<compile_context>
chip_gen: v6e
topology: v6e:2x2x1
jax: 0.10.0
libtpu: 0.0.40
codegen_flags: <defaults>
</compile_context>

<pallas_src>
import functools

import numpy as np

import jax
import jax.numpy as jnp
from jax import lax
from jax.experimental import pallas as pl
from jax.experimental.pallas import tpu as pltpu

_EPS = 1e-5
_TINY_CIN = 16          # below this, use the single K=9*Cin im2col matmul


# ---------------------------------------------------------------------------
# Generation-aware budgets (v5e/v6e: 128 MiB VMEM, v7x: 64 MiB).
# ---------------------------------------------------------------------------
def _tpu_budgets():
    vmem = 64 << 20
    try:
        info = pltpu.get_tpu_info()
        vmem = int(getattr(info, "vmem_capacity_bytes", vmem))
    except Exception:
        pass
    if vmem >= (96 << 20):                       # v5e / v6e (128 MiB VMEM)
        return {"tile_budget": 24 << 20, "stats_budget": 16 << 20,
                "vmem_clamp": 80 << 20}
    return {"tile_budget": 8 << 20, "stats_budget": 6 << 20,     # v7x (64 MiB)
            "vmem_clamp": 40 << 20}


def _vmem_limit(est_bytes, clamp):
    return int(min(clamp, max(16 << 20, 2 * est_bytes)))


def _round8(v):
    return v + (-v) % 8


def _conv_tile_bytes(th, W, cin, cout, itm):
    wp = _round8(W + 2)
    return (2 * th * W * cin * 4             # double-buffered input block (worst case f32)
            + 4 * th * W * cout * 4          # double-buffered output block + f32 acc temps
            + (th + 2) * wp * cin * itm      # padded-window scratch
            + 4 * W * cin * 4                # halo rows
            + (th * W * 9 * cin * itm if cin < _TINY_CIN else 0))


def _pick_row_tile(H, W, cin, cout, itm, budget, min_blocks=1):
    """Largest multiple-of-8 divisor of H whose working set fits the budget."""
    cands = [t for t in range(8, H + 1, 8) if H % t == 0]
    if not cands:
        return H                              # TODO(synk): ragged H needs padding
    if min_blocks > 1:
        narrowed = [t for t in cands if H // t >= min_blocks]
        if narrowed:
            cands = narrowed
    fitting = [t for t in cands if _conv_tile_bytes(t, W, cin, cout, itm) <= budget]
    return max(fitting) if fitting else min(cands)


def _pick_stats_tile(H, W, C, budget, min_blocks=1):
    cands = [t for t in range(8, H + 1, 8) if H % t == 0]
    if not cands:
        return H
    if min_blocks > 1:
        narrowed = [t for t in cands if H // t >= min_blocks]
        if narrowed:
            cands = narrowed
    fitting = [t for t in cands if 2 * t * W * C * 4 <= budget]
    return max(fitting) if fitting else min(cands)


# ---------------------------------------------------------------------------
# Kernel 1: tiled per-channel partial sums (batch statistics for the 1st BN).
# ---------------------------------------------------------------------------
def _channel_stats_kernel(x_ref, st_ref):
    _, TH, W, C = x_ref.shape
    v = x_ref[...].astype(jnp.float32).reshape(TH * W, C)
    st_ref[:, :, 0:1, :] = jnp.sum(v, axis=0, keepdims=True).reshape(1, 1, 1, C)
    st_ref[:, :, 1:2, :] = jnp.sum(v * v, axis=0, keepdims=True).reshape(1, 1, 1, C)


def channel_stats_pallas(x, row_tile, vmem_clamp):
    N, H, W, C = x.shape
    nblk = H // row_tile
    est = 2 * row_tile * W * C * jnp.dtype(x.dtype).itemsize + 4 * 2 * C * 4
    return pl.pallas_call(
        _channel_stats_kernel,
        out_shape=jax.ShapeDtypeStruct((N, nblk, 2, C), jnp.float32),
        grid_spec=pltpu.PrefetchScalarGridSpec(
            num_scalar_prefetch=0,
            grid=(N, nblk),
            in_specs=[pl.BlockSpec((1, row_tile, W, C),
                                   lambda n, i: (n, i, 0, 0))],
            out_specs=pl.BlockSpec((1, 1, 2, C), lambda n, i: (n, i, 0, 0)),
        ),
        compiler_params=pltpu.CompilerParams(
            dimension_semantics=("parallel", "parallel"),
            vmem_limit_bytes=_vmem_limit(est, vmem_clamp),
        ),
    )(x)


# ---------------------------------------------------------------------------
# Kernel 2: fused BN(scale/shift) -> ReLU -> Conv3x3(pad=1) on a row block,
# optionally emitting per-tile partial sums of its own output (stats for the
# *next* BatchNorm).
# ---------------------------------------------------------------------------
def _bn_relu_conv_kernel(x_ref, hal_ref, sc_ref, sh_ref, w_ref, b_ref, *refs,
                         emit_stats, compute_dtype):
    refs = list(refs)
    o_ref = refs.pop(0)
    st_ref = refs.pop(0) if emit_stats else None
    win_ref = refs.pop(0)
    pat_ref = refs.pop(0) if refs else None      # present only for tiny Cin

    f32 = jnp.float32
    cdt = compute_dtype
    _, TH, W, Cin = x_ref.shape
    Cout = w_ref.shape[-1]
    i = pl.program_id(1)
    nblk = pl.num_programs(1)

    scale = sc_ref[...]                          # (1, Cin) f32
    shift = sh_ref[...]                          # (1, Cin) f32

    def bn_relu(v):                              # (..., Cin) f32 -> f32
        return jnp.maximum(v * scale + shift, 0.0)

    # Zero only the two 1-element halo *columns* of the persistent window
    # scratch; interior + halo rows are fully overwritten every step, and the
    # sublane-alignment padding columns (>= W+2) are never read.
    zcol = jnp.zeros((TH + 2, 1, Cin), cdt)
    win_ref[:, 0:1, :] = zcol
    win_ref[:, W + 1:W + 2, :] = zcol

    # BN -> ReLU in f32, cast ONCE into the compute_dtype window (rows 1..TH).
    a = bn_relu(x_ref[...].astype(f32).reshape(TH * W, Cin))
    win_ref[1:TH + 1, 1:W + 1, :] = a.reshape(TH, W, Cin).astype(cdt)

    # Halo rows (neighbouring image rows).  Rows outside the image must be
    # *post-activation* zeros (Conv2d pads after BN+ReLU), so mask at borders.
    h = hal_ref[...].astype(f32).reshape(2, W, Cin)
    top = bn_relu(h[0]) * (i > 0).astype(f32)
    bot = bn_relu(h[1]) * (i < nblk - 1).astype(f32)
    win_ref[0:1, 1:W + 1, :] = top.reshape(1, W, Cin).astype(cdt)
    win_ref[TH + 1:TH + 2, 1:W + 1, :] = bot.reshape(1, W, Cin).astype(cdt)

    # 3x3 conv.
    if pat_ref is not None:
        # Tiny Cin: a K=Cin matmul wastes almost the whole MXU K dimension, so
        # materialize a small 2D (TH*W, 9*Cin) im2col patch and do one matmul.
        for t in range(9):
            dy, dx = divmod(t, 3)
            pat_ref[:, t * Cin:(t + 1) * Cin] = (
                win_ref[dy:dy + TH, dx:dx + W, :].reshape(TH * W, Cin))
        acc = jnp.dot(pat_ref[...], w_ref[...], preferred_element_type=f32)
    else:
        # General case: accumulate 9 tap matmuls directly from shifted window
        # views -- no materialized im2col scratch and no 9x write/re-read
        # VMEM traffic; accumulation stays in f32.
        acc = jnp.zeros((TH * W, Cout), f32)
        for t in range(9):
            dy, dx = divmod(t, 3)
            tap = win_ref[dy:dy + TH, dx:dx + W, :].reshape(TH * W, Cin)
            acc = acc + jnp.dot(tap, w_ref[t * Cin:(t + 1) * Cin, :],
                                preferred_element_type=f32)
    acc = acc + b_ref[...]                       # conv bias (f32)

    if emit_stats:
        # Partial batch stats of the f32 conv output (before any bf16 store):
        # feeds the next BatchNorm without an extra pass over HBM.
        s = jnp.sum(acc, axis=0, keepdims=True)       # (1, Cout)
        ss = jnp.sum(acc * acc, axis=0, keepdims=True)
        st_ref[:, :, 0:1, :] = s.reshape(1, 1, 1, Cout)
        st_ref[:, :, 1:2, :] = ss.reshape(1, 1, 1, Cout)

    # TODO(synk): lane-dense (1, TH, W*Cout) store for Cout < 128 (see header).
    o_ref[...] = acc.reshape(1, TH, W, Cout).astype(o_ref.dtype)


def bn_relu_conv_pallas(x, halos, scale, shift, w2d, bias, *, row_tile,
                        emit_stats, compute_dtype, out_dtype, vmem_clamp):
    """Fused BatchNorm(scale/shift) -> ReLU -> Conv2d(3x3, padding=1).

    x:      (N, H, W, Cin)       NHWC activations
    halos:  (N, 2*nblk, W, Cin)  rows just above/below each row block
    scale:  (1, Cin)             gamma * rsqrt(var + eps)        (f32)
    shift:  (1, Cin)             beta - mean * scale             (f32)
    w2d:    (9*Cin, Cout)        conv weight, im2col layout (dy, dx, cin)
    bias:   (1, Cout)            conv bias (f32)
    """
    N, H, W, Cin = x.shape
    Cout = w2d.shape[1]
    TH = row_tile
    nblk = H // TH
    WP = _round8(W + 2)                    # sublane-align the padded window
    tiny = Cin < _TINY_CIN

    kernel = functools.partial(_bn_relu_conv_kernel,
                               emit_stats=emit_stats,
                               compute_dtype=compute_dtype)

    in_specs = [
        pl.BlockSpec((1, TH, W, Cin), lambda n, i: (n, i, 0, 0)),
        pl.BlockSpec((1, 2, W, Cin), lambda n, i: (n, i, 0, 0)),
        pl.BlockSpec((1, Cin), lambda n, i: (0, 0)),
        pl.BlockSpec((1, Cin), lambda n, i: (0, 0)),
        pl.BlockSpec((9 * Cin, Cout), lambda n, i: (0, 0)),
        pl.BlockSpec((1, Cout), lambda n, i: (0, 0)),
    ]

    out_shape = jax.ShapeDtypeStruct((N, H, W, Cout), out_dtype)
    out_spec = pl.BlockSpec((1, TH, W, Cout), lambda n, i: (n, i, 0, 0))
    if emit_stats:
        out_shape = (out_shape,
                     jax.ShapeDtypeStruct((N, nblk, 2, Cout), jnp.float32))
        out_spec = (out_spec,
                    pl.BlockSpec((1, 1, 2, Cout), lambda n, i: (n, i, 0, 0)))

    scratch = [pltpu.VMEM((TH + 2, WP, Cin), compute_dtype)]   # padded window
    if tiny:
        scratch.append(pltpu.VMEM((TH * W, 9 * Cin), compute_dtype))

    itm = jnp.dtype(compute_dtype).itemsize
    xb = jnp.dtype(x.dtype).itemsize
    ob = jnp.dtype(out_dtype).itemsize
    est = (2 * TH * W * Cin * xb               # double-buffered input block
           + 2 * TH * W * Cout * ob            # double-buffered output block
           + 2 * 2 * W * Cin * xb              # halo rows
           + 2 * 9 * Cin * Cout * itm          # weights (double-buffered)
           + 2 * (2 * Cin + 3 * Cout) * 4      # scale / shift / bias / stats
           + (TH + 2) * WP * Cin * itm         # window scratch
           + 2 * TH * W * Cout * 4             # f32 accumulator / matmul temps
           + (TH * W * 9 * Cin * itm if tiny else 0))

    return pl.pallas_call(
        kernel,
        out_shape=out_shape,
        grid_spec=pltpu.PrefetchScalarGridSpec(
            num_scalar_prefetch=0,
            grid=(N, nblk),
            in_specs=in_specs,
            out_specs=out_spec,
            scratch_shapes=scratch,
        ),
        compiler_params=pltpu.CompilerParams(
            dimension_semantics=("parallel", "parallel"),
            vmem_limit_bytes=_vmem_limit(est, vmem_clamp),
        ),
    )(x, halos, scale, shift, w2d, bias)


# ---------------------------------------------------------------------------
# JAX glue: fold partial stats into BN scale/shift, build halo rows.
# ---------------------------------------------------------------------------
def _bn_scale_shift(partials, count, gamma, beta, eps=_EPS):
    s = partials[:, :, 0, :].sum(axis=(0, 1))
    ss = partials[:, :, 1, :].sum(axis=(0, 1))
    mean = s / count
    # Single-pass variance can go slightly negative from f32 cancellation.
    var = jnp.maximum(ss / count - mean * mean, 0.0)
    scale = gamma * lax.rsqrt(var + eps)
    shift = beta - mean * scale
    return scale.reshape(1, -1), shift.reshape(1, -1)


def _row_halos(x, row_tile):
    """Rows just above / below each row block: (N, 2*nblk, W, C)."""
    N, H, W, C = x.shape
    nblk = H // row_tile
    starts = np.arange(nblk) * row_tile
    top = x[:, np.clip(starts - 1, 0, H - 1)]          # masked in-kernel (i==0)
    bot = x[:, np.clip(starts + row_tile, 0, H - 1)]   # masked in-kernel (last)
    return jnp.stack([top, bot], axis=2).reshape(N, 2 * nblk, W, C)


# ---------------------------------------------------------------------------
# DoubleConv forward (NCHW in / NCHW out, like the PyTorch module).
# ---------------------------------------------------------------------------
def double_conv_forward(x_nchw, params, *, compute_dtype=jnp.float32,
                        row_tile=None):
    x = jnp.transpose(x_nchw, (0, 2, 3, 1)).astype(jnp.float32)   # -> NHWC
    N, H, W, Cin = x.shape
    w1, w2 = params["w1"], params["w2"]
    Cmid, Cout = w1.shape[-1], w2.shape[-1]
    assert w1.shape == (3, 3, Cin, Cmid) and w2.shape == (3, 3, Cmid, Cout)

    budgets = _tpu_budgets()
    itm = jnp.dtype(compute_dtype).itemsize
    min_blocks = 2 if N == 1 else 1        # keep >= 2 parallel steps (v7x 2 TCs)
    if row_tile is None:
        row_tile = _pick_row_tile(H, W, max(Cin, Cmid), max(Cmid, Cout), itm,
                                  budget=budgets["tile_budget"],
                                  min_blocks=min_blocks)
    assert H % row_tile == 0               # TODO(synk): ragged H (odd UNet levels)
    count = float(N * H * W)

    # im2col weight layout (dy, dx, cin) x cout.  (PyTorch OIHW weights map
    # here via w.transpose(2, 3, 1, 0).)
    w1r = w1.reshape(9 * Cin, Cmid).astype(compute_dtype)
    w2r = w2.reshape(9 * Cmid, Cout).astype(compute_dtype)
    cb1 = params["cb1"].reshape(1, Cmid).astype(jnp.float32)
    cb2 = params["cb2"].reshape(1, Cout).astype(jnp.float32)
    inter_dtype = compute_dtype            # y stored bf16 on the bf16 path

    # ---- stage 0: BN1 batch stats (own, larger tile: pure HBM-read pass) ----
    stats_tile = _pick_stats_tile(H, W, Cin, budgets["stats_budget"],
                                  min_blocks=min_blocks)
    st1 = channel_stats_pallas(x, stats_tile, budgets["vmem_clamp"])
    sc1, sh1 = _bn_scale_shift(st1, count, params["g1"], params["b1"])

    # ---- stage 1: BN1 -> ReLU -> Conv1 (+ BN2 partial stats by-product) ----
    y, st2 = bn_relu_conv_pallas(
        x, _row_halos(x, row_tile), sc1, sh1, w1r, cb1,
        row_tile=row_tile, emit_stats=True, compute_dtype=compute_dtype,
        out_dtype=inter_dtype, vmem_clamp=budgets["vmem_clamp"])

    # ---- stage 2: BN2 -> ReLU -> Conv2 ----
    sc2, sh2 = _bn_scale_shift(st2, count, params["g2"], params["b2"])
    out = bn_relu_conv_pallas(
        y, _row_halos(y, row_tile), sc2, sh2, w2r, cb2,
        row_tile=row_tile, emit_stats=False, compute_dtype=compute_dtype,
        out_dtype=jnp.float32, vmem_clamp=budgets["vmem_clamp"])

    return jnp.transpose(out, (0, 3, 1, 2))                       # -> NCHW


# ---------------------------------------------------------------------------
# Deterministic parameter init (shapes of DoubleConv(in_channels, out_channels))
# ---------------------------------------------------------------------------
def init_params(key, in_ch, out_ch):
    ks = jax.random.split(key, 8)
    n = lambda k, s, sc=0.1: sc * jax.random.normal(k, s, jnp.float32)
    return dict(
        g1=1.0 + n(ks[0], (in_ch,)),          # BN1 gamma
        b1=n(ks[1], (in_ch,)),                # BN1 beta
        w1=n(ks[2], (3, 3, in_ch, out_ch)),   # conv1 weight (HWIO)
        cb1=n(ks[3], (out_ch,)),              # conv1 bias
        g2=1.0 + n(ks[4], (out_ch,)),         # BN2 gamma
        b2=n(ks[5], (out_ch,)),               # BN2 beta
        w2=n(ks[6], (3, 3, out_ch, out_ch)),  # conv2 weight (HWIO)
        cb2=n(ks[7], (out_ch,)),              # conv2 bias
    )


# ---------------------------------------------------------------------------
# Pure-JAX reference (correctness check)
# ---------------------------------------------------------------------------
def double_conv_ref(x_nhwc, p):
    def bn(v, g, b):
        m = jnp.mean(v, axis=(0, 1, 2), keepdims=True)
        var = jnp.mean((v - m) ** 2, axis=(0, 1, 2), keepdims=True)
        return ((v - m) * lax.rsqrt(var + _EPS) * g.reshape(1, 1, 1, -1)
                + b.reshape(1, 1, 1, -1))

    dn = ("NHWC", "HWIO", "NHWC")
    a = jnp.maximum(bn(x_nhwc, p["g1"], p["b1"]), 0.0)
    y = lax.conv_general_dilated(a, p["w1"], (1, 1), "SAME",
                                 dimension_numbers=dn) + p["cb1"].reshape(1, 1, 1, -1)
    a2 = jnp.maximum(bn(y, p["g2"], p["b2"]), 0.0)
    return lax.conv_general_dilated(a2, p["w2"], (1, 1), "SAME",
                                    dimension_numbers=dn) + p["cb2"].reshape(1, 1, 1, -1)


if __name__ == "__main__":
    key = jax.random.PRNGKey(0)
    kx, kp, kx2, kp2 = jax.random.split(key, 4)

    # Test 1: DoubleConv(4, 8), (N, C, H, W) = (2, 4, 16, 16).
    # Exercises the tiny-Cin (single im2col matmul) path.
    N, Cin, Cout, H, W = 2, 4, 8, 16, 16
    x = jax.random.normal(kx, (N, Cin, H, W), jnp.float32)    # NCHW, PyTorch-like
    params = init_params(kp, Cin, Cout)

    fwd_f32 = jax.jit(double_conv_forward)
    out = jax.block_until_ready(fwd_f32(x, params))
    assert out.shape == (N, Cout, H, W), out.shape

    ref = jnp.transpose(double_conv_ref(jnp.transpose(x, (0, 2, 3, 1)), params),
                        (0, 3, 1, 2))
    err = float(jnp.max(jnp.abs(out - ref)))
    assert jnp.allclose(out, ref, atol=1e-4, rtol=1e-4), err

    # Forced small row tile -> grid (2, 2): exercises the halo path.
    fwd_t8 = jax.jit(functools.partial(double_conv_forward, row_tile=8))
    out8 = jax.block_until_ready(fwd_t8(x, params))
    err8 = float(jnp.max(jnp.abs(out8 - ref)))
    assert jnp.allclose(out8, ref, atol=1e-4, rtol=1e-4), err8

    # Test 2: DoubleConv(32, 32), N=1, 16x16.  Exercises the accumulating
    # tap-matmul path (Cin >= 16) and the ">=2 row blocks when N==1" rule.
    x2 = jax.random.normal(kx2, (1, 32, 16, 16), jnp.float32)
    params2 = init_params(kp2, 32, 32)
    out2 = jax.block_until_ready(fwd_f32(x2, params2))
    ref2 = jnp.transpose(double_conv_ref(jnp.transpose(x2, (0, 2, 3, 1)), params2),
                         (0, 3, 1, 2))
    err2 = float(jnp.max(jnp.abs(out2 - ref2)))
    assert jnp.allclose(out2, ref2, atol=1e-4, rtol=1e-4), err2

    # bf16 fast path (bf16 weights / window / intermediate, f32 accumulation):
    # recommended on all generations, checked with a loose tolerance.
    fwd_bf16 = jax.jit(functools.partial(double_conv_forward,
                                         compute_dtype=jnp.bfloat16))
    out_bf = jax.block_until_ready(fwd_bf16(x, params))
    err_bf = float(jnp.max(jnp.abs(out_bf - ref)))
    assert jnp.allclose(out_bf, ref, atol=0.2, rtol=0.1), err_bf

    print("KERNEL_OK")
</pallas_src>

<mosaic_0001>
module attributes {stable_mosaic.version = 11 : i64} {
  func.func @_channel_stats_kernel(%arg0: i32, %arg1: i32, %arg2: memref<1x16x16x4xf32, #tpu.memory_space<vmem>>, %arg3: memref<1x1x2x4xf32, #tpu.memory_space<vmem>>) attributes {dimension_semantics = [#tpu.dimension_semantics<parallel>, #tpu.dimension_semantics<parallel>], iteration_bounds = array<i64: 2, 1>, scalar_prefetch = 0 : i64, scratch_operands = 0 : i64, tpu.core_type = #tpu.core_type<tc>, window_params = [{transform_indices = @transform_0, window_bounds = array<i64: 1, 16, 16, 4>}, {transform_indices = @transform_1, window_bounds = array<i64: 1, 1, 2, 4>}]} {
    %c0 = arith.constant 0 : index
    %c0_0 = arith.constant 0 : index
    %c0_1 = arith.constant 0 : index
    %c0_2 = arith.constant 0 : index
    %0 = vector.load %arg2[%c0, %c0_0, %c0_1, %c0_2] : memref<1x16x16x4xf32, #tpu.memory_space<vmem>>, vector<1x16x16x4xf32>
    %1 = vector.shape_cast %0 : vector<1x16x16x4xf32> to vector<256x4xf32>
    %cst = arith.constant dense<0.000000e+00> : vector<4xf32>
    %2 = vector.multi_reduction <add>, %1, %cst [0] : vector<256x4xf32> to vector<4xf32>
    %3 = vector.shape_cast %2 : vector<4xf32> to vector<1x4xf32>
    %4 = vector.shape_cast %3 : vector<1x4xf32> to vector<1x1x1x4xf32>
    %c0_3 = arith.constant 0 : index
    %c0_4 = arith.constant 0 : index
    %c0_5 = arith.constant 0 : index
    %c0_6 = arith.constant 0 : index
    %5 = vector.load %arg3[%c0_3, %c0_4, %c0_5, %c0_6] : memref<1x1x2x4xf32, #tpu.memory_space<vmem>>, vector<1x1x1x4xf32>
    tpu.vector_store %arg3[%c0_3, %c0_4, %c0_5, %c0_6], %4 {strides = array<i32>} : memref<1x1x2x4xf32, #tpu.memory_space<vmem>>, vector<1x1x1x4xf32>,
    %6 = arith.mulf %1, %1 : vector<256x4xf32>
    %cst_7 = arith.constant dense<0.000000e+00> : vector<4xf32>
    %7 = vector.multi_reduction <add>, %6, %cst_7 [0] : vector<256x4xf32> to vector<4xf32>
    %8 = vector.shape_cast %7 : vector<4xf32> to vector<1x4xf32>
    %9 = vector.shape_cast %8 : vector<1x4xf32> to vector<1x1x1x4xf32>
    %c0_8 = arith.constant 0 : index
    %c0_9 = arith.constant 0 : index
    %c1 = arith.constant 1 : index
    %c0_10 = arith.constant 0 : index
    %10 = vector.load %arg3[%c0_8, %c0_9, %c1, %c0_10] : memref<1x1x2x4xf32, #tpu.memory_space<vmem>>, vector<1x1x1x4xf32>
    tpu.vector_store %arg3[%c0_8, %c0_9, %c1, %c0_10], %9 {strides = array<i32>} : memref<1x1x2x4xf32, #tpu.memory_space<vmem>>, vector<1x1x1x4xf32>,
    return
  }
  func.func @transform_0(%arg0: i32, %arg1: i32) -> (i32, i32, i32, i32) {
    %c0_i32 = arith.constant 0 : i32
    %c0_i32_0 = arith.constant 0 : i32
    %c0_i32_1 = arith.constant 0 : i32
    return %arg0, %arg1, %c0_i32, %c0_i32_0 : i32, i32, i32, i32
  }
  func.func @transform_1(%arg0: i32, %arg1: i32) -> (i32, i32, i32, i32) {
    %c0_i32 = arith.constant 0 : i32
    %c0_i32_0 = arith.constant 0 : i32
    %c0_i32_1 = arith.constant 0 : i32
    return %arg0, %arg1, %c0_i32, %c0_i32_0 : i32, i32, i32, i32
  }
}

module attributes {stable_mosaic.version = 11 : i64} {
  func.func @_bn_relu_conv_kernel(%arg0: i32, %arg1: i32, %arg2: memref<1x16x16x4xf32, #tpu.memory_space<vmem>>, %arg3: memref<1x2x16x4xf32, #tpu.memory_space<vmem>>, %arg4: memref<1x4xf32, #tpu.memory_space<vmem>>, %arg5: memref<1x4xf32, #tpu.memory_space<vmem>>, %arg6: memref<36x8xf32, #tpu.memory_space<vmem>>, %arg7: memref<1x8xf32, #tpu.memory_space<vmem>>, %arg8: memref<1x16x16x8xf32, #tpu.memory_space<vmem>>, %arg9: memref<1x1x2x8xf32, #tpu.memory_space<vmem>>, %arg10: memref<18x24x4xf32, #tpu.memory_space<vmem>>, %arg11: memref<256x36xf32, #tpu.memory_space<vmem>>) attributes {dimension_semantics = [#tpu.dimension_semantics<parallel>, #tpu.dimension_semantics<parallel>], iteration_bounds = array<i64: 2, 1>, scalar_prefetch = 0 : i64, scratch_operands = 2 : i64, tpu.core_type = #tpu.core_type<tc>, window_params = [{transform_indices = @transform_0, window_bounds = array<i64: 1, 16, 16, 4>}, {transform_indices = @transform_1, window_bounds = array<i64: 1, 2, 16, 4>}, {pipeline_mode = #tpu.pipeline_mode<synchronous>, transform_indices = @transform_2, window_bounds = array<i64: 1, 4>}, {pipeline_mode = #tpu.pipeline_mode<synchronous>, transform_indices = @transform_3, window_bounds = array<i64: 1, 4>}, {pipeline_mode = #tpu.pipeline_mode<synchronous>, transform_indices = @transform_4, window_bounds = array<i64: 36, 8>}, {pipeline_mode = #tpu.pipeline_mode<synchronous>, transform_indices = @transform_5, window_bounds = array<i64: 1, 8>}, {transform_indices = @transform_6, window_bounds = array<i64: 1, 16, 16, 8>}, {transform_indices = @transform_7, window_bounds = array<i64: 1, 1, 2, 8>}]} {
    %c0 = arith.constant 0 : index
    %c0_0 = arith.constant 0 : index
    %0 = vector.load %arg4[%c0, %c0_0] : memref<1x4xf32, #tpu.memory_space<vmem>>, vector<1x4xf32>
    %c0_1 = arith.constant 0 : index
    %c0_2 = arith.constant 0 : index
    %1 = vector.load %arg5[%c0_1, %c0_2] : memref<1x4xf32, #tpu.memory_space<vmem>>, vector<1x4xf32>
    %cst = arith.constant 0.000000e+00 : f32
    %2 = vector.broadcast %cst : f32 to vector<18x1x4xf32>
    %c0_3 = arith.constant 0 : index
    %c0_4 = arith.constant 0 : index
    %c0_5 = arith.constant 0 : index
    %3 = vector.load %arg10[%c0_3, %c0_4, %c0_5] : memref<18x24x4xf32, #tpu.memory_space<vmem>>, vector<18x1x4xf32>
    tpu.vector_store %arg10[%c0_3, %c0_4, %c0_5], %2 {strides = array<i32>} : memref<18x24x4xf32, #tpu.memory_space<vmem>>, vector<18x1x4xf32>,
    %c0_6 = arith.constant 0 : index
    %c17 = arith.constant 17 : index
    %c0_7 = arith.constant 0 : index
    %4 = vector.load %arg10[%c0_6, %c17, %c0_7] : memref<18x24x4xf32, #tpu.memory_space<vmem>>, vector<18x1x4xf32>
    tpu.vector_store %arg10[%c0_6, %c17, %c0_7], %2 {strides = array<i32>} : memref<18x24x4xf32, #tpu.memory_space<vmem>>, vector<18x1x4xf32>,
    %c0_8 = arith.constant 0 : index
    %c0_9 = arith.constant 0 : index
    %c0_10 = arith.constant 0 : index
    %c0_11 = arith.constant 0 : index
    %5 = vector.load %arg2[%c0_8, %c0_9, %c0_10, %c0_11] : memref<1x16x16x4xf32, #tpu.memory_space<vmem>>, vector<1x16x16x4xf32>
    %6 = vector.shape_cast %5 : vector<1x16x16x4xf32> to vector<256x4xf32>
    %7 = vector.broadcast %0 : vector<1x4xf32> to vector<256x4xf32>
    %8 = arith.mulf %6, %7 : vector<256x4xf32>
    %9 = vector.broadcast %1 : vector<1x4xf32> to vector<256x4xf32>
    %10 = arith.addf %8, %9 : vector<256x4xf32>
    %cst_12 = arith.constant 0.000000e+00 : f32
    %11 = vector.broadcast %cst_12 : f32 to vector<256x4xf32>
    %12 = arith.maximumf %10, %11 : vector<256x4xf32>
    %13 = vector.shape_cast %12 : vector<256x4xf32> to vector<16x16x4xf32>
    %c1 = arith.constant 1 : index
    %c1_13 = arith.constant 1 : index
    %c0_14 = arith.constant 0 : index
    %14 = vector.load %arg10[%c1, %c1_13, %c0_14] : memref<18x24x4xf32, #tpu.memory_space<vmem>>, vector<16x16x4xf32>
    tpu.vector_store %arg10[%c1, %c1_13, %c0_14], %13 {strides = array<i32>} : memref<18x24x4xf32, #tpu.memory_space<vmem>>, vector<16x16x4xf32>,
    %c0_15 = arith.constant 0 : index
    %c0_16 = arith.constant 0 : index
    %c0_17 = arith.constant 0 : index
    %c0_18 = arith.constant 0 : index
    %15 = vector.load %arg3[%c0_15, %c0_16, %c0_17, %c0_18] : memref<1x2x16x4xf32, #tpu.memory_space<vmem>>, vector<1x2x16x4xf32>
    %16 = vector.shape_cast %15 : vector<1x2x16x4xf32> to vector<2x16x4xf32>
    %17 = vector.extract_strided_slice %16 {offsets = [0, 0, 0], sizes = [1, 16, 4], strides = [1, 1, 1]} : vector<2x16x4xf32> to vector<1x16x4xf32>
    %18 = vector.shape_cast %17 : vector<1x16x4xf32> to vector<16x4xf32>
    %19 = vector.broadcast %0 : vector<1x4xf32> to vector<16x4xf32>
    %20 = arith.mulf %18, %19 : vector<16x4xf32>
    %21 = vector.broadcast %1 : vector<1x4xf32> to vector<16x4xf32>
    %22 = arith.addf %20, %21 : vector<16x4xf32>
    %cst_19 = arith.constant 0.000000e+00 : f32
    %23 = vector.broadcast %cst_19 : f32 to vector<16x4xf32>
    %24 = arith.maximumf %22, %23 : vector<16x4xf32>
    %c0_i32 = arith.constant 0 : i32
    %25 = arith.cmpi sgt, %arg1, %c0_i32 : i32
    %26 = arith.extui %25 : i1 to i32
    %27 = arith.sitofp %26 : i32 to f32
    %28 = vector.broadcast %27 : f32 to vector<16x4xf32>
    %29 = arith.mulf %24, %28 : vector<16x4xf32>
    %30 = vector.extract_strided_slice %16 {offsets = [1, 0, 0], sizes = [1, 16, 4], strides = [1, 1, 1]} : vector<2x16x4xf32> to vector<1x16x4xf32>
    %31 = vector.shape_cast %30 : vector<1x16x4xf32> to vector<16x4xf32>
    %32 = vector.broadcast %0 : vector<1x4xf32> to vector<16x4xf32>
    %33 = arith.mulf %31, %32 : vector<16x4xf32>
    %34 = vector.broadcast %1 : vector<1x4xf32> to vector<16x4xf32>
    %35 = arith.addf %33, %34 : vector<16x4xf32>
    %cst_20 = arith.constant 0.000000e+00 : f32
    %36 = vector.broadcast %cst_20 : f32 to vector<16x4xf32>
    %37 = arith.maximumf %35, %36 : vector<16x4xf32>
    %c0_i32_21 = arith.constant 0 : i32
    %38 = arith.cmpi slt, %arg1, %c0_i32_21 : i32
    %39 = arith.extui %38 : i1 to i32
    %40 = arith.sitofp %39 : i32 to f32
    %41 = vector.broadcast %40 : f32 to vector<16x4xf32>
    %42 = arith.mulf %37, %41 : vector<16x4xf32>
    %43 = vector.shape_cast %29 : vector<16x4xf32> to vector<1x16x4xf32>
    %c0_22 = arith.constant 0 : index
    %c1_23 = arith.constant 1 : index
    %c0_24 = arith.constant 0 : index
    %44 = vector.load %arg10[%c0_22, %c1_23, %c0_24] : memref<18x24x4xf32, #tpu.memory_space<vmem>>, vector<1x16x4xf32>
    tpu.vector_store %arg10[%c0_22, %c1_23, %c0_24], %43 {strides = array<i32>} : memref<18x24x4xf32, #tpu.memory_space<vmem>>, vector<1x16x4xf32>,
    %45 = vector.shape_cast %42 : vector<16x4xf32> to vector<1x16x4xf32>
    %c17_25 = arith.constant 17 : index
    %c1_26 = arith.constant 1 : index
    %c0_27 = arith.constant 0 : index
    %46 = vector.load %arg10[%c17_25, %c1_26, %c0_27] : memref<18x24x4xf32, #tpu.memory_space<vmem>>, vector<1x16x4xf32>
    tpu.vector_store %arg10[%c17_25, %c1_26, %c0_27], %45 {strides = array<i32>} : memref<18x24x4xf32, #tpu.memory_space<vmem>>, vector<1x16x4xf32>,
    %c0_28 = arith.constant 0 : index
    %c0_29 = arith.constant 0 : index
    %c0_30 = arith.constant 0 : index
    %47 = vector.load %arg10[%c0_28, %c0_29, %c0_30] : memref<18x24x4xf32, #tpu.memory_space<vmem>>, vector<16x16x4xf32>
    %48 = vector.shape_cast %47 : vector<16x16x4xf32> to vector<256x4xf32>
    %c0_31 = arith.constant 0 : index
    %c0_32 = arith.constant 0 : index
    %49 = vector.load %arg11[%c0_31, %c0_32] : memref<256x36xf32, #tpu.memory_space<vmem>>, vector<256x4xf32>
    tpu.vector_store %arg11[%c0_31, %c0_32], %48 {strides = array<i32>} : memref<256x36xf32, #tpu.memory_space<vmem>>, vector<256x4xf32>,
    %c0_33 = arith.constant 0 : index
    %c1_34 = arith.constant 1 : index
    %c0_35 = arith.constant 0 : index
    %50 = vector.load %arg10[%c0_33, %c1_34, %c0_35] : memref<18x24x4xf32, #tpu.memory_space<vmem>>, vector<16x16x4xf32>
    %51 = vector.shape_cast %50 : vector<16x16x4xf32> to vector<256x4xf32>
    %c0_36 = arith.constant 0 : index
    %c4 = arith.constant 4 : index
    %52 = vector.load %arg11[%c0_36, %c4] : memref<256x36xf32, #tpu.memory_space<vmem>>, vector<256x4xf32>
    tpu.vector_store %arg11[%c0_36, %c4], %51 {strides = array<i32>} : memref<256x36xf32, #tpu.memory_space<vmem>>, vector<256x4xf32>,
    %c0_37 = arith.constant 0 : index
    %c2 = arith.constant 2 : index
    %c0_38 = arith.constant 0 : index
    %53 = vector.load %arg10[%c0_37, %c2, %c0_38] : memref<18x24x4xf32, #tpu.memory_space<vmem>>, vector<16x16x4xf32>
    %54 = vector.shape_cast %53 : vector<16x16x4xf32> to vector<256x4xf32>
    %c0_39 = arith.constant 0 : index
    %c8 = arith.constant 8 : index
    %55 = vector.load %arg11[%c0_39, %c8] : memref<256x36xf32, #tpu.memory_space<vmem>>, vector<256x4xf32>
    tpu.vector_store %arg11[%c0_39, %c8], %54 {strides = array<i32>} : memref<256x36xf32, #tpu.memory_space<vmem>>, vector<256x4xf32>,
    %c1_40 = arith.constant 1 : index
    %c0_41 = arith.constant 0 : index
    %c0_42 = arith.constant 0 : index
    %56 = vector.load %arg10[%c1_40, %c0_41, %c0_42] : memref<18x24x4xf32, #tpu.memory_space<vmem>>, vector<16x16x4xf32>
    %57 = vector.shape_cast %56 : vector<16x16x4xf32> to vector<256x4xf32>
    %c0_43 = arith.constant 0 : index
    %c12 = arith.constant 12 : index
    %58 = vector.load %arg11[%c0_43, %c12] : memref<256x36xf32, #tpu.memory_space<vmem>>, vector<256x4xf32>
    tpu.vector_store %arg11[%c0_43, %c12], %57 {strides = array<i32>} : memref<256x36xf32, #tpu.memory_space<vmem>>, vector<256x4xf32>,
    %c1_44 = arith.constant 1 : index
    %c1_45 = arith.constant 1 : index
    %c0_46 = arith.constant 0 : index
    %59 = vector.load %arg10[%c1_44, %c1_45, %c0_46] : memref<18x24x4xf32, #tpu.memory_space<vmem>>, vector<16x16x4xf32>
    %60 = vector.shape_cast %59 : vector<16x16x4xf32> to vector<256x4xf32>
    %c0_47 = arith.constant 0 : index
    %c16 = arith.constant 16 : index
    %61 = vector.load %arg11[%c0_47, %c16] : memref<256x36xf32, #tpu.memory_space<vmem>>, vector<256x4xf32>
    tpu.vector_store %arg11[%c0_47, %c16], %60 {strides = array<i32>} : memref<256x36xf32, #tpu.memory_space<vmem>>, vector<256x4xf32>,
    %c1_48 = arith.constant 1 : index
    %c2_49 = arith.constant 2 : index
    %c0_50 = arith.constant 0 : index
    %62 = vector.load %arg10[%c1_48, %c2_49, %c0_50] : memref<18x24x4xf32, #tpu.memory_space<vmem>>, vector<16x16x4xf32>
    %63 = vector.shape_cast %62 : vector<16x16x4xf32> to vector<256x4xf32>
    %c0_51 = arith.constant 0 : index
    %c20 = arith.constant 20 : index
    %64 = vector.load %arg11[%c0_51, %c20] : memref<256x36xf32, #tpu.memory_space<vmem>>, vector<256x4xf32>
    tpu.vector_store %arg11[%c0_51, %c20], %63 {strides = array<i32>} : memref<256x36xf32, #tpu.memory_space<vmem>>, vector<256x4xf32>,
    %c2_52 = arith.constant 2 : index
    %c0_53 = arith.constant 0 : index
    %c0_54 = arith.constant 0 : index
    %65 = vector.load %arg10[%c2_52, %c0_53, %c0_54] : memref<18x24x4xf32, #tpu.memory_space<vmem>>, vector<16x16x4xf32>
    %66 = vector.shape_cast %65 : vector<16x16x4xf32> to vector<256x4xf32>
    %c0_55 = arith.constant 0 : index
    %c24 = arith.constant 24 : index
    %67 = vector.load %arg11[%c0_55, %c24] : memref<256x36xf32, #tpu.memory_space<vmem>>, vector<256x4xf32>
    tpu.vector_store %arg11[%c0_55, %c24], %66 {strides = array<i32>} : memref<256x36xf32, #tpu.memory_space<vmem>>, vector<256x4xf32>,
    %c2_56 = arith.constant 2 : index
    %c1_57 = arith.constant 1 : index
    %c0_58 = arith.constant 0 : index
    %68 = vector.load %arg10[%c2_56, %c1_57, %c0_58] : memref<18x24x4xf32, #tpu.memory_space<vmem>>, vector<16x16x4xf32>
    %69 = vector.shape_cast %68 : vector<16x16x4xf32> to vector<256x4xf32>
    %c0_59 = arith.constant 0 : index
    %c28 = arith.constant 28 : index
    %70 = vector.load %arg11[%c0_59, %c28] : memref<256x36xf32, #tpu.memory_space<vmem>>, vector<256x4xf32>
    tpu.vector_store %arg11[%c0_59, %c28], %69 {strides = array<i32>} : memref<256x36xf32, #tpu.memory_space<vmem>>, vector<256x4xf32>,
    %c2_60 = arith.constant 2 : index
    %c2_61 = arith.constant 2 : index
    %c0_62 = arith.constant 0 : index
    %71 = vector.load %arg10[%c2_60, %c2_61, %c0_62] : memref<18x24x4xf32, #tpu.memory_space<vmem>>, vector<16x16x4xf32>
    %72 = vector.shape_cast %71 : vector<16x16x4xf32> to vector<256x4xf32>
    %c0_63 = arith.constant 0 : index
    %c32 = arith.constant 32 : index
    %73 = vector.load %arg11[%c0_63, %c32] : memref<256x36xf32, #tpu.memory_space<vmem>>, vector<256x4xf32>
    tpu.vector_store %arg11[%c0_63, %c32], %72 {strides = array<i32>} : memref<256x36xf32, #tpu.memory_space<vmem>>, vector<256x4xf32>,
    %c0_64 = arith.constant 0 : index
    %c0_65 = arith.constant 0 : index
    %74 = vector.load %arg11[%c0_64, %c0_65] : memref<256x36xf32, #tpu.memory_space<vmem>>, vector<256x36xf32>
    %c0_66 = arith.constant 0 : index
    %c0_67 = arith.constant 0 : index
    %75 = vector.load %arg6[%c0_66, %c0_67] : memref<36x8xf32, #tpu.memory_space<vmem>>, vector<36x8xf32>
    %cst_68 = arith.constant dense<0.000000e+00> : vector<256x8xf32>
    %76 = tpu.matmul %74, %75, %cst_68 {dimension_numbers = #tpu.dot_dimension_numbers<[1], [0], [0], [1], [0, 0, 1, 1], [], []>} : vector<256x36xf32>, vector<36x8xf32>, vector<256x8xf32> -> vector<256x8xf32>
    %c0_69 = arith.constant 0 : index
    %c0_70 = arith.constant 0 : index
    %77 = vector.load %arg7[%c0_69, %c0_70] : memref<1x8xf32, #tpu.memory_space<vmem>>, vector<1x8xf32>
    %78 = vector.broadcast %77 : vector<1x8xf32> to vector<256x8xf32>
    %79 = arith.addf %76, %78 : vector<256x8xf32>
    %cst_71 = arith.constant dense<0.000000e+00> : vector<8xf32>
    %80 = vector.multi_reduction <add>, %79, %cst_71 [0] : vector<256x8xf32> to vector<8xf32>
    %81 = vector.shape_cast %80 : vector<8xf32> to vector<1x8xf32>
    %82 = arith.mulf %79, %79 : vector<256x8xf32>
    %cst_72 = arith.constant dense<0.000000e+00> : vector<8xf32>
    %83 = vector.multi_reduction <add>, %82, %cst_72 [0] : vector<256x8xf32> to vector<8xf32>
    %84 = vector.shape_cast %83 : vector<8xf32> to vector<1x8xf32>
    %85 = vector.shape_cast %81 : vector<1x8xf32> to vector<1x1x1x8xf32>
    %c0_73 = arith.constant 0 : index
    %c0_74 = arith.constant 0 : index
    %c0_75 = arith.constant 0 : index
    %c0_76 = arith.constant 0 : index
    %86 = vector.load %arg9[%c0_73, %c0_74, %c0_75, %c0_76] : memref<1x1x2x8xf32, #tpu.memory_space<vmem>>, vector<1x1x1x8xf32>
    tpu.vector_store %arg9[%c0_73, %c0_74, %c0_75, %c0_76], %85 {strides = array<i32>} : memref<1x1x2x8xf32, #tpu.memory_space<vmem>>, vector<1x1x1x8xf32>,
    %87 = vector.shape_cast %84 : vector<1x8xf32> to vector<1x1x1x8xf32>
    %c0_77 = arith.constant 0 : index
    %c0_78 = arith.constant 0 : index
    %c1_79 = arith.constant 1 : index
    %c0_80 = arith.constant 0 : index
    %88 = vector.load %arg9[%c0_77, %c0_78, %c1_79, %c0_80] : memref<1x1x2x8xf32, #tpu.memory_space<vmem>>, vector<1x1x1x8xf32>
    tpu.vector_store %arg9[%c0_77, %c0_78, %c1_79, %c0_80], %87 {strides = array<i32>} : memref<1x1x2x8xf32, #tpu.memory_space<vmem>>, vector<1x1x1x8xf32>,
    %89 = vector.shape_cast %79 : vector<256x8xf32> to vector<1x16x16x8xf32>
    %c0_81 = arith.constant 0 : index
    %c0_82 = arith.constant 0 : index
    %c0_83 = arith.constant 0 : index
    %c0_84 = arith.constant 0 : index
    %90 = vector.load %arg8[%c0_81, %c0_82, %c0_83, %c0_84] : memref<1x16x16x8xf32, #tpu.memory_space<vmem>>, vector<1x16x16x8xf32>
    tpu.vector_store %arg8[%c0_81, %c0_82, %c0_83, %c0_84], %89 {strides = array<i32>} : memref<1x16x16x8xf32, #tpu.memory_space<vmem>>, vector<1x16x16x8xf32>,
    return
  }
  func.func @transform_0(%arg0: i32, %arg1: i32) -> (i32, i32, i32, i32) {
    %c0_i32 = arith.constant 0 : i32
    %c0_i32_0 = arith.constant 0 : i32
    %c0_i32_1 = arith.constant 0 : i32
    return %arg0, %arg1, %c0_i32, %c0_i32_0 : i32, i32, i32, i32
  }
  func.func @transform_1(%arg0: i32, %arg1: i32) -> (i32, i32, i32, i32) {
    %c0_i32 = arith.constant 0 : i32
    %c0_i32_0 = arith.constant 0 : i32
    %c0_i32_1 = arith.constant 0 : i32
    return %arg0, %arg1, %c0_i32, %c0_i32_0 : i32, i32, i32, i32
  }
  func.func @transform_2(%arg0: i32, %arg1: i32) -> (i32, i32) {
    %c0_i32 = arith.constant 0 : i32
    %c0_i32_0 = arith.constant 0 : i32
    %c0_i32_1 = arith.constant 0 : i32
    return %c0_i32, %c0_i32_0 : i32, i32
  }
  func.func @transform_3(%arg0: i32, %arg1: i32) -> (i32, i32) {
    %c0_i32 = arith.constant 0 : i32
    %c0_i32_0 = arith.constant 0 : i32
    %c0_i32_1 = arith.constant 0 : i32
    return %c0_i32, %c0_i32_0 : i32, i32
  }
  func.func @transform_4(%arg0: i32, %arg1: i32) -> (i32, i32) {
    %c0_i32 = arith.constant 0 : i32
    %c0_i32_0 = arith.constant 0 : i32
    %c0_i32_1 = arith.constant 0 : i32
    return %c0_i32, %c0_i32_0 : i32, i32
  }
  func.func @transform_5(%arg0: i32, %arg1: i32) -> (i32, i32) {
    %c0_i32 = arith.constant 0 : i32
    %c0_i32_0 = arith.constant 0 : i32
    %c0_i32_1 = arith.constant 0 : i32
    return %c0_i32, %c0_i32_0 : i32, i32
  }
  func.func @transform_6(%arg0: i32, %arg1: i32) -> (i32, i32, i32, i32) {
    %c0_i32 = arith.constant 0 : i32
    %c0_i32_0 = arith.constant 0 : i32
    %c0_i32_1 = arith.constant 0 : i32
    return %arg0, %arg1, %c0_i32, %c0_i32_0 : i32, i32, i32, i32
  }
  func.func @transform_7(%arg0: i32, %arg1: i32) -> (i32, i32, i32, i32) {
    %c0_i32 = arith.constant 0 : i32
    %c0_i32_0 = arith.constant 0 : i32
    %c0_i32_1 = arith.constant 0 : i32
    return %arg0, %arg1, %c0_i32, %c0_i32_0 : i32, i32, i32, i32
  }
}

module attributes {stable_mosaic.version = 11 : i64} {
  func.func @_bn_relu_conv_kernel(%arg0: i32, %arg1: i32, %arg2: memref<1x16x16x8xf32, #tpu.memory_space<vmem>>, %arg3: memref<1x2x16x8xf32, #tpu.memory_space<vmem>>, %arg4: memref<1x8xf32, #tpu.memory_space<vmem>>, %arg5: memref<1x8xf32, #tpu.memory_space<vmem>>, %arg6: memref<72x8xf32, #tpu.memory_space<vmem>>, %arg7: memref<1x8xf32, #tpu.memory_space<vmem>>, %arg8: memref<1x16x16x8xf32, #tpu.memory_space<vmem>>, %arg9: memref<18x24x8xf32, #tpu.memory_space<vmem>>, %arg10: memref<256x72xf32, #tpu.memory_space<vmem>>) attributes {dimension_semantics = [#tpu.dimension_semantics<parallel>, #tpu.dimension_semantics<parallel>], iteration_bounds = array<i64: 2, 1>, scalar_prefetch = 0 : i64, scratch_operands = 2 : i64, tpu.core_type = #tpu.core_type<tc>, window_params = [{transform_indices = @transform_0, window_bounds = array<i64: 1, 16, 16, 8>}, {transform_indices = @transform_1, window_bounds = array<i64: 1, 2, 16, 8>}, {pipeline_mode = #tpu.pipeline_mode<synchronous>, transform_indices = @transform_2, window_bounds = array<i64: 1, 8>}, {pipeline_mode = #tpu.pipeline_mode<synchronous>, transform_indices = @transform_3, window_bounds = array<i64: 1, 8>}, {pipeline_mode = #tpu.pipeline_mode<synchronous>, transform_indices = @transform_4, window_bounds = array<i64: 72, 8>}, {pipeline_mode = #tpu.pipeline_mode<synchronous>, transform_indices = @transform_5, window_bounds = array<i64: 1, 8>}, {transform_indices = @transform_6, window_bounds = array<i64: 1, 16, 16, 8>}]} {
    %c0 = arith.constant 0 : index
    %c0_0 = arith.constant 0 : index
    %0 = vector.load %arg4[%c0, %c0_0] : memref<1x8xf32, #tpu.memory_space<vmem>>, vector<1x8xf32>
    %c0_1 = arith.constant 0 : index
    %c0_2 = arith.constant 0 : index
    %1 = vector.load %arg5[%c0_1, %c0_2] : memref<1x8xf32, #tpu.memory_space<vmem>>, vector<1x8xf32>
    %cst = arith.constant 0.000000e+00 : f32
    %2 = vector.broadcast %cst : f32 to vector<18x1x8xf32>
    %c0_3 = arith.constant 0 : index
    %c0_4 = arith.constant 0 : index
    %c0_5 = arith.constant 0 : index
    %3 = vector.load %arg9[%c0_3, %c0_4, %c0_5] : memref<18x24x8xf32, #tpu.memory_space<vmem>>, vector<18x1x8xf32>
    tpu.vector_store %arg9[%c0_3, %c0_4, %c0_5], %2 {strides = array<i32>} : memref<18x24x8xf32, #tpu.memory_space<vmem>>, vector<18x1x8xf32>,
    %c0_6 = arith.constant 0 : index
    %c17 = arith.constant 17 : index
    %c0_7 = arith.constant 0 : index
    %4 = vector.load %arg9[%c0_6, %c17, %c0_7] : memref<18x24x8xf32, #tpu.memory_space<vmem>>, vector<18x1x8xf32>
    tpu.vector_store %arg9[%c0_6, %c17, %c0_7], %2 {strides = array<i32>} : memref<18x24x8xf32, #tpu.memory_space<vmem>>, vector<18x1x8xf32>,
    %c0_8 = arith.constant 0 : index
    %c0_9 = arith.constant 0 : index
    %c0_10 = arith.constant 0 : index
    %c0_11 = arith.constant 0 : index
    %5 = vector.load %arg2[%c0_8, %c0_9, %c0_10, %c0_11] : memref<1x16x16x8xf32, #tpu.memory_space<vmem>>, vector<1x16x16x8xf32>
    %6 = vector.shape_cast %5 : vector<1x16x16x8xf32> to vector<256x8xf32>
    %7 = vector.broadcast %0 : vector<1x8xf32> to vector<256x8xf32>
    %8 = arith.mulf %6, %7 : vector<256x8xf32>
    %9 = vector.broadcast %1 : vector<1x8xf32> to vector<256x8xf32>
    %10 = arith.addf %8, %9 : vector<256x8xf32>
    %cst_12 = arith.constant 0.000000e+00 : f32
    %11 = vector.broadcast %cst_12 : f32 to vector<256x8xf32>
    %12 = arith.maximumf %10, %11 : vector<256x8xf32>
    %13 = vector.shape_cast %12 : vector<256x8xf32> to vector<16x16x8xf32>
    %c1 = arith.constant 1 : index
    %c1_13 = arith.constant 1 : index
    %c0_14 = arith.constant 0 : index
    %14 = vector.load %arg9[%c1, %c1_13, %c0_14] : memref<18x24x8xf32, #tpu.memory_space<vmem>>, vector<16x16x8xf32>
    tpu.vector_store %arg9[%c1, %c1_13, %c0_14], %13 {strides = array<i32>} : memref<18x24x8xf32, #tpu.memory_space<vmem>>, vector<16x16x8xf32>,
    %c0_15 = arith.constant 0 : index
    %c0_16 = arith.constant 0 : index
    %c0_17 = arith.constant 0 : index
    %c0_18 = arith.constant 0 : index
    %15 = vector.load %arg3[%c0_15, %c0_16, %c0_17, %c0_18] : memref<1x2x16x8xf32, #tpu.memory_space<vmem>>, vector<1x2x16x8xf32>
    %16 = vector.shape_cast %15 : vector<1x2x16x8xf32> to vector<2x16x8xf32>
    %17 = vector.extract_strided_slice %16 {offsets = [0, 0, 0], sizes = [1, 16, 8], strides = [1, 1, 1]} : vector<2x16x8xf32> to vector<1x16x8xf32>
    %18 = vector.shape_cast %17 : vector<1x16x8xf32> to vector<16x8xf32>
    %19 = vector.broadcast %0 : vector<1x8xf32> to vector<16x8xf32>
    %20 = arith.mulf %18, %19 : vector<16x8xf32>
    %21 = vector.broadcast %1 : vector<1x8xf32> to vector<16x8xf32>
    %22 = arith.addf %20, %21 : vector<16x8xf32>
    %cst_19 = arith.constant 0.000000e+00 : f32
    %23 = vector.broadcast %cst_19 : f32 to vector<16x8xf32>
    %24 = arith.maximumf %22, %23 : vector<16x8xf32>
    %c0_i32 = arith.constant 0 : i32
    %25 = arith.cmpi sgt, %arg1, %c0_i32 : i32
    %26 = arith.extui %25 : i1 to i32
    %27 = arith.sitofp %26 : i32 to f32
    %28 = vector.broadcast %27 : f32 to vector<16x8xf32>
    %29 = arith.mulf %24, %28 : vector<16x8xf32>
    %30 = vector.extract_strided_slice %16 {offsets = [1, 0, 0], sizes = [1, 16, 8], strides = [1, 1, 1]} : vector<2x16x8xf32> to vector<1x16x8xf32>
    %31 = vector.shape_cast %30 : vector<1x16x8xf32> to vector<16x8xf32>
    %32 = vector.broadcast %0 : vector<1x8xf32> to vector<16x8xf32>
    %33 = arith.mulf %31, %32 : vector<16x8xf32>
    %34 = vector.broadcast %1 : vector<1x8xf32> to vector<16x8xf32>
    %35 = arith.addf %33, %34 : vector<16x8xf32>
    %cst_20 = arith.constant 0.000000e+00 : f32
    %36 = vector.broadcast %cst_20 : f32 to vector<16x8xf32>
    %37 = arith.maximumf %35, %36 : vector<16x8xf32>
    %c0_i32_21 = arith.constant 0 : i32
    %38 = arith.cmpi slt, %arg1, %c0_i32_21 : i32
    %39 = arith.extui %38 : i1 to i32
    %40 = arith.sitofp %39 : i32 to f32
    %41 = vector.broadcast %40 : f32 to vector<16x8xf32>
    %42 = arith.mulf %37, %41 : vector<16x8xf32>
    %43 = vector.shape_cast %29 : vector<16x8xf32> to vector<1x16x8xf32>
    %c0_22 = arith.constant 0 : index
    %c1_23 = arith.constant 1 : index
    %c0_24 = arith.constant 0 : index
    %44 = vector.load %arg9[%c0_22, %c1_23, %c0_24] : memref<18x24x8xf32, #tpu.memory_space<vmem>>, vector<1x16x8xf32>
    tpu.vector_store %arg9[%c0_22, %c1_23, %c0_24], %43 {strides = array<i32>} : memref<18x24x8xf32, #tpu.memory_space<vmem>>, vector<1x16x8xf32>,
    %45 = vector.shape_cast %42 : vector<16x8xf32> to vector<1x16x8xf32>
    %c17_25 = arith.constant 17 : index
    %c1_26 = arith.constant 1 : index
    %c0_27 = arith.constant 0 : index
    %46 = vector.load %arg9[%c17_25, %c1_26, %c0_27] : memref<18x24x8xf32, #tpu.memory_space<vmem>>, vector<1x16x8xf32>
    tpu.vector_store %arg9[%c17_25, %c1_26, %c0_27], %45 {strides = array<i32>} : memref<18x24x8xf32, #tpu.memory_space<vmem>>, vector<1x16x8xf32>,
    %c0_28 = arith.constant 0 : index
    %c0_29 = arith.constant 0 : index
    %c0_30 = arith.constant 0 : index
    %47 = vector.load %arg9[%c0_28, %c0_29, %c0_30] : memref<18x24x8xf32, #tpu.memory_space<vmem>>, vector<16x16x8xf32>
    %48 = vector.shape_cast %47 : vector<16x16x8xf32> to vector<256x8xf32>
    %c0_31 = arith.constant 0 : index
    %c0_32 = arith.constant 0 : index
    %49 = vector.load %arg10[%c0_31, %c0_32] : memref<256x72xf32, #tpu.memory_space<vmem>>, vector<256x8xf32>
    tpu.vector_store %arg10[%c0_31, %c0_32], %48 {strides = array<i32>} : memref<256x72xf32, #tpu.memory_space<vmem>>, vector<256x8xf32>,
    %c0_33 = arith.constant 0 : index
    %c1_34 = arith.constant 1 : index
    %c0_35 = arith.constant 0 : index
    %50 = vector.load %arg9[%c0_33, %c1_34, %c0_35] : memref<18x24x8xf32, #tpu.memory_space<vmem>>, vector<16x16x8xf32>
    %51 = vector.shape_cast %50 : vector<16x16x8xf32> to vector<256x8xf32>
    %c0_36 = arith.constant 0 : index
    %c8 = arith.constant 8 : index
    %52 = vector.load %arg10[%c0_36, %c8] : memref<256x72xf32, #tpu.memory_space<vmem>>, vector<256x8xf32>
    tpu.vector_store %arg10[%c0_36, %c8], %51 {strides = array<i32>} : memref<256x72xf32, #tpu.memory_space<vmem>>, vector<256x8xf32>,
    %c0_37 = arith.constant 0 : index
    %c2 = arith.constant 2 : index
    %c0_38 = arith.constant 0 : index
    %53 = vector.load %arg9[%c0_37, %c2, %c0_38] : memref<18x24x8xf32, #tpu.memory_space<vmem>>, vector<16x16x8xf32>
    %54 = vector.shape_cast %53 : vector<16x16x8xf32> to vector<256x8xf32>
    %c0_39 = arith.constant 0 : index
    %c16 = arith.constant 16 : index
    %55 = vector.load %arg10[%c0_39, %c16] : memref<256x72xf32, #tpu.memory_space<vmem>>, vector<256x8xf32>
    tpu.vector_store %arg10[%c0_39, %c16], %54 {strides = array<i32>} : memref<256x72xf32, #tpu.memory_space<vmem>>, vector<256x8xf32>,
    %c1_40 = arith.constant 1 : index
    %c0_41 = arith.constant 0 : index
    %c0_42 = arith.constant 0 : index
    %56 = vector.load %arg9[%c1_40, %c0_41, %c0_42] : memref<18x24x8xf32, #tpu.memory_space<vmem>>, vector<16x16x8xf32>
    %57 = vector.shape_cast %56 : vector<16x16x8xf32> to vector<256x8xf32>
    %c0_43 = arith.constant 0 : index
    %c24 = arith.constant 24 : index
    %58 = vector.load %arg10[%c0_43, %c24] : memref<256x72xf32, #tpu.memory_space<vmem>>, vector<256x8xf32>
    tpu.vector_store %arg10[%c0_43, %c24], %57 {strides = array<i32>} : memref<256x72xf32, #tpu.memory_space<vmem>>, vector<256x8xf32>,
    %c1_44 = arith.constant 1 : index
    %c1_45 = arith.constant 1 : index
    %c0_46 = arith.constant 0 : index
    %59 = vector.load %arg9[%c1_44, %c1_45, %c0_46] : memref<18x24x8xf32, #tpu.memory_space<vmem>>, vector<16x16x8xf32>
    %60 = vector.shape_cast %59 : vector<16x16x8xf32> to vector<256x8xf32>
    %c0_47 = arith.constant 0 : index
    %c32 = arith.constant 32 : index
    %61 = vector.load %arg10[%c0_47, %c32] : memref<256x72xf32, #tpu.memory_space<vmem>>, vector<256x8xf32>
    tpu.vector_store %arg10[%c0_47, %c32], %60 {strides = array<i32>} : memref<256x72xf32, #tpu.memory_space<vmem>>, vector<256x8xf32>,
    %c1_48 = arith.constant 1 : index
    %c2_49 = arith.constant 2 : index
    %c0_50 = arith.constant 0 : index
    %62 = vector.load %arg9[%c1_48, %c2_49, %c0_50] : memref<18x24x8xf32, #tpu.memory_space<vmem>>, vector<16x16x8xf32>
    %63 = vector.shape_cast %62 : vector<16x16x8xf32> to vector<256x8xf32>
    %c0_51 = arith.constant 0 : index
    %c40 = arith.constant 40 : index
    %64 = vector.load %arg10[%c0_51, %c40] : memref<256x72xf32, #tpu.memory_space<vmem>>, vector<256x8xf32>
    tpu.vector_store %arg10[%c0_51, %c40], %63 {strides = array<i32>} : memref<256x72xf32, #tpu.memory_space<vmem>>, vector<256x8xf32>,
    %c2_52 = arith.constant 2 : index
    %c0_53 = arith.constant 0 : index
    %c0_54 = arith.constant 0 : index
    %65 = vector.load %arg9[%c2_52, %c0_53, %c0_54] : memref<18x24x8xf32, #tpu.memory_space<vmem>>, vector<16x16x8xf32>
    %66 = vector.shape_cast %65 : vector<16x16x8xf32> to vector<256x8xf32>
    %c0_55 = arith.constant 0 : index
    %c48 = arith.constant 48 : index
    %67 = vector.load %arg10[%c0_55, %c48] : memref<256x72xf32, #tpu.memory_space<vmem>>, vector<256x8xf32>
    tpu.vector_store %arg10[%c0_55, %c48], %66 {strides = array<i32>} : memref<256x72xf32, #tpu.memory_space<vmem>>, vector<256x8xf32>,
    %c2_56 = arith.constant 2 : index
    %c1_57 = arith.constant 1 : index
    %c0_58 = arith.constant 0 : index
    %68 = vector.load %arg9[%c2_56, %c1_57, %c0_58] : memref<18x24x8xf32, #tpu.memory_space<vmem>>, vector<16x16x8xf32>
    %69 = vector.shape_cast %68 : vector<16x16x8xf32> to vector<256x8xf32>
    %c0_59 = arith.constant 0 : index
    %c56 = arith.constant 56 : index
    %70 = vector.load %arg10[%c0_59, %c56] : memref<256x72xf32, #tpu.memory_space<vmem>>, vector<256x8xf32>
    tpu.vector_store %arg10[%c0_59, %c56], %69 {strides = array<i32>} : memref<256x72xf32, #tpu.memory_space<vmem>>, vector<256x8xf32>,
    %c2_60 = arith.constant 2 : index
    %c2_61 = arith.constant 2 : index
    %c0_62 = arith.constant 0 : index
    %71 = vector.load %arg9[%c2_60, %c2_61, %c0_62] : memref<18x24x8xf32, #tpu.memory_space<vmem>>, vector<16x16x8xf32>
    %72 = vector.shape_cast %71 : vector<16x16x8xf32> to vector<256x8xf32>
    %c0_63 = arith.constant 0 : index
    %c64 = arith.constant 64 : index
    %73 = vector.load %arg10[%c0_63, %c64] : memref<256x72xf32, #tpu.memory_space<vmem>>, vector<256x8xf32>
    tpu.vector_store %arg10[%c0_63, %c64], %72 {strides = array<i32>} : memref<256x72xf32, #tpu.memory_space<vmem>>, vector<256x8xf32>,
    %c0_64 = arith.constant 0 : index
    %c0_65 = arith.constant 0 : index
    %74 = vector.load %arg10[%c0_64, %c0_65] : memref<256x72xf32, #tpu.memory_space<vmem>>, vector<256x72xf32>
    %c0_66 = arith.constant 0 : index
    %c0_67 = arith.constant 0 : index
    %75 = vector.load %arg6[%c0_66, %c0_67] : memref<72x8xf32, #tpu.memory_space<vmem>>, vector<72x8xf32>
    %cst_68 = arith.constant dense<0.000000e+00> : vector<256x8xf32>
    %76 = tpu.matmul %74, %75, %cst_68 {dimension_numbers = #tpu.dot_dimension_numbers<[1], [0], [0], [1], [0, 0, 1, 1], [], []>} : vector<256x72xf32>, vector<72x8xf32>, vector<256x8xf32> -> vector<256x8xf32>
    %c0_69 = arith.constant 0 : index
    %c0_70 = arith.constant 0 : index
    %77 = vector.load %arg7[%c0_69, %c0_70] : memref<1x8xf32, #tpu.memory_space<vmem>>, vector<1x8xf32>
    %78 = vector.broadcast %77 : vector<1x8xf32> to vector<256x8xf32>
    %79 = arith.addf %76, %78 : vector<256x8xf32>
    %80 = vector.shape_cast %79 : vector<256x8xf32> to vector<1x16x16x8xf32>
    %c0_71 = arith.constant 0 : index
    %c0_72 = arith.constant 0 : index
    %c0_73 = arith.constant 0 : index
    %c0_74 = arith.constant 0 : index
    %81 = vector.load %arg8[%c0_71, %c0_72, %c0_73, %c0_74] : memref<1x16x16x8xf32, #tpu.memory_space<vmem>>, vector<1x16x16x8xf32>
    tpu.vector_store %arg8[%c0_71, %c0_72, %c0_73, %c0_74], %80 {strides = array<i32>} : memref<1x16x16x8xf32, #tpu.memory_space<vmem>>, vector<1x16x16x8xf32>,
    return
  }
  func.func @transform_0(%arg0: i32, %arg1: i32) -> (i32, i32, i32, i32) {
    %c0_i32 = arith.constant 0 : i32
    %c0_i32_0 = arith.constant 0 : i32
    %c0_i32_1 = arith.constant 0 : i32
    return %arg0, %arg1, %c0_i32, %c0_i32_0 : i32, i32, i32, i32
  }
  func.func @transform_1(%arg0: i32, %arg1: i32) -> (i32, i32, i32, i32) {
    %c0_i32 = arith.constant 0 : i32
    %c0_i32_0 = arith.constant 0 : i32
    %c0_i32_1 = arith.constant 0 : i32
    return %arg0, %arg1, %c0_i32, %c0_i32_0 : i32, i32, i32, i32
  }
  func.func @transform_2(%arg0: i32, %arg1: i32) -> (i32, i32) {
    %c0_i32 = arith.constant 0 : i32
    %c0_i32_0 = arith.constant 0 : i32
    %c0_i32_1 = arith.constant 0 : i32
    return %c0_i32, %c0_i32_0 : i32, i32
  }
  func.func @transform_3(%arg0: i32, %arg1: i32) -> (i32, i32) {
    %c0_i32 = arith.constant 0 : i32
    %c0_i32_0 = arith.constant 0 : i32
    %c0_i32_1 = arith.constant 0 : i32
    return %c0_i32, %c0_i32_0 : i32, i32
  }
  func.func @transform_4(%arg0: i32, %arg1: i32) -> (i32, i32) {
    %c0_i32 = arith.constant 0 : i32
    %c0_i32_0 = arith.constant 0 : i32
    %c0_i32_1 = arith.constant 0 : i32
    return %c0_i32, %c0_i32_0 : i32, i32
  }
  func.func @transform_5(%arg0: i32, %arg1: i32) -> (i32, i32) {
    %c0_i32 = arith.constant 0 : i32
    %c0_i32_0 = arith.constant 0 : i32
    %c0_i32_1 = arith.constant 0 : i32
    return %c0_i32, %c0_i32_0 : i32, i32
  }
  func.func @transform_6(%arg0: i32, %arg1: i32) -> (i32, i32, i32, i32) {
    %c0_i32 = arith.constant 0 : i32
    %c0_i32_0 = arith.constant 0 : i32
    %c0_i32_1 = arith.constant 0 : i32
    return %arg0, %arg1, %c0_i32, %c0_i32_0 : i32, i32, i32, i32
  }
}

</mosaic_0001>

<llo_original>
// kernel: double_conv_forward.3
$region0: #{double_conv_forward.3}
  #allocation0 [shape = 'u32[]', space=smem, size = 0x4, offset = 0x4, fixed_abs, tag = 'smem constant byte address 0x4 - core index']
  #allocation1 [shape = 'u32[144,128]{1,0:T(1,128)}', space=vmem, size = 0x12000, scoped, tag = 'internal scratch']
  %s0 = inlined_call_operand.vmem [shape: f32[2,16,16,4], index: 0, kind: input, shape index: {}]
  %s1 = inlined_call_operand.vmem [shape: f32[2,1,2,4], index: 1, kind: output, shape index: {}]
  %s2 = sld [smem:[#allocation0]]
  $region37: #{double_conv_forward.3} parent=0
    _
  %s4 = ssub.s32 1, %s2
  %s5 = scalar_select 0, %s4, %s2
  loop: start=0, step=1, limit=4
  $region2: #{double_conv_forward.3} parent=0 // loop_pre_header
    _
  $region3: #{double_conv_forward.3} parent=0 // loop_header
    %s7 = sphi 0, %s11
    %p8 = scmp.ge.s32.totalorder %s7, 4
    %s14 = sphi 0, %s26
    %s15 = sphi 0, %s22
    %s16 = sphi 0, %s14
    %s17 = sphi 0, %s15
    %s18 = sphi 0, %s16
    %s19 = sphi 0, %s17
    %s31 = sphi 0, %s33
    %s34 = sphi 0, %s31
    %s35 = sphi 0, %s34
    %s51 = sphi 0, %s35
    %s59 = sphi 0, %s61
    %s62 = sphi 0, %s59
    %s63 = sphi 0, %s62
    %s79 = sphi 0, %s63
  $region4: #{double_conv_forward.3} parent=0 // loop_header_branch
    %10 = sbr.rel (%p8) target = $region8
  $region5: #{double_conv_forward.3} parent=0 // loop_body
    %s12 = ssub.s32 %s7, 1
    %s13 = ssub.s32 %s7, 2
    %s20 = sadd.s32 1, %s15
    %p21 = scmp.ge.s32.totalorder %s20, 1
    %s22 = scalar_select %p21, 0, %s20
    %s23 = sadd.s32 1, %s14
    %s24 = scalar_select %p21, %s23, %s14
    %p25 = scmp.ge.s32.totalorder %s24, 2
    %s26 = scalar_select %p25, 0, %s24
    %s27 = ssub.s32 %s14, %s26
    %s28 = ssub.s32 %s15, %s22
    %s29 = sor.u32 %s27, %s28
    %p30 = scmp.eq.s32.totalorder %s29, 0
    %s32 = sadd.s32 %s31, 1
    %s33 = scalar_select %p30, %s31, %s32
    %p36 = pneg %p30
    %p37 = scmp.eq.s32.totalorder %s7, 1
    %p38 = por %p36, %p37
    %p39 = scmp.ne.s32.totalorder %s31, %s34
    %p40 = scmp.eq.s32.totalorder %s7, 0
    %p41 = por %p39, %p40
    %p42 = scmp.ne.s32.totalorder %s31, %s34
    %p43 = scmp.eq.s32.totalorder %s12, 1
    %p44 = por %p42, %p43
    %p45 = scmp.ne.s32.totalorder %s34, %s35
    %p46 = scmp.eq.s32.totalorder %s12, 0
    %p47 = por %p45, %p46
    %p48 = scmp.ne.s32.totalorder %s34, %s35
    %p49 = scmp.eq.s32.totalorder %s13, 1
    %p50 = por %p48, %p49
    %p52 = scmp.ne.s32.totalorder %s35, %s51
    %p53 = scmp.eq.s32.totalorder %s13, 0
    %p54 = por %p52, %p53
    %s55 = ssub.s32 %s14, %s26
    %s56 = ssub.s32 %s15, %s22
    %s57 = sor.u32 %s55, %s56
    %p58 = scmp.eq.s32.totalorder %s57, 0
    %s60 = sadd.s32 %s59, 1
    %s61 = scalar_select %p58, %s59, %s60
    %p64 = pneg %p58
    %p65 = scmp.eq.s32.totalorder %s7, 1
    %p66 = por %p64, %p65
    %p67 = scmp.ne.s32.totalorder %s59, %s62
    %p68 = scmp.eq.s32.totalorder %s7, 0
    %p69 = por %p67, %p68
    %p70 = scmp.ne.s32.totalorder %s59, %s62
    %p71 = scmp.eq.s32.totalorder %s12, 1
    %p72 = por %p70, %p71
    %p73 = scmp.ne.s32.totalorder %s62, %s63
    %p74 = scmp.eq.s32.totalorder %s12, 0
    %p75 = por %p73, %p74
    %p76 = scmp.ne.s32.totalorder %s62, %s63
    %p77 = scmp.eq.s32.totalorder %s13, 1
    %p78 = por %p76, %p77
    %p80 = scmp.ne.s32.totalorder %s63, %s79
    %p81 = scmp.eq.s32.totalorder %s13, 0
    %p82 = por %p80, %p81
    %p83 = scmp.le.s32.totalorder 1, %s7
    %p84 = scmp.lt.s32.totalorder %s7, 3
    %p85 = pnand %p83, %p84
    %p86 = pneg %p85
    // Predicated region
    $region9: #{double_conv_forward.3} parent=5 // pred_check
      _
    $region10: #{double_conv_forward.3} parent=5 // pred_check_branch
      %88 = sbr.rel (%p85) target = $region12
    $region11: #{double_conv_forward.3} parent=5 // pred_region
      %s89 = ssub.s32 %s7, 1
    $region12: #{double_conv_forward.3} parent=5 // pred_fallthru
      _
    %p90 = scmp.lt.s32.totalorder %s7, 2
    // Predicated region
    $region13: #{double_conv_forward.3} parent=5 // pred_check
      %p91 = pneg %p90
    $region14: #{double_conv_forward.3} parent=5 // pred_check_branch
      %93 = sbr.rel (%p91) target = $region16
    $region15: #{double_conv_forward.3} parent=5 // pred_region
      // Predicated region
      $region17: #{double_conv_forward.3} parent=15 // pred_check
        %p94 = pneg %p41
      $region18: #{double_conv_forward.3} parent=15 // pred_check_branch
        %96 = sbr.rel (%p94) target = $region20
      $region19: #{double_conv_forward.3} parent=15 // pred_region
        %s97 = smul.u32 16, %s15
        %p98 = scmp.lt.s32.totalorder %s14, 1
        %s99 = scalar_select %p98, %s14, 1
        %p100 = scmp.lt.s32.totalorder %s97, 15
        %s101 = scalar_select %p100, %s97, 15
        %s102 = smul.addr %s101, 2
        %s103 = smul.addr %s99, 32
        %s104 = sadd.s32 %s102, %s103
        %s105 = smul.addr %s104, 8
        %s106 = scalar_lea.vmem %s0, %s105
        %s107 = smul.u32 16, %s15
      $region20: #{double_conv_forward.3} parent=15 // pred_fallthru
        _
    $region16: #{double_conv_forward.3} parent=5 // pred_fallthru
      _
    %p108 = scmp.le.s32.totalorder 1, %s7
    %p109 = scmp.lt.s32.totalorder %s7, 3
    %p110 = pnand %p108, %p109
    %p111 = pneg %p110
    // Predicated region
    $region21: #{double_conv_forward.3} parent=5 // pred_check
      _
    $region22: #{double_conv_forward.3} parent=5 // pred_check_branch
      %113 = sbr.rel (%p110) target = $region24
    $region23: #{double_conv_forward.3} parent=5 // pred_region
      %s114 = ssub.s32 %s7, 1
      %s115 = smul.u32 16, %s17
      %p116 = scmp.lt.s32.totalorder %s16, 1
      %s117 = scalar_select %p116, %s16, 1
      %p118 = scmp.lt.s32.totalorder %s115, 15
      %s119 = scalar_select %p118, %s115, 15
      %s120 = smul.addr %s119, 2
      %s121 = smul.addr %s117, 32
      %s122 = sadd.s32 %s120, %s121
      %s123 = smul.addr %s122, 8
      %s124 = scalar_lea.vmem %s0, %s123
      %p125 = pneg %p47
      %p126 = pneg %p44
      %p127 = pneg %p75
      %p128 = pneg %p72
      %p129 = scmp.lt.s32.totalorder %s16, 1
      %s130 = scalar_select %p129, %s16, 1
      %p131 = scmp.lt.s32.totalorder %s17, 0
      %s132 = scalar_select %p131, %s17, 0
      %s133 = sadd.s32 %s132, %s130
      %s134 = smul.addr %s133, 2
      %s135 = scalar_lea.vmem %s1, %s134
      %s136 = smul.u32 16, %s17
      %p137 = scmp.lt.s32.totalorder %s16, 1
      %s138 = scalar_select %p137, %s16, 1
      %p139 = scmp.lt.s32.totalorder %s136, 15
      %s140 = scalar_select %p139, %s136, 15
      %s141 = smul.addr %s140, 2
      %s142 = smul.addr %s138, 32
      %s143 = sadd.s32 %s141, %s142
      %s144 = smul.addr %s143, 8
      %s145 = scalar_lea.vmem %s0, %s144
      %s146 = smul.u32 16, %s17
      %p147 = scmp.lt.s32.totalorder %s16, 1
      %s148 = scalar_select %p147, %s16, 1
      %p149 = scmp.lt.s32.totalorder %s17, 0
      %s150 = scalar_select %p149, %s17, 0
      %s151 = sadd.s32 %s150, %s148
      %s152 = smul.addr %s151, 2
      %s153 = scalar_lea.vmem %s1, %s152
      %v154 = vld [vmem:[%s145] sm:$0xff]
      %v155 = vld [vmem:[%s145 + $0x8] sm:$0xff]
      %v156 = vld [vmem:[%s145 + $0x10] sm:$0xff]
      %v157 = vld [vmem:[%s145 + $0x18] sm:$0xff]
      %v158 = vld [vmem:[%s145 + $0x20] sm:$0xff]
      %v159 = vld [vmem:[%s145 + $0x28] sm:$0xff]
      %v160 = vld [vmem:[%s145 + $0x30] sm:$0xff]
      %v161 = vld [vmem:[%s145 + $0x38] sm:$0xff]
      %v162 = vld [vmem:[%s145 + $0x40] sm:$0xff]
      %v163 = vld [vmem:[%s145 + $0x48] sm:$0xff]
      %v164 = vld [vmem:[%s145 + $0x50] sm:$0xff]
      %v165 = vld [vmem:[%s145 + $0x58] sm:$0xff]
      %v166 = vld [vmem:[%s145 + $0x60] sm:$0xff]
      %v167 = vld [vmem:[%s145 + $0x68] sm:$0xff]
      %v168 = vld [vmem:[%s145 + $0x70] sm:$0xff]
      %v169 = vld [vmem:[%s145 + $0x78] sm:$0xff]
      %v170 = vld [vmem:[%s145 + $0x80] sm:$0xff]
      %v171 = vld [vmem:[%s145 + $0x88] sm:$0xff]
      %v172 = vld [vmem:[%s145 + $0x90] sm:$0xff]
      %v173 = vld [vmem:[%s145 + $0x98] sm:$0xff]
      %v174 = vld [vmem:[%s145 + $0xa0] sm:$0xff]
      %v175 = vld [vmem:[%s145 + $0xa8] sm:$0xff]
      %v176 = vld [vmem:[%s145 + $0xb0] sm:$0xff]
      %v177 = vld [vmem:[%s145 + $0xb8] sm:$0xff]
      %v178 = vld [vmem:[%s145 + $0xc0] sm:$0xff]
      %v179 = vld [vmem:[%s145 + $0xc8] sm:$0xff]
      %v180 = vld [vmem:[%s145 + $0xd0] sm:$0xff]
      %v181 = vld [vmem:[%s145 + $0xd8] sm:$0xff]
      %v182 = vld [vmem:[%s145 + $0xe0] sm:$0xff]
      %v183 = vld [vmem:[%s145 + $0xe8] sm:$0xff]
      %v184 = vld [vmem:[%s145 + $0xf0] sm:$0xff]
      %v185 = vld [vmem:[%s145 + $0xf8] sm:$0xff]
      %vm186 = vcmask 31744
      %v187 = vsel %vm186, %v154, 0.0
      %v188 = vsel %vm186, %v155, 0.0
      %v189 = vadd.f32 %v187, %v188
      %v190 = vsel %vm186, %v156, 0.0
      %v191 = vadd.f32 %v189, %v190
      %v192 = vsel %vm186, %v157, 0.0
      %v193 = vadd.f32 %v191, %v192
      %v194 = vsel %vm186, %v158, 0.0
      %v195 = vadd.f32 %v193, %v194
      %v196 = vsel %vm186, %v159, 0.0
      %v197 = vadd.f32 %v195, %v196
      %v198 = vsel %vm186, %v160, 0.0
      %v199 = vadd.f32 %v197, %v198
      %v200 = vsel %vm186, %v161, 0.0
      %v201 = vadd.f32 %v199, %v200
      %v202 = vsel %vm186, %v162, 0.0
      %v203 = vadd.f32 %v201, %v202
      %v204 = vsel %vm186, %v163, 0.0
      %v205 = vadd.f32 %v203, %v204
      %v206 = vsel %vm186, %v164, 0.0
      %v207 = vadd.f32 %v205, %v206
      %v208 = vsel %vm186, %v165, 0.0
      %v209 = vadd.f32 %v207, %v208
      %v210 = vsel %vm186, %v166, 0.0
      %v211 = vadd.f32 %v209, %v210
      %v212 = vsel %vm186, %v167, 0.0
      %v213 = vadd.f32 %v211, %v212
      %v214 = vsel %vm186, %v168, 0.0
      %v215 = vadd.f32 %v213, %v214
      %v216 = vsel %vm186, %v169, 0.0
      %v217 = vadd.f32 %v215, %v216
      %v218 = vsel %vm186, %v170, 0.0
      %v219 = vadd.f32 %v217, %v218
      %v220 = vsel %vm186, %v171, 0.0
      %v221 = vadd.f32 %v219, %v220
      %v222 = vsel %vm186, %v172, 0.0
      %v223 = vadd.f32 %v221, %v222
      %v224 = vsel %vm186, %v173, 0.0
      %v225 = vadd.f32 %v223, %v224
      %v226 = vsel %vm186, %v174, 0.0
      %v227 = vadd.f32 %v225, %v226
      %v228 = vsel %vm186, %v175, 0.0
      %v229 = vadd.f32 %v227, %v228
      %v230 = vsel %vm186, %v176, 0.0
      %v231 = vadd.f32 %v229, %v230
      %v232 = vsel %vm186, %v177, 0.0
      %v233 = vadd.f32 %v231, %v232
      %v234 = vsel %vm186, %v178, 0.0
      %v235 = vadd.f32 %v233, %v234
      %v236 = vsel %vm186, %v179, 0.0
      %v237 = vadd.f32 %v235, %v236
      %v238 = vsel %vm186, %v180, 0.0
      %v239 = vadd.f32 %v237, %v238
      %v240 = vsel %vm186, %v181, 0.0
      %v241 = vadd.f32 %v239, %v240
      %v242 = vsel %vm186, %v182, 0.0
      %v243 = vadd.f32 %v241, %v242
      %v244 = vsel %vm186, %v183, 0.0
      %v245 = vadd.f32 %v243, %v244
      %v246 = vsel %vm186, %v184, 0.0
      %v247 = vadd.f32 %v245, %v246
      %v248 = vsel %vm186, %v185, 0.0
      %v249 = vadd.f32 %v247, %v248
      %v250 = vrot.slane %v249, 4
      %v251 = vadd.f32 %v249, %v250
      %v252 = vrot.slane %v251, 2
      %v253 = vadd.f32 %v251, %v252
      %v254 = vrot.slane %v253, 1
      %v255 = vadd.f32 %v253, %v254
      %vm256 = vcmask 24576
      %257 = vst.msk [vmem:[%s153] sm:$0x1] %vm256, %v255
      %v258 = vmul.f32 %v154, %v154
      %v259 = vmul.f32 %v155, %v155
      %v260 = vmul.f32 %v156, %v156
      %v261 = vmul.f32 %v157, %v157
      %v262 = vmul.f32 %v158, %v158
      %v263 = vmul.f32 %v159, %v159
      %v264 = vmul.f32 %v160, %v160
      %v265 = vmul.f32 %v161, %v161
      %v266 = vmul.f32 %v162, %v162
      %v267 = vmul.f32 %v163, %v163
      %v268 = vmul.f32 %v164, %v164
      %v269 = vmul.f32 %v165, %v165
      %v270 = vmul.f32 %v166, %v166
      %v271 = vmul.f32 %v167, %v167
      %v272 = vmul.f32 %v168, %v168
      %v273 = vmul.f32 %v169, %v169
      %v274 = vmul.f32 %v170, %v170
      %v275 = vmul.f32 %v171, %v171
      %v276 = vmul.f32 %v172, %v172
      %v277 = vmul.f32 %v173, %v173
      %v278 = vmul.f32 %v174, %v174
      %v279 = vmul.f32 %v175, %v175
      %v280 = vmul.f32 %v176, %v176
      %v281 = vmul.f32 %v177, %v177
      %v282 = vmul.f32 %v178, %v178
      %v283 = vmul.f32 %v179, %v179
      %v284 = vmul.f32 %v180, %v180
      %v285 = vmul.f32 %v181, %v181
      %v286 = vmul.f32 %v182, %v182
      %v287 = vmul.f32 %v183, %v183
      %v288 = vmul.f32 %v184, %v184
      %v289 = vmul.f32 %v185, %v185
      %v290 = vsel %vm186, %v258, 0.0
      %v291 = vsel %vm186, %v259, 0.0
      %v292 = vadd.f32 %v290, %v291
      %v293 = vsel %vm186, %v260, 0.0
      %v294 = vadd.f32 %v292, %v293
      %v295 = vsel %vm186, %v261, 0.0
      %v296 = vadd.f32 %v294, %v295
      %v297 = vsel %vm186, %v262, 0.0
      %v298 = vadd.f32 %v296, %v297
      %v299 = vsel %vm186, %v263, 0.0
      %v300 = vadd.f32 %v298, %v299
      %v301 = vsel %vm186, %v264, 0.0
      %v302 = vadd.f32 %v300, %v301
      %v303 = vsel %vm186, %v265, 0.0
      %v304 = vadd.f32 %v302, %v303
      %v305 = vsel %vm186, %v266, 0.0
      %v306 = vadd.f32 %v304, %v305
      %v307 = vsel %vm186, %v267, 0.0
      %v308 = vadd.f32 %v306, %v307
      %v309 = vsel %vm186, %v268, 0.0
      %v310 = vadd.f32 %v308, %v309
      %v311 = vsel %vm186, %v269, 0.0
      %v312 = vadd.f32 %v310, %v311
      %v313 = vsel %vm186, %v270, 0.0
      %v314 = vadd.f32 %v312, %v313
      %v315 = vsel %vm186, %v271, 0.0
      %v316 = vadd.f32 %v314, %v315
      %v317 = vsel %vm186, %v272, 0.0
      %v318 = vadd.f32 %v316, %v317
      %v319 = vsel %vm186, %v273, 0.0
      %v320 = vadd.f32 %v318, %v319
      %v321 = vsel %vm186, %v274, 0.0
      %v322 = vadd.f32 %v320, %v321
      %v323 = vsel %vm186, %v275, 0.0
      %v324 = vadd.f32 %v322, %v323
      %v325 = vsel %vm186, %v276, 0.0
      %v326 = vadd.f32 %v324, %v325
      %v327 = vsel %vm186, %v277, 0.0
      %v328 = vadd.f32 %v326, %v327
      %v329 = vsel %vm186, %v278, 0.0
      %v330 = vadd.f32 %v328, %v329
      %v331 = vsel %vm186, %v279, 0.0
      %v332 = vadd.f32 %v330, %v331
      %v333 = vsel %vm186, %v280, 0.0
      %v334 = vadd.f32 %v332, %v333
      %v335 = vsel %vm186, %v281, 0.0
      %v336 = vadd.f32 %v334, %v335
      %v337 = vsel %vm186, %v282, 0.0
      %v338 = vadd.f32 %v336, %v337
      %v339 = vsel %vm186, %v283, 0.0
      %v340 = vadd.f32 %v338, %v339
      %v341 = vsel %vm186, %v284, 0.0
      %v342 = vadd.f32 %v340, %v341
      %v343 = vsel %vm186, %v285, 0.0
      %v344 = vadd.f32 %v342, %v343
      %v345 = vsel %vm186, %v286, 0.0
      %v346 = vadd.f32 %v344, %v345
      %v347 = vsel %vm186, %v287, 0.0
      %v348 = vadd.f32 %v346, %v347
      %v349 = vsel %vm186, %v288, 0.0
      %v350 = vadd.f32 %v348, %v349
      %v351 = vsel %vm186, %v289, 0.0
      %v352 = vadd.f32 %v350, %v351
      %v353 = vrot.slane %v352, 4
      %v354 = vadd.f32 %v352, %v353
      %v355 = vrot.slane %v354, 2
      %v356 = vadd.f32 %v354, %v355
      %v357 = vrot.slane %v356, 1
      %v358 = vadd.f32 %v356, %v357
      %359 = vst.msk [vmem:[%s153 + $0x1] sm:$0x1] %vm256, %v358
      %p360 = scmp.lt.s32.totalorder %s16, 1
      %s361 = scalar_select %p360, %s16, 1
      %p362 = scmp.lt.s32.totalorder %s17, 0
      %s363 = scalar_select %p362, %s17, 0
      %s364 = sadd.s32 %s363, %s361
      %s365 = smul.addr %s364, 2
      %s366 = scalar_lea.vmem %s1, %s365
      // Predicated region
      $region25: #{double_conv_forward.3} parent=23 // pred_check
        %p367 = pneg %p72
      $region26: #{double_conv_forward.3} parent=23 // pred_check_branch
        %369 = sbr.rel (%p367) target = $region28
      $region27: #{double_conv_forward.3} parent=23 // pred_region
        _
      $region28: #{double_conv_forward.3} parent=23 // pred_fallthru
        _
    $region24: #{double_conv_forward.3} parent=5 // pred_fallthru
      _
    %p370 = scmp.le.s32.totalorder 2, %s7
    // Predicated region
    $region29: #{double_conv_forward.3} parent=5 // pred_check
      %p371 = pneg %p370
    $region30: #{double_conv_forward.3} parent=5 // pred_check_branch
      %373 = sbr.rel (%p371) target = $region32
    $region31: #{double_conv_forward.3} parent=5 // pred_region
      %s374 = ssub.s32 %s7, 2
      // Predicated region
      $region33: #{double_conv_forward.3} parent=31 // pred_check
        %p375 = pneg %p78
      $region34: #{double_conv_forward.3} parent=31 // pred_check_branch
        %377 = sbr.rel (%p375) target = $region36
      $region35: #{double_conv_forward.3} parent=31 // pred_region
        %p378 = scmp.lt.s32.totalorder %s18, 1
        %s379 = scalar_select %p378, %s18, 1
        %p380 = scmp.lt.s32.totalorder %s19, 0
        %s381 = scalar_select %p380, %s19, 0
        %s382 = sadd.s32 %s381, %s379
        %s383 = smul.addr %s382, 2
        %s384 = scalar_lea.vmem %s1, %s383
      $region36: #{double_conv_forward.3} parent=31 // pred_fallthru
        _
    $region32: #{double_conv_forward.3} parent=5 // pred_fallthru
      _
  $region6: #{double_conv_forward.3} parent=0 // loop_footer
    %s11 = sadd.s32 1, %s7
  $region7: #{double_conv_forward.3} parent=0 // loop_footer_branch
    %6 = sbr.rel target = $region3
  $region8: #{double_conv_forward.3} parent=0 // loop_exit
    _

// kernel: double_conv_forward.5
$region0: #{double_conv_forward.5}
  #allocation0 [shape = 'u32[]', space=smem, size = 0x4, offset = 0x4, fixed_abs, tag = 'smem constant byte address 0x4 - core index']
  #allocation1 [shape = 'u32[144,128]{1,0:T(1,128)}', space=vmem, size = 0x12000, scoped, tag = 'internal scratch']
  #allocation2 [shape = 'f32[18,24,8]{2,1,0:T(8,128)}', space=vmem, size = 0x36000, scoped, tag = 'scratch operand']
  #allocation3 [shape = 'f32[256,72]{1,0:T(8,128)}', space=vmem, size = 0x20000, scoped, tag = 'scratch operand']
  %s0 = inlined_call_operand.vmem [shape: f32[2,16,16,8], index: 0, kind: input, shape index: {}]
  %s1 = inlined_call_operand.vmem [shape: f32[2,2,16,8], index: 1, kind: input, shape index: {}]
  %s2 = inlined_call_operand.vmem [shape: f32[1,8], index: 2, kind: input, shape index: {}]
  %s3 = inlined_call_operand.vmem [shape: f32[1,8], index: 3, kind: input, shape index: {}]
  %s4 = inlined_call_operand.vmem [shape: f32[72,8], index: 4, kind: input, shape index: {}]
  %s5 = inlined_call_operand.vmem [shape: f32[1,8], index: 5, kind: input, shape index: {}]
  %s6 = inlined_call_operand.vmem [shape: f32[2,16,16,8], index: 6, kind: output, shape index: {}]
  %s7 = sld [smem:[#allocation0]]
  $region57: #{double_conv_forward.5} parent=0
    _
  %s9 = ssub.s32 1, %s7
  %s10 = scalar_select 0, %s9, %s7
  loop: start=0, step=1, limit=4
  $region2: #{double_conv_forward.5} parent=0 // loop_pre_header
    _
  $region3: #{double_conv_forward.5} parent=0 // loop_header
    %s12 = sphi 0, %s16
    %p13 = scmp.ge.s32.totalorder %s12, 4
    %s19 = sphi 0, %s31
    %s20 = sphi 0, %s27
    %s21 = sphi 0, %s19
    %s22 = sphi 0, %s20
    %s23 = sphi 0, %s21
    %s24 = sphi 0, %s22
    %s36 = sphi 0, %s38
    %s39 = sphi 0, %s36
    %s40 = sphi 0, %s39
    %s56 = sphi 0, %s40
    %s64 = sphi 0, %s66
    %s67 = sphi 0, %s64
    %s68 = sphi 0, %s67
    %s84 = sphi 0, %s68
    %s88 = sphi 0, %s88
    %s90 = sphi 0, %s88
    %s91 = sphi 0, %s90
    %s105 = sphi 0, %s91
    %s109 = sphi 0, %s109
    %s111 = sphi 0, %s109
    %s112 = sphi 0, %s111
    %s126 = sphi 0, %s112
    %s130 = sphi 0, %s130
    %s132 = sphi 0, %s130
    %s133 = sphi 0, %s132
    %s147 = sphi 0, %s133
    %s151 = sphi 0, %s151
    %s153 = sphi 0, %s151
    %s154 = sphi 0, %s153
    %s168 = sphi 0, %s154
    %s176 = sphi 0, %s178
    %s179 = sphi 0, %s176
    %s180 = sphi 0, %s179
    %s196 = sphi 0, %s180
  $region4: #{double_conv_forward.5} parent=0 // loop_header_branch
    %15 = sbr.rel (%p13) target = $region8
  $region5: #{double_conv_forward.5} parent=0 // loop_body
    %s17 = ssub.s32 %s12, 1
    %s18 = ssub.s32 %s12, 2
    %s25 = sadd.s32 1, %s20
    %p26 = scmp.ge.s32.totalorder %s25, 1
    %s27 = scalar_select %p26, 0, %s25
    %s28 = sadd.s32 1, %s19
    %s29 = scalar_select %p26, %s28, %s19
    %p30 = scmp.ge.s32.totalorder %s29, 2
    %s31 = scalar_select %p30, 0, %s29
    %s32 = ssub.s32 %s19, %s31
    %s33 = ssub.s32 %s20, %s27
    %s34 = sor.u32 %s32, %s33
    %p35 = scmp.eq.s32.totalorder %s34, 0
    %s37 = sadd.s32 %s36, 1
    %s38 = scalar_select %p35, %s36, %s37
    %p41 = pneg %p35
    %p42 = scmp.eq.s32.totalorder %s12, 1
    %p43 = por %p41, %p42
    %p44 = scmp.ne.s32.totalorder %s36, %s39
    %p45 = scmp.eq.s32.totalorder %s12, 0
    %p46 = por %p44, %p45
    %p47 = scmp.ne.s32.totalorder %s36, %s39
    %p48 = scmp.eq.s32.totalorder %s17, 1
    %p49 = por %p47, %p48
    %p50 = scmp.ne.s32.totalorder %s39, %s40
    %p51 = scmp.eq.s32.totalorder %s17, 0
    %p52 = por %p50, %p51
    %p53 = scmp.ne.s32.totalorder %s39, %s40
    %p54 = scmp.eq.s32.totalorder %s18, 1
    %p55 = por %p53, %p54
    %p57 = scmp.ne.s32.totalorder %s40, %s56
    %p58 = scmp.eq.s32.totalorder %s18, 0
    %p59 = por %p57, %p58
    %s60 = ssub.s32 %s19, %s31
    %s61 = ssub.s32 %s20, %s27
    %s62 = sor.u32 %s60, %s61
    %p63 = scmp.eq.s32.totalorder %s62, 0
    %s65 = sadd.s32 %s64, 1
    %s66 = scalar_select %p63, %s64, %s65
    %p69 = pneg %p63
    %p70 = scmp.eq.s32.totalorder %s12, 1
    %p71 = por %p69, %p70
    %p72 = scmp.ne.s32.totalorder %s64, %s67
    %p73 = scmp.eq.s32.totalorder %s12, 0
    %p74 = por %p72, %p73
    %p75 = scmp.ne.s32.totalorder %s64, %s67
    %p76 = scmp.eq.s32.totalorder %s17, 1
    %p77 = por %p75, %p76
    %p78 = scmp.ne.s32.totalorder %s67, %s68
    %p79 = scmp.eq.s32.totalorder %s17, 0
    %p80 = por %p78, %p79
    %p81 = scmp.ne.s32.totalorder %s67, %s68
    %p82 = scmp.eq.s32.totalorder %s18, 1
    %p83 = por %p81, %p82
    %p85 = scmp.ne.s32.totalorder %s68, %s84
    %p86 = scmp.eq.s32.totalorder %s18, 0
    %p87 = por %p85, %p86
    %s89 = sadd.s32 %s88, 1
    %p92 = scmp.eq.s32.totalorder %s12, 1
    %p93 = scmp.ne.s32.totalorder %s88, %s90
    %p94 = scmp.eq.s32.totalorder %s12, 0
    %p95 = por %p93, %p94
    %p96 = scmp.ne.s32.totalorder %s88, %s90
    %p97 = scmp.eq.s32.totalorder %s17, 1
    %p98 = por %p96, %p97
    %p99 = scmp.ne.s32.totalorder %s90, %s91
    %p100 = scmp.eq.s32.totalorder %s17, 0
    %p101 = por %p99, %p100
    %p102 = scmp.ne.s32.totalorder %s90, %s91
    %p103 = scmp.eq.s32.totalorder %s18, 1
    %p104 = por %p102, %p103
    %p106 = scmp.ne.s32.totalorder %s91, %s105
    %p107 = scmp.eq.s32.totalorder %s18, 0
    %p108 = por %p106, %p107
    %s110 = sadd.s32 %s109, 1
    %p113 = scmp.eq.s32.totalorder %s12, 1
    %p114 = scmp.ne.s32.totalorder %s109, %s111
    %p115 = scmp.eq.s32.totalorder %s12, 0
    %p116 = por %p114, %p115
    %p117 = scmp.ne.s32.totalorder %s109, %s111
    %p118 = scmp.eq.s32.totalorder %s17, 1
    %p119 = por %p117, %p118
    %p120 = scmp.ne.s32.totalorder %s111, %s112
    %p121 = scmp.eq.s32.totalorder %s17, 0
    %p122 = por %p120, %p121
    %p123 = scmp.ne.s32.totalorder %s111, %s112
    %p124 = scmp.eq.s32.totalorder %s18, 1
    %p125 = por %p123, %p124
    %p127 = scmp.ne.s32.totalorder %s112, %s126
    %p128 = scmp.eq.s32.totalorder %s18, 0
    %p129 = por %p127, %p128
    %s131 = sadd.s32 %s130, 1
    %p134 = scmp.eq.s32.totalorder %s12, 1
    %p135 = scmp.ne.s32.totalorder %s130, %s132
    %p136 = scmp.eq.s32.totalorder %s12, 0
    %p137 = por %p135, %p136
    %p138 = scmp.ne.s32.totalorder %s130, %s132
    %p139 = scmp.eq.s32.totalorder %s17, 1
    %p140 = por %p138, %p139
    %p141 = scmp.ne.s32.totalorder %s132, %s133
    %p142 = scmp.eq.s32.totalorder %s17, 0
    %p143 = por %p141, %p142
    %p144 = scmp.ne.s32.totalorder %s132, %s133
    %p145 = scmp.eq.s32.totalorder %s18, 1
    %p146 = por %p144, %p145
    %p148 = scmp.ne.s32.totalorder %s133, %s147
    %p149 = scmp.eq.s32.totalorder %s18, 0
    %p150 = por %p148, %p149
    %s152 = sadd.s32 %s151, 1
    %p155 = scmp.eq.s32.totalorder %s12, 1
    %p156 = scmp.ne.s32.totalorder %s151, %s153
    %p157 = scmp.eq.s32.totalorder %s12, 0
    %p158 = por %p156, %p157
    %p159 = scmp.ne.s32.totalorder %s151, %s153
    %p160 = scmp.eq.s32.totalorder %s17, 1
    %p161 = por %p159, %p160
    %p162 = scmp.ne.s32.totalorder %s153, %s154
    %p163 = scmp.eq.s32.totalorder %s17, 0
    %p164 = por %p162, %p163
    %p165 = scmp.ne.s32.totalorder %s153, %s154
    %p166 = scmp.eq.s32.totalorder %s18, 1
    %p167 = por %p165, %p166
    %p169 = scmp.ne.s32.totalorder %s154, %s168
    %p170 = scmp.eq.s32.totalorder %s18, 0
    %p171 = por %p169, %p170
    %s172 = ssub.s32 %s19, %s31
    %s173 = ssub.s32 %s20, %s27
    %s174 = sor.u32 %s172, %s173
    %p175 = scmp.eq.s32.totalorder %s174, 0
    %s177 = sadd.s32 %s176, 1
    %s178 = scalar_select %p175, %s176, %s177
    %p181 = pneg %p175
    %p182 = scmp.eq.s32.totalorder %s12, 1
    %p183 = por %p181, %p182
    %p184 = scmp.ne.s32.totalorder %s176, %s179
    %p185 = scmp.eq.s32.totalorder %s12, 0
    %p186 = por %p184, %p185
    %p187 = scmp.ne.s32.totalorder %s176, %s179
    %p188 = scmp.eq.s32.totalorder %s17, 1
    %p189 = por %p187, %p188
    %p190 = scmp.ne.s32.totalorder %s179, %s180
    %p191 = scmp.eq.s32.totalorder %s17, 0
    %p192 = por %p190, %p191
    %p193 = scmp.ne.s32.totalorder %s179, %s180
    %p194 = scmp.eq.s32.totalorder %s18, 1
    %p195 = por %p193, %p194
    %p197 = scmp.ne.s32.totalorder %s180, %s196
    %p198 = scmp.eq.s32.totalorder %s18, 0
    %p199 = por %p197, %p198
    %p200 = scmp.le.s32.totalorder 1, %s12
    %p201 = scmp.lt.s32.totalorder %s12, 3
    %p202 = pnand %p200, %p201
    %p203 = pneg %p202
    // Predicated region
    $region9: #{double_conv_forward.5} parent=5 // pred_check
      _
    $region10: #{double_conv_forward.5} parent=5 // pred_check_branch
      %205 = sbr.rel (%p202) target = $region12
    $region11: #{double_conv_forward.5} parent=5 // pred_region
      %s206 = ssub.s32 %s12, 1
      // Predicated region
      $region13: #{double_conv_forward.5} parent=11 // pred_check
        %p207 = pneg %p101
      $region14: #{double_conv_forward.5} parent=11 // pred_check_branch
        %209 = sbr.rel (%p207) target = $region16
      $region15: #{double_conv_forward.5} parent=11 // pred_region
        _
      $region16: #{double_conv_forward.5} parent=11 // pred_fallthru
        _
      // Predicated region
      $region17: #{double_conv_forward.5} parent=11 // pred_check
        %p210 = pneg %p122
      $region18: #{double_conv_forward.5} parent=11 // pred_check_branch
        %212 = sbr.rel (%p210) target = $region20
      $region19: #{double_conv_forward.5} parent=11 // pred_region
        _
      $region20: #{double_conv_forward.5} parent=11 // pred_fallthru
        _
      // Predicated region
      $region21: #{double_conv_forward.5} parent=11 // pred_check
        %p213 = pneg %p143
      $region22: #{double_conv_forward.5} parent=11 // pred_check_branch
        %215 = sbr.rel (%p213) target = $region24
      $region23: #{double_conv_forward.5} parent=11 // pred_region
        _
      $region24: #{double_conv_forward.5} parent=11 // pred_fallthru
        _
      // Predicated region
      $region25: #{double_conv_forward.5} parent=11 // pred_check
        %p216 = pneg %p164
      $region26: #{double_conv_forward.5} parent=11 // pred_check_branch
        %218 = sbr.rel (%p216) target = $region28
      $region27: #{double_conv_forward.5} parent=11 // pred_region
        _
      $region28: #{double_conv_forward.5} parent=11 // pred_fallthru
        _
    $region12: #{double_conv_forward.5} parent=5 // pred_fallthru
      _
    %p219 = scmp.lt.s32.totalorder %s12, 2
    // Predicated region
    $region29: #{double_conv_forward.5} parent=5 // pred_check
      %p220 = pneg %p219
    $region30: #{double_conv_forward.5} parent=5 // pred_check_branch
      %222 = sbr.rel (%p220) target = $region32
    $region31: #{double_conv_forward.5} parent=5 // pred_region
      // Predicated region
      $region33: #{double_conv_forward.5} parent=31 // pred_check
        %p223 = pneg %p46
      $region34: #{double_conv_forward.5} parent=31 // pred_check_branch
        %225 = sbr.rel (%p223) target = $region36
      $region35: #{double_conv_forward.5} parent=31 // pred_region
        %s226 = smul.u32 16, %s20
        %p227 = scmp.lt.s32.totalorder %s19, 1
        %s228 = scalar_select %p227, %s19, 1
        %p229 = scmp.lt.s32.totalorder %s226, 15
        %s230 = scalar_select %p229, %s226, 15
        %s231 = smul.addr %s230, 2
        %s232 = smul.addr %s228, 32
        %s233 = sadd.s32 %s231, %s232
        %s234 = smul.addr %s233, 8
        %s235 = scalar_lea.vmem %s0, %s234
        %s236 = smul.u32 16, %s20
      $region36: #{double_conv_forward.5} parent=31 // pred_fallthru
        _
      // Predicated region
      $region37: #{double_conv_forward.5} parent=31 // pred_check
        %p237 = pneg %p74
      $region38: #{double_conv_forward.5} parent=31 // pred_check_branch
        %239 = sbr.rel (%p237) target = $region40
      $region39: #{double_conv_forward.5} parent=31 // pred_region
        %s240 = smul.u32 2, %s20
        %p241 = scmp.lt.s32.totalorder %s19, 1
        %s242 = scalar_select %p241, %s19, 1
        %p243 = scmp.lt.s32.totalorder %s240, 1
        %s244 = scalar_select %p243, %s240, 1
        %s245 = smul.addr %s244, 2
        %s246 = smul.addr %s242, 4
        %s247 = sadd.s32 %s245, %s246
        %s248 = smul.addr %s247, 8
        %s249 = scalar_lea.vmem %s1, %s248
        %s250 = smul.u32 2, %s20
      $region40: #{double_conv_forward.5} parent=31 // pred_fallthru
        _
    $region32: #{double_conv_forward.5} parent=5 // pred_fallthru
      _
    %p251 = scmp.le.s32.totalorder 1, %s12
    %p252 = scmp.lt.s32.totalorder %s12, 3
    %p253 = pnand %p251, %p252
    %p254 = pneg %p253
    // Predicated region
    $region41: #{double_conv_forward.5} parent=5 // pred_check
      _
    $region42: #{double_conv_forward.5} parent=5 // pred_check_branch
      %256 = sbr.rel (%p253) target = $region44
    $region43: #{double_conv_forward.5} parent=5 // pred_region
      %s257 = ssub.s32 %s12, 1
      %s258 = smul.u32 16, %s22
      %p259 = scmp.lt.s32.totalorder %s21, 1
      %s260 = scalar_select %p259, %s21, 1
      %p261 = scmp.lt.s32.totalorder %s258, 15
      %s262 = scalar_select %p261, %s258, 15
      %s263 = smul.addr %s262, 2
      %s264 = smul.addr %s260, 32
      %s265 = sadd.s32 %s263, %s264
      %s266 = smul.addr %s265, 8
      %s267 = scalar_lea.vmem %s0, %s266
      %p268 = pneg %p52
      %p269 = pneg %p49
      %s270 = smul.u32 2, %s22
      %p271 = scmp.lt.s32.totalorder %s21, 1
      %s272 = scalar_select %p271, %s21, 1
      %p273 = scmp.lt.s32.totalorder %s270, 1
      %s274 = scalar_select %p273, %s270, 1
      %s275 = smul.addr %s274, 2
      %s276 = smul.addr %s272, 4
      %s277 = sadd.s32 %s275, %s276
      %s278 = smul.addr %s277, 8
      %s279 = scalar_lea.vmem %s1, %s278
      %p280 = pneg %p80
      %p281 = pneg %p77
      %p282 = pneg %p101
      %p283 = pneg %p98
      %p284 = pneg %p122
      %p285 = pneg %p119
      %p286 = pneg %p143
      %p287 = pneg %p140
      %p288 = pneg %p164
      %p289 = pneg %p161
      %p290 = pneg %p192
      %p291 = pneg %p189
      %s292 = smul.u32 16, %s22
      %p293 = scmp.lt.s32.totalorder %s21, 1
      %s294 = scalar_select %p293, %s21, 1
      %p295 = scmp.lt.s32.totalorder %s292, 15
      %s296 = scalar_select %p295, %s292, 15
      %s297 = smul.addr %s296, 2
      %s298 = smul.addr %s294, 32
      %s299 = sadd.s32 %s297, %s298
      %s300 = smul.addr %s299, 8
      %s301 = scalar_lea.vmem %s6, %s300
      %s302 = smul.u32 16, %s22
      %p303 = scmp.lt.s32.totalorder %s21, 1
      %s304 = scalar_select %p303, %s21, 1
      %p305 = scmp.lt.s32.totalorder %s302, 15
      %s306 = scalar_select %p305, %s302, 15
      %s307 = smul.addr %s306, 2
      %s308 = smul.addr %s304, 32
      %s309 = sadd.s32 %s307, %s308
      %s310 = smul.addr %s309, 8
      %s311 = scalar_lea.vmem %s0, %s310
      %s312 = smul.u32 16, %s22
      %s313 = smul.u32 2, %s22
      %p314 = scmp.lt.s32.totalorder %s21, 1
      %s315 = scalar_select %p314, %s21, 1
      %p316 = scmp.lt.s32.totalorder %s313, 1
      %s317 = scalar_select %p316, %s313, 1
      %s318 = smul.addr %s317, 2
      %s319 = smul.addr %s315, 4
      %s320 = sadd.s32 %s318, %s319
      %s321 = smul.addr %s320, 8
      %s322 = scalar_lea.vmem %s1, %s321
      %s323 = smul.u32 2, %s22
      %s324 = smul.u32 16, %s22
      %p325 = scmp.lt.s32.totalorder %s21, 1
      %s326 = scalar_select %p325, %s21, 1
      %p327 = scmp.lt.s32.totalorder %s324, 15
      %s328 = scalar_select %p327, %s324, 15
      %s329 = smul.addr %s328, 2
      %s330 = smul.addr %s326, 32
      %s331 = sadd.s32 %s329, %s330
      %s332 = smul.addr %s331, 8
      %s333 = scalar_lea.vmem %s6, %s332
      %s334 = smul.u32 16, %s22
      %v335 = vld [vmem:[%s2] sm:$0x1]
      %v336 = vld [vmem:[%s3] sm:$0x1]
      %vm337 = vcmask 57344
      %338 = vst.msk [vmem:[#allocation2] sm:$0x1] %vm337, 0.0
      %339 = vst.msk [vmem:[#allocation2 + $0x18] sm:$0x1] %vm337, 0.0
      %340 = vst.msk [vmem:[#allocation2 + $0x30] sm:$0x1] %vm337, 0.0
      %341 = vst.msk [vmem:[#allocation2 + $0x48] sm:$0x1] %vm337, 0.0
      %342 = vst.msk [vmem:[#allocation2 + $0x60] sm:$0x1] %vm337, 0.0
      %343 = vst.msk [vmem:[#allocation2 + $0x78] sm:$0x1] %vm337, 0.0
      %344 = vst.msk [vmem:[#allocation2 + $0x90] sm:$0x1] %vm337, 0.0
      %345 = vst.msk [vmem:[#allocation2 + $0xa8] sm:$0x1] %vm337, 0.0
      %346 = vst.msk [vmem:[#allocation2 + $0xc0] sm:$0x1] %vm337, 0.0
      %347 = vst.msk [vmem:[#allocation2 + $0xd8] sm:$0x1] %vm337, 0.0
      %348 = vst.msk [vmem:[#allocation2 + $0xf0] sm:$0x1] %vm337, 0.0
      %349 = vst.msk [vmem:[#allocation2 + $0x108] sm:$0x1] %vm337, 0.0
      %350 = vst.msk [vmem:[#allocation2 + $0x120] sm:$0x1] %vm337, 0.0
      %351 = vst.msk [vmem:[#allocation2 + $0x138] sm:$0x1] %vm337, 0.0
      %352 = vst.msk [vmem:[#allocation2 + $0x150] sm:$0x1] %vm337, 0.0
      %353 = vst.msk [vmem:[#allocation2 + $0x168] sm:$0x1] %vm337, 0.0
      %354 = vst.msk [vmem:[#allocation2 + $0x180] sm:$0x1] %vm337, 0.0
      %355 = vst.msk [vmem:[#allocation2 + $0x198] sm:$0x1] %vm337, 0.0
      %356 = vst.msk [vmem:[#allocation2 + $0x11] sm:$0x1] %vm337, 0.0
      %357 = vst.msk [vmem:[#allocation2 + $0x29] sm:$0x1] %vm337, 0.0
      %358 = vst.msk [vmem:[#allocation2 + $0x41] sm:$0x1] %vm337, 0.0
      %359 = vst.msk [vmem:[#allocation2 + $0x59] sm:$0x1] %vm337, 0.0
      %360 = vst.msk [vmem:[#allocation2 + $0x71] sm:$0x1] %vm337, 0.0
      %361 = vst.msk [vmem:[#allocation2 + $0x89] sm:$0x1] %vm337, 0.0
      %362 = vst.msk [vmem:[#allocation2 + $0xa1] sm:$0x1] %vm337, 0.0
      %363 = vst.msk [vmem:[#allocation2 + $0xb9] sm:$0x1] %vm337, 0.0
      %364 = vst.msk [vmem:[#allocation2 + $0xd1] sm:$0x1] %vm337, 0.0
      %365 = vst.msk [vmem:[#allocation2 + $0xe9] sm:$0x1] %vm337, 0.0
      %366 = vst.msk [vmem:[#allocation2 + $0x101] sm:$0x1] %vm337, 0.0
      %367 = vst.msk [vmem:[#allocation2 + $0x119] sm:$0x1] %vm337, 0.0
      %368 = vst.msk [vmem:[#allocation2 + $0x131] sm:$0x1] %vm337, 0.0
      %369 = vst.msk [vmem:[#allocation2 + $0x149] sm:$0x1] %vm337, 0.0
      %370 = vst.msk [vmem:[#allocation2 + $0x161] sm:$0x1] %vm337, 0.0
      %371 = vst.msk [vmem:[#allocation2 + $0x179] sm:$0x1] %vm337, 0.0
      %372 = vst.msk [vmem:[#allocation2 + $0x191] sm:$0x1] %vm337, 0.0
      %373 = vst.msk [vmem:[#allocation2 + $0x1a9] sm:$0x1] %vm337, 0.0
      %v374 = vld [vmem:[%s311] sm:$0xff]
      %v375 = vld [vmem:[%s311 + $0x8] sm:$0xff]
      %v376 = vld [vmem:[%s311 + $0x10] sm:$0xff]
      %v377 = vld [vmem:[%s311 + $0x18] sm:$0xff]
      %v378 = vld [vmem:[%s311 + $0x20] sm:$0xff]
      %v379 = vld [vmem:[%s311 + $0x28] sm:$0xff]
      %v380 = vld [vmem:[%s311 + $0x30] sm:$0xff]
      %v381 = vld [vmem:[%s311 + $0x38] sm:$0xff]
      %v382 = vld [vmem:[%s311 + $0x40] sm:$0xff]
      %v383 = vld [vmem:[%s311 + $0x48] sm:$0xff]
      %v384 = vld [vmem:[%s311 + $0x50] sm:$0xff]
      %v385 = vld [vmem:[%s311 + $0x58] sm:$0xff]
      %v386 = vld [vmem:[%s311 + $0x60] sm:$0xff]
      %v387 = vld [vmem:[%s311 + $0x68] sm:$0xff]
      %v388 = vld [vmem:[%s311 + $0x70] sm:$0xff]
      %v389 = vld [vmem:[%s311 + $0x78] sm:$0xff]
      %v390 = vld [vmem:[%s311 + $0x80] sm:$0xff]
      %v391 = vld [vmem:[%s311 + $0x88] sm:$0xff]
      %v392 = vld [vmem:[%s311 + $0x90] sm:$0xff]
      %v393 = vld [vmem:[%s311 + $0x98] sm:$0xff]
      %v394 = vld [vmem:[%s311 + $0xa0] sm:$0xff]
      %v395 = vld [vmem:[%s311 + $0xa8] sm:$0xff]
      %v396 = vld [vmem:[%s311 + $0xb0] sm:$0xff]
      %v397 = vld [vmem:[%s311 + $0xb8] sm:$0xff]
      %v398 = vld [vmem:[%s311 + $0xc0] sm:$0xff]
      %v399 = vld [vmem:[%s311 + $0xc8] sm:$0xff]
      %v400 = vld [vmem:[%s311 + $0xd0] sm:$0xff]
      %v401 = vld [vmem:[%s311 + $0xd8] sm:$0xff]
      %v402 = vld [vmem:[%s311 + $0xe0] sm:$0xff]
      %v403 = vld [vmem:[%s311 + $0xe8] sm:$0xff]
      %v404 = vld [vmem:[%s311 + $0xf0] sm:$0xff]
      %v405 = vld [vmem:[%s311 + $0xf8] sm:$0xff]
      %v407 = vlaneseq
      %v408 = vshrl.u32 %v407, 7
      %v409 = vsub.s32 0, %v408
      %v410 = vrot.slane %v335, %v409
      %v412 = vmul.f32 %v374, %v410
      %v413 = vmul.f32 %v375, %v410
      %v414 = vmul.f32 %v376, %v410
      %v415 = vmul.f32 %v377, %v410
      %v416 = vmul.f32 %v378, %v410
      %v417 = vmul.f32 %v379, %v410
      %v418 = vmul.f32 %v380, %v410
      %v419 = vmul.f32 %v381, %v410
      %v420 = vmul.f32 %v382, %v410
      %v421 = vmul.f32 %v383, %v410
      %v422 = vmul.f32 %v384, %v410
      %v423 = vmul.f32 %v385, %v410
      %v424 = vmul.f32 %v386, %v410
      %v425 = vmul.f32 %v387, %v410
      %v426 = vmul.f32 %v388, %v410
      %v427 = vmul.f32 %v389, %v410
      %v428 = vmul.f32 %v390, %v410
      %v429 = vmul.f32 %v391, %v410
      %v430 = vmul.f32 %v392, %v410
      %v431 = vmul.f32 %v393, %v410
      %v432 = vmul.f32 %v394, %v410
      %v433 = vmul.f32 %v395, %v410
      %v434 = vmul.f32 %v396, %v410
      %v435 = vmul.f32 %v397, %v410
      %v436 = vmul.f32 %v398, %v410
      %v437 = vmul.f32 %v399, %v410
      %v438 = vmul.f32 %v400, %v410
      %v439 = vmul.f32 %v401, %v410
      %v440 = vmul.f32 %v402, %v410
      %v441 = vmul.f32 %v403, %v410
      %v442 = vmul.f32 %v404, %v410
      %v443 = vmul.f32 %v405, %v410
      %v445 = vlaneseq
      %v446 = vshrl.u32 %v445, 7
      %v447 = vsub.s32 0, %v446
      %v448 = vrot.slane %v336, %v447
      %v450 = vadd.f32 %v412, %v448
      %v451 = vadd.f32 %v413, %v448
      %v452 = vadd.f32 %v414, %v448
      %v453 = vadd.f32 %v415, %v448
      %v454 = vadd.f32 %v416, %v448
      %v455 = vadd.f32 %v417, %v448
      %v456 = vadd.f32 %v418, %v448
      %v457 = vadd.f32 %v419, %v448
      %v458 = vadd.f32 %v420, %v448
      %v459 = vadd.f32 %v421, %v448
      %v460 = vadd.f32 %v422, %v448
      %v461 = vadd.f32 %v423, %v448
      %v462 = vadd.f32 %v424, %v448
      %v463 = vadd.f32 %v425, %v448
      %v464 = vadd.f32 %v426, %v448
      %v465 = vadd.f32 %v427, %v448
      %v466 = vadd.f32 %v428, %v448
      %v467 = vadd.f32 %v429, %v448
      %v468 = vadd.f32 %v430, %v448
      %v469 = vadd.f32 %v431, %v448
      %v470 = vadd.f32 %v432, %v448
      %v471 = vadd.f32 %v433, %v448
      %v472 = vadd.f32 %v434, %v448
      %v473 = vadd.f32 %v435, %v448
      %v474 = vadd.f32 %v436, %v448
      %v475 = vadd.f32 %v437, %v448
      %v476 = vadd.f32 %v438, %v448
      %v477 = vadd.f32 %v439, %v448
      %v478 = vadd.f32 %v440, %v448
      %v479 = vadd.f32 %v441, %v448
      %v480 = vadd.f32 %v442, %v448
      %v481 = vadd.f32 %v443, %v448
      %v482 = vmax.f32 %v450, 0.0
      %v483 = vmax.f32 %v451, 0.0
      %v484 = vmax.f32 %v452, 0.0
      %v485 = vmax.f32 %v453, 0.0
      %v486 = vmax.f32 %v454, 0.0
      %v487 = vmax.f32 %v455, 0.0
      %v488 = vmax.f32 %v456, 0.0
      %v489 = vmax.f32 %v457, 0.0
      %v490 = vmax.f32 %v458, 0.0
      %v491 = vmax.f32 %v459, 0.0
      %v492 = vmax.f32 %v460, 0.0
      %v493 = vmax.f32 %v461, 0.0
      %v494 = vmax.f32 %v462, 0.0
      %v495 = vmax.f32 %v463, 0.0
      %v496 = vmax.f32 %v464, 0.0
      %v497 = vmax.f32 %v465, 0.0
      %v498 = vmax.f32 %v466, 0.0
      %v499 = vmax.f32 %v467, 0.0
      %v500 = vmax.f32 %v468, 0.0
      %v501 = vmax.f32 %v469, 0.0
      %v502 = vmax.f32 %v470, 0.0
      %v503 = vmax.f32 %v471, 0.0
      %v504 = vmax.f32 %v472, 0.0
      %v505 = vmax.f32 %v473, 0.0
      %v506 = vmax.f32 %v474, 0.0
      %v507 = vmax.f32 %v475, 0.0
      %v508 = vmax.f32 %v476, 0.0
      %v509 = vmax.f32 %v477, 0.0
      %v510 = vmax.f32 %v478, 0.0
      %v511 = vmax.f32 %v479, 0.0
      %v512 = vmax.f32 %v480, 0.0
      %v513 = vmax.f32 %v481, 0.0
      %s514 = scalar_lea.vmem [#allocation2], 24
      %vm515 = vcmask 64512
      %516 = vst.msk [vmem:[%s514 + $0x1] sm:$0xff] %vm515, %v482
      %517 = vst.msk [vmem:[%s514 + $0x9] sm:$0xff] %vm515, %v483
      %518 = vst.msk [vmem:[%s514 + $0x19] sm:$0xff] %vm515, %v484
      %519 = vst.msk [vmem:[%s514 + $0x21] sm:$0xff] %vm515, %v485
      %520 = vst.msk [vmem:[%s514 + $0x31] sm:$0xff] %vm515, %v486
      %521 = vst.msk [vmem:[%s514 + $0x39] sm:$0xff] %vm515, %v487
      %522 = vst.msk [vmem:[%s514 + $0x49] sm:$0xff] %vm515, %v488
      %523 = vst.msk [vmem:[%s514 + $0x51] sm:$0xff] %vm515, %v489
      %524 = vst.msk [vmem:[%s514 + $0x61] sm:$0xff] %vm515, %v490
      %525 = vst.msk [vmem:[%s514 + $0x69] sm:$0xff] %vm515, %v491
      %526 = vst.msk [vmem:[%s514 + $0x79] sm:$0xff] %vm515, %v492
      %527 = vst.msk [vmem:[%s514 + $0x81] sm:$0xff] %vm515, %v493
      %528 = vst.msk [vmem:[%s514 + $0x91] sm:$0xff] %vm515, %v494
      %529 = vst.msk [vmem:[%s514 + $0x99] sm:$0xff] %vm515, %v495
      %530 = vst.msk [vmem:[%s514 + $0xa9] sm:$0xff] %vm515, %v496
      %531 = vst.msk [vmem:[%s514 + $0xb1] sm:$0xff] %vm515, %v497
      %532 = vst.msk [vmem:[%s514 + $0xc1] sm:$0xff] %vm515, %v498
      %533 = vst.msk [vmem:[%s514 + $0xc9] sm:$0xff] %vm515, %v499
      %534 = vst.msk [vmem:[%s514 + $0xd9] sm:$0xff] %vm515, %v500
      %535 = vst.msk [vmem:[%s514 + $0xe1] sm:$0xff] %vm515, %v501
      %536 = vst.msk [vmem:[%s514 + $0xf1] sm:$0xff] %vm515, %v502
      %537 = vst.msk [vmem:[%s514 + $0xf9] sm:$0xff] %vm515, %v503
      %538 = vst.msk [vmem:[%s514 + $0x109] sm:$0xff] %vm515, %v504
      %539 = vst.msk [vmem:[%s514 + $0x111] sm:$0xff] %vm515, %v505
      %540 = vst.msk [vmem:[%s514 + $0x121] sm:$0xff] %vm515, %v506
      %541 = vst.msk [vmem:[%s514 + $0x129] sm:$0xff] %vm515, %v507
      %542 = vst.msk [vmem:[%s514 + $0x139] sm:$0xff] %vm515, %v508
      %543 = vst.msk [vmem:[%s514 + $0x141] sm:$0xff] %vm515, %v509
      %544 = vst.msk [vmem:[%s514 + $0x151] sm:$0xff] %vm515, %v510
      %545 = vst.msk [vmem:[%s514 + $0x159] sm:$0xff] %vm515, %v511
      %546 = vst.msk [vmem:[%s514 + $0x169] sm:$0xff] %vm515, %v512
      %547 = vst.msk [vmem:[%s514 + $0x171] sm:$0xff] %vm515, %v513
      %v548 = vld [vmem:[%s322] sm:$0xff]
      %v549 = vld [vmem:[%s322 + $0x8] sm:$0xff]
      %v550 = vld [vmem:[%s322 + $0x10] sm:$0xff]
      %v551 = vld [vmem:[%s322 + $0x18] sm:$0xff]
      %v552 = vmul.f32 %v548, %v410
      %v553 = vmul.f32 %v549, %v410
      %v554 = vadd.f32 %v552, %v448
      %v555 = vadd.f32 %v553, %v448
      %v556 = vmax.f32 %v554, 0.0
      %v557 = vmax.f32 %v555, 0.0
      %p558 = scmp.gt.s32.totalorder %s22, 0
      %s559 = scalar_select %p558, 1, 0
      %s560 = scvt.s32.f32 %s559
      %v561 = vstv %s560
      %v562 = vmul.f32 %v556, %v561
      %v563 = vmul.f32 %v557, %v561
      %v564 = vmul.f32 %v550, %v410
      %v565 = vmul.f32 %v551, %v410
      %v566 = vadd.f32 %v564, %v448
      %v567 = vadd.f32 %v565, %v448
      %v568 = vmax.f32 %v566, 0.0
      %v569 = vmax.f32 %v567, 0.0
      %p570 = scmp.lt.s32.totalorder %s22, 0
      %s571 = scalar_select %p570, 1, 0
      %s572 = scvt.s32.f32 %s571
      %v573 = vstv %s572
      %v574 = vmul.f32 %v568, %v573
      %v575 = vmul.f32 %v569, %v573
      %576 = vst.msk [vmem:[#allocation2 + $0x1] sm:$0xff] %vm515, %v562
      %577 = vst.msk [vmem:[#allocation2 + $0x9] sm:$0xff] %vm515, %v563
      %s578 = scalar_lea.vmem [#allocation2], 408
      %579 = vst.msk [vmem:[%s578 + $0x1] sm:$0xff] %vm515, %v574
      %580 = vst.msk [vmem:[%s578 + $0x9] sm:$0xff] %vm515, %v575
      %v581 = vld [vmem:[#allocation2] sm:$0xff]
      %v582 = vld [vmem:[#allocation2 + $0x8] sm:$0xff]
      %v583 = vld [vmem:[#allocation2 + $0x18] sm:$0xff]
      %v584 = vld [vmem:[#allocation2 + $0x20] sm:$0xff]
      %v585 = vld [vmem:[#allocation2 + $0x30] sm:$0xff]
      %v586 = vld [vmem:[#allocation2 + $0x38] sm:$0xff]
      %v587 = vld [vmem:[#allocation2 + $0x48] sm:$0xff]
      %v588 = vld [vmem:[#allocation2 + $0x50] sm:$0xff]
      %v589 = vld [vmem:[#allocation2 + $0x60] sm:$0xff]
      %v590 = vld [vmem:[#allocation2 + $0x68] sm:$0xff]
      %v591 = vld [vmem:[#allocation2 + $0x78] sm:$0xff]
      %v592 = vld [vmem:[#allocation2 + $0x80] sm:$0xff]
      %v593 = vld [vmem:[#allocation2 + $0x90] sm:$0xff]
      %v594 = vld [vmem:[#allocation2 + $0x98] sm:$0xff]
      %v595 = vld [vmem:[#allocation2 + $0xa8] sm:$0xff]
      %v596 = vld [vmem:[#allocation2 + $0xb0] sm:$0xff]
      %v597 = vld [vmem:[#allocation2 + $0xc0] sm:$0xff]
      %v598 = vld [vmem:[#allocation2 + $0xc8] sm:$0xff]
      %v599 = vld [vmem:[#allocation2 + $0xd8] sm:$0xff]
      %v600 = vld [vmem:[#allocation2 + $0xe0] sm:$0xff]
      %v601 = vld [vmem:[#allocation2 + $0xf0] sm:$0xff]
      %v602 = vld [vmem:[#allocation2 + $0xf8] sm:$0xff]
      %v603 = vld [vmem:[#allocation2 + $0x108] sm:$0xff]
      %v604 = vld [vmem:[#allocation2 + $0x110] sm:$0xff]
      %v605 = vld [vmem:[#allocation2 + $0x120] sm:$0xff]
      %v606 = vld [vmem:[#allocation2 + $0x128] sm:$0xff]
      %v607 = vld [vmem:[#allocation2 + $0x138] sm:$0xff]
      %v608 = vld [vmem:[#allocation2 + $0x140] sm:$0xff]
      %v609 = vld [vmem:[#allocation2 + $0x150] sm:$0xff]
      %v610 = vld [vmem:[#allocation2 + $0x158] sm:$0xff]
      %v611 = vld [vmem:[#allocation2 + $0x168] sm:$0xff]
      %v612 = vld [vmem:[#allocation2 + $0x170] sm:$0xff]
      %613 = vst.msk [vmem:[#allocation3] sm:$0xff] %vm515, %v581
      %614 = vst.msk [vmem:[#allocation3 + $0x8] sm:$0xff] %vm515, %v582
      %615 = vst.msk [vmem:[#allocation3 + $0x10] sm:$0xff] %vm515, %v583
      %616 = vst.msk [vmem:[#allocation3 + $0x18] sm:$0xff] %vm515, %v584
      %617 = vst.msk [vmem:[#allocation3 + $0x20] sm:$0xff] %vm515, %v585
      %618 = vst.msk [vmem:[#allocation3 + $0x28] sm:$0xff] %vm515, %v586
      %619 = vst.msk [vmem:[#allocation3 + $0x30] sm:$0xff] %vm515, %v587
      %620 = vst.msk [vmem:[#allocation3 + $0x38] sm:$0xff] %vm515, %v588
      %621 = vst.msk [vmem:[#allocation3 + $0x40] sm:$0xff] %vm515, %v589
      %622 = vst.msk [vmem:[#allocation3 + $0x48] sm:$0xff] %vm515, %v590
      %623 = vst.msk [vmem:[#allocation3 + $0x50] sm:$0xff] %vm515, %v591
      %624 = vst.msk [vmem:[#allocation3 + $0x58] sm:$0xff] %vm515, %v592
      %625 = vst.msk [vmem:[#allocation3 + $0x60] sm:$0xff] %vm515, %v593
      %626 = vst.msk [vmem:[#allocation3 + $0x68] sm:$0xff] %vm515, %v594
      %627 = vst.msk [vmem:[#allocation3 + $0x70] sm:$0xff] %vm515, %v595
      %628 = vst.msk [vmem:[#allocation3 + $0x78] sm:$0xff] %vm515, %v596
      %629 = vst.msk [vmem:[#allocation3 + $0x80] sm:$0xff] %vm515, %v597
      %630 = vst.msk [vmem:[#allocation3 + $0x88] sm:$0xff] %vm515, %v598
      %631 = vst.msk [vmem:[#allocation3 + $0x90] sm:$0xff] %vm515, %v599
      %632 = vst.msk [vmem:[#allocation3 + $0x98] sm:$0xff] %vm515, %v600
      %633 = vst.msk [vmem:[#allocation3 + $0xa0] sm:$0xff] %vm515, %v601
      %634 = vst.msk [vmem:[#allocation3 + $0xa8] sm:$0xff] %vm515, %v602
      %635 = vst.msk [vmem:[#allocation3 + $0xb0] sm:$0xff] %vm515, %v603
      %636 = vst.msk [vmem:[#allocation3 + $0xb8] sm:$0xff] %vm515, %v604
      %637 = vst.msk [vmem:[#allocation3 + $0xc0] sm:$0xff] %vm515, %v605
      %638 = vst.msk [vmem:[#allocation3 + $0xc8] sm:$0xff] %vm515, %v606
      %639 = vst.msk [vmem:[#allocation3 + $0xd0] sm:$0xff] %vm515, %v607
      %640 = vst.msk [vmem:[#allocation3 + $0xd8] sm:$0xff] %vm515, %v608
      %641 = vst.msk [vmem:[#allocation3 + $0xe0] sm:$0xff] %vm515, %v609
      %642 = vst.msk [vmem:[#allocation3 + $0xe8] sm:$0xff] %vm515, %v610
      %643 = vst.msk [vmem:[#allocation3 + $0xf0] sm:$0xff] %vm515, %v611
      %644 = vst.msk [vmem:[#allocation3 + $0xf8] sm:$0xff] %vm515, %v612
      %v645 = vld [vmem:[#allocation2 + $0x1] sm:$0xff]
      %v646 = vld [vmem:[#allocation2 + $0x9] sm:$0xff]
      %v647 = vld [vmem:[#allocation2 + $0x19] sm:$0xff]
      %v648 = vld [vmem:[#allocation2 + $0x21] sm:$0xff]
      %v649 = vld [vmem:[#allocation2 + $0x31] sm:$0xff]
      %v650 = vld [vmem:[#allocation2 + $0x39] sm:$0xff]
      %v651 = vld [vmem:[#allocation2 + $0x49] sm:$0xff]
      %v652 = vld [vmem:[#allocation2 + $0x51] sm:$0xff]
      %v653 = vld [vmem:[#allocation2 + $0x61] sm:$0xff]
      %v654 = vld [vmem:[#allocation2 + $0x69] sm:$0xff]
      %v655 = vld [vmem:[#allocation2 + $0x79] sm:$0xff]
      %v656 = vld [vmem:[#allocation2 + $0x81] sm:$0xff]
      %v657 = vld [vmem:[#allocation2 + $0x91] sm:$0xff]
      %v658 = vld [vmem:[#allocation2 + $0x99] sm:$0xff]
      %v659 = vld [vmem:[#allocation2 + $0xa9] sm:$0xff]
      %v660 = vld [vmem:[#allocation2 + $0xb1] sm:$0xff]
      %v661 = vld [vmem:[#allocation2 + $0xc1] sm:$0xff]
      %v662 = vld [vmem:[#allocation2 + $0xc9] sm:$0xff]
      %v663 = vld [vmem:[#allocation2 + $0xd9] sm:$0xff]
      %v664 = vld [vmem:[#allocation2 + $0xe1] sm:$0xff]
      %v665 = vld [vmem:[#allocation2 + $0xf1] sm:$0xff]
      %v666 = vld [vmem:[#allocation2 + $0xf9] sm:$0xff]
      %v667 = vld [vmem:[#allocation2 + $0x109] sm:$0xff]
      %v668 = vld [vmem:[#allocation2 + $0x111] sm:$0xff]
      %v669 = vld [vmem:[#allocation2 + $0x121] sm:$0xff]
      %v670 = vld [vmem:[#allocation2 + $0x129] sm:$0xff]
      %v671 = vld [vmem:[#allocation2 + $0x139] sm:$0xff]
      %v672 = vld [vmem:[#allocation2 + $0x141] sm:$0xff]
      %v673 = vld [vmem:[#allocation2 + $0x151] sm:$0xff]
      %v674 = vld [vmem:[#allocation2 + $0x159] sm:$0xff]
      %v675 = vld [vmem:[#allocation2 + $0x169] sm:$0xff]
      %v676 = vld [vmem:[#allocation2 + $0x171] sm:$0xff]
      %709 = vrot.lane.b32.xlu0 %v645, 8
      %v710 = vpop.permute.xlu0 %709
      %711 = vrot.lane.b32.xlu0 %v646, 8
      %v712 = vpop.permute.xlu0 %711
      %713 = vrot.lane.b32.xlu0 %v647, 8
      %v714 = vpop.permute.xlu0 %713
      %715 = vrot.lane.b32.xlu0 %v648, 8
      %v716 = vpop.permute.xlu0 %715
      %717 = vrot.lane.b32.xlu0 %v649, 8
      %v718 = vpop.permute.xlu0 %717
      %719 = vrot.lane.b32.xlu0 %v650, 8
      %v720 = vpop.permute.xlu0 %719
      %721 = vrot.lane.b32.xlu0 %v651, 8
      %v722 = vpop.permute.xlu0 %721
      %723 = vrot.lane.b32.xlu0 %v652, 8
      %v724 = vpop.permute.xlu0 %723
      %725 = vrot.lane.b32.xlu0 %v653, 8
      %v726 = vpop.permute.xlu0 %725
      %727 = vrot.lane.b32.xlu0 %v654, 8
      %v728 = vpop.permute.xlu0 %727
      %729 = vrot.lane.b32.xlu0 %v655, 8
      %v730 = vpop.permute.xlu0 %729
      %731 = vrot.lane.b32.xlu0 %v656, 8
      %v732 = vpop.permute.xlu0 %731
      %733 = vrot.lane.b32.xlu0 %v657, 8
      %v734 = vpop.permute.xlu0 %733
      %735 = vrot.lane.b32.xlu0 %v658, 8
      %v736 = vpop.permute.xlu0 %735
      %737 = vrot.lane.b32.xlu0 %v659, 8
      %v738 = vpop.permute.xlu0 %737
      %739 = vrot.lane.b32.xlu0 %v660, 8
      %v740 = vpop.permute.xlu0 %739
      %741 = vrot.lane.b32.xlu0 %v661, 8
      %v742 = vpop.permute.xlu0 %741
      %743 = vrot.lane.b32.xlu0 %v662, 8
      %v744 = vpop.permute.xlu0 %743
      %745 = vrot.lane.b32.xlu0 %v663, 8
      %v746 = vpop.permute.xlu0 %745
      %747 = vrot.lane.b32.xlu0 %v664, 8
      %v748 = vpop.permute.xlu0 %747
      %749 = vrot.lane.b32.xlu0 %v665, 8
      %v750 = vpop.permute.xlu0 %749
      %751 = vrot.lane.b32.xlu0 %v666, 8
      %v752 = vpop.permute.xlu0 %751
      %753 = vrot.lane.b32.xlu0 %v667, 8
      %v754 = vpop.permute.xlu0 %753
      %755 = vrot.lane.b32.xlu0 %v668, 8
      %v756 = vpop.permute.xlu0 %755
      %757 = vrot.lane.b32.xlu0 %v669, 8
      %v758 = vpop.permute.xlu0 %757
      %759 = vrot.lane.b32.xlu0 %v670, 8
      %v760 = vpop.permute.xlu0 %759
      %761 = vrot.lane.b32.xlu0 %v671, 8
      %v762 = vpop.permute.xlu0 %761
      %763 = vrot.lane.b32.xlu0 %v672, 8
      %v764 = vpop.permute.xlu0 %763
      %765 = vrot.lane.b32.xlu0 %v673, 8
      %v766 = vpop.permute.xlu0 %765
      %767 = vrot.lane.b32.xlu0 %v674, 8
      %v768 = vpop.permute.xlu0 %767
      %769 = vrot.lane.b32.xlu0 %v675, 8
      %v770 = vpop.permute.xlu0 %769
      %771 = vrot.lane.b32.xlu0 %v676, 8
      %v772 = vpop.permute.xlu0 %771
      %vm805 = vcmask 130112
      %806 = vst.msk [vmem:[#allocation3] sm:$0xff] %vm805, %v710
      %807 = vst.msk [vmem:[#allocation3 + $0x8] sm:$0xff] %vm805, %v712
      %808 = vst.msk [vmem:[#allocation3 + $0x10] sm:$0xff] %vm805, %v714
      %809 = vst.msk [vmem:[#allocation3 + $0x18] sm:$0xff] %vm805, %v716
      %810 = vst.msk [vmem:[#allocation3 + $0x20] sm:$0xff] %vm805, %v718
      %811 = vst.msk [vmem:[#allocation3 + $0x28] sm:$0xff] %vm805, %v720
      %812 = vst.msk [vmem:[#allocation3 + $0x30] sm:$0xff] %vm805, %v722
      %813 = vst.msk [vmem:[#allocation3 + $0x38] sm:$0xff] %vm805, %v724
      %814 = vst.msk [vmem:[#allocation3 + $0x40] sm:$0xff] %vm805, %v726
      %815 = vst.msk [vmem:[#allocation3 + $0x48] sm:$0xff] %vm805, %v728
      %816 = vst.msk [vmem:[#allocation3 + $0x50] sm:$0xff] %vm805, %v730
      %817 = vst.msk [vmem:[#allocation3 + $0x58] sm:$0xff] %vm805, %v732
      %818 = vst.msk [vmem:[#allocation3 + $0x60] sm:$0xff] %vm805, %v734
      %819 = vst.msk [vmem:[#allocation3 + $0x68] sm:$0xff] %vm805, %v736
      %820 = vst.msk [vmem:[#allocation3 + $0x70] sm:$0xff] %vm805, %v738
      %821 = vst.msk [vmem:[#allocation3 + $0x78] sm:$0xff] %vm805, %v740
      %822 = vst.msk [vmem:[#allocation3 + $0x80] sm:$0xff] %vm805, %v742
      %823 = vst.msk [vmem:[#allocation3 + $0x88] sm:$0xff] %vm805, %v744
      %824 = vst.msk [vmem:[#allocation3 + $0x90] sm:$0xff] %vm805, %v746
      %825 = vst.msk [vmem:[#allocation3 + $0x98] sm:$0xff] %vm805, %v748
      %826 = vst.msk [vmem:[#allocation3 + $0xa0] sm:$0xff] %vm805, %v750
      %827 = vst.msk [vmem:[#allocation3 + $0xa8] sm:$0xff] %vm805, %v752
      %828 = vst.msk [vmem:[#allocation3 + $0xb0] sm:$0xff] %vm805, %v754
      %829 = vst.msk [vmem:[#allocation3 + $0xb8] sm:$0xff] %vm805, %v756
      %830 = vst.msk [vmem:[#allocation3 + $0xc0] sm:$0xff] %vm805, %v758
      %831 = vst.msk [vmem:[#allocation3 + $0xc8] sm:$0xff] %vm805, %v760
      %832 = vst.msk [vmem:[#allocation3 + $0xd0] sm:$0xff] %vm805, %v762
      %833 = vst.msk [vmem:[#allocation3 + $0xd8] sm:$0xff] %vm805, %v764
      %834 = vst.msk [vmem:[#allocation3 + $0xe0] sm:$0xff] %vm805, %v766
      %835 = vst.msk [vmem:[#allocation3 + $0xe8] sm:$0xff] %vm805, %v768
      %836 = vst.msk [vmem:[#allocation3 + $0xf0] sm:$0xff] %vm805, %v770
      %837 = vst.msk [vmem:[#allocation3 + $0xf8] sm:$0xff] %vm805, %v772
      %v838 = vld [vmem:[#allocation2 + $0x2] sm:$0xff]
      %v839 = vld [vmem:[#allocation2 + $0xa] sm:$0xff]
      %v840 = vld [vmem:[#allocation2 + $0x1a] sm:$0xff]
      %v841 = vld [vmem:[#allocation2 + $0x22] sm:$0xff]
      %v842 = vld [vmem:[#allocation2 + $0x32] sm:$0xff]
      %v843 = vld [vmem:[#allocation2 + $0x3a] sm:$0xff]
      %v844 = vld [vmem:[#allocation2 + $0x4a] sm:$0xff]
      %v845 = vld [vmem:[#allocation2 + $0x52] sm:$0xff]
      %v846 = vld [vmem:[#allocation2 + $0x62] sm:$0xff]
      %v847 = vld [vmem:[#allocation2 + $0x6a] sm:$0xff]
      %v848 = vld [vmem:[#allocation2 + $0x7a] sm:$0xff]
      %v849 = vld [vmem:[#allocation2 + $0x82] sm:$0xff]
      %v850 = vld [vmem:[#allocation2 + $0x92] sm:$0xff]
      %v851 = vld [vmem:[#allocation2 + $0x9a] sm:$0xff]
      %v852 = vld [vmem:[#allocation2 + $0xaa] sm:$0xff]
      %v853 = vld [vmem:[#allocation2 + $0xb2] sm:$0xff]
      %v854 = vld [vmem:[#allocation2 + $0xc2] sm:$0xff]
      %v855 = vld [vmem:[#allocation2 + $0xca] sm:$0xff]
      %v856 = vld [vmem:[#allocation2 + $0xda] sm:$0xff]
      %v857 = vld [vmem:[#allocation2 + $0xe2] sm:$0xff]
      %v858 = vld [vmem:[#allocation2 + $0xf2] sm:$0xff]
      %v859 = vld [vmem:[#allocation2 + $0xfa] sm:$0xff]
      %v860 = vld [vmem:[#allocation2 + $0x10a] sm:$0xff]
      %v861 = vld [vmem:[#allocation2 + $0x112] sm:$0xff]
      %v862 = vld [vmem:[#allocation2 + $0x122] sm:$0xff]
      %v863 = vld [vmem:[#allocation2 + $0x12a] sm:$0xff]
      %v864 = vld [vmem:[#allocation2 + $0x13a] sm:$0xff]
      %v865 = vld [vmem:[#allocation2 + $0x142] sm:$0xff]
      %v866 = vld [vmem:[#allocation2 + $0x152] sm:$0xff]
      %v867 = vld [vmem:[#allocation2 + $0x15a] sm:$0xff]
      %v868 = vld [vmem:[#allocation2 + $0x16a] sm:$0xff]
      %v869 = vld [vmem:[#allocation2 + $0x172] sm:$0xff]
      %902 = vrot.lane.b32.xlu0 %v838, 16
      %v903 = vpop.permute.xlu0 %902
      %904 = vrot.lane.b32.xlu0 %v839, 16
      %v905 = vpop.permute.xlu0 %904
      %906 = vrot.lane.b32.xlu0 %v840, 16
      %v907 = vpop.permute.xlu0 %906
      %908 = vrot.lane.b32.xlu0 %v841, 16
      %v909 = vpop.permute.xlu0 %908
      %910 = vrot.lane.b32.xlu0 %v842, 16
      %v911 = vpop.permute.xlu0 %910
      %912 = vrot.lane.b32.xlu0 %v843, 16
      %v913 = vpop.permute.xlu0 %912
      %914 = vrot.lane.b32.xlu0 %v844, 16
      %v915 = vpop.permute.xlu0 %914
      %916 = vrot.lane.b32.xlu0 %v845, 16
      %v917 = vpop.permute.xlu0 %916
      %918 = vrot.lane.b32.xlu0 %v846, 16
      %v919 = vpop.permute.xlu0 %918
      %920 = vrot.lane.b32.xlu0 %v847, 16
      %v921 = vpop.permute.xlu0 %920
      %922 = vrot.lane.b32.xlu0 %v848, 16
      %v923 = vpop.permute.xlu0 %922
      %924 = vrot.lane.b32.xlu0 %v849, 16
      %v925 = vpop.permute.xlu0 %924
      %926 = vrot.lane.b32.xlu0 %v850, 16
      %v927 = vpop.permute.xlu0 %926
      %928 = vrot.lane.b32.xlu0 %v851, 16
      %v929 = vpop.permute.xlu0 %928
      %930 = vrot.lane.b32.xlu0 %v852, 16
      %v931 = vpop.permute.xlu0 %930
      %932 = vrot.lane.b32.xlu0 %v853, 16
      %v933 = vpop.permute.xlu0 %932
      %934 = vrot.lane.b32.xlu0 %v854, 16
      %v935 = vpop.permute.xlu0 %934
      %936 = vrot.lane.b32.xlu0 %v855, 16
      %v937 = vpop.permute.xlu0 %936
      %938 = vrot.lane.b32.xlu0 %v856, 16
      %v939 = vpop.permute.xlu0 %938
      %940 = vrot.lane.b32.xlu0 %v857, 16
      %v941 = vpop.permute.xlu0 %940
      %942 = vrot.lane.b32.xlu0 %v858, 16
      %v943 = vpop.permute.xlu0 %942
      %944 = vrot.lane.b32.xlu0 %v859, 16
      %v945 = vpop.permute.xlu0 %944
      %946 = vrot.lane.b32.xlu0 %v860, 16
      %v947 = vpop.permute.xlu0 %946
      %948 = vrot.lane.b32.xlu0 %v861, 16
      %v949 = vpop.permute.xlu0 %948
      %950 = vrot.lane.b32.xlu0 %v862, 16
      %v951 = vpop.permute.xlu0 %950
      %952 = vrot.lane.b32.xlu0 %v863, 16
      %v953 = vpop.permute.xlu0 %952
      %954 = vrot.lane.b32.xlu0 %v864, 16
      %v955 = vpop.permute.xlu0 %954
      %956 = vrot.lane.b32.xlu0 %v865, 16
      %v957 = vpop.permute.xlu0 %956
      %958 = vrot.lane.b32.xlu0 %v866, 16
      %v959 = vpop.permute.xlu0 %958
      %960 = vrot.lane.b32.xlu0 %v867, 16
      %v961 = vpop.permute.xlu0 %960
      %962 = vrot.lane.b32.xlu0 %v868, 16
      %v963 = vpop.permute.xlu0 %962
      %964 = vrot.lane.b32.xlu0 %v869, 16
      %v965 = vpop.permute.xlu0 %964
      %vm998 = vcmask 195712
      %999 = vst.msk [vmem:[#allocation3] sm:$0xff] %vm998, %v903
      %1000 = vst.msk [vmem:[#allocation3 + $0x8] sm:$0xff] %vm998, %v905
      %1001 = vst.msk [vmem:[#allocation3 + $0x10] sm:$0xff] %vm998, %v907
      %1002 = vst.msk [vmem:[#allocation3 + $0x18] sm:$0xff] %vm998, %v909
      %1003 = vst.msk [vmem:[#allocation3 + $0x20] sm:$0xff] %vm998, %v911
      %1004 = vst.msk [vmem:[#allocation3 + $0x28] sm:$0xff] %vm998, %v913
      %1005 = vst.msk [vmem:[#allocation3 + $0x30] sm:$0xff] %vm998, %v915
      %1006 = vst.msk [vmem:[#allocation3 + $0x38] sm:$0xff] %vm998, %v917
      %1007 = vst.msk [vmem:[#allocation3 + $0x40] sm:$0xff] %vm998, %v919
      %1008 = vst.msk [vmem:[#allocation3 + $0x48] sm:$0xff] %vm998, %v921
      %1009 = vst.msk [vmem:[#allocation3 + $0x50] sm:$0xff] %vm998, %v923
      %1010 = vst.msk [vmem:[#allocation3 + $0x58] sm:$0xff] %vm998, %v925
      %1011 = vst.msk [vmem:[#allocation3 + $0x60] sm:$0xff] %vm998, %v927
      %1012 = vst.msk [vmem:[#allocation3 + $0x68] sm:$0xff] %vm998, %v929
      %1013 = vst.msk [vmem:[#allocation3 + $0x70] sm:$0xff] %vm998, %v931
      %1014 = vst.msk [vmem:[#allocation3 + $0x78] sm:$0xff] %vm998, %v933
      %1015 = vst.msk [vmem:[#allocation3 + $0x80] sm:$0xff] %vm998, %v935
      %1016 = vst.msk [vmem:[#allocation3 + $0x88] sm:$0xff] %vm998, %v937
      %1017 = vst.msk [vmem:[#allocation3 + $0x90] sm:$0xff] %vm998, %v939
      %1018 = vst.msk [vmem:[#allocation3 + $0x98] sm:$0xff] %vm998, %v941
      %1019 = vst.msk [vmem:[#allocation3 + $0xa0] sm:$0xff] %vm998, %v943
      %1020 = vst.msk [vmem:[#allocation3 + $0xa8] sm:$0xff] %vm998, %v945
      %1021 = vst.msk [vmem:[#allocation3 + $0xb0] sm:$0xff] %vm998, %v947
      %1022 = vst.msk [vmem:[#allocation3 + $0xb8] sm:$0xff] %vm998, %v949
      %1023 = vst.msk [vmem:[#allocation3 + $0xc0] sm:$0xff] %vm998, %v951
      %1024 = vst.msk [vmem:[#allocation3 + $0xc8] sm:$0xff] %vm998, %v953
      %1025 = vst.msk [vmem:[#allocation3 + $0xd0] sm:$0xff] %vm998, %v955
      %1026 = vst.msk [vmem:[#allocation3 + $0xd8] sm:$0xff] %vm998, %v957
      %1027 = vst.msk [vmem:[#allocation3 + $0xe0] sm:$0xff] %vm998, %v959
      %1028 = vst.msk [vmem:[#allocation3 + $0xe8] sm:$0xff] %vm998, %v961
      %1029 = vst.msk [vmem:[#allocation3 + $0xf0] sm:$0xff] %vm998, %v963
      %1030 = vst.msk [vmem:[#allocation3 + $0xf8] sm:$0xff] %vm998, %v965
      %v1031 = vld [vmem:[%s514] sm:$0xff]
      %v1032 = vld [vmem:[%s514 + $0x8] sm:$0xff]
      %v1033 = vld [vmem:[%s514 + $0x18] sm:$0xff]
      %v1034 = vld [vmem:[%s514 + $0x20] sm:$0xff]
      %v1035 = vld [vmem:[%s514 + $0x30] sm:$0xff]
      %v1036 = vld [vmem:[%s514 + $0x38] sm:$0xff]
      %v1037 = vld [vmem:[%s514 + $0x48] sm:$0xff]
      %v1038 = vld [vmem:[%s514 + $0x50] sm:$0xff]
      %v1039 = vld [vmem:[%s514 + $0x60] sm:$0xff]
      %v1040 = vld [vmem:[%s514 + $0x68] sm:$0xff]
      %v1041 = vld [vmem:[%s514 + $0x78] sm:$0xff]
      %v1042 = vld [vmem:[%s514 + $0x80] sm:$0xff]
      %v1043 = vld [vmem:[%s514 + $0x90] sm:$0xff]
      %v1044 = vld [vmem:[%s514 + $0x98] sm:$0xff]
      %v1045 = vld [vmem:[%s514 + $0xa8] sm:$0xff]
      %v1046 = vld [vmem:[%s514 + $0xb0] sm:$0xff]
      %v1047 = vld [vmem:[%s514 + $0xc0] sm:$0xff]
      %v1048 = vld [vmem:[%s514 + $0xc8] sm:$0xff]
      %v1049 = vld [vmem:[%s514 + $0xd8] sm:$0xff]
      %v1050 = vld [vmem:[%s514 + $0xe0] sm:$0xff]
      %v1051 = vld [vmem:[%s514 + $0xf0] sm:$0xff]
      %v1052 = vld [vmem:[%s514 + $0xf8] sm:$0xff]
      %v1053 = vld [vmem:[%s514 + $0x108] sm:$0xff]
      %v1054 = vld [vmem:[%s514 + $0x110] sm:$0xff]
      %v1055 = vld [vmem:[%s514 + $0x120] sm:$0xff]
      %v1056 = vld [vmem:[%s514 + $0x128] sm:$0xff]
      %v1057 = vld [vmem:[%s514 + $0x138] sm:$0xff]
      %v1058 = vld [vmem:[%s514 + $0x140] sm:$0xff]
      %v1059 = vld [vmem:[%s514 + $0x150] sm:$0xff]
      %v1060 = vld [vmem:[%s514 + $0x158] sm:$0xff]
      %v1061 = vld [vmem:[%s514 + $0x168] sm:$0xff]
      %v1062 = vld [vmem:[%s514 + $0x170] sm:$0xff]
      %1095 = vrot.lane.b32.xlu0 %v1031, 24
      %v1096 = vpop.permute.xlu0 %1095
      %1097 = vrot.lane.b32.xlu0 %v1032, 24
      %v1098 = vpop.permute.xlu0 %1097
      %1099 = vrot.lane.b32.xlu0 %v1033, 24
      %v1100 = vpop.permute.xlu0 %1099
      %1101 = vrot.lane.b32.xlu0 %v1034, 24
      %v1102 = vpop.permute.xlu0 %1101
      %1103 = vrot.lane.b32.xlu0 %v1035, 24
      %v1104 = vpop.permute.xlu0 %1103
      %1105 = vrot.lane.b32.xlu0 %v1036, 24
      %v1106 = vpop.permute.xlu0 %1105
      %1107 = vrot.lane.b32.xlu0 %v1037, 24
      %v1108 = vpop.permute.xlu0 %1107
      %1109 = vrot.lane.b32.xlu0 %v1038, 24
      %v1110 = vpop.permute.xlu0 %1109
      %1111 = vrot.lane.b32.xlu0 %v1039, 24
      %v1112 = vpop.permute.xlu0 %1111
      %1113 = vrot.lane.b32.xlu0 %v1040, 24
      %v1114 = vpop.permute.xlu0 %1113
      %1115 = vrot.lane.b32.xlu0 %v1041, 24
      %v1116 = vpop.permute.xlu0 %1115
      %1117 = vrot.lane.b32.xlu0 %v1042, 24
      %v1118 = vpop.permute.xlu0 %1117
      %1119 = vrot.lane.b32.xlu0 %v1043, 24
      %v1120 = vpop.permute.xlu0 %1119
      %1121 = vrot.lane.b32.xlu0 %v1044, 24
      %v1122 = vpop.permute.xlu0 %1121
      %1123 = vrot.lane.b32.xlu0 %v1045, 24
      %v1124 = vpop.permute.xlu0 %1123
      %1125 = vrot.lane.b32.xlu0 %v1046, 24
      %v1126 = vpop.permute.xlu0 %1125
      %1127 = vrot.lane.b32.xlu0 %v1047, 24
      %v1128 = vpop.permute.xlu0 %1127
      %1129 = vrot.lane.b32.xlu0 %v1048, 24
      %v1130 = vpop.permute.xlu0 %1129
      %1131 = vrot.lane.b32.xlu0 %v1049, 24
      %v1132 = vpop.permute.xlu0 %1131
      %1133 = vrot.lane.b32.xlu0 %v1050, 24
      %v1134 = vpop.permute.xlu0 %1133
      %1135 = vrot.lane.b32.xlu0 %v1051, 24
      %v1136 = vpop.permute.xlu0 %1135
      %1137 = vrot.lane.b32.xlu0 %v1052, 24
      %v1138 = vpop.permute.xlu0 %1137
      %1139 = vrot.lane.b32.xlu0 %v1053, 24
      %v1140 = vpop.permute.xlu0 %1139
      %1141 = vrot.lane.b32.xlu0 %v1054, 24
      %v1142 = vpop.permute.xlu0 %1141
      %1143 = vrot.lane.b32.xlu0 %v1055, 24
      %v1144 = vpop.permute.xlu0 %1143
      %1145 = vrot.lane.b32.xlu0 %v1056, 24
      %v1146 = vpop.permute.xlu0 %1145
      %1147 = vrot.lane.b32.xlu0 %v1057, 24
      %v1148 = vpop.permute.xlu0 %1147
      %1149 = vrot.lane.b32.xlu0 %v1058, 24
      %v1150 = vpop.permute.xlu0 %1149
      %1151 = vrot.lane.b32.xlu0 %v1059, 24
      %v1152 = vpop.permute.xlu0 %1151
      %1153 = vrot.lane.b32.xlu0 %v1060, 24
      %v1154 = vpop.permute.xlu0 %1153
      %1155 = vrot.lane.b32.xlu0 %v1061, 24
      %v1156 = vpop.permute.xlu0 %1155
      %1157 = vrot.lane.b32.xlu0 %v1062, 24
      %v1158 = vpop.permute.xlu0 %1157
      %vm1191 = vcmask 261312
      %1192 = vst.msk [vmem:[#allocation3] sm:$0xff] %vm1191, %v1096
      %1193 = vst.msk [vmem:[#allocation3 + $0x8] sm:$0xff] %vm1191, %v1098
      %1194 = vst.msk [vmem:[#allocation3 + $0x10] sm:$0xff] %vm1191, %v1100
      %1195 = vst.msk [vmem:[#allocation3 + $0x18] sm:$0xff] %vm1191, %v1102
      %1196 = vst.msk [vmem:[#allocation3 + $0x20] sm:$0xff] %vm1191, %v1104
      %1197 = vst.msk [vmem:[#allocation3 + $0x28] sm:$0xff] %vm1191, %v1106
      %1198 = vst.msk [vmem:[#allocation3 + $0x30] sm:$0xff] %vm1191, %v1108
      %1199 = vst.msk [vmem:[#allocation3 + $0x38] sm:$0xff] %vm1191, %v1110
      %1200 = vst.msk [vmem:[#allocation3 + $0x40] sm:$0xff] %vm1191, %v1112
      %1201 = vst.msk [vmem:[#allocation3 + $0x48] sm:$0xff] %vm1191, %v1114
      %1202 = vst.msk [vmem:[#allocation3 + $0x50] sm:$0xff] %vm1191, %v1116
      %1203 = vst.msk [vmem:[#allocation3 + $0x58] sm:$0xff] %vm1191, %v1118
      %1204 = vst.msk [vmem:[#allocation3 + $0x60] sm:$0xff] %vm1191, %v1120
      %1205 = vst.msk [vmem:[#allocation3 + $0x68] sm:$0xff] %vm1191, %v1122
      %1206 = vst.msk [vmem:[#allocation3 + $0x70] sm:$0xff] %vm1191, %v1124
      %1207 = vst.msk [vmem:[#allocation3 + $0x78] sm:$0xff] %vm1191, %v1126
      %1208 = vst.msk [vmem:[#allocation3 + $0x80] sm:$0xff] %vm1191, %v1128
      %1209 = vst.msk [vmem:[#allocation3 + $0x88] sm:$0xff] %vm1191, %v1130
      %1210 = vst.msk [vmem:[#allocation3 + $0x90] sm:$0xff] %vm1191, %v1132
      %1211 = vst.msk [vmem:[#allocation3 + $0x98] sm:$0xff] %vm1191, %v1134
      %1212 = vst.msk [vmem:[#allocation3 + $0xa0] sm:$0xff] %vm1191, %v1136
      %1213 = vst.msk [vmem:[#allocation3 + $0xa8] sm:$0xff] %vm1191, %v1138
      %1214 = vst.msk [vmem:[#allocation3 + $0xb0] sm:$0xff] %vm1191, %v1140
      %1215 = vst.msk [vmem:[#allocation3 + $0xb8] sm:$0xff] %vm1191, %v1142
      %1216 = vst.msk [vmem:[#allocation3 + $0xc0] sm:$0xff] %vm1191, %v1144
      %1217 = vst.msk [vmem:[#allocation3 + $0xc8] sm:$0xff] %vm1191, %v1146
      %1218 = vst.msk [vmem:[#allocation3 + $0xd0] sm:$0xff] %vm1191, %v1148
      %1219 = vst.msk [vmem:[#allocation3 + $0xd8] sm:$0xff] %vm1191, %v1150
      %1220 = vst.msk [vmem:[#allocation3 + $0xe0] sm:$0xff] %vm1191, %v1152
      %1221 = vst.msk [vmem:[#allocation3 + $0xe8] sm:$0xff] %vm1191, %v1154
      %1222 = vst.msk [vmem:[#allocation3 + $0xf0] sm:$0xff] %vm1191, %v1156
      %1223 = vst.msk [vmem:[#allocation3 + $0xf8] sm:$0xff] %vm1191, %v1158
      %v1224 = vld [vmem:[%s514 + $0x1] sm:$0xff]
      %v1225 = vld [vmem:[%s514 + $0x9] sm:$0xff]
      %v1226 = vld [vmem:[%s514 + $0x19] sm:$0xff]
      %v1227 = vld [vmem:[%s514 + $0x21] sm:$0xff]
      %v1228 = vld [vmem:[%s514 + $0x31] sm:$0xff]
      %v1229 = vld [vmem:[%s514 + $0x39] sm:$0xff]
      %v1230 = vld [vmem:[%s514 + $0x49] sm:$0xff]
      %v1231 = vld [vmem:[%s514 + $0x51] sm:$0xff]
      %v1232 = vld [vmem:[%s514 + $0x61] sm:$0xff]
      %v1233 = vld [vmem:[%s514 + $0x69] sm:$0xff]
      %v1234 = vld [vmem:[%s514 + $0x79] sm:$0xff]
      %v1235 = vld [vmem:[%s514 + $0x81] sm:$0xff]
      %v1236 = vld [vmem:[%s514 + $0x91] sm:$0xff]
      %v1237 = vld [vmem:[%s514 + $0x99] sm:$0xff]
      %v1238 = vld [vmem:[%s514 + $0xa9] sm:$0xff]
      %v1239 = vld [vmem:[%s514 + $0xb1] sm:$0xff]
      %v1240 = vld [vmem:[%s514 + $0xc1] sm:$0xff]
      %v1241 = vld [vmem:[%s514 + $0xc9] sm:$0xff]
      %v1242 = vld [vmem:[%s514 + $0xd9] sm:$0xff]
      %v1243 = vld [vmem:[%s514 + $0xe1] sm:$0xff]
      %v1244 = vld [vmem:[%s514 + $0xf1] sm:$0xff]
      %v1245 = vld [vmem:[%s514 + $0xf9] sm:$0xff]
      %v1246 = vld [vmem:[%s514 + $0x109] sm:$0xff]
      %v1247 = vld [vmem:[%s514 + $0x111] sm:$0xff]
      %v1248 = vld [vmem:[%s514 + $0x121] sm:$0xff]
      %v1249 = vld [vmem:[%s514 + $0x129] sm:$0xff]
      %v1250 = vld [vmem:[%s514 + $0x139] sm:$0xff]
      %v1251 = vld [vmem:[%s514 + $0x141] sm:$0xff]
      %v1252 = vld [vmem:[%s514 + $0x151] sm:$0xff]
      %v1253 = vld [vmem:[%s514 + $0x159] sm:$0xff]
      %v1254 = vld [vmem:[%s514 + $0x169] sm:$0xff]
      %v1255 = vld [vmem:[%s514 + $0x171] sm:$0xff]
      %1288 = vrot.lane.b32.xlu0 %v1224, 32
      %v1289 = vpop.permute.xlu0 %1288
      %1290 = vrot.lane.b32.xlu0 %v1225, 32
      %v1291 = vpop.permute.xlu0 %1290
      %1292 = vrot.lane.b32.xlu0 %v1226, 32
      %v1293 = vpop.permute.xlu0 %1292
      %1294 = vrot.lane.b32.xlu0 %v1227, 32
      %v1295 = vpop.permute.xlu0 %1294
      %1296 = vrot.lane.b32.xlu0 %v1228, 32
      %v1297 = vpop.permute.xlu0 %1296
      %1298 = vrot.lane.b32.xlu0 %v1229, 32
      %v1299 = vpop.permute.xlu0 %1298
      %1300 = vrot.lane.b32.xlu0 %v1230, 32
      %v1301 = vpop.permute.xlu0 %1300
      %1302 = vrot.lane.b32.xlu0 %v1231, 32
      %v1303 = vpop.permute.xlu0 %1302
      %1304 = vrot.lane.b32.xlu0 %v1232, 32
      %v1305 = vpop.permute.xlu0 %1304
      %1306 = vrot.lane.b32.xlu0 %v1233, 32
      %v1307 = vpop.permute.xlu0 %1306
      %1308 = vrot.lane.b32.xlu0 %v1234, 32
      %v1309 = vpop.permute.xlu0 %1308
      %1310 = vrot.lane.b32.xlu0 %v1235, 32
      %v1311 = vpop.permute.xlu0 %1310
      %1312 = vrot.lane.b32.xlu0 %v1236, 32
      %v1313 = vpop.permute.xlu0 %1312
      %1314 = vrot.lane.b32.xlu0 %v1237, 32
      %v1315 = vpop.permute.xlu0 %1314
      %1316 = vrot.lane.b32.xlu0 %v1238, 32
      %v1317 = vpop.permute.xlu0 %1316
      %1318 = vrot.lane.b32.xlu0 %v1239, 32
      %v1319 = vpop.permute.xlu0 %1318
      %1320 = vrot.lane.b32.xlu0 %v1240, 32
      %v1321 = vpop.permute.xlu0 %1320
      %1322 = vrot.lane.b32.xlu0 %v1241, 32
      %v1323 = vpop.permute.xlu0 %1322
      %1324 = vrot.lane.b32.xlu0 %v1242, 32
      %v1325 = vpop.permute.xlu0 %1324
      %1326 = vrot.lane.b32.xlu0 %v1243, 32
      %v1327 = vpop.permute.xlu0 %1326
      %1328 = vrot.lane.b32.xlu0 %v1244, 32
      %v1329 = vpop.permute.xlu0 %1328
      %1330 = vrot.lane.b32.xlu0 %v1245, 32
      %v1331 = vpop.permute.xlu0 %1330
      %1332 = vrot.lane.b32.xlu0 %v1246, 32
      %v1333 = vpop.permute.xlu0 %1332
      %1334 = vrot.lane.b32.xlu0 %v1247, 32
      %v1335 = vpop.permute.xlu0 %1334
      %1336 = vrot.lane.b32.xlu0 %v1248, 32
      %v1337 = vpop.permute.xlu0 %1336
      %1338 = vrot.lane.b32.xlu0 %v1249, 32
      %v1339 = vpop.permute.xlu0 %1338
      %1340 = vrot.lane.b32.xlu0 %v1250, 32
      %v1341 = vpop.permute.xlu0 %1340
      %1342 = vrot.lane.b32.xlu0 %v1251, 32
      %v1343 = vpop.permute.xlu0 %1342
      %1344 = vrot.lane.b32.xlu0 %v1252, 32
      %v1345 = vpop.permute.xlu0 %1344
      %1346 = vrot.lane.b32.xlu0 %v1253, 32
      %v1347 = vpop.permute.xlu0 %1346
      %1348 = vrot.lane.b32.xlu0 %v1254, 32
      %v1349 = vpop.permute.xlu0 %1348
      %1350 = vrot.lane.b32.xlu0 %v1255, 32
      %v1351 = vpop.permute.xlu0 %1350
      %vm1384 = vcmask 326912
      %1385 = vst.msk [vmem:[#allocation3] sm:$0xff] %vm1384, %v1289
      %1386 = vst.msk [vmem:[#allocation3 + $0x8] sm:$0xff] %vm1384, %v1291
      %1387 = vst.msk [vmem:[#allocation3 + $0x10] sm:$0xff] %vm1384, %v1293
      %1388 = vst.msk [vmem:[#allocation3 + $0x18] sm:$0xff] %vm1384, %v1295
      %1389 = vst.msk [vmem:[#allocation3 + $0x20] sm:$0xff] %vm1384, %v1297
      %1390 = vst.msk [vmem:[#allocation3 + $0x28] sm:$0xff] %vm1384, %v1299
      %1391 = vst.msk [vmem:[#allocation3 + $0x30] sm:$0xff] %vm1384, %v1301
      %1392 = vst.msk [vmem:[#allocation3 + $0x38] sm:$0xff] %vm1384, %v1303
      %1393 = vst.msk [vmem:[#allocation3 + $0x40] sm:$0xff] %vm1384, %v1305
      %1394 = vst.msk [vmem:[#allocation3 + $0x48] sm:$0xff] %vm1384, %v1307
      %1395 = vst.msk [vmem:[#allocation3 + $0x50] sm:$0xff] %vm1384, %v1309
      %1396 = vst.msk [vmem:[#allocation3 + $0x58] sm:$0xff] %vm1384, %v1311
      %1397 = vst.msk [vmem:[#allocation3 + $0x60] sm:$0xff] %vm1384, %v1313
      %1398 = vst.msk [vmem:[#allocation3 + $0x68] sm:$0xff] %vm1384, %v1315
      %1399 = vst.msk [vmem:[#allocation3 + $0x70] sm:$0xff] %vm1384, %v1317
      %1400 = vst.msk [vmem:[#allocation3 + $0x78] sm:$0xff] %vm1384, %v1319
      %1401 = vst.msk [vmem:[#allocation3 + $0x80] sm:$0xff] %vm1384, %v1321
      %1402 = vst.msk [vmem:[#allocation3 + $0x88] sm:$0xff] %vm1384, %v1323
      %1403 = vst.msk [vmem:[#allocation3 + $0x90] sm:$0xff] %vm1384, %v1325
      %1404 = vst.msk [vmem:[#allocation3 + $0x98] sm:$0xff] %vm1384, %v1327
      %1405 = vst.msk [vmem:[#allocation3 + $0xa0] sm:$0xff] %vm1384, %v1329
      %1406 = vst.msk [vmem:[#allocation3 + $0xa8] sm:$0xff] %vm1384, %v1331
      %1407 = vst.msk [vmem:[#allocation3 + $0xb0] sm:$0xff] %vm1384, %v1333
      %1408 = vst.msk [vmem:[#allocation3 + $0xb8] sm:$0xff] %vm1384, %v1335
      %1409 = vst.msk [vmem:[#allocation3 + $0xc0] sm:$0xff] %vm1384, %v1337
      %1410 = vst.msk [vmem:[#allocation3 + $0xc8] sm:$0xff] %vm1384, %v1339
      %1411 = vst.msk [vmem:[#allocation3 + $0xd0] sm:$0xff] %vm1384, %v1341
      %1412 = vst.msk [vmem:[#allocation3 + $0xd8] sm:$0xff] %vm1384, %v1343
      %1413 = vst.msk [vmem:[#allocation3 + $0xe0] sm:$0xff] %vm1384, %v1345
      %1414 = vst.msk [vmem:[#allocation3 + $0xe8] sm:$0xff] %vm1384, %v1347
      %1415 = vst.msk [vmem:[#allocation3 + $0xf0] sm:$0xff] %vm1384, %v1349
      %1416 = vst.msk [vmem:[#allocation3 + $0xf8] sm:$0xff] %vm1384, %v1351
      %v1417 = vld [vmem:[%s514 + $0x2] sm:$0xff]
      %v1418 = vld [vmem:[%s514 + $0xa] sm:$0xff]
      %v1419 = vld [vmem:[%s514 + $0x1a] sm:$0xff]
      %v1420 = vld [vmem:[%s514 + $0x22] sm:$0xff]
      %v1421 = vld [vmem:[%s514 + $0x32] sm:$0xff]
      %v1422 = vld [vmem:[%s514 + $0x3a] sm:$0xff]
      %v1423 = vld [vmem:[%s514 + $0x4a] sm:$0xff]
      %v1424 = vld [vmem:[%s514 + $0x52] sm:$0xff]
      %v1425 = vld [vmem:[%s514 + $0x62] sm:$0xff]
      %v1426 = vld [vmem:[%s514 + $0x6a] sm:$0xff]
      %v1427 = vld [vmem:[%s514 + $0x7a] sm:$0xff]
      %v1428 = vld [vmem:[%s514 + $0x82] sm:$0xff]
      %v1429 = vld [vmem:[%s514 + $0x92] sm:$0xff]
      %v1430 = vld [vmem:[%s514 + $0x9a] sm:$0xff]
      %v1431 = vld [vmem:[%s514 + $0xaa] sm:$0xff]
      %v1432 = vld [vmem:[%s514 + $0xb2] sm:$0xff]
      %v1433 = vld [vmem:[%s514 + $0xc2] sm:$0xff]
      %v1434 = vld [vmem:[%s514 + $0xca] sm:$0xff]
      %v1435 = vld [vmem:[%s514 + $0xda] sm:$0xff]
      %v1436 = vld [vmem:[%s514 + $0xe2] sm:$0xff]
      %v1437 = vld [vmem:[%s514 + $0xf2] sm:$0xff]
      %v1438 = vld [vmem:[%s514 + $0xfa] sm:$0xff]
      %v1439 = vld [vmem:[%s514 + $0x10a] sm:$0xff]
      %v1440 = vld [vmem:[%s514 + $0x112] sm:$0xff]
      %v1441 = vld [vmem:[%s514 + $0x122] sm:$0xff]
      %v1442 = vld [vmem:[%s514 + $0x12a] sm:$0xff]
      %v1443 = vld [vmem:[%s514 + $0x13a] sm:$0xff]
      %v1444 = vld [vmem:[%s514 + $0x142] sm:$0xff]
      %v1445 = vld [vmem:[%s514 + $0x152] sm:$0xff]
      %v1446 = vld [vmem:[%s514 + $0x15a] sm:$0xff]
      %v1447 = vld [vmem:[%s514 + $0x16a] sm:$0xff]
      %v1448 = vld [vmem:[%s514 + $0x172] sm:$0xff]
      %1481 = vrot.lane.b32.xlu0 %v1417, 40
      %v1482 = vpop.permute.xlu0 %1481
      %1483 = vrot.lane.b32.xlu0 %v1418, 40
      %v1484 = vpop.permute.xlu0 %1483
      %1485 = vrot.lane.b32.xlu0 %v1419, 40
      %v1486 = vpop.permute.xlu0 %1485
      %1487 = vrot.lane.b32.xlu0 %v1420, 40
      %v1488 = vpop.permute.xlu0 %1487
      %1489 = vrot.lane.b32.xlu0 %v1421, 40
      %v1490 = vpop.permute.xlu0 %1489
      %1491 = vrot.lane.b32.xlu0 %v1422, 40
      %v1492 = vpop.permute.xlu0 %1491
      %1493 = vrot.lane.b32.xlu0 %v1423, 40
      %v1494 = vpop.permute.xlu0 %1493
      %1495 = vrot.lane.b32.xlu0 %v1424, 40
      %v1496 = vpop.permute.xlu0 %1495
      %1497 = vrot.lane.b32.xlu0 %v1425, 40
      %v1498 = vpop.permute.xlu0 %1497
      %1499 = vrot.lane.b32.xlu0 %v1426, 40
      %v1500 = vpop.permute.xlu0 %1499
      %1501 = vrot.lane.b32.xlu0 %v1427, 40
      %v1502 = vpop.permute.xlu0 %1501
      %1503 = vrot.lane.b32.xlu0 %v1428, 40
      %v1504 = vpop.permute.xlu0 %1503
      %1505 = vrot.lane.b32.xlu0 %v1429, 40
      %v1506 = vpop.permute.xlu0 %1505
      %1507 = vrot.lane.b32.xlu0 %v1430, 40
      %v1508 = vpop.permute.xlu0 %1507
      %1509 = vrot.lane.b32.xlu0 %v1431, 40
      %v1510 = vpop.permute.xlu0 %1509
      %1511 = vrot.lane.b32.xlu0 %v1432, 40
      %v1512 = vpop.permute.xlu0 %1511
      %1513 = vrot.lane.b32.xlu0 %v1433, 40
      %v1514 = vpop.permute.xlu0 %1513
      %1515 = vrot.lane.b32.xlu0 %v1434, 40
      %v1516 = vpop.permute.xlu0 %1515
      %1517 = vrot.lane.b32.xlu0 %v1435, 40
      %v1518 = vpop.permute.xlu0 %1517
      %1519 = vrot.lane.b32.xlu0 %v1436, 40
      %v1520 = vpop.permute.xlu0 %1519
      %1521 = vrot.lane.b32.xlu0 %v1437, 40
      %v1522 = vpop.permute.xlu0 %1521
      %1523 = vrot.lane.b32.xlu0 %v1438, 40
      %v1524 = vpop.permute.xlu0 %1523
      %1525 = vrot.lane.b32.xlu0 %v1439, 40
      %v1526 = vpop.permute.xlu0 %1525
      %1527 = vrot.lane.b32.xlu0 %v1440, 40
      %v1528 = vpop.permute.xlu0 %1527
      %1529 = vrot.lane.b32.xlu0 %v1441, 40
      %v1530 = vpop.permute.xlu0 %1529
      %1531 = vrot.lane.b32.xlu0 %v1442, 40
      %v1532 = vpop.permute.xlu0 %1531
      %1533 = vrot.lane.b32.xlu0 %v1443, 40
      %v1534 = vpop.permute.xlu0 %1533
      %1535 = vrot.lane.b32.xlu0 %v1444, 40
      %v1536 = vpop.permute.xlu0 %1535
      %1537 = vrot.lane.b32.xlu0 %v1445, 40
      %v1538 = vpop.permute.xlu0 %1537
      %1539 = vrot.lane.b32.xlu0 %v1446, 40
      %v1540 = vpop.permute.xlu0 %1539
      %1541 = vrot.lane.b32.xlu0 %v1447, 40
      %v1542 = vpop.permute.xlu0 %1541
      %1543 = vrot.lane.b32.xlu0 %v1448, 40
      %v1544 = vpop.permute.xlu0 %1543
      %vm1577 = vcmask 392512
      %1578 = vst.msk [vmem:[#allocation3] sm:$0xff] %vm1577, %v1482
      %1579 = vst.msk [vmem:[#allocation3 + $0x8] sm:$0xff] %vm1577, %v1484
      %1580 = vst.msk [vmem:[#allocation3 + $0x10] sm:$0xff] %vm1577, %v1486
      %1581 = vst.msk [vmem:[#allocation3 + $0x18] sm:$0xff] %vm1577, %v1488
      %1582 = vst.msk [vmem:[#allocation3 + $0x20] sm:$0xff] %vm1577, %v1490
      %1583 = vst.msk [vmem:[#allocation3 + $0x28] sm:$0xff] %vm1577, %v1492
      %1584 = vst.msk [vmem:[#allocation3 + $0x30] sm:$0xff] %vm1577, %v1494
      %1585 = vst.msk [vmem:[#allocation3 + $0x38] sm:$0xff] %vm1577, %v1496
      %1586 = vst.msk [vmem:[#allocation3 + $0x40] sm:$0xff] %vm1577, %v1498
      %1587 = vst.msk [vmem:[#allocation3 + $0x48] sm:$0xff] %vm1577, %v1500
      %1588 = vst.msk [vmem:[#allocation3 + $0x50] sm:$0xff] %vm1577, %v1502
      %1589 = vst.msk [vmem:[#allocation3 + $0x58] sm:$0xff] %vm1577, %v1504
      %1590 = vst.msk [vmem:[#allocation3 + $0x60] sm:$0xff] %vm1577, %v1506
      %1591 = vst.msk [vmem:[#allocation3 + $0x68] sm:$0xff] %vm1577, %v1508
      %1592 = vst.msk [vmem:[#allocation3 + $0x70] sm:$0xff] %vm1577, %v1510
      %1593 = vst.msk [vmem:[#allocation3 + $0x78] sm:$0xff] %vm1577, %v1512
      %1594 = vst.msk [vmem:[#allocation3 + $0x80] sm:$0xff] %vm1577, %v1514
      %1595 = vst.msk [vmem:[#allocation3 + $0x88] sm:$0xff] %vm1577, %v1516
      %1596 = vst.msk [vmem:[#allocation3 + $0x90] sm:$0xff] %vm1577, %v1518
      %1597 = vst.msk [vmem:[#allocation3 + $0x98] sm:$0xff] %vm1577, %v1520
      %1598 = vst.msk [vmem:[#allocation3 + $0xa0] sm:$0xff] %vm1577, %v1522
      %1599 = vst.msk [vmem:[#allocation3 + $0xa8] sm:$0xff] %vm1577, %v1524
      %1600 = vst.msk [vmem:[#allocation3 + $0xb0] sm:$0xff] %vm1577, %v1526
      %1601 = vst.msk [vmem:[#allocation3 + $0xb8] sm:$0xff] %vm1577, %v1528
      %1602 = vst.msk [vmem:[#allocation3 + $0xc0] sm:$0xff] %vm1577, %v1530
      %1603 = vst.msk [vmem:[#allocation3 + $0xc8] sm:$0xff] %vm1577, %v1532
      %1604 = vst.msk [vmem:[#allocation3 + $0xd0] sm:$0xff] %vm1577, %v1534
      %1605 = vst.msk [vmem:[#allocation3 + $0xd8] sm:$0xff] %vm1577, %v1536
      %1606 = vst.msk [vmem:[#allocation3 + $0xe0] sm:$0xff] %vm1577, %v1538
      %1607 = vst.msk [vmem:[#allocation3 + $0xe8] sm:$0xff] %vm1577, %v1540
      %1608 = vst.msk [vmem:[#allocation3 + $0xf0] sm:$0xff] %vm1577, %v1542
      %1609 = vst.msk [vmem:[#allocation3 + $0xf8] sm:$0xff] %vm1577, %v1544
      %s1610 = scalar_lea.vmem [#allocation2], 48
      %v1611 = vld [vmem:[%s1610] sm:$0xff]
      %v1612 = vld [vmem:[%s1610 + $0x8] sm:$0xff]
      %v1613 = vld [vmem:[%s1610 + $0x18] sm:$0xff]
      %v1614 = vld [vmem:[%s1610 + $0x20] sm:$0xff]
      %v1615 = vld [vmem:[%s1610 + $0x30] sm:$0xff]
      %v1616 = vld [vmem:[%s1610 + $0x38] sm:$0xff]
      %v1617 = vld [vmem:[%s1610 + $0x48] sm:$0xff]
      %v1618 = vld [vmem:[%s1610 + $0x50] sm:$0xff]
      %v1619 = vld [vmem:[%s1610 + $0x60] sm:$0xff]
      %v1620 = vld [vmem:[%s1610 + $0x68] sm:$0xff]
      %v1621 = vld [vmem:[%s1610 + $0x78] sm:$0xff]
      %v1622 = vld [vmem:[%s1610 + $0x80] sm:$0xff]
      %v1623 = vld [vmem:[%s1610 + $0x90] sm:$0xff]
      %v1624 = vld [vmem:[%s1610 + $0x98] sm:$0xff]
      %v1625 = vld [vmem:[%s1610 + $0xa8] sm:$0xff]
      %v1626 = vld [vmem:[%s1610 + $0xb0] sm:$0xff]
      %v1627 = vld [vmem:[%s1610 + $0xc0] sm:$0xff]
      %v1628 = vld [vmem:[%s1610 + $0xc8] sm:$0xff]
      %v1629 = vld [vmem:[%s1610 + $0xd8] sm:$0xff]
      %v1630 = vld [vmem:[%s1610 + $0xe0] sm:$0xff]
      %v1631 = vld [vmem:[%s1610 + $0xf0] sm:$0xff]
      %v1632 = vld [vmem:[%s1610 + $0xf8] sm:$0xff]
      %v1633 = vld [vmem:[%s1610 + $0x108] sm:$0xff]
      %v1634 = vld [vmem:[%s1610 + $0x110] sm:$0xff]
      %v1635 = vld [vmem:[%s1610 + $0x120] sm:$0xff]
      %v1636 = vld [vmem:[%s1610 + $0x128] sm:$0xff]
      %v1637 = vld [vmem:[%s1610 + $0x138] sm:$0xff]
      %v1638 = vld [vmem:[%s1610 + $0x140] sm:$0xff]
      %v1639 = vld [vmem:[%s1610 + $0x150] sm:$0xff]
      %v1640 = vld [vmem:[%s1610 + $0x158] sm:$0xff]
      %v1641 = vld [vmem:[%s1610 + $0x168] sm:$0xff]
      %v1642 = vld [vmem:[%s1610 + $0x170] sm:$0xff]
      %1675 = vrot.lane.b32.xlu0 %v1611, 48
      %v1676 = vpop.permute.xlu0 %1675
      %1677 = vrot.lane.b32.xlu0 %v1612, 48
      %v1678 = vpop.permute.xlu0 %1677
      %1679 = vrot.lane.b32.xlu0 %v1613, 48
      %v1680 = vpop.permute.xlu0 %1679
      %1681 = vrot.lane.b32.xlu0 %v1614, 48
      %v1682 = vpop.permute.xlu0 %1681
      %1683 = vrot.lane.b32.xlu0 %v1615, 48
      %v1684 = vpop.permute.xlu0 %1683
      %1685 = vrot.lane.b32.xlu0 %v1616, 48
      %v1686 = vpop.permute.xlu0 %1685
      %1687 = vrot.lane.b32.xlu0 %v1617, 48
      %v1688 = vpop.permute.xlu0 %1687
      %1689 = vrot.lane.b32.xlu0 %v1618, 48
      %v1690 = vpop.permute.xlu0 %1689
      %1691 = vrot.lane.b32.xlu0 %v1619, 48
      %v1692 = vpop.permute.xlu0 %1691
      %1693 = vrot.lane.b32.xlu0 %v1620, 48
      %v1694 = vpop.permute.xlu0 %1693
      %1695 = vrot.lane.b32.xlu0 %v1621, 48
      %v1696 = vpop.permute.xlu0 %1695
      %1697 = vrot.lane.b32.xlu0 %v1622, 48
      %v1698 = vpop.permute.xlu0 %1697
      %1699 = vrot.lane.b32.xlu0 %v1623, 48
      %v1700 = vpop.permute.xlu0 %1699
      %1701 = vrot.lane.b32.xlu0 %v1624, 48
      %v1702 = vpop.permute.xlu0 %1701
      %1703 = vrot.lane.b32.xlu0 %v1625, 48
      %v1704 = vpop.permute.xlu0 %1703
      %1705 = vrot.lane.b32.xlu0 %v1626, 48
      %v1706 = vpop.permute.xlu0 %1705
      %1707 = vrot.lane.b32.xlu0 %v1627, 48
      %v1708 = vpop.permute.xlu0 %1707
      %1709 = vrot.lane.b32.xlu0 %v1628, 48
      %v1710 = vpop.permute.xlu0 %1709
      %1711 = vrot.lane.b32.xlu0 %v1629, 48
      %v1712 = vpop.permute.xlu0 %1711
      %1713 = vrot.lane.b32.xlu0 %v1630, 48
      %v1714 = vpop.permute.xlu0 %1713
      %1715 = vrot.lane.b32.xlu0 %v1631, 48
      %v1716 = vpop.permute.xlu0 %1715
      %1717 = vrot.lane.b32.xlu0 %v1632, 48
      %v1718 = vpop.permute.xlu0 %1717
      %1719 = vrot.lane.b32.xlu0 %v1633, 48
      %v1720 = vpop.permute.xlu0 %1719
      %1721 = vrot.lane.b32.xlu0 %v1634, 48
      %v1722 = vpop.permute.xlu0 %1721
      %1723 = vrot.lane.b32.xlu0 %v1635, 48
      %v1724 = vpop.permute.xlu0 %1723
      %1725 = vrot.lane.b32.xlu0 %v1636, 48
      %v1726 = vpop.permute.xlu0 %1725
      %1727 = vrot.lane.b32.xlu0 %v1637, 48
      %v1728 = vpop.permute.xlu0 %1727
      %1729 = vrot.lane.b32.xlu0 %v1638, 48
      %v1730 = vpop.permute.xlu0 %1729
      %1731 = vrot.lane.b32.xlu0 %v1639, 48
      %v1732 = vpop.permute.xlu0 %1731
      %1733 = vrot.lane.b32.xlu0 %v1640, 48
      %v1734 = vpop.permute.xlu0 %1733
      %1735 = vrot.lane.b32.xlu0 %v1641, 48
      %v1736 = vpop.permute.xlu0 %1735
      %1737 = vrot.lane.b32.xlu0 %v1642, 48
      %v1738 = vpop.permute.xlu0 %1737
      %vm1771 = vcmask 458112
      %1772 = vst.msk [vmem:[#allocation3] sm:$0xff] %vm1771, %v1676
      %1773 = vst.msk [vmem:[#allocation3 + $0x8] sm:$0xff] %vm1771, %v1678
      %1774 = vst.msk [vmem:[#allocation3 + $0x10] sm:$0xff] %vm1771, %v1680
      %1775 = vst.msk [vmem:[#allocation3 + $0x18] sm:$0xff] %vm1771, %v1682
      %1776 = vst.msk [vmem:[#allocation3 + $0x20] sm:$0xff] %vm1771, %v1684
      %1777 = vst.msk [vmem:[#allocation3 + $0x28] sm:$0xff] %vm1771, %v1686
      %1778 = vst.msk [vmem:[#allocation3 + $0x30] sm:$0xff] %vm1771, %v1688
      %1779 = vst.msk [vmem:[#allocation3 + $0x38] sm:$0xff] %vm1771, %v1690
      %1780 = vst.msk [vmem:[#allocation3 + $0x40] sm:$0xff] %vm1771, %v1692
      %1781 = vst.msk [vmem:[#allocation3 + $0x48] sm:$0xff] %vm1771, %v1694
      %1782 = vst.msk [vmem:[#allocation3 + $0x50] sm:$0xff] %vm1771, %v1696
      %1783 = vst.msk [vmem:[#allocation3 + $0x58] sm:$0xff] %vm1771, %v1698
      %1784 = vst.msk [vmem:[#allocation3 + $0x60] sm:$0xff] %vm1771, %v1700
      %1785 = vst.msk [vmem:[#allocation3 + $0x68] sm:$0xff] %vm1771, %v1702
      %1786 = vst.msk [vmem:[#allocation3 + $0x70] sm:$0xff] %vm1771, %v1704
      %1787 = vst.msk [vmem:[#allocation3 + $0x78] sm:$0xff] %vm1771, %v1706
      %1788 = vst.msk [vmem:[#allocation3 + $0x80] sm:$0xff] %vm1771, %v1708
      %1789 = vst.msk [vmem:[#allocation3 + $0x88] sm:$0xff] %vm1771, %v1710
      %1790 = vst.msk [vmem:[#allocation3 + $0x90] sm:$0xff] %vm1771, %v1712
      %1791 = vst.msk [vmem:[#allocation3 + $0x98] sm:$0xff] %vm1771, %v1714
      %1792 = vst.msk [vmem:[#allocation3 + $0xa0] sm:$0xff] %vm1771, %v1716
      %1793 = vst.msk [vmem:[#allocation3 + $0xa8] sm:$0xff] %vm1771, %v1718
      %1794 = vst.msk [vmem:[#allocation3 + $0xb0] sm:$0xff] %vm1771, %v1720
      %1795 = vst.msk [vmem:[#allocation3 + $0xb8] sm:$0xff] %vm1771, %v1722
      %1796 = vst.msk [vmem:[#allocation3 + $0xc0] sm:$0xff] %vm1771, %v1724
      %1797 = vst.msk [vmem:[#allocation3 + $0xc8] sm:$0xff] %vm1771, %v1726
      %1798 = vst.msk [vmem:[#allocation3 + $0xd0] sm:$0xff] %vm1771, %v1728
      %1799 = vst.msk [vmem:[#allocation3 + $0xd8] sm:$0xff] %vm1771, %v1730
      %1800 = vst.msk [vmem:[#allocation3 + $0xe0] sm:$0xff] %vm1771, %v1732
      %1801 = vst.msk [vmem:[#allocation3 + $0xe8] sm:$0xff] %vm1771, %v1734
      %1802 = vst.msk [vmem:[#allocation3 + $0xf0] sm:$0xff] %vm1771, %v1736
      %1803 = vst.msk [vmem:[#allocation3 + $0xf8] sm:$0xff] %vm1771, %v1738
      %v1804 = vld [vmem:[%s1610 + $0x1] sm:$0xff]
      %v1805 = vld [vmem:[%s1610 + $0x9] sm:$0xff]
      %v1806 = vld [vmem:[%s1610 + $0x19] sm:$0xff]
      %v1807 = vld [vmem:[%s1610 + $0x21] sm:$0xff]
      %v1808 = vld [vmem:[%s1610 + $0x31] sm:$0xff]
      %v1809 = vld [vmem:[%s1610 + $0x39] sm:$0xff]
      %v1810 = vld [vmem:[%s1610 + $0x49] sm:$0xff]
      %v1811 = vld [vmem:[%s1610 + $0x51] sm:$0xff]
      %v1812 = vld [vmem:[%s1610 + $0x61] sm:$0xff]
      %v1813 = vld [vmem:[%s1610 + $0x69] sm:$0xff]
      %v1814 = vld [vmem:[%s1610 + $0x79] sm:$0xff]
      %v1815 = vld [vmem:[%s1610 + $0x81] sm:$0xff]
      %v1816 = vld [vmem:[%s1610 + $0x91] sm:$0xff]
      %v1817 = vld [vmem:[%s1610 + $0x99] sm:$0xff]
      %v1818 = vld [vmem:[%s1610 + $0xa9] sm:$0xff]
      %v1819 = vld [vmem:[%s1610 + $0xb1] sm:$0xff]
      %v1820 = vld [vmem:[%s1610 + $0xc1] sm:$0xff]
      %v1821 = vld [vmem:[%s1610 + $0xc9] sm:$0xff]
      %v1822 = vld [vmem:[%s1610 + $0xd9] sm:$0xff]
      %v1823 = vld [vmem:[%s1610 + $0xe1] sm:$0xff]
      %v1824 = vld [vmem:[%s1610 + $0xf1] sm:$0xff]
      %v1825 = vld [vmem:[%s1610 + $0xf9] sm:$0xff]
      %v1826 = vld [vmem:[%s1610 + $0x109] sm:$0xff]
      %v1827 = vld [vmem:[%s1610 + $0x111] sm:$0xff]
      %v1828 = vld [vmem:[%s1610 + $0x121] sm:$0xff]
      %v1829 = vld [vmem:[%s1610 + $0x129] sm:$0xff]
      %v1830 = vld [vmem:[%s1610 + $0x139] sm:$0xff]
      %v1831 = vld [vmem:[%s1610 + $0x141] sm:$0xff]
      %v1832 = vld [vmem:[%s1610 + $0x151] sm:$0xff]
      %v1833 = vld [vmem:[%s1610 + $0x159] sm:$0xff]
      %v1834 = vld [vmem:[%s1610 + $0x169] sm:$0xff]
      %v1835 = vld [vmem:[%s1610 + $0x171] sm:$0xff]
      %1868 = vrot.lane.b32.xlu0 %v1804, 56
      %v1869 = vpop.permute.xlu0 %1868
      %1870 = vrot.lane.b32.xlu0 %v1805, 56
      %v1871 = vpop.permute.xlu0 %1870
      %1872 = vrot.lane.b32.xlu0 %v1806, 56
      %v1873 = vpop.permute.xlu0 %1872
      %1874 = vrot.lane.b32.xlu0 %v1807, 56
      %v1875 = vpop.permute.xlu0 %1874
      %1876 = vrot.lane.b32.xlu0 %v1808, 56
      %v1877 = vpop.permute.xlu0 %1876
      %1878 = vrot.lane.b32.xlu0 %v1809, 56
      %v1879 = vpop.permute.xlu0 %1878
      %1880 = vrot.lane.b32.xlu0 %v1810, 56
      %v1881 = vpop.permute.xlu0 %1880
      %1882 = vrot.lane.b32.xlu0 %v1811, 56
      %v1883 = vpop.permute.xlu0 %1882
      %1884 = vrot.lane.b32.xlu0 %v1812, 56
      %v1885 = vpop.permute.xlu0 %1884
      %1886 = vrot.lane.b32.xlu0 %v1813, 56
      %v1887 = vpop.permute.xlu0 %1886
      %1888 = vrot.lane.b32.xlu0 %v1814, 56
      %v1889 = vpop.permute.xlu0 %1888
      %1890 = vrot.lane.b32.xlu0 %v1815, 56
      %v1891 = vpop.permute.xlu0 %1890
      %1892 = vrot.lane.b32.xlu0 %v1816, 56
      %v1893 = vpop.permute.xlu0 %1892
      %1894 = vrot.lane.b32.xlu0 %v1817, 56
      %v1895 = vpop.permute.xlu0 %1894
      %1896 = vrot.lane.b32.xlu0 %v1818, 56
      %v1897 = vpop.permute.xlu0 %1896
      %1898 = vrot.lane.b32.xlu0 %v1819, 56
      %v1899 = vpop.permute.xlu0 %1898
      %1900 = vrot.lane.b32.xlu0 %v1820, 56
      %v1901 = vpop.permute.xlu0 %1900
      %1902 = vrot.lane.b32.xlu0 %v1821, 56
      %v1903 = vpop.permute.xlu0 %1902
      %1904 = vrot.lane.b32.xlu0 %v1822, 56
      %v1905 = vpop.permute.xlu0 %1904
      %1906 = vrot.lane.b32.xlu0 %v1823, 56
      %v1907 = vpop.permute.xlu0 %1906
      %1908 = vrot.lane.b32.xlu0 %v1824, 56
      %v1909 = vpop.permute.xlu0 %1908
      %1910 = vrot.lane.b32.xlu0 %v1825, 56
      %v1911 = vpop.permute.xlu0 %1910
      %1912 = vrot.lane.b32.xlu0 %v1826, 56
      %v1913 = vpop.permute.xlu0 %1912
      %1914 = vrot.lane.b32.xlu0 %v1827, 56
      %v1915 = vpop.permute.xlu0 %1914
      %1916 = vrot.lane.b32.xlu0 %v1828, 56
      %v1917 = vpop.permute.xlu0 %1916
      %1918 = vrot.lane.b32.xlu0 %v1829, 56
      %v1919 = vpop.permute.xlu0 %1918
      %1920 = vrot.lane.b32.xlu0 %v1830, 56
      %v1921 = vpop.permute.xlu0 %1920
      %1922 = vrot.lane.b32.xlu0 %v1831, 56
      %v1923 = vpop.permute.xlu0 %1922
      %1924 = vrot.lane.b32.xlu0 %v1832, 56
      %v1925 = vpop.permute.xlu0 %1924
      %1926 = vrot.lane.b32.xlu0 %v1833, 56
      %v1927 = vpop.permute.xlu0 %1926
      %1928 = vrot.lane.b32.xlu0 %v1834, 56
      %v1929 = vpop.permute.xlu0 %1928
      %1930 = vrot.lane.b32.xlu0 %v1835, 56
      %v1931 = vpop.permute.xlu0 %1930
      %vm1964 = vcmask 523712
      %1965 = vst.msk [vmem:[#allocation3] sm:$0xff] %vm1964, %v1869
      %1966 = vst.msk [vmem:[#allocation3 + $0x8] sm:$0xff] %vm1964, %v1871
      %1967 = vst.msk [vmem:[#allocation3 + $0x10] sm:$0xff] %vm1964, %v1873
      %1968 = vst.msk [vmem:[#allocation3 + $0x18] sm:$0xff] %vm1964, %v1875
      %1969 = vst.msk [vmem:[#allocation3 + $0x20] sm:$0xff] %vm1964, %v1877
      %1970 = vst.msk [vmem:[#allocation3 + $0x28] sm:$0xff] %vm1964, %v1879
      %1971 = vst.msk [vmem:[#allocation3 + $0x30] sm:$0xff] %vm1964, %v1881
      %1972 = vst.msk [vmem:[#allocation3 + $0x38] sm:$0xff] %vm1964, %v1883
      %1973 = vst.msk [vmem:[#allocation3 + $0x40] sm:$0xff] %vm1964, %v1885
      %1974 = vst.msk [vmem:[#allocation3 + $0x48] sm:$0xff] %vm1964, %v1887
      %1975 = vst.msk [vmem:[#allocation3 + $0x50] sm:$0xff] %vm1964, %v1889
      %1976 = vst.msk [vmem:[#allocation3 + $0x58] sm:$0xff] %vm1964, %v1891
      %1977 = vst.msk [vmem:[#allocation3 + $0x60] sm:$0xff] %vm1964, %v1893
      %1978 = vst.msk [vmem:[#allocation3 + $0x68] sm:$0xff] %vm1964, %v1895
      %1979 = vst.msk [vmem:[#allocation3 + $0x70] sm:$0xff] %vm1964, %v1897
      %1980 = vst.msk [vmem:[#allocation3 + $0x78] sm:$0xff] %vm1964, %v1899
      %1981 = vst.msk [vmem:[#allocation3 + $0x80] sm:$0xff] %vm1964, %v1901
      %1982 = vst.msk [vmem:[#allocation3 + $0x88] sm:$0xff] %vm1964, %v1903
      %1983 = vst.msk [vmem:[#allocation3 + $0x90] sm:$0xff] %vm1964, %v1905
      %1984 = vst.msk [vmem:[#allocation3 + $0x98] sm:$0xff] %vm1964, %v1907
      %1985 = vst.msk [vmem:[#allocation3 + $0xa0] sm:$0xff] %vm1964, %v1909
      %1986 = vst.msk [vmem:[#allocation3 + $0xa8] sm:$0xff] %vm1964, %v1911
      %1987 = vst.msk [vmem:[#allocation3 + $0xb0] sm:$0xff] %vm1964, %v1913
      %1988 = vst.msk [vmem:[#allocation3 + $0xb8] sm:$0xff] %vm1964, %v1915
      %1989 = vst.msk [vmem:[#allocation3 + $0xc0] sm:$0xff] %vm1964, %v1917
      %1990 = vst.msk [vmem:[#allocation3 + $0xc8] sm:$0xff] %vm1964, %v1919
      %1991 = vst.msk [vmem:[#allocation3 + $0xd0] sm:$0xff] %vm1964, %v1921
      %1992 = vst.msk [vmem:[#allocation3 + $0xd8] sm:$0xff] %vm1964, %v1923
      %1993 = vst.msk [vmem:[#allocation3 + $0xe0] sm:$0xff] %vm1964, %v1925
      %1994 = vst.msk [vmem:[#allocation3 + $0xe8] sm:$0xff] %vm1964, %v1927
      %1995 = vst.msk [vmem:[#allocation3 + $0xf0] sm:$0xff] %vm1964, %v1929
      %1996 = vst.msk [vmem:[#allocation3 + $0xf8] sm:$0xff] %vm1964, %v1931
      %v1997 = vld [vmem:[%s1610 + $0x2] sm:$0xff]
      %v1998 = vld [vmem:[%s1610 + $0xa] sm:$0xff]
      %v1999 = vld [vmem:[%s1610 + $0x1a] sm:$0xff]
      %v2000 = vld [vmem:[%s1610 + $0x22] sm:$0xff]
      %v2001 = vld [vmem:[%s1610 + $0x32] sm:$0xff]
      %v2002 = vld [vmem:[%s1610 + $0x3a] sm:$0xff]
      %v2003 = vld [vmem:[%s1610 + $0x4a] sm:$0xff]
      %v2004 = vld [vmem:[%s1610 + $0x52] sm:$0xff]
      %v2005 = vld [vmem:[%s1610 + $0x62] sm:$0xff]
      %v2006 = vld [vmem:[%s1610 + $0x6a] sm:$0xff]
      %v2007 = vld [vmem:[%s1610 + $0x7a] sm:$0xff]
      %v2008 = vld [vmem:[%s1610 + $0x82] sm:$0xff]
      %v2009 = vld [vmem:[%s1610 + $0x92] sm:$0xff]
      %v2010 = vld [vmem:[%s1610 + $0x9a] sm:$0xff]
      %v2011 = vld [vmem:[%s1610 + $0xaa] sm:$0xff]
      %v2012 = vld [vmem:[%s1610 + $0xb2] sm:$0xff]
      %v2013 = vld [vmem:[%s1610 + $0xc2] sm:$0xff]
      %v2014 = vld [vmem:[%s1610 + $0xca] sm:$0xff]
      %v2015 = vld [vmem:[%s1610 + $0xda] sm:$0xff]
      %v2016 = vld [vmem:[%s1610 + $0xe2] sm:$0xff]
      %v2017 = vld [vmem:[%s1610 + $0xf2] sm:$0xff]
      %v2018 = vld [vmem:[%s1610 + $0xfa] sm:$0xff]
      %v2019 = vld [vmem:[%s1610 + $0x10a] sm:$0xff]
      %v2020 = vld [vmem:[%s1610 + $0x112] sm:$0xff]
      %v2021 = vld [vmem:[%s1610 + $0x122] sm:$0xff]
      %v2022 = vld [vmem:[%s1610 + $0x12a] sm:$0xff]
      %v2023 = vld [vmem:[%s1610 + $0x13a] sm:$0xff]
      %v2024 = vld [vmem:[%s1610 + $0x142] sm:$0xff]
      %v2025 = vld [vmem:[%s1610 + $0x152] sm:$0xff]
      %v2026 = vld [vmem:[%s1610 + $0x15a] sm:$0xff]
      %v2027 = vld [vmem:[%s1610 + $0x16a] sm:$0xff]
      %v2028 = vld [vmem:[%s1610 + $0x172] sm:$0xff]
      %2061 = vrot.lane.b32.xlu0 %v1997, 64
      %v2062 = vpop.permute.xlu0 %2061
      %2063 = vrot.lane.b32.xlu0 %v1998, 64
      %v2064 = vpop.permute.xlu0 %2063
      %2065 = vrot.lane.b32.xlu0 %v1999, 64
      %v2066 = vpop.permute.xlu0 %2065
      %2067 = vrot.lane.b32.xlu0 %v2000, 64
      %v2068 = vpop.permute.xlu0 %2067
      %2069 = vrot.lane.b32.xlu0 %v2001, 64
      %v2070 = vpop.permute.xlu0 %2069
      %2071 = vrot.lane.b32.xlu0 %v2002, 64
      %v2072 = vpop.permute.xlu0 %2071
      %2073 = vrot.lane.b32.xlu0 %v2003, 64
      %v2074 = vpop.permute.xlu0 %2073
      %2075 = vrot.lane.b32.xlu0 %v2004, 64
      %v2076 = vpop.permute.xlu0 %2075
      %2077 = vrot.lane.b32.xlu0 %v2005, 64
      %v2078 = vpop.permute.xlu0 %2077
      %2079 = vrot.lane.b32.xlu0 %v2006, 64
      %v2080 = vpop.permute.xlu0 %2079
      %2081 = vrot.lane.b32.xlu0 %v2007, 64
      %v2082 = vpop.permute.xlu0 %2081
      %2083 = vrot.lane.b32.xlu0 %v2008, 64
      %v2084 = vpop.permute.xlu0 %2083
      %2085 = vrot.lane.b32.xlu0 %v2009, 64
      %v2086 = vpop.permute.xlu0 %2085
      %2087 = vrot.lane.b32.xlu0 %v2010, 64
      %v2088 = vpop.permute.xlu0 %2087
      %2089 = vrot.lane.b32.xlu0 %v2011, 64
      %v2090 = vpop.permute.xlu0 %2089
      %2091 = vrot.lane.b32.xlu0 %v2012, 64
      %v2092 = vpop.permute.xlu0 %2091
      %2093 = vrot.lane.b32.xlu0 %v2013, 64
      %v2094 = vpop.permute.xlu0 %2093
      %2095 = vrot.lane.b32.xlu0 %v2014, 64
      %v2096 = vpop.permute.xlu0 %2095
      %2097 = vrot.lane.b32.xlu0 %v2015, 64
      %v2098 = vpop.permute.xlu0 %2097
      %2099 = vrot.lane.b32.xlu0 %v2016, 64
      %v2100 = vpop.permute.xlu0 %2099
      %2101 = vrot.lane.b32.xlu0 %v2017, 64
      %v2102 = vpop.permute.xlu0 %2101
      %2103 = vrot.lane.b32.xlu0 %v2018, 64
      %v2104 = vpop.permute.xlu0 %2103
      %2105 = vrot.lane.b32.xlu0 %v2019, 64
      %v2106 = vpop.permute.xlu0 %2105
      %2107 = vrot.lane.b32.xlu0 %v2020, 64
      %v2108 = vpop.permute.xlu0 %2107
      %2109 = vrot.lane.b32.xlu0 %v2021, 64
      %v2110 = vpop.permute.xlu0 %2109
      %2111 = vrot.lane.b32.xlu0 %v2022, 64
      %v2112 = vpop.permute.xlu0 %2111
      %2113 = vrot.lane.b32.xlu0 %v2023, 64
      %v2114 = vpop.permute.xlu0 %2113
      %2115 = vrot.lane.b32.xlu0 %v2024, 64
      %v2116 = vpop.permute.xlu0 %2115
      %2117 = vrot.lane.b32.xlu0 %v2025, 64
      %v2118 = vpop.permute.xlu0 %2117
      %2119 = vrot.lane.b32.xlu0 %v2026, 64
      %v2120 = vpop.permute.xlu0 %2119
      %2121 = vrot.lane.b32.xlu0 %v2027, 64
      %v2122 = vpop.permute.xlu0 %2121
      %2123 = vrot.lane.b32.xlu0 %v2028, 64
      %v2124 = vpop.permute.xlu0 %2123
      %vm2157 = vcmask 589312
      %2158 = vst.msk [vmem:[#allocation3] sm:$0xff] %vm2157, %v2062
      %2159 = vst.msk [vmem:[#allocation3 + $0x8] sm:$0xff] %vm2157, %v2064
      %2160 = vst.msk [vmem:[#allocation3 + $0x10] sm:$0xff] %vm2157, %v2066
      %2161 = vst.msk [vmem:[#allocation3 + $0x18] sm:$0xff] %vm2157, %v2068
      %2162 = vst.msk [vmem:[#allocation3 + $0x20] sm:$0xff] %vm2157, %v2070
      %2163 = vst.msk [vmem:[#allocation3 + $0x28] sm:$0xff] %vm2157, %v2072
      %2164 = vst.msk [vmem:[#allocation3 + $0x30] sm:$0xff] %vm2157, %v2074
      %2165 = vst.msk [vmem:[#allocation3 + $0x38] sm:$0xff] %vm2157, %v2076
      %2166 = vst.msk [vmem:[#allocation3 + $0x40] sm:$0xff] %vm2157, %v2078
      %2167 = vst.msk [vmem:[#allocation3 + $0x48] sm:$0xff] %vm2157, %v2080
      %2168 = vst.msk [vmem:[#allocation3 + $0x50] sm:$0xff] %vm2157, %v2082
      %2169 = vst.msk [vmem:[#allocation3 + $0x58] sm:$0xff] %vm2157, %v2084
      %2170 = vst.msk [vmem:[#allocation3 + $0x60] sm:$0xff] %vm2157, %v2086
      %2171 = vst.msk [vmem:[#allocation3 + $0x68] sm:$0xff] %vm2157, %v2088
      %2172 = vst.msk [vmem:[#allocation3 + $0x70] sm:$0xff] %vm2157, %v2090
      %2173 = vst.msk [vmem:[#allocation3 + $0x78] sm:$0xff] %vm2157, %v2092
      %2174 = vst.msk [vmem:[#allocation3 + $0x80] sm:$0xff] %vm2157, %v2094
      %2175 = vst.msk [vmem:[#allocation3 + $0x88] sm:$0xff] %vm2157, %v2096
      %2176 = vst.msk [vmem:[#allocation3 + $0x90] sm:$0xff] %vm2157, %v2098
      %2177 = vst.msk [vmem:[#allocation3 + $0x98] sm:$0xff] %vm2157, %v2100
      %2178 = vst.msk [vmem:[#allocation3 + $0xa0] sm:$0xff] %vm2157, %v2102
      %2179 = vst.msk [vmem:[#allocation3 + $0xa8] sm:$0xff] %vm2157, %v2104
      %2180 = vst.msk [vmem:[#allocation3 + $0xb0] sm:$0xff] %vm2157, %v2106
      %2181 = vst.msk [vmem:[#allocation3 + $0xb8] sm:$0xff] %vm2157, %v2108
      %2182 = vst.msk [vmem:[#allocation3 + $0xc0] sm:$0xff] %vm2157, %v2110
      %2183 = vst.msk [vmem:[#allocation3 + $0xc8] sm:$0xff] %vm2157, %v2112
      %2184 = vst.msk [vmem:[#allocation3 + $0xd0] sm:$0xff] %vm2157, %v2114
      %2185 = vst.msk [vmem:[#allocation3 + $0xd8] sm:$0xff] %vm2157, %v2116
      %2186 = vst.msk [vmem:[#allocation3 + $0xe0] sm:$0xff] %vm2157, %v2118
      %2187 = vst.msk [vmem:[#allocation3 + $0xe8] sm:$0xff] %vm2157, %v2120
      %2188 = vst.msk [vmem:[#allocation3 + $0xf0] sm:$0xff] %vm2157, %v2122
      %2189 = vst.msk [vmem:[#allocation3 + $0xf8] sm:$0xff] %vm2157, %v2124
      %v2190 = vld [vmem:[#allocation3] sm:$0xff]
      %v2191 = vld [vmem:[#allocation3 + $0x8] sm:$0xff]
      %v2192 = vld [vmem:[#allocation3 + $0x10] sm:$0xff]
      %v2193 = vld [vmem:[#allocation3 + $0x18] sm:$0xff]
      %v2194 = vld [vmem:[#allocation3 + $0x20] sm:$0xff]
      %v2195 = vld [vmem:[#allocation3 + $0x28] sm:$0xff]
      %v2196 = vld [vmem:[#allocation3 + $0x30] sm:$0xff]
      %v2197 = vld [vmem:[#allocation3 + $0x38] sm:$0xff]
      %v2198 = vld [vmem:[#allocation3 + $0x40] sm:$0xff]
      %v2199 = vld [vmem:[#allocation3 + $0x48] sm:$0xff]
      %v2200 = vld [vmem:[#allocation3 + $0x50] sm:$0xff]
      %v2201 = vld [vmem:[#allocation3 + $0x58] sm:$0xff]
      %v2202 = vld [vmem:[#allocation3 + $0x60] sm:$0xff]
      %v2203 = vld [vmem:[#allocation3 + $0x68] sm:$0xff]
      %v2204 = vld [vmem:[#allocation3 + $0x70] sm:$0xff]
      %v2205 = vld [vmem:[#allocation3 + $0x78] sm:$0xff]
      %v2206 = vld [vmem:[#allocation3 + $0x80] sm:$0xff]
      %v2207 = vld [vmem:[#allocation3 + $0x88] sm:$0xff]
      %v2208 = vld [vmem:[#allocation3 + $0x90] sm:$0xff]
      %v2209 = vld [vmem:[#allocation3 + $0x98] sm:$0xff]
      %v2210 = vld [vmem:[#allocation3 + $0xa0] sm:$0xff]
      %v2211 = vld [vmem:[#allocation3 + $0xa8] sm:$0xff]
      %v2212 = vld [vmem:[#allocation3 + $0xb0] sm:$0xff]
      %v2213 = vld [vmem:[#allocation3 + $0xb8] sm:$0xff]
      %v2214 = vld [vmem:[#allocation3 + $0xc0] sm:$0xff]
      %v2215 = vld [vmem:[#allocation3 + $0xc8] sm:$0xff]
      %v2216 = vld [vmem:[#allocation3 + $0xd0] sm:$0xff]
      %v2217 = vld [vmem:[#allocation3 + $0xd8] sm:$0xff]
      %v2218 = vld [vmem:[#allocation3 + $0xe0] sm:$0xff]
      %v2219 = vld [vmem:[#allocation3 + $0xe8] sm:$0xff]
      %v2220 = vld [vmem:[#allocation3 + $0xf0] sm:$0xff]
      %v2221 = vld [vmem:[#allocation3 + $0xf8] sm:$0xff]
      %v2222 = vld [vmem:[%s4] sm:$0xff]
      %v2223 = vld [vmem:[%s4 + $0x8] sm:$0xff]
      %v2224 = vld [vmem:[%s4 + $0x10] sm:$0xff]
      %v2225 = vld [vmem:[%s4 + $0x18] sm:$0xff]
      %v2226 = vld [vmem:[%s4 + $0x20] sm:$0xff]
      %v2227 = vld [vmem:[%s4 + $0x28] sm:$0xff]
      %v2228 = vld [vmem:[%s4 + $0x30] sm:$0xff]
      %v2229 = vld [vmem:[%s4 + $0x38] sm:$0xff]
      %v2230 = vld [vmem:[%s4 + $0x40] sm:$0xff]
      %v2231 = vld [vmem:[%s5] sm:$0x1]
      %v2233 = vlaneseq
      %v2234 = vshrl.u32 %v2233, 7
      %v2235 = vsub.s32 0, %v2234
      %v2236 = vrot.slane %v2231, %v2235
      %vm2238 = vcmask 588800
      %v2240 = vsel %vm2238, %v2190, 0
      %v2243 = vsel %vm2238, %v2191, 0
      %v2246 = vsel %vm2238, %v2192, 0
      %v2249 = vsel %vm2238, %v2193, 0
      %v2252 = vsel %vm2238, %v2194, 0
      %v2255 = vsel %vm2238, %v2195, 0
      %v2258 = vsel %vm2238, %v2196, 0
      %v2261 = vsel %vm2238, %v2197, 0
      %v2264 = vsel %vm2238, %v2198, 0
      %v2267 = vsel %vm2238, %v2199, 0
      %v2270 = vsel %vm2238, %v2200, 0
      %v2273 = vsel %vm2238, %v2201, 0
      %v2276 = vsel %vm2238, %v2202, 0
      %v2279 = vsel %vm2238, %v2203, 0
      %v2282 = vsel %vm2238, %v2204, 0
      %v2285 = vsel %vm2238, %v2205, 0
      %v2288 = vsel %vm2238, %v2206, 0
      %v2291 = vsel %vm2238, %v2207, 0
      %v2294 = vsel %vm2238, %v2208, 0
      %v2297 = vsel %vm2238, %v2209, 0
      %v2300 = vsel %vm2238, %v2210, 0
      %v2303 = vsel %vm2238, %v2211, 0
      %v2306 = vsel %vm2238, %v2212, 0
      %v2309 = vsel %vm2238, %v2213, 0
      %v2312 = vsel %vm2238, %v2214, 0
      %v2315 = vsel %vm2238, %v2215, 0
      %v2318 = vsel %vm2238, %v2216, 0
      %v2321 = vsel %vm2238, %v2217, 0
      %v2324 = vsel %vm2238, %v2218, 0
      %v2327 = vsel %vm2238, %v2219, 0
      %v2330 = vsel %vm2238, %v2220, 0
      %v2333 = vsel %vm2238, %v2221, 0
      %2335 = vmatprep.subr.mxu0 0.0
      %2336 = vmatpush1.msra.mxu0 0.0
      %2337 = vmatprep.subr.mxu0 0.0
      %2338 = vmatpush1.msra.mxu0 0.0
      %2339 = vmatprep.subr.mxu0 0.0
      %2340 = vmatpush1.msra.mxu0 0.0
      %2341 = vmatprep.subr.mxu0 0.0
      %2342 = vmatpush1.msra.mxu0 0.0
      %2343 = vmatprep.subr.mxu0 0.0
      %2344 = vmatpush1.msra.mxu0 0.0
      %2345 = vmatprep.subr.mxu0 0.0
      %2346 = vmatpush1.msra.mxu0 0.0
      %2347 = vmatprep.subr.mxu0 0.0
      %2348 = vmatpush1.msra.mxu0 0.0
      %2349 = vmatprep.subr.mxu0 0.0
      %2350 = vmatpush1.msra.mxu0 %v2230
      %2351 = vmatprep.subr.mxu0 0.0
      %2352 = vmatpush1.msra.mxu0 %v2229
      %2353 = vmatprep.subr.mxu0 0.0
      %2354 = vmatpush1.msra.mxu0 %v2228
      %2355 = vmatprep.subr.mxu0 0.0
      %2356 = vmatpush1.msra.mxu0 %v2227
      %2357 = vmatprep.subr.mxu0 0.0
      %2358 = vmatpush1.msra.mxu0 %v2226
      %2359 = vmatprep.subr.mxu0 0.0
      %2360 = vmatpush1.msra.mxu0 %v2225
      %2361 = vmatprep.subr.mxu0 0.0
      %2362 = vmatpush1.msra.mxu0 %v2224
      %2363 = vmatprep.subr.mxu0 0.0
      %2364 = vmatpush1.msra.mxu0 %v2223
      %2365 = vmatprep.subr.mxu0 0.0
      %2366 = vmatpush1.msra.mxu0 %v2222
      %2367 = vmatprep.subr.mxu0 0.0
      %2368 = vmatpush2.msra.mxu0 0.0
      %2369 = vmatprep.subr.mxu0 0.0
      %2370 = vmatpush2.msra.mxu0 0.0
      %2371 = vmatprep.subr.mxu0 0.0
      %2372 = vmatpush2.msra.mxu0 0.0
      %2373 = vmatprep.subr.mxu0 0.0
      %2374 = vmatpush2.msra.mxu0 0.0
      %2375 = vmatprep.subr.mxu0 0.0
      %2376 = vmatpush2.msra.mxu0 0.0
      %2377 = vmatprep.subr.mxu0 0.0
      %2378 = vmatpush2.msra.mxu0 0.0
      %2379 = vmatprep.subr.mxu0 0.0
      %2380 = vmatpush2.msra.mxu0 0.0
      %2381 = vmatprep.subr.mxu0 0.0
      %2382 = vmatpush2.msra.mxu0 0.0
      %2383 = vmatprep.subr.mxu0 0.0
      %2384 = vmatpush2.msra.mxu0 0.0
      %2385 = vmatprep.subr.mxu0 0.0
      %2386 = vmatpush2.msra.mxu0 0.0
      %2387 = vmatprep.subr.mxu0 0.0
      %2388 = vmatpush2.msra.mxu0 0.0
      %2389 = vmatprep.subr.mxu0 0.0
      %2390 = vmatpush2.msra.mxu0 0.0
      %2391 = vmatprep.subr.mxu0 0.0
      %2392 = vmatpush2.msra.mxu0 0.0
      %2393 = vmatprep.subr.mxu0 0.0
      %2394 = vmatpush2.msra.mxu0 0.0
      %2395 = vmatprep.subr.mxu0 0.0
      %2396 = vmatpush2.msra.mxu0 0.0
      %2397 = vmatprep.subr.mxu0 0.0
      %2398 = vmatpush2.msra.mxu0 0.0
      %2399 = vmatprep.mubr.f32.mxu0 0.0
      %2400 = vmatmul.mubr.f32.gmra.mxu0 %v2240
      %v2401 = vpop.f32.mrf.mxu0
      %v2402 = vadd.f32 %v2236, %v2401
      %v2403 = vpop.f32.mrf.mxu0
      %2404 = vmatprep.mubr.f32.mxu0 0.0
      %2405 = vmatmul.mubr.f32.gmra.mxu0 %v2243
      %v2406 = vpop.f32.mrf.mxu0
      %v2407 = vadd.f32 %v2236, %v2406
      %v2408 = vpop.f32.mrf.mxu0
      %2409 = vmatprep.mubr.f32.mxu0 0.0
      %2410 = vmatmul.mubr.f32.gmra.mxu0 %v2246
      %v2411 = vpop.f32.mrf.mxu0
      %v2412 = vadd.f32 %v2236, %v2411
      %v2413 = vpop.f32.mrf.mxu0
      %2414 = vmatprep.mubr.f32.mxu0 0.0
      %2415 = vmatmul.mubr.f32.gmra.mxu0 %v2249
      %v2416 = vpop.f32.mrf.mxu0
      %v2417 = vadd.f32 %v2236, %v2416
      %v2418 = vpop.f32.mrf.mxu0
      %2419 = vmatprep.mubr.f32.mxu0 0.0
      %2420 = vmatmul.mubr.f32.gmra.mxu0 %v2252
      %v2421 = vpop.f32.mrf.mxu0
      %v2422 = vadd.f32 %v2236, %v2421
      %v2423 = vpop.f32.mrf.mxu0
      %2424 = vmatprep.mubr.f32.mxu0 0.0
      %2425 = vmatmul.mubr.f32.gmra.mxu0 %v2255
      %v2426 = vpop.f32.mrf.mxu0
      %v2427 = vadd.f32 %v2236, %v2426
      %v2428 = vpop.f32.mrf.mxu0
      %2429 = vmatprep.mubr.f32.mxu0 0.0
      %2430 = vmatmul.mubr.f32.gmra.mxu0 %v2258
      %v2431 = vpop.f32.mrf.mxu0
      %v2432 = vadd.f32 %v2236, %v2431
      %v2433 = vpop.f32.mrf.mxu0
      %2434 = vmatprep.mubr.f32.mxu0 0.0
      %2435 = vmatmul.mubr.f32.gmra.mxu0 %v2261
      %v2436 = vpop.f32.mrf.mxu0
      %v2437 = vadd.f32 %v2236, %v2436
      %v2438 = vpop.f32.mrf.mxu0
      %2439 = vmatprep.mubr.f32.mxu0 0.0
      %2440 = vmatmul.mubr.f32.gmra.mxu0 %v2264
      %v2441 = vpop.f32.mrf.mxu0
      %v2442 = vadd.f32 %v2236, %v2441
      %v2443 = vpop.f32.mrf.mxu0
      %2444 = vmatprep.mubr.f32.mxu0 0.0
      %2445 = vmatmul.mubr.f32.gmra.mxu0 %v2267
      %v2446 = vpop.f32.mrf.mxu0
      %v2447 = vadd.f32 %v2236, %v2446
      %v2448 = vpop.f32.mrf.mxu0
      %2449 = vmatprep.mubr.f32.mxu0 0.0
      %2450 = vmatmul.mubr.f32.gmra.mxu0 %v2270
      %v2451 = vpop.f32.mrf.mxu0
      %v2452 = vadd.f32 %v2236, %v2451
      %v2453 = vpop.f32.mrf.mxu0
      %2454 = vmatprep.mubr.f32.mxu0 0.0
      %2455 = vmatmul.mubr.f32.gmra.mxu0 %v2273
      %v2456 = vpop.f32.mrf.mxu0
      %v2457 = vadd.f32 %v2236, %v2456
      %v2458 = vpop.f32.mrf.mxu0
      %2459 = vmatprep.mubr.f32.mxu0 0.0
      %2460 = vmatmul.mubr.f32.gmra.mxu0 %v2276
      %v2461 = vpop.f32.mrf.mxu0
      %v2462 = vadd.f32 %v2236, %v2461
      %v2463 = vpop.f32.mrf.mxu0
      %2464 = vmatprep.mubr.f32.mxu0 0.0
      %2465 = vmatmul.mubr.f32.gmra.mxu0 %v2279
      %v2466 = vpop.f32.mrf.mxu0
      %v2467 = vadd.f32 %v2236, %v2466
      %v2468 = vpop.f32.mrf.mxu0
      %2469 = vmatprep.mubr.f32.mxu0 0.0
      %2470 = vmatmul.mubr.f32.gmra.mxu0 %v2282
      %v2471 = vpop.f32.mrf.mxu0
      %v2472 = vadd.f32 %v2236, %v2471
      %v2473 = vpop.f32.mrf.mxu0
      %2474 = vmatprep.mubr.f32.mxu0 0.0
      %2475 = vmatmul.mubr.f32.gmra.mxu0 %v2285
      %v2476 = vpop.f32.mrf.mxu0
      %v2477 = vadd.f32 %v2236, %v2476
      %v2478 = vpop.f32.mrf.mxu0
      %2479 = vmatprep.mubr.f32.mxu0 0.0
      %2480 = vmatmul.mubr.f32.gmra.mxu0 %v2288
      %v2481 = vpop.f32.mrf.mxu0
      %v2482 = vadd.f32 %v2236, %v2481
      %v2483 = vpop.f32.mrf.mxu0
      %2484 = vmatprep.mubr.f32.mxu0 0.0
      %2485 = vmatmul.mubr.f32.gmra.mxu0 %v2291
      %v2486 = vpop.f32.mrf.mxu0
      %v2487 = vadd.f32 %v2236, %v2486
      %v2488 = vpop.f32.mrf.mxu0
      %2489 = vmatprep.mubr.f32.mxu0 0.0
      %2490 = vmatmul.mubr.f32.gmra.mxu0 %v2294
      %v2491 = vpop.f32.mrf.mxu0
      %v2492 = vadd.f32 %v2236, %v2491
      %v2493 = vpop.f32.mrf.mxu0
      %2494 = vmatprep.mubr.f32.mxu0 0.0
      %2495 = vmatmul.mubr.f32.gmra.mxu0 %v2297
      %v2496 = vpop.f32.mrf.mxu0
      %v2497 = vadd.f32 %v2236, %v2496
      %v2498 = vpop.f32.mrf.mxu0
      %2499 = vmatprep.mubr.f32.mxu0 0.0
      %2500 = vmatmul.mubr.f32.gmra.mxu0 %v2300
      %v2501 = vpop.f32.mrf.mxu0
      %v2502 = vadd.f32 %v2236, %v2501
      %v2503 = vpop.f32.mrf.mxu0
      %2504 = vmatprep.mubr.f32.mxu0 0.0
      %2505 = vmatmul.mubr.f32.gmra.mxu0 %v2303
      %v2506 = vpop.f32.mrf.mxu0
      %v2507 = vadd.f32 %v2236, %v2506
      %v2508 = vpop.f32.mrf.mxu0
      %2509 = vmatprep.mubr.f32.mxu0 0.0
      %2510 = vmatmul.mubr.f32.gmra.mxu0 %v2306
      %v2511 = vpop.f32.mrf.mxu0
      %v2512 = vadd.f32 %v2236, %v2511
      %v2513 = vpop.f32.mrf.mxu0
      %2514 = vmatprep.mubr.f32.mxu0 0.0
      %2515 = vmatmul.mubr.f32.gmra.mxu0 %v2309
      %v2516 = vpop.f32.mrf.mxu0
      %v2517 = vadd.f32 %v2236, %v2516
      %v2518 = vpop.f32.mrf.mxu0
      %2519 = vmatprep.mubr.f32.mxu0 0.0
      %2520 = vmatmul.mubr.f32.gmra.mxu0 %v2312
      %v2521 = vpop.f32.mrf.mxu0
      %v2522 = vadd.f32 %v2236, %v2521
      %v2523 = vpop.f32.mrf.mxu0
      %2524 = vmatprep.mubr.f32.mxu0 0.0
      %2525 = vmatmul.mubr.f32.gmra.mxu0 %v2315
      %v2526 = vpop.f32.mrf.mxu0
      %v2527 = vadd.f32 %v2236, %v2526
      %v2528 = vpop.f32.mrf.mxu0
      %2529 = vmatprep.mubr.f32.mxu0 0.0
      %2530 = vmatmul.mubr.f32.gmra.mxu0 %v2318
      %v2531 = vpop.f32.mrf.mxu0
      %v2532 = vadd.f32 %v2236, %v2531
      %v2533 = vpop.f32.mrf.mxu0
      %2534 = vmatprep.mubr.f32.mxu0 0.0
      %2535 = vmatmul.mubr.f32.gmra.mxu0 %v2321
      %v2536 = vpop.f32.mrf.mxu0
      %v2537 = vadd.f32 %v2236, %v2536
      %v2538 = vpop.f32.mrf.mxu0
      %2539 = vmatprep.mubr.f32.mxu0 0.0
      %2540 = vmatmul.mubr.f32.gmra.mxu0 %v2324
      %v2541 = vpop.f32.mrf.mxu0
      %v2542 = vadd.f32 %v2236, %v2541
      %v2543 = vpop.f32.mrf.mxu0
      %2544 = vmatprep.mubr.f32.mxu0 0.0
      %2545 = vmatmul.mubr.f32.gmra.mxu0 %v2327
      %v2546 = vpop.f32.mrf.mxu0
      %v2547 = vadd.f32 %v2236, %v2546
      %v2548 = vpop.f32.mrf.mxu0
      %2549 = vmatprep.mubr.f32.mxu0 0.0
      %2550 = vmatmul.mubr.f32.gmra.mxu0 %v2330
      %v2551 = vpop.f32.mrf.mxu0
      %v2552 = vadd.f32 %v2236, %v2551
      %v2553 = vpop.f32.mrf.mxu0
      %2554 = vmatprep.mubr.f32.mxu0 0.0
      %2555 = vmatmul.mubr.f32.gmra.mxu0 %v2333
      %v2556 = vpop.f32.mrf.mxu0
      %v2557 = vadd.f32 %v2236, %v2556
      %v2558 = vpop.f32.mrf.mxu0
      %2559 = vdwg.mxu0
      %2560 = vst.msk [vmem:[%s333] sm:$0xff] %vm515, %v2402
      %2561 = vst.msk [vmem:[%s333 + $0x8] sm:$0xff] %vm515, %v2407
      %2562 = vst.msk [vmem:[%s333 + $0x10] sm:$0xff] %vm515, %v2412
      %2563 = vst.msk [vmem:[%s333 + $0x18] sm:$0xff] %vm515, %v2417
      %2564 = vst.msk [vmem:[%s333 + $0x20] sm:$0xff] %vm515, %v2422
      %2565 = vst.msk [vmem:[%s333 + $0x28] sm:$0xff] %vm515, %v2427
      %2566 = vst.msk [vmem:[%s333 + $0x30] sm:$0xff] %vm515, %v2432
      %2567 = vst.msk [vmem:[%s333 + $0x38] sm:$0xff] %vm515, %v2437
      %2568 = vst.msk [vmem:[%s333 + $0x40] sm:$0xff] %vm515, %v2442
      %2569 = vst.msk [vmem:[%s333 + $0x48] sm:$0xff] %vm515, %v2447
      %2570 = vst.msk [vmem:[%s333 + $0x50] sm:$0xff] %vm515, %v2452
      %2571 = vst.msk [vmem:[%s333 + $0x58] sm:$0xff] %vm515, %v2457
      %2572 = vst.msk [vmem:[%s333 + $0x60] sm:$0xff] %vm515, %v2462
      %2573 = vst.msk [vmem:[%s333 + $0x68] sm:$0xff] %vm515, %v2467
      %2574 = vst.msk [vmem:[%s333 + $0x70] sm:$0xff] %vm515, %v2472
      %2575 = vst.msk [vmem:[%s333 + $0x78] sm:$0xff] %vm515, %v2477
      %2576 = vst.msk [vmem:[%s333 + $0x80] sm:$0xff] %vm515, %v2482
      %2577 = vst.msk [vmem:[%s333 + $0x88] sm:$0xff] %vm515, %v2487
      %2578 = vst.msk [vmem:[%s333 + $0x90] sm:$0xff] %vm515, %v2492
      %2579 = vst.msk [vmem:[%s333 + $0x98] sm:$0xff] %vm515, %v2497
      %2580 = vst.msk [vmem:[%s333 + $0xa0] sm:$0xff] %vm515, %v2502
      %2581 = vst.msk [vmem:[%s333 + $0xa8] sm:$0xff] %vm515, %v2507
      %2582 = vst.msk [vmem:[%s333 + $0xb0] sm:$0xff] %vm515, %v2512
      %2583 = vst.msk [vmem:[%s333 + $0xb8] sm:$0xff] %vm515, %v2517
      %2584 = vst.msk [vmem:[%s333 + $0xc0] sm:$0xff] %vm515, %v2522
      %2585 = vst.msk [vmem:[%s333 + $0xc8] sm:$0xff] %vm515, %v2527
      %2586 = vst.msk [vmem:[%s333 + $0xd0] sm:$0xff] %vm515, %v2532
      %2587 = vst.msk [vmem:[%s333 + $0xd8] sm:$0xff] %vm515, %v2537
      %2588 = vst.msk [vmem:[%s333 + $0xe0] sm:$0xff] %vm515, %v2542
      %2589 = vst.msk [vmem:[%s333 + $0xe8] sm:$0xff] %vm515, %v2547
      %2590 = vst.msk [vmem:[%s333 + $0xf0] sm:$0xff] %vm515, %v2552
      %2591 = vst.msk [vmem:[%s333 + $0xf8] sm:$0xff] %vm515, %v2557
      %s2592 = smul.u32 16, %s22
      %p2593 = scmp.lt.s32.totalorder %s21, 1
      %s2594 = scalar_select %p2593, %s21, 1
      %p2595 = scmp.lt.s32.totalorder %s2592, 15
      %s2596 = scalar_select %p2595, %s2592, 15
      %s2597 = smul.addr %s2596, 2
      %s2598 = smul.addr %s2594, 32
      %s2599 = sadd.s32 %s2597, %s2598
      %s2600 = smul.addr %s2599, 8
      %s2601 = scalar_lea.vmem %s6, %s2600
      // Predicated region
      $region45: #{double_conv_forward.5} parent=43 // pred_check
        %p2602 = pneg %p189
      $region46: #{double_conv_forward.5} parent=43 // pred_check_branch
        %2604 = sbr.rel (%p2602) target = $region48
      $region47: #{double_conv_forward.5} parent=43 // pred_region
        %s2605 = smul.u32 16, %s22
      $region48: #{double_conv_forward.5} parent=43 // pred_fallthru
        _
    $region44: #{double_conv_forward.5} parent=5 // pred_fallthru
      _
    %p2606 = scmp.le.s32.totalorder 2, %s12
    // Predicated region
    $region49: #{double_conv_forward.5} parent=5 // pred_check
      %p2607 = pneg %p2606
    $region50: #{double_conv_forward.5} parent=5 // pred_check_branch
      %2609 = sbr.rel (%p2607) target = $region52
    $region51: #{double_conv_forward.5} parent=5 // pred_region
      %s2610 = ssub.s32 %s12, 2
      // Predicated region
      $region53: #{double_conv_forward.5} parent=51 // pred_check
        %p2611 = pneg %p195
      $region54: #{double_conv_forward.5} parent=51 // pred_check_branch
        %2613 = sbr.rel (%p2611) target = $region56
      $region55: #{double_conv_forward.5} parent=51 // pred_region
        %s2614 = smul.u32 16, %s24
        %p2615 = scmp.lt.s32.totalorder %s23, 1
        %s2616 = scalar_select %p2615, %s23, 1
        %p2617 = scmp.lt.s32.totalorder %s2614, 15
        %s2618 = scalar_select %p2617, %s2614, 15
        %s2619 = smul.addr %s2618, 2
        %s2620 = smul.addr %s2616, 32
        %s2621 = sadd.s32 %s2619, %s2620
        %s2622 = smul.addr %s2621, 8
        %s2623 = scalar_lea.vmem %s6, %s2622
      $region56: #{double_conv_forward.5} parent=51 // pred_fallthru
        _
    $region52: #{double_conv_forward.5} parent=5 // pred_fallthru
      _
  $region6: #{double_conv_forward.5} parent=0 // loop_footer
    %s16 = sadd.s32 1, %s12
  $region7: #{double_conv_forward.5} parent=0 // loop_footer_branch
    %11 = sbr.rel target = $region3
  $region8: #{double_conv_forward.5} parent=0 // loop_exit
    _

// kernel: double_conv_forward.4
$region0: #{double_conv_forward.4}
  #allocation0 [shape = 'u32[]', space=smem, size = 0x4, offset = 0x4, fixed_abs, tag = 'smem constant byte address 0x4 - core index']
  #allocation1 [shape = 'u32[144,128]{1,0:T(1,128)}', space=vmem, size = 0x12000, scoped, tag = 'internal scratch']
  #allocation2 [shape = 'f32[18,24,4]{2,1,0:T(8,128)}', space=vmem, size = 0x36000, scoped, tag = 'scratch operand']
  #allocation3 [shape = 'f32[256,36]{1,0:T(8,128)}', space=vmem, size = 0x20000, scoped, tag = 'scratch operand']
  %s0 = inlined_call_operand.vmem [shape: f32[2,16,16,4], index: 0, kind: input, shape index: {}]
  %s1 = inlined_call_operand.vmem [shape: f32[2,2,16,4], index: 1, kind: input, shape index: {}]
  %s2 = inlined_call_operand.vmem [shape: f32[1,4], index: 2, kind: input, shape index: {}]
  %s3 = inlined_call_operand.vmem [shape: f32[1,4], index: 3, kind: input, shape index: {}]
  %s4 = inlined_call_operand.vmem [shape: f32[36,8], index: 4, kind: input, shape index: {}]
  %s5 = inlined_call_operand.vmem [shape: f32[1,8], index: 5, kind: input, shape index: {}]
  %s6 = inlined_call_operand.vmem [shape: f32[2,16,16,8], index: 6, kind: output, shape index: {0}]
  %s7 = inlined_call_operand.vmem [shape: f32[2,1,2,8], index: 7, kind: output, shape index: {1}]
  %8 = xla_tuple %s6, %s7
  %s9 = sld [smem:[#allocation0]]
  $region65: #{double_conv_forward.4} parent=0
    _
  %s11 = ssub.s32 1, %s9
  %s12 = scalar_select 0, %s11, %s9
  loop: start=0, step=1, limit=4
  $region2: #{double_conv_forward.4} parent=0 // loop_pre_header
    _
  $region3: #{double_conv_forward.4} parent=0 // loop_header
    %s14 = sphi 0, %s18
    %p15 = scmp.ge.s32.totalorder %s14, 4
    %s21 = sphi 0, %s33
    %s22 = sphi 0, %s29
    %s23 = sphi 0, %s21
    %s24 = sphi 0, %s22
    %s25 = sphi 0, %s23
    %s26 = sphi 0, %s24
    %s38 = sphi 0, %s40
    %s41 = sphi 0, %s38
    %s42 = sphi 0, %s41
    %s58 = sphi 0, %s42
    %s66 = sphi 0, %s68
    %s69 = sphi 0, %s66
    %s70 = sphi 0, %s69
    %s86 = sphi 0, %s70
    %s90 = sphi 0, %s90
    %s92 = sphi 0, %s90
    %s93 = sphi 0, %s92
    %s107 = sphi 0, %s93
    %s111 = sphi 0, %s111
    %s113 = sphi 0, %s111
    %s114 = sphi 0, %s113
    %s128 = sphi 0, %s114
    %s132 = sphi 0, %s132
    %s134 = sphi 0, %s132
    %s135 = sphi 0, %s134
    %s149 = sphi 0, %s135
    %s153 = sphi 0, %s153
    %s155 = sphi 0, %s153
    %s156 = sphi 0, %s155
    %s170 = sphi 0, %s156
    %s178 = sphi 0, %s180
    %s181 = sphi 0, %s178
    %s182 = sphi 0, %s181
    %s198 = sphi 0, %s182
    %s206 = sphi 0, %s208
    %s209 = sphi 0, %s206
    %s210 = sphi 0, %s209
    %s226 = sphi 0, %s210
  $region4: #{double_conv_forward.4} parent=0 // loop_header_branch
    %17 = sbr.rel (%p15) target = $region8
  $region5: #{double_conv_forward.4} parent=0 // loop_body
    %s19 = ssub.s32 %s14, 1
    %s20 = ssub.s32 %s14, 2
    %s27 = sadd.s32 1, %s22
    %p28 = scmp.ge.s32.totalorder %s27, 1
    %s29 = scalar_select %p28, 0, %s27
    %s30 = sadd.s32 1, %s21
    %s31 = scalar_select %p28, %s30, %s21
    %p32 = scmp.ge.s32.totalorder %s31, 2
    %s33 = scalar_select %p32, 0, %s31
    %s34 = ssub.s32 %s21, %s33
    %s35 = ssub.s32 %s22, %s29
    %s36 = sor.u32 %s34, %s35
    %p37 = scmp.eq.s32.totalorder %s36, 0
    %s39 = sadd.s32 %s38, 1
    %s40 = scalar_select %p37, %s38, %s39
    %p43 = pneg %p37
    %p44 = scmp.eq.s32.totalorder %s14, 1
    %p45 = por %p43, %p44
    %p46 = scmp.ne.s32.totalorder %s38, %s41
    %p47 = scmp.eq.s32.totalorder %s14, 0
    %p48 = por %p46, %p47
    %p49 = scmp.ne.s32.totalorder %s38, %s41
    %p50 = scmp.eq.s32.totalorder %s19, 1
    %p51 = por %p49, %p50
    %p52 = scmp.ne.s32.totalorder %s41, %s42
    %p53 = scmp.eq.s32.totalorder %s19, 0
    %p54 = por %p52, %p53
    %p55 = scmp.ne.s32.totalorder %s41, %s42
    %p56 = scmp.eq.s32.totalorder %s20, 1
    %p57 = por %p55, %p56
    %p59 = scmp.ne.s32.totalorder %s42, %s58
    %p60 = scmp.eq.s32.totalorder %s20, 0
    %p61 = por %p59, %p60
    %s62 = ssub.s32 %s21, %s33
    %s63 = ssub.s32 %s22, %s29
    %s64 = sor.u32 %s62, %s63
    %p65 = scmp.eq.s32.totalorder %s64, 0
    %s67 = sadd.s32 %s66, 1
    %s68 = scalar_select %p65, %s66, %s67
    %p71 = pneg %p65
    %p72 = scmp.eq.s32.totalorder %s14, 1
    %p73 = por %p71, %p72
    %p74 = scmp.ne.s32.totalorder %s66, %s69
    %p75 = scmp.eq.s32.totalorder %s14, 0
    %p76 = por %p74, %p75
    %p77 = scmp.ne.s32.totalorder %s66, %s69
    %p78 = scmp.eq.s32.totalorder %s19, 1
    %p79 = por %p77, %p78
    %p80 = scmp.ne.s32.totalorder %s69, %s70
    %p81 = scmp.eq.s32.totalorder %s19, 0
    %p82 = por %p80, %p81
    %p83 = scmp.ne.s32.totalorder %s69, %s70
    %p84 = scmp.eq.s32.totalorder %s20, 1
    %p85 = por %p83, %p84
    %p87 = scmp.ne.s32.totalorder %s70, %s86
    %p88 = scmp.eq.s32.totalorder %s20, 0
    %p89 = por %p87, %p88
    %s91 = sadd.s32 %s90, 1
    %p94 = scmp.eq.s32.totalorder %s14, 1
    %p95 = scmp.ne.s32.totalorder %s90, %s92
    %p96 = scmp.eq.s32.totalorder %s14, 0
    %p97 = por %p95, %p96
    %p98 = scmp.ne.s32.totalorder %s90, %s92
    %p99 = scmp.eq.s32.totalorder %s19, 1
    %p100 = por %p98, %p99
    %p101 = scmp.ne.s32.totalorder %s92, %s93
    %p102 = scmp.eq.s32.totalorder %s19, 0
    %p103 = por %p101, %p102
    %p104 = scmp.ne.s32.totalorder %s92, %s93
    %p105 = scmp.eq.s32.totalorder %s20, 1
    %p106 = por %p104, %p105
    %p108 = scmp.ne.s32.totalorder %s93, %s107
    %p109 = scmp.eq.s32.totalorder %s20, 0
    %p110 = por %p108, %p109
    %s112 = sadd.s32 %s111, 1
    %p115 = scmp.eq.s32.totalorder %s14, 1
    %p116 = scmp.ne.s32.totalorder %s111, %s113
    %p117 = scmp.eq.s32.totalorder %s14, 0
    %p118 = por %p116, %p117
    %p119 = scmp.ne.s32.totalorder %s111, %s113
    %p120 = scmp.eq.s32.totalorder %s19, 1
    %p121 = por %p119, %p120
    %p122 = scmp.ne.s32.totalorder %s113, %s114
    %p123 = scmp.eq.s32.totalorder %s19, 0
    %p124 = por %p122, %p123
    %p125 = scmp.ne.s32.totalorder %s113, %s114
    %p126 = scmp.eq.s32.totalorder %s20, 1
    %p127 = por %p125, %p126
    %p129 = scmp.ne.s32.totalorder %s114, %s128
    %p130 = scmp.eq.s32.totalorder %s20, 0
    %p131 = por %p129, %p130
    %s133 = sadd.s32 %s132, 1
    %p136 = scmp.eq.s32.totalorder %s14, 1
    %p137 = scmp.ne.s32.totalorder %s132, %s134
    %p138 = scmp.eq.s32.totalorder %s14, 0
    %p139 = por %p137, %p138
    %p140 = scmp.ne.s32.totalorder %s132, %s134
    %p141 = scmp.eq.s32.totalorder %s19, 1
    %p142 = por %p140, %p141
    %p143 = scmp.ne.s32.totalorder %s134, %s135
    %p144 = scmp.eq.s32.totalorder %s19, 0
    %p145 = por %p143, %p144
    %p146 = scmp.ne.s32.totalorder %s134, %s135
    %p147 = scmp.eq.s32.totalorder %s20, 1
    %p148 = por %p146, %p147
    %p150 = scmp.ne.s32.totalorder %s135, %s149
    %p151 = scmp.eq.s32.totalorder %s20, 0
    %p152 = por %p150, %p151
    %s154 = sadd.s32 %s153, 1
    %p157 = scmp.eq.s32.totalorder %s14, 1
    %p158 = scmp.ne.s32.totalorder %s153, %s155
    %p159 = scmp.eq.s32.totalorder %s14, 0
    %p160 = por %p158, %p159
    %p161 = scmp.ne.s32.totalorder %s153, %s155
    %p162 = scmp.eq.s32.totalorder %s19, 1
    %p163 = por %p161, %p162
    %p164 = scmp.ne.s32.totalorder %s155, %s156
    %p165 = scmp.eq.s32.totalorder %s19, 0
    %p166 = por %p164, %p165
    %p167 = scmp.ne.s32.totalorder %s155, %s156
    %p168 = scmp.eq.s32.totalorder %s20, 1
    %p169 = por %p167, %p168
    %p171 = scmp.ne.s32.totalorder %s156, %s170
    %p172 = scmp.eq.s32.totalorder %s20, 0
    %p173 = por %p171, %p172
    %s174 = ssub.s32 %s21, %s33
    %s175 = ssub.s32 %s22, %s29
    %s176 = sor.u32 %s174, %s175
    %p177 = scmp.eq.s32.totalorder %s176, 0
    %s179 = sadd.s32 %s178, 1
    %s180 = scalar_select %p177, %s178, %s179
    %p183 = pneg %p177
    %p184 = scmp.eq.s32.totalorder %s14, 1
    %p185 = por %p183, %p184
    %p186 = scmp.ne.s32.totalorder %s178, %s181
    %p187 = scmp.eq.s32.totalorder %s14, 0
    %p188 = por %p186, %p187
    %p189 = scmp.ne.s32.totalorder %s178, %s181
    %p190 = scmp.eq.s32.totalorder %s19, 1
    %p191 = por %p189, %p190
    %p192 = scmp.ne.s32.totalorder %s181, %s182
    %p193 = scmp.eq.s32.totalorder %s19, 0
    %p194 = por %p192, %p193
    %p195 = scmp.ne.s32.totalorder %s181, %s182
    %p196 = scmp.eq.s32.totalorder %s20, 1
    %p197 = por %p195, %p196
    %p199 = scmp.ne.s32.totalorder %s182, %s198
    %p200 = scmp.eq.s32.totalorder %s20, 0
    %p201 = por %p199, %p200
    %s202 = ssub.s32 %s21, %s33
    %s203 = ssub.s32 %s22, %s29
    %s204 = sor.u32 %s202, %s203
    %p205 = scmp.eq.s32.totalorder %s204, 0
    %s207 = sadd.s32 %s206, 1
    %s208 = scalar_select %p205, %s206, %s207
    %p211 = pneg %p205
    %p212 = scmp.eq.s32.totalorder %s14, 1
    %p213 = por %p211, %p212
    %p214 = scmp.ne.s32.totalorder %s206, %s209
    %p215 = scmp.eq.s32.totalorder %s14, 0
    %p216 = por %p214, %p215
    %p217 = scmp.ne.s32.totalorder %s206, %s209
    %p218 = scmp.eq.s32.totalorder %s19, 1
    %p219 = por %p217, %p218
    %p220 = scmp.ne.s32.totalorder %s209, %s210
    %p221 = scmp.eq.s32.totalorder %s19, 0
    %p222 = por %p220, %p221
    %p223 = scmp.ne.s32.totalorder %s209, %s210
    %p224 = scmp.eq.s32.totalorder %s20, 1
    %p225 = por %p223, %p224
    %p227 = scmp.ne.s32.totalorder %s210, %s226
    %p228 = scmp.eq.s32.totalorder %s20, 0
    %p229 = por %p227, %p228
    %p230 = scmp.le.s32.totalorder 1, %s14
    %p231 = scmp.lt.s32.totalorder %s14, 3
    %p232 = pnand %p230, %p231
    %p233 = pneg %p232
    // Predicated region
    $region9: #{double_conv_forward.4} parent=5 // pred_check
      _
    $region10: #{double_conv_forward.4} parent=5 // pred_check_branch
      %235 = sbr.rel (%p232) target = $region12
    $region11: #{double_conv_forward.4} parent=5 // pred_region
      %s236 = ssub.s32 %s14, 1
      // Predicated region
      $region13: #{double_conv_forward.4} parent=11 // pred_check
        %p237 = pneg %p103
      $region14: #{double_conv_forward.4} parent=11 // pred_check_branch
        %239 = sbr.rel (%p237) target = $region16
      $region15: #{double_conv_forward.4} parent=11 // pred_region
        _
      $region16: #{double_conv_forward.4} parent=11 // pred_fallthru
        _
      // Predicated region
      $region17: #{double_conv_forward.4} parent=11 // pred_check
        %p240 = pneg %p124
      $region18: #{double_conv_forward.4} parent=11 // pred_check_branch
        %242 = sbr.rel (%p240) target = $region20
      $region19: #{double_conv_forward.4} parent=11 // pred_region
        _
      $region20: #{double_conv_forward.4} parent=11 // pred_fallthru
        _
      // Predicated region
      $region21: #{double_conv_forward.4} parent=11 // pred_check
        %p243 = pneg %p145
      $region22: #{double_conv_forward.4} parent=11 // pred_check_branch
        %245 = sbr.rel (%p243) target = $region24
      $region23: #{double_conv_forward.4} parent=11 // pred_region
        _
      $region24: #{double_conv_forward.4} parent=11 // pred_fallthru
        _
      // Predicated region
      $region25: #{double_conv_forward.4} parent=11 // pred_check
        %p246 = pneg %p166
      $region26: #{double_conv_forward.4} parent=11 // pred_check_branch
        %248 = sbr.rel (%p246) target = $region28
      $region27: #{double_conv_forward.4} parent=11 // pred_region
        _
      $region28: #{double_conv_forward.4} parent=11 // pred_fallthru
        _
    $region12: #{double_conv_forward.4} parent=5 // pred_fallthru
      _
    %p249 = scmp.lt.s32.totalorder %s14, 2
    // Predicated region
    $region29: #{double_conv_forward.4} parent=5 // pred_check
      %p250 = pneg %p249
    $region30: #{double_conv_forward.4} parent=5 // pred_check_branch
      %252 = sbr.rel (%p250) target = $region32
    $region31: #{double_conv_forward.4} parent=5 // pred_region
      // Predicated region
      $region33: #{double_conv_forward.4} parent=31 // pred_check
        %p253 = pneg %p48
      $region34: #{double_conv_forward.4} parent=31 // pred_check_branch
        %255 = sbr.rel (%p253) target = $region36
      $region35: #{double_conv_forward.4} parent=31 // pred_region
        %s256 = smul.u32 16, %s22
        %p257 = scmp.lt.s32.totalorder %s21, 1
        %s258 = scalar_select %p257, %s21, 1
        %p259 = scmp.lt.s32.totalorder %s256, 15
        %s260 = scalar_select %p259, %s256, 15
        %s261 = smul.addr %s260, 2
        %s262 = smul.addr %s258, 32
        %s263 = sadd.s32 %s261, %s262
        %s264 = smul.addr %s263, 8
        %s265 = scalar_lea.vmem %s0, %s264
        %s266 = smul.u32 16, %s22
      $region36: #{double_conv_forward.4} parent=31 // pred_fallthru
        _
      // Predicated region
      $region37: #{double_conv_forward.4} parent=31 // pred_check
        %p267 = pneg %p76
      $region38: #{double_conv_forward.4} parent=31 // pred_check_branch
        %269 = sbr.rel (%p267) target = $region40
      $region39: #{double_conv_forward.4} parent=31 // pred_region
        %s270 = smul.u32 2, %s22
        %p271 = scmp.lt.s32.totalorder %s21, 1
        %s272 = scalar_select %p271, %s21, 1
        %p273 = scmp.lt.s32.totalorder %s270, 1
        %s274 = scalar_select %p273, %s270, 1
        %s275 = smul.addr %s274, 2
        %s276 = smul.addr %s272, 4
        %s277 = sadd.s32 %s275, %s276
        %s278 = smul.addr %s277, 8
        %s279 = scalar_lea.vmem %s1, %s278
        %s280 = smul.u32 2, %s22
      $region40: #{double_conv_forward.4} parent=31 // pred_fallthru
        _
    $region32: #{double_conv_forward.4} parent=5 // pred_fallthru
      _
    %p281 = scmp.le.s32.totalorder 1, %s14
    %p282 = scmp.lt.s32.totalorder %s14, 3
    %p283 = pnand %p281, %p282
    %p284 = pneg %p283
    // Predicated region
    $region41: #{double_conv_forward.4} parent=5 // pred_check
      _
    $region42: #{double_conv_forward.4} parent=5 // pred_check_branch
      %286 = sbr.rel (%p283) target = $region44
    $region43: #{double_conv_forward.4} parent=5 // pred_region
      %s287 = ssub.s32 %s14, 1
      %s288 = smul.u32 16, %s24
      %p289 = scmp.lt.s32.totalorder %s23, 1
      %s290 = scalar_select %p289, %s23, 1
      %p291 = scmp.lt.s32.totalorder %s288, 15
      %s292 = scalar_select %p291, %s288, 15
      %s293 = smul.addr %s292, 2
      %s294 = smul.addr %s290, 32
      %s295 = sadd.s32 %s293, %s294
      %s296 = smul.addr %s295, 8
      %s297 = scalar_lea.vmem %s0, %s296
      %p298 = pneg %p54
      %p299 = pneg %p51
      %s300 = smul.u32 2, %s24
      %p301 = scmp.lt.s32.totalorder %s23, 1
      %s302 = scalar_select %p301, %s23, 1
      %p303 = scmp.lt.s32.totalorder %s300, 1
      %s304 = scalar_select %p303, %s300, 1
      %s305 = smul.addr %s304, 2
      %s306 = smul.addr %s302, 4
      %s307 = sadd.s32 %s305, %s306
      %s308 = smul.addr %s307, 8
      %s309 = scalar_lea.vmem %s1, %s308
      %p310 = pneg %p82
      %p311 = pneg %p79
      %p312 = pneg %p103
      %p313 = pneg %p100
      %p314 = pneg %p124
      %p315 = pneg %p121
      %p316 = pneg %p145
      %p317 = pneg %p142
      %p318 = pneg %p166
      %p319 = pneg %p163
      %p320 = pneg %p194
      %p321 = pneg %p191
      %s322 = smul.u32 16, %s24
      %p323 = scmp.lt.s32.totalorder %s23, 1
      %s324 = scalar_select %p323, %s23, 1
      %p325 = scmp.lt.s32.totalorder %s322, 15
      %s326 = scalar_select %p325, %s322, 15
      %s327 = smul.addr %s326, 2
      %s328 = smul.addr %s324, 32
      %s329 = sadd.s32 %s327, %s328
      %s330 = smul.addr %s329, 8
      %s331 = scalar_lea.vmem %s6, %s330
      %p332 = pneg %p222
      %p333 = pneg %p219
      %p334 = scmp.lt.s32.totalorder %s23, 1
      %s335 = scalar_select %p334, %s23, 1
      %p336 = scmp.lt.s32.totalorder %s24, 0
      %s337 = scalar_select %p336, %s24, 0
      %s338 = sadd.s32 %s337, %s335
      %s339 = smul.addr %s338, 2
      %s340 = scalar_lea.vmem %s7, %s339
      %s341 = smul.u32 16, %s24
      %p342 = scmp.lt.s32.totalorder %s23, 1
      %s343 = scalar_select %p342, %s23, 1
      %p344 = scmp.lt.s32.totalorder %s341, 15
      %s345 = scalar_select %p344, %s341, 15
      %s346 = smul.addr %s345, 2
      %s347 = smul.addr %s343, 32
      %s348 = sadd.s32 %s346, %s347
      %s349 = smul.addr %s348, 8
      %s350 = scalar_lea.vmem %s0, %s349
      %s351 = smul.u32 16, %s24
      %s352 = smul.u32 2, %s24
      %p353 = scmp.lt.s32.totalorder %s23, 1
      %s354 = scalar_select %p353, %s23, 1
      %p355 = scmp.lt.s32.totalorder %s352, 1
      %s356 = scalar_select %p355, %s352, 1
      %s357 = smul.addr %s356, 2
      %s358 = smul.addr %s354, 4
      %s359 = sadd.s32 %s357, %s358
      %s360 = smul.addr %s359, 8
      %s361 = scalar_lea.vmem %s1, %s360
      %s362 = smul.u32 2, %s24
      %s363 = smul.u32 16, %s24
      %p364 = scmp.lt.s32.totalorder %s23, 1
      %s365 = scalar_select %p364, %s23, 1
      %p366 = scmp.lt.s32.totalorder %s363, 15
      %s367 = scalar_select %p366, %s363, 15
      %s368 = smul.addr %s367, 2
      %s369 = smul.addr %s365, 32
      %s370 = sadd.s32 %s368, %s369
      %s371 = smul.addr %s370, 8
      %s372 = scalar_lea.vmem %s6, %s371
      %s373 = smul.u32 16, %s24
      %p374 = scmp.lt.s32.totalorder %s23, 1
      %s375 = scalar_select %p374, %s23, 1
      %p376 = scmp.lt.s32.totalorder %s24, 0
      %s377 = scalar_select %p376, %s24, 0
      %s378 = sadd.s32 %s377, %s375
      %s379 = smul.addr %s378, 2
      %s380 = scalar_lea.vmem %s7, %s379
      %v381 = vld [vmem:[%s2] sm:$0x1]
      %v382 = vld [vmem:[%s3] sm:$0x1]
      %vm383 = vcmask 24576
      %384 = vst.msk [vmem:[#allocation2] sm:$0x1] %vm383, 0.0
      %385 = vst.msk [vmem:[#allocation2 + $0x18] sm:$0x1] %vm383, 0.0
      %386 = vst.msk [vmem:[#allocation2 + $0x30] sm:$0x1] %vm383, 0.0
      %387 = vst.msk [vmem:[#allocation2 + $0x48] sm:$0x1] %vm383, 0.0
      %388 = vst.msk [vmem:[#allocation2 + $0x60] sm:$0x1] %vm383, 0.0
      %389 = vst.msk [vmem:[#allocation2 + $0x78] sm:$0x1] %vm383, 0.0
      %390 = vst.msk [vmem:[#allocation2 + $0x90] sm:$0x1] %vm383, 0.0
      %391 = vst.msk [vmem:[#allocation2 + $0xa8] sm:$0x1] %vm383, 0.0
      %392 = vst.msk [vmem:[#allocation2 + $0xc0] sm:$0x1] %vm383, 0.0
      %393 = vst.msk [vmem:[#allocation2 + $0xd8] sm:$0x1] %vm383, 0.0
      %394 = vst.msk [vmem:[#allocation2 + $0xf0] sm:$0x1] %vm383, 0.0
      %395 = vst.msk [vmem:[#allocation2 + $0x108] sm:$0x1] %vm383, 0.0
      %396 = vst.msk [vmem:[#allocation2 + $0x120] sm:$0x1] %vm383, 0.0
      %397 = vst.msk [vmem:[#allocation2 + $0x138] sm:$0x1] %vm383, 0.0
      %398 = vst.msk [vmem:[#allocation2 + $0x150] sm:$0x1] %vm383, 0.0
      %399 = vst.msk [vmem:[#allocation2 + $0x168] sm:$0x1] %vm383, 0.0
      %400 = vst.msk [vmem:[#allocation2 + $0x180] sm:$0x1] %vm383, 0.0
      %401 = vst.msk [vmem:[#allocation2 + $0x198] sm:$0x1] %vm383, 0.0
      %402 = vst.msk [vmem:[#allocation2 + $0x11] sm:$0x1] %vm383, 0.0
      %403 = vst.msk [vmem:[#allocation2 + $0x29] sm:$0x1] %vm383, 0.0
      %404 = vst.msk [vmem:[#allocation2 + $0x41] sm:$0x1] %vm383, 0.0
      %405 = vst.msk [vmem:[#allocation2 + $0x59] sm:$0x1] %vm383, 0.0
      %406 = vst.msk [vmem:[#allocation2 + $0x71] sm:$0x1] %vm383, 0.0
      %407 = vst.msk [vmem:[#allocation2 + $0x89] sm:$0x1] %vm383, 0.0
      %408 = vst.msk [vmem:[#allocation2 + $0xa1] sm:$0x1] %vm383, 0.0
      %409 = vst.msk [vmem:[#allocation2 + $0xb9] sm:$0x1] %vm383, 0.0
      %410 = vst.msk [vmem:[#allocation2 + $0xd1] sm:$0x1] %vm383, 0.0
      %411 = vst.msk [vmem:[#allocation2 + $0xe9] sm:$0x1] %vm383, 0.0
      %412 = vst.msk [vmem:[#allocation2 + $0x101] sm:$0x1] %vm383, 0.0
      %413 = vst.msk [vmem:[#allocation2 + $0x119] sm:$0x1] %vm383, 0.0
      %414 = vst.msk [vmem:[#allocation2 + $0x131] sm:$0x1] %vm383, 0.0
      %415 = vst.msk [vmem:[#allocation2 + $0x149] sm:$0x1] %vm383, 0.0
      %416 = vst.msk [vmem:[#allocation2 + $0x161] sm:$0x1] %vm383, 0.0
      %417 = vst.msk [vmem:[#allocation2 + $0x179] sm:$0x1] %vm383, 0.0
      %418 = vst.msk [vmem:[#allocation2 + $0x191] sm:$0x1] %vm383, 0.0
      %419 = vst.msk [vmem:[#allocation2 + $0x1a9] sm:$0x1] %vm383, 0.0
      %v420 = vld [vmem:[%s350] sm:$0xff]
      %v421 = vld [vmem:[%s350 + $0x8] sm:$0xff]
      %v422 = vld [vmem:[%s350 + $0x10] sm:$0xff]
      %v423 = vld [vmem:[%s350 + $0x18] sm:$0xff]
      %v424 = vld [vmem:[%s350 + $0x20] sm:$0xff]
      %v425 = vld [vmem:[%s350 + $0x28] sm:$0xff]
      %v426 = vld [vmem:[%s350 + $0x30] sm:$0xff]
      %v427 = vld [vmem:[%s350 + $0x38] sm:$0xff]
      %v428 = vld [vmem:[%s350 + $0x40] sm:$0xff]
      %v429 = vld [vmem:[%s350 + $0x48] sm:$0xff]
      %v430 = vld [vmem:[%s350 + $0x50] sm:$0xff]
      %v431 = vld [vmem:[%s350 + $0x58] sm:$0xff]
      %v432 = vld [vmem:[%s350 + $0x60] sm:$0xff]
      %v433 = vld [vmem:[%s350 + $0x68] sm:$0xff]
      %v434 = vld [vmem:[%s350 + $0x70] sm:$0xff]
      %v435 = vld [vmem:[%s350 + $0x78] sm:$0xff]
      %v436 = vld [vmem:[%s350 + $0x80] sm:$0xff]
      %v437 = vld [vmem:[%s350 + $0x88] sm:$0xff]
      %v438 = vld [vmem:[%s350 + $0x90] sm:$0xff]
      %v439 = vld [vmem:[%s350 + $0x98] sm:$0xff]
      %v440 = vld [vmem:[%s350 + $0xa0] sm:$0xff]
      %v441 = vld [vmem:[%s350 + $0xa8] sm:$0xff]
      %v442 = vld [vmem:[%s350 + $0xb0] sm:$0xff]
      %v443 = vld [vmem:[%s350 + $0xb8] sm:$0xff]
      %v444 = vld [vmem:[%s350 + $0xc0] sm:$0xff]
      %v445 = vld [vmem:[%s350 + $0xc8] sm:$0xff]
      %v446 = vld [vmem:[%s350 + $0xd0] sm:$0xff]
      %v447 = vld [vmem:[%s350 + $0xd8] sm:$0xff]
      %v448 = vld [vmem:[%s350 + $0xe0] sm:$0xff]
      %v449 = vld [vmem:[%s350 + $0xe8] sm:$0xff]
      %v450 = vld [vmem:[%s350 + $0xf0] sm:$0xff]
      %v451 = vld [vmem:[%s350 + $0xf8] sm:$0xff]
      %v453 = vlaneseq
      %v454 = vshrl.u32 %v453, 7
      %v455 = vsub.s32 0, %v454
      %v456 = vrot.slane %v381, %v455
      %v458 = vmul.f32 %v420, %v456
      %v459 = vmul.f32 %v421, %v456
      %v460 = vmul.f32 %v422, %v456
      %v461 = vmul.f32 %v423, %v456
      %v462 = vmul.f32 %v424, %v456
      %v463 = vmul.f32 %v425, %v456
      %v464 = vmul.f32 %v426, %v456
      %v465 = vmul.f32 %v427, %v456
      %v466 = vmul.f32 %v428, %v456
      %v467 = vmul.f32 %v429, %v456
      %v468 = vmul.f32 %v430, %v456
      %v469 = vmul.f32 %v431, %v456
      %v470 = vmul.f32 %v432, %v456
      %v471 = vmul.f32 %v433, %v456
      %v472 = vmul.f32 %v434, %v456
      %v473 = vmul.f32 %v435, %v456
      %v474 = vmul.f32 %v436, %v456
      %v475 = vmul.f32 %v437, %v456
      %v476 = vmul.f32 %v438, %v456
      %v477 = vmul.f32 %v439, %v456
      %v478 = vmul.f32 %v440, %v456
      %v479 = vmul.f32 %v441, %v456
      %v480 = vmul.f32 %v442, %v456
      %v481 = vmul.f32 %v443, %v456
      %v482 = vmul.f32 %v444, %v456
      %v483 = vmul.f32 %v445, %v456
      %v484 = vmul.f32 %v446, %v456
      %v485 = vmul.f32 %v447, %v456
      %v486 = vmul.f32 %v448, %v456
      %v487 = vmul.f32 %v449, %v456
      %v488 = vmul.f32 %v450, %v456
      %v489 = vmul.f32 %v451, %v456
      %v491 = vlaneseq
      %v492 = vshrl.u32 %v491, 7
      %v493 = vsub.s32 0, %v492
      %v494 = vrot.slane %v382, %v493
      %v496 = vadd.f32 %v458, %v494
      %v497 = vadd.f32 %v459, %v494
      %v498 = vadd.f32 %v460, %v494
      %v499 = vadd.f32 %v461, %v494
      %v500 = vadd.f32 %v462, %v494
      %v501 = vadd.f32 %v463, %v494
      %v502 = vadd.f32 %v464, %v494
      %v503 = vadd.f32 %v465, %v494
      %v504 = vadd.f32 %v466, %v494
      %v505 = vadd.f32 %v467, %v494
      %v506 = vadd.f32 %v468, %v494
      %v507 = vadd.f32 %v469, %v494
      %v508 = vadd.f32 %v470, %v494
      %v509 = vadd.f32 %v471, %v494
      %v510 = vadd.f32 %v472, %v494
      %v511 = vadd.f32 %v473, %v494
      %v512 = vadd.f32 %v474, %v494
      %v513 = vadd.f32 %v475, %v494
      %v514 = vadd.f32 %v476, %v494
      %v515 = vadd.f32 %v477, %v494
      %v516 = vadd.f32 %v478, %v494
      %v517 = vadd.f32 %v479, %v494
      %v518 = vadd.f32 %v480, %v494
      %v519 = vadd.f32 %v481, %v494
      %v520 = vadd.f32 %v482, %v494
      %v521 = vadd.f32 %v483, %v494
      %v522 = vadd.f32 %v484, %v494
      %v523 = vadd.f32 %v485, %v494
      %v524 = vadd.f32 %v486, %v494
      %v525 = vadd.f32 %v487, %v494
      %v526 = vadd.f32 %v488, %v494
      %v527 = vadd.f32 %v489, %v494
      %v528 = vmax.f32 %v496, 0.0
      %v529 = vmax.f32 %v497, 0.0
      %v530 = vmax.f32 %v498, 0.0
      %v531 = vmax.f32 %v499, 0.0
      %v532 = vmax.f32 %v500, 0.0
      %v533 = vmax.f32 %v501, 0.0
      %v534 = vmax.f32 %v502, 0.0
      %v535 = vmax.f32 %v503, 0.0
      %v536 = vmax.f32 %v504, 0.0
      %v537 = vmax.f32 %v505, 0.0
      %v538 = vmax.f32 %v506, 0.0
      %v539 = vmax.f32 %v507, 0.0
      %v540 = vmax.f32 %v508, 0.0
      %v541 = vmax.f32 %v509, 0.0
      %v542 = vmax.f32 %v510, 0.0
      %v543 = vmax.f32 %v511, 0.0
      %v544 = vmax.f32 %v512, 0.0
      %v545 = vmax.f32 %v513, 0.0
      %v546 = vmax.f32 %v514, 0.0
      %v547 = vmax.f32 %v515, 0.0
      %v548 = vmax.f32 %v516, 0.0
      %v549 = vmax.f32 %v517, 0.0
      %v550 = vmax.f32 %v518, 0.0
      %v551 = vmax.f32 %v519, 0.0
      %v552 = vmax.f32 %v520, 0.0
      %v553 = vmax.f32 %v521, 0.0
      %v554 = vmax.f32 %v522, 0.0
      %v555 = vmax.f32 %v523, 0.0
      %v556 = vmax.f32 %v524, 0.0
      %v557 = vmax.f32 %v525, 0.0
      %v558 = vmax.f32 %v526, 0.0
      %v559 = vmax.f32 %v527, 0.0
      %s560 = scalar_lea.vmem [#allocation2], 24
      %vm561 = vcmask 31744
      %562 = vst.msk [vmem:[%s560 + $0x1] sm:$0xff] %vm561, %v528
      %563 = vst.msk [vmem:[%s560 + $0x9] sm:$0xff] %vm561, %v529
      %564 = vst.msk [vmem:[%s560 + $0x19] sm:$0xff] %vm561, %v530
      %565 = vst.msk [vmem:[%s560 + $0x21] sm:$0xff] %vm561, %v531
      %566 = vst.msk [vmem:[%s560 + $0x31] sm:$0xff] %vm561, %v532
      %567 = vst.msk [vmem:[%s560 + $0x39] sm:$0xff] %vm561, %v533
      %568 = vst.msk [vmem:[%s560 + $0x49] sm:$0xff] %vm561, %v534
      %569 = vst.msk [vmem:[%s560 + $0x51] sm:$0xff] %vm561, %v535
      %570 = vst.msk [vmem:[%s560 + $0x61] sm:$0xff] %vm561, %v536
      %571 = vst.msk [vmem:[%s560 + $0x69] sm:$0xff] %vm561, %v537
      %572 = vst.msk [vmem:[%s560 + $0x79] sm:$0xff] %vm561, %v538
      %573 = vst.msk [vmem:[%s560 + $0x81] sm:$0xff] %vm561, %v539
      %574 = vst.msk [vmem:[%s560 + $0x91] sm:$0xff] %vm561, %v540
      %575 = vst.msk [vmem:[%s560 + $0x99] sm:$0xff] %vm561, %v541
      %576 = vst.msk [vmem:[%s560 + $0xa9] sm:$0xff] %vm561, %v542
      %577 = vst.msk [vmem:[%s560 + $0xb1] sm:$0xff] %vm561, %v543
      %578 = vst.msk [vmem:[%s560 + $0xc1] sm:$0xff] %vm561, %v544
      %579 = vst.msk [vmem:[%s560 + $0xc9] sm:$0xff] %vm561, %v545
      %580 = vst.msk [vmem:[%s560 + $0xd9] sm:$0xff] %vm561, %v546
      %581 = vst.msk [vmem:[%s560 + $0xe1] sm:$0xff] %vm561, %v547
      %582 = vst.msk [vmem:[%s560 + $0xf1] sm:$0xff] %vm561, %v548
      %583 = vst.msk [vmem:[%s560 + $0xf9] sm:$0xff] %vm561, %v549
      %584 = vst.msk [vmem:[%s560 + $0x109] sm:$0xff] %vm561, %v550
      %585 = vst.msk [vmem:[%s560 + $0x111] sm:$0xff] %vm561, %v551
      %586 = vst.msk [vmem:[%s560 + $0x121] sm:$0xff] %vm561, %v552
      %587 = vst.msk [vmem:[%s560 + $0x129] sm:$0xff] %vm561, %v553
      %588 = vst.msk [vmem:[%s560 + $0x139] sm:$0xff] %vm561, %v554
      %589 = vst.msk [vmem:[%s560 + $0x141] sm:$0xff] %vm561, %v555
      %590 = vst.msk [vmem:[%s560 + $0x151] sm:$0xff] %vm561, %v556
      %591 = vst.msk [vmem:[%s560 + $0x159] sm:$0xff] %vm561, %v557
      %592 = vst.msk [vmem:[%s560 + $0x169] sm:$0xff] %vm561, %v558
      %593 = vst.msk [vmem:[%s560 + $0x171] sm:$0xff] %vm561, %v559
      %v594 = vld [vmem:[%s361] sm:$0xff]
      %v595 = vld [vmem:[%s361 + $0x8] sm:$0xff]
      %v596 = vld [vmem:[%s361 + $0x10] sm:$0xff]
      %v597 = vld [vmem:[%s361 + $0x18] sm:$0xff]
      %v598 = vmul.f32 %v594, %v456
      %v599 = vmul.f32 %v595, %v456
      %v600 = vadd.f32 %v598, %v494
      %v601 = vadd.f32 %v599, %v494
      %v602 = vmax.f32 %v600, 0.0
      %v603 = vmax.f32 %v601, 0.0
      %p604 = scmp.gt.s32.totalorder %s24, 0
      %s605 = scalar_select %p604, 1, 0
      %s606 = scvt.s32.f32 %s605
      %v607 = vstv %s606
      %v608 = vmul.f32 %v602, %v607
      %v609 = vmul.f32 %v603, %v607
      %v610 = vmul.f32 %v596, %v456
      %v611 = vmul.f32 %v597, %v456
      %v612 = vadd.f32 %v610, %v494
      %v613 = vadd.f32 %v611, %v494
      %v614 = vmax.f32 %v612, 0.0
      %v615 = vmax.f32 %v613, 0.0
      %p616 = scmp.lt.s32.totalorder %s24, 0
      %s617 = scalar_select %p616, 1, 0
      %s618 = scvt.s32.f32 %s617
      %v619 = vstv %s618
      %v620 = vmul.f32 %v614, %v619
      %v621 = vmul.f32 %v615, %v619
      %622 = vst.msk [vmem:[#allocation2 + $0x1] sm:$0xff] %vm561, %v608
      %623 = vst.msk [vmem:[#allocation2 + $0x9] sm:$0xff] %vm561, %v609
      %s624 = scalar_lea.vmem [#allocation2], 408
      %625 = vst.msk [vmem:[%s624 + $0x1] sm:$0xff] %vm561, %v620
      %626 = vst.msk [vmem:[%s624 + $0x9] sm:$0xff] %vm561, %v621
      %v627 = vld [vmem:[#allocation2] sm:$0xff]
      %v628 = vld [vmem:[#allocation2 + $0x8] sm:$0xff]
      %v629 = vld [vmem:[#allocation2 + $0x18] sm:$0xff]
      %v630 = vld [vmem:[#allocation2 + $0x20] sm:$0xff]
      %v631 = vld [vmem:[#allocation2 + $0x30] sm:$0xff]
      %v632 = vld [vmem:[#allocation2 + $0x38] sm:$0xff]
      %v633 = vld [vmem:[#allocation2 + $0x48] sm:$0xff]
      %v634 = vld [vmem:[#allocation2 + $0x50] sm:$0xff]
      %v635 = vld [vmem:[#allocation2 + $0x60] sm:$0xff]
      %v636 = vld [vmem:[#allocation2 + $0x68] sm:$0xff]
      %v637 = vld [vmem:[#allocation2 + $0x78] sm:$0xff]
      %v638 = vld [vmem:[#allocation2 + $0x80] sm:$0xff]
      %v639 = vld [vmem:[#allocation2 + $0x90] sm:$0xff]
      %v640 = vld [vmem:[#allocation2 + $0x98] sm:$0xff]
      %v641 = vld [vmem:[#allocation2 + $0xa8] sm:$0xff]
      %v642 = vld [vmem:[#allocation2 + $0xb0] sm:$0xff]
      %v643 = vld [vmem:[#allocation2 + $0xc0] sm:$0xff]
      %v644 = vld [vmem:[#allocation2 + $0xc8] sm:$0xff]
      %v645 = vld [vmem:[#allocation2 + $0xd8] sm:$0xff]
      %v646 = vld [vmem:[#allocation2 + $0xe0] sm:$0xff]
      %v647 = vld [vmem:[#allocation2 + $0xf0] sm:$0xff]
      %v648 = vld [vmem:[#allocation2 + $0xf8] sm:$0xff]
      %v649 = vld [vmem:[#allocation2 + $0x108] sm:$0xff]
      %v650 = vld [vmem:[#allocation2 + $0x110] sm:$0xff]
      %v651 = vld [vmem:[#allocation2 + $0x120] sm:$0xff]
      %v652 = vld [vmem:[#allocation2 + $0x128] sm:$0xff]
      %v653 = vld [vmem:[#allocation2 + $0x138] sm:$0xff]
      %v654 = vld [vmem:[#allocation2 + $0x140] sm:$0xff]
      %v655 = vld [vmem:[#allocation2 + $0x150] sm:$0xff]
      %v656 = vld [vmem:[#allocation2 + $0x158] sm:$0xff]
      %v657 = vld [vmem:[#allocation2 + $0x168] sm:$0xff]
      %v658 = vld [vmem:[#allocation2 + $0x170] sm:$0xff]
      %659 = vst.msk [vmem:[#allocation3] sm:$0xff] %vm561, %v627
      %660 = vst.msk [vmem:[#allocation3 + $0x8] sm:$0xff] %vm561, %v628
      %661 = vst.msk [vmem:[#allocation3 + $0x10] sm:$0xff] %vm561, %v629
      %662 = vst.msk [vmem:[#allocation3 + $0x18] sm:$0xff] %vm561, %v630
      %663 = vst.msk [vmem:[#allocation3 + $0x20] sm:$0xff] %vm561, %v631
      %664 = vst.msk [vmem:[#allocation3 + $0x28] sm:$0xff] %vm561, %v632
      %665 = vst.msk [vmem:[#allocation3 + $0x30] sm:$0xff] %vm561, %v633
      %666 = vst.msk [vmem:[#allocation3 + $0x38] sm:$0xff] %vm561, %v634
      %667 = vst.msk [vmem:[#allocation3 + $0x40] sm:$0xff] %vm561, %v635
      %668 = vst.msk [vmem:[#allocation3 + $0x48] sm:$0xff] %vm561, %v636
      %669 = vst.msk [vmem:[#allocation3 + $0x50] sm:$0xff] %vm561, %v637
      %670 = vst.msk [vmem:[#allocation3 + $0x58] sm:$0xff] %vm561, %v638
      %671 = vst.msk [vmem:[#allocation3 + $0x60] sm:$0xff] %vm561, %v639
      %672 = vst.msk [vmem:[#allocation3 + $0x68] sm:$0xff] %vm561, %v640
      %673 = vst.msk [vmem:[#allocation3 + $0x70] sm:$0xff] %vm561, %v641
      %674 = vst.msk [vmem:[#allocation3 + $0x78] sm:$0xff] %vm561, %v642
      %675 = vst.msk [vmem:[#allocation3 + $0x80] sm:$0xff] %vm561, %v643
      %676 = vst.msk [vmem:[#allocation3 + $0x88] sm:$0xff] %vm561, %v644
      %677 = vst.msk [vmem:[#allocation3 + $0x90] sm:$0xff] %vm561, %v645
      %678 = vst.msk [vmem:[#allocation3 + $0x98] sm:$0xff] %vm561, %v646
      %679 = vst.msk [vmem:[#allocation3 + $0xa0] sm:$0xff] %vm561, %v647
      %680 = vst.msk [vmem:[#allocation3 + $0xa8] sm:$0xff] %vm561, %v648
      %681 = vst.msk [vmem:[#allocation3 + $0xb0] sm:$0xff] %vm561, %v649
      %682 = vst.msk [vmem:[#allocation3 + $0xb8] sm:$0xff] %vm561, %v650
      %683 = vst.msk [vmem:[#allocation3 + $0xc0] sm:$0xff] %vm561, %v651
      %684 = vst.msk [vmem:[#allocation3 + $0xc8] sm:$0xff] %vm561, %v652
      %685 = vst.msk [vmem:[#allocation3 + $0xd0] sm:$0xff] %vm561, %v653
      %686 = vst.msk [vmem:[#allocation3 + $0xd8] sm:$0xff] %vm561, %v654
      %687 = vst.msk [vmem:[#allocation3 + $0xe0] sm:$0xff] %vm561, %v655
      %688 = vst.msk [vmem:[#allocation3 + $0xe8] sm:$0xff] %vm561, %v656
      %689 = vst.msk [vmem:[#allocation3 + $0xf0] sm:$0xff] %vm561, %v657
      %690 = vst.msk [vmem:[#allocation3 + $0xf8] sm:$0xff] %vm561, %v658
      %v691 = vld [vmem:[#allocation2 + $0x1] sm:$0xff]
      %v692 = vld [vmem:[#allocation2 + $0x9] sm:$0xff]
      %v693 = vld [vmem:[#allocation2 + $0x19] sm:$0xff]
      %v694 = vld [vmem:[#allocation2 + $0x21] sm:$0xff]
      %v695 = vld [vmem:[#allocation2 + $0x31] sm:$0xff]
      %v696 = vld [vmem:[#allocation2 + $0x39] sm:$0xff]
      %v697 = vld [vmem:[#allocation2 + $0x49] sm:$0xff]
      %v698 = vld [vmem:[#allocation2 + $0x51] sm:$0xff]
      %v699 = vld [vmem:[#allocation2 + $0x61] sm:$0xff]
      %v700 = vld [vmem:[#allocation2 + $0x69] sm:$0xff]
      %v701 = vld [vmem:[#allocation2 + $0x79] sm:$0xff]
      %v702 = vld [vmem:[#allocation2 + $0x81] sm:$0xff]
      %v703 = vld [vmem:[#allocation2 + $0x91] sm:$0xff]
      %v704 = vld [vmem:[#allocation2 + $0x99] sm:$0xff]
      %v705 = vld [vmem:[#allocation2 + $0xa9] sm:$0xff]
      %v706 = vld [vmem:[#allocation2 + $0xb1] sm:$0xff]
      %v707 = vld [vmem:[#allocation2 + $0xc1] sm:$0xff]
      %v708 = vld [vmem:[#allocation2 + $0xc9] sm:$0xff]
      %v709 = vld [vmem:[#allocation2 + $0xd9] sm:$0xff]
      %v710 = vld [vmem:[#allocation2 + $0xe1] sm:$0xff]
      %v711 = vld [vmem:[#allocation2 + $0xf1] sm:$0xff]
      %v712 = vld [vmem:[#allocation2 + $0xf9] sm:$0xff]
      %v713 = vld [vmem:[#allocation2 + $0x109] sm:$0xff]
      %v714 = vld [vmem:[#allocation2 + $0x111] sm:$0xff]
      %v715 = vld [vmem:[#allocation2 + $0x121] sm:$0xff]
      %v716 = vld [vmem:[#allocation2 + $0x129] sm:$0xff]
      %v717 = vld [vmem:[#allocation2 + $0x139] sm:$0xff]
      %v718 = vld [vmem:[#allocation2 + $0x141] sm:$0xff]
      %v719 = vld [vmem:[#allocation2 + $0x151] sm:$0xff]
      %v720 = vld [vmem:[#allocation2 + $0x159] sm:$0xff]
      %v721 = vld [vmem:[#allocation2 + $0x169] sm:$0xff]
      %v722 = vld [vmem:[#allocation2 + $0x171] sm:$0xff]
      %755 = vrot.lane.b32.xlu0 %v691, 4
      %v756 = vpop.permute.xlu0 %755
      %757 = vrot.lane.b32.xlu0 %v692, 4
      %v758 = vpop.permute.xlu0 %757
      %759 = vrot.lane.b32.xlu0 %v693, 4
      %v760 = vpop.permute.xlu0 %759
      %761 = vrot.lane.b32.xlu0 %v694, 4
      %v762 = vpop.permute.xlu0 %761
      %763 = vrot.lane.b32.xlu0 %v695, 4
      %v764 = vpop.permute.xlu0 %763
      %765 = vrot.lane.b32.xlu0 %v696, 4
      %v766 = vpop.permute.xlu0 %765
      %767 = vrot.lane.b32.xlu0 %v697, 4
      %v768 = vpop.permute.xlu0 %767
      %769 = vrot.lane.b32.xlu0 %v698, 4
      %v770 = vpop.permute.xlu0 %769
      %771 = vrot.lane.b32.xlu0 %v699, 4
      %v772 = vpop.permute.xlu0 %771
      %773 = vrot.lane.b32.xlu0 %v700, 4
      %v774 = vpop.permute.xlu0 %773
      %775 = vrot.lane.b32.xlu0 %v701, 4
      %v776 = vpop.permute.xlu0 %775
      %777 = vrot.lane.b32.xlu0 %v702, 4
      %v778 = vpop.permute.xlu0 %777
      %779 = vrot.lane.b32.xlu0 %v703, 4
      %v780 = vpop.permute.xlu0 %779
      %781 = vrot.lane.b32.xlu0 %v704, 4
      %v782 = vpop.permute.xlu0 %781
      %783 = vrot.lane.b32.xlu0 %v705, 4
      %v784 = vpop.permute.xlu0 %783
      %785 = vrot.lane.b32.xlu0 %v706, 4
      %v786 = vpop.permute.xlu0 %785
      %787 = vrot.lane.b32.xlu0 %v707, 4
      %v788 = vpop.permute.xlu0 %787
      %789 = vrot.lane.b32.xlu0 %v708, 4
      %v790 = vpop.permute.xlu0 %789
      %791 = vrot.lane.b32.xlu0 %v709, 4
      %v792 = vpop.permute.xlu0 %791
      %793 = vrot.lane.b32.xlu0 %v710, 4
      %v794 = vpop.permute.xlu0 %793
      %795 = vrot.lane.b32.xlu0 %v711, 4
      %v796 = vpop.permute.xlu0 %795
      %797 = vrot.lane.b32.xlu0 %v712, 4
      %v798 = vpop.permute.xlu0 %797
      %799 = vrot.lane.b32.xlu0 %v713, 4
      %v800 = vpop.permute.xlu0 %799
      %801 = vrot.lane.b32.xlu0 %v714, 4
      %v802 = vpop.permute.xlu0 %801
      %803 = vrot.lane.b32.xlu0 %v715, 4
      %v804 = vpop.permute.xlu0 %803
      %805 = vrot.lane.b32.xlu0 %v716, 4
      %v806 = vpop.permute.xlu0 %805
      %807 = vrot.lane.b32.xlu0 %v717, 4
      %v808 = vpop.permute.xlu0 %807
      %809 = vrot.lane.b32.xlu0 %v718, 4
      %v810 = vpop.permute.xlu0 %809
      %811 = vrot.lane.b32.xlu0 %v719, 4
      %v812 = vpop.permute.xlu0 %811
      %813 = vrot.lane.b32.xlu0 %v720, 4
      %v814 = vpop.permute.xlu0 %813
      %815 = vrot.lane.b32.xlu0 %v721, 4
      %v816 = vpop.permute.xlu0 %815
      %817 = vrot.lane.b32.xlu0 %v722, 4
      %v818 = vpop.permute.xlu0 %817
      %vm851 = vcmask 64544
      %852 = vst.msk [vmem:[#allocation3] sm:$0xff] %vm851, %v756
      %853 = vst.msk [vmem:[#allocation3 + $0x8] sm:$0xff] %vm851, %v758
      %854 = vst.msk [vmem:[#allocation3 + $0x10] sm:$0xff] %vm851, %v760
      %855 = vst.msk [vmem:[#allocation3 + $0x18] sm:$0xff] %vm851, %v762
      %856 = vst.msk [vmem:[#allocation3 + $0x20] sm:$0xff] %vm851, %v764
      %857 = vst.msk [vmem:[#allocation3 + $0x28] sm:$0xff] %vm851, %v766
      %858 = vst.msk [vmem:[#allocation3 + $0x30] sm:$0xff] %vm851, %v768
      %859 = vst.msk [vmem:[#allocation3 + $0x38] sm:$0xff] %vm851, %v770
      %860 = vst.msk [vmem:[#allocation3 + $0x40] sm:$0xff] %vm851, %v772
      %861 = vst.msk [vmem:[#allocation3 + $0x48] sm:$0xff] %vm851, %v774
      %862 = vst.msk [vmem:[#allocation3 + $0x50] sm:$0xff] %vm851, %v776
      %863 = vst.msk [vmem:[#allocation3 + $0x58] sm:$0xff] %vm851, %v778
      %864 = vst.msk [vmem:[#allocation3 + $0x60] sm:$0xff] %vm851, %v780
      %865 = vst.msk [vmem:[#allocation3 + $0x68] sm:$0xff] %vm851, %v782
      %866 = vst.msk [vmem:[#allocation3 + $0x70] sm:$0xff] %vm851, %v784
      %867 = vst.msk [vmem:[#allocation3 + $0x78] sm:$0xff] %vm851, %v786
      %868 = vst.msk [vmem:[#allocation3 + $0x80] sm:$0xff] %vm851, %v788
      %869 = vst.msk [vmem:[#allocation3 + $0x88] sm:$0xff] %vm851, %v790
      %870 = vst.msk [vmem:[#allocation3 + $0x90] sm:$0xff] %vm851, %v792
      %871 = vst.msk [vmem:[#allocation3 + $0x98] sm:$0xff] %vm851, %v794
      %872 = vst.msk [vmem:[#allocation3 + $0xa0] sm:$0xff] %vm851, %v796
      %873 = vst.msk [vmem:[#allocation3 + $0xa8] sm:$0xff] %vm851, %v798
      %874 = vst.msk [vmem:[#allocation3 + $0xb0] sm:$0xff] %vm851, %v800
      %875 = vst.msk [vmem:[#allocation3 + $0xb8] sm:$0xff] %vm851, %v802
      %876 = vst.msk [vmem:[#allocation3 + $0xc0] sm:$0xff] %vm851, %v804
      %877 = vst.msk [vmem:[#allocation3 + $0xc8] sm:$0xff] %vm851, %v806
      %878 = vst.msk [vmem:[#allocation3 + $0xd0] sm:$0xff] %vm851, %v808
      %879 = vst.msk [vmem:[#allocation3 + $0xd8] sm:$0xff] %vm851, %v810
      %880 = vst.msk [vmem:[#allocation3 + $0xe0] sm:$0xff] %vm851, %v812
      %881 = vst.msk [vmem:[#allocation3 + $0xe8] sm:$0xff] %vm851, %v814
      %882 = vst.msk [vmem:[#allocation3 + $0xf0] sm:$0xff] %vm851, %v816
      %883 = vst.msk [vmem:[#allocation3 + $0xf8] sm:$0xff] %vm851, %v818
      %v884 = vld [vmem:[#allocation2 + $0x2] sm:$0xff]
      %v885 = vld [vmem:[#allocation2 + $0xa] sm:$0xff]
      %v886 = vld [vmem:[#allocation2 + $0x1a] sm:$0xff]
      %v887 = vld [vmem:[#allocation2 + $0x22] sm:$0xff]
      %v888 = vld [vmem:[#allocation2 + $0x32] sm:$0xff]
      %v889 = vld [vmem:[#allocation2 + $0x3a] sm:$0xff]
      %v890 = vld [vmem:[#allocation2 + $0x4a] sm:$0xff]
      %v891 = vld [vmem:[#allocation2 + $0x52] sm:$0xff]
      %v892 = vld [vmem:[#allocation2 + $0x62] sm:$0xff]
      %v893 = vld [vmem:[#allocation2 + $0x6a] sm:$0xff]
      %v894 = vld [vmem:[#allocation2 + $0x7a] sm:$0xff]
      %v895 = vld [vmem:[#allocation2 + $0x82] sm:$0xff]
      %v896 = vld [vmem:[#allocation2 + $0x92] sm:$0xff]
      %v897 = vld [vmem:[#allocation2 + $0x9a] sm:$0xff]
      %v898 = vld [vmem:[#allocation2 + $0xaa] sm:$0xff]
      %v899 = vld [vmem:[#allocation2 + $0xb2] sm:$0xff]
      %v900 = vld [vmem:[#allocation2 + $0xc2] sm:$0xff]
      %v901 = vld [vmem:[#allocation2 + $0xca] sm:$0xff]
      %v902 = vld [vmem:[#allocation2 + $0xda] sm:$0xff]
      %v903 = vld [vmem:[#allocation2 + $0xe2] sm:$0xff]
      %v904 = vld [vmem:[#allocation2 + $0xf2] sm:$0xff]
      %v905 = vld [vmem:[#allocation2 + $0xfa] sm:$0xff]
      %v906 = vld [vmem:[#allocation2 + $0x10a] sm:$0xff]
      %v907 = vld [vmem:[#allocation2 + $0x112] sm:$0xff]
      %v908 = vld [vmem:[#allocation2 + $0x122] sm:$0xff]
      %v909 = vld [vmem:[#allocation2 + $0x12a] sm:$0xff]
      %v910 = vld [vmem:[#allocation2 + $0x13a] sm:$0xff]
      %v911 = vld [vmem:[#allocation2 + $0x142] sm:$0xff]
      %v912 = vld [vmem:[#allocation2 + $0x152] sm:$0xff]
      %v913 = vld [vmem:[#allocation2 + $0x15a] sm:$0xff]
      %v914 = vld [vmem:[#allocation2 + $0x16a] sm:$0xff]
      %v915 = vld [vmem:[#allocation2 + $0x172] sm:$0xff]
      %948 = vrot.lane.b32.xlu0 %v884, 8
      %v949 = vpop.permute.xlu0 %948
      %950 = vrot.lane.b32.xlu0 %v885, 8
      %v951 = vpop.permute.xlu0 %950
      %952 = vrot.lane.b32.xlu0 %v886, 8
      %v953 = vpop.permute.xlu0 %952
      %954 = vrot.lane.b32.xlu0 %v887, 8
      %v955 = vpop.permute.xlu0 %954
      %956 = vrot.lane.b32.xlu0 %v888, 8
      %v957 = vpop.permute.xlu0 %956
      %958 = vrot.lane.b32.xlu0 %v889, 8
      %v959 = vpop.permute.xlu0 %958
      %960 = vrot.lane.b32.xlu0 %v890, 8
      %v961 = vpop.permute.xlu0 %960
      %962 = vrot.lane.b32.xlu0 %v891, 8
      %v963 = vpop.permute.xlu0 %962
      %964 = vrot.lane.b32.xlu0 %v892, 8
      %v965 = vpop.permute.xlu0 %964
      %966 = vrot.lane.b32.xlu0 %v893, 8
      %v967 = vpop.permute.xlu0 %966
      %968 = vrot.lane.b32.xlu0 %v894, 8
      %v969 = vpop.permute.xlu0 %968
      %970 = vrot.lane.b32.xlu0 %v895, 8
      %v971 = vpop.permute.xlu0 %970
      %972 = vrot.lane.b32.xlu0 %v896, 8
      %v973 = vpop.permute.xlu0 %972
      %974 = vrot.lane.b32.xlu0 %v897, 8
      %v975 = vpop.permute.xlu0 %974
      %976 = vrot.lane.b32.xlu0 %v898, 8
      %v977 = vpop.permute.xlu0 %976
      %978 = vrot.lane.b32.xlu0 %v899, 8
      %v979 = vpop.permute.xlu0 %978
      %980 = vrot.lane.b32.xlu0 %v900, 8
      %v981 = vpop.permute.xlu0 %980
      %982 = vrot.lane.b32.xlu0 %v901, 8
      %v983 = vpop.permute.xlu0 %982
      %984 = vrot.lane.b32.xlu0 %v902, 8
      %v985 = vpop.permute.xlu0 %984
      %986 = vrot.lane.b32.xlu0 %v903, 8
      %v987 = vpop.permute.xlu0 %986
      %988 = vrot.lane.b32.xlu0 %v904, 8
      %v989 = vpop.permute.xlu0 %988
      %990 = vrot.lane.b32.xlu0 %v905, 8
      %v991 = vpop.permute.xlu0 %990
      %992 = vrot.lane.b32.xlu0 %v906, 8
      %v993 = vpop.permute.xlu0 %992
      %994 = vrot.lane.b32.xlu0 %v907, 8
      %v995 = vpop.permute.xlu0 %994
      %996 = vrot.lane.b32.xlu0 %v908, 8
      %v997 = vpop.permute.xlu0 %996
      %998 = vrot.lane.b32.xlu0 %v909, 8
      %v999 = vpop.permute.xlu0 %998
      %1000 = vrot.lane.b32.xlu0 %v910, 8
      %v1001 = vpop.permute.xlu0 %1000
      %1002 = vrot.lane.b32.xlu0 %v911, 8
      %v1003 = vpop.permute.xlu0 %1002
      %1004 = vrot.lane.b32.xlu0 %v912, 8
      %v1005 = vpop.permute.xlu0 %1004
      %1006 = vrot.lane.b32.xlu0 %v913, 8
      %v1007 = vpop.permute.xlu0 %1006
      %1008 = vrot.lane.b32.xlu0 %v914, 8
      %v1009 = vpop.permute.xlu0 %1008
      %1010 = vrot.lane.b32.xlu0 %v915, 8
      %v1011 = vpop.permute.xlu0 %1010
      %vm1044 = vcmask 97344
      %1045 = vst.msk [vmem:[#allocation3] sm:$0xff] %vm1044, %v949
      %1046 = vst.msk [vmem:[#allocation3 + $0x8] sm:$0xff] %vm1044, %v951
      %1047 = vst.msk [vmem:[#allocation3 + $0x10] sm:$0xff] %vm1044, %v953
      %1048 = vst.msk [vmem:[#allocation3 + $0x18] sm:$0xff] %vm1044, %v955
      %1049 = vst.msk [vmem:[#allocation3 + $0x20] sm:$0xff] %vm1044, %v957
      %1050 = vst.msk [vmem:[#allocation3 + $0x28] sm:$0xff] %vm1044, %v959
      %1051 = vst.msk [vmem:[#allocation3 + $0x30] sm:$0xff] %vm1044, %v961
      %1052 = vst.msk [vmem:[#allocation3 + $0x38] sm:$0xff] %vm1044, %v963
      %1053 = vst.msk [vmem:[#allocation3 + $0x40] sm:$0xff] %vm1044, %v965
      %1054 = vst.msk [vmem:[#allocation3 + $0x48] sm:$0xff] %vm1044, %v967
      %1055 = vst.msk [vmem:[#allocation3 + $0x50] sm:$0xff] %vm1044, %v969
      %1056 = vst.msk [vmem:[#allocation3 + $0x58] sm:$0xff] %vm1044, %v971
      %1057 = vst.msk [vmem:[#allocation3 + $0x60] sm:$0xff] %vm1044, %v973
      %1058 = vst.msk [vmem:[#allocation3 + $0x68] sm:$0xff] %vm1044, %v975
      %1059 = vst.msk [vmem:[#allocation3 + $0x70] sm:$0xff] %vm1044, %v977
      %1060 = vst.msk [vmem:[#allocation3 + $0x78] sm:$0xff] %vm1044, %v979
      %1061 = vst.msk [vmem:[#allocation3 + $0x80] sm:$0xff] %vm1044, %v981
      %1062 = vst.msk [vmem:[#allocation3 + $0x88] sm:$0xff] %vm1044, %v983
      %1063 = vst.msk [vmem:[#allocation3 + $0x90] sm:$0xff] %vm1044, %v985
      %1064 = vst.msk [vmem:[#allocation3 + $0x98] sm:$0xff] %vm1044, %v987
      %1065 = vst.msk [vmem:[#allocation3 + $0xa0] sm:$0xff] %vm1044, %v989
      %1066 = vst.msk [vmem:[#allocation3 + $0xa8] sm:$0xff] %vm1044, %v991
      %1067 = vst.msk [vmem:[#allocation3 + $0xb0] sm:$0xff] %vm1044, %v993
      %1068 = vst.msk [vmem:[#allocation3 + $0xb8] sm:$0xff] %vm1044, %v995
      %1069 = vst.msk [vmem:[#allocation3 + $0xc0] sm:$0xff] %vm1044, %v997
      %1070 = vst.msk [vmem:[#allocation3 + $0xc8] sm:$0xff] %vm1044, %v999
      %1071 = vst.msk [vmem:[#allocation3 + $0xd0] sm:$0xff] %vm1044, %v1001
      %1072 = vst.msk [vmem:[#allocation3 + $0xd8] sm:$0xff] %vm1044, %v1003
      %1073 = vst.msk [vmem:[#allocation3 + $0xe0] sm:$0xff] %vm1044, %v1005
      %1074 = vst.msk [vmem:[#allocation3 + $0xe8] sm:$0xff] %vm1044, %v1007
      %1075 = vst.msk [vmem:[#allocation3 + $0xf0] sm:$0xff] %vm1044, %v1009
      %1076 = vst.msk [vmem:[#allocation3 + $0xf8] sm:$0xff] %vm1044, %v1011
      %v1077 = vld [vmem:[%s560] sm:$0xff]
      %v1078 = vld [vmem:[%s560 + $0x8] sm:$0xff]
      %v1079 = vld [vmem:[%s560 + $0x18] sm:$0xff]
      %v1080 = vld [vmem:[%s560 + $0x20] sm:$0xff]
      %v1081 = vld [vmem:[%s560 + $0x30] sm:$0xff]
      %v1082 = vld [vmem:[%s560 + $0x38] sm:$0xff]
      %v1083 = vld [vmem:[%s560 + $0x48] sm:$0xff]
      %v1084 = vld [vmem:[%s560 + $0x50] sm:$0xff]
      %v1085 = vld [vmem:[%s560 + $0x60] sm:$0xff]
      %v1086 = vld [vmem:[%s560 + $0x68] sm:$0xff]
      %v1087 = vld [vmem:[%s560 + $0x78] sm:$0xff]
      %v1088 = vld [vmem:[%s560 + $0x80] sm:$0xff]
      %v1089 = vld [vmem:[%s560 + $0x90] sm:$0xff]
      %v1090 = vld [vmem:[%s560 + $0x98] sm:$0xff]
      %v1091 = vld [vmem:[%s560 + $0xa8] sm:$0xff]
      %v1092 = vld [vmem:[%s560 + $0xb0] sm:$0xff]
      %v1093 = vld [vmem:[%s560 + $0xc0] sm:$0xff]
      %v1094 = vld [vmem:[%s560 + $0xc8] sm:$0xff]
      %v1095 = vld [vmem:[%s560 + $0xd8] sm:$0xff]
      %v1096 = vld [vmem:[%s560 + $0xe0] sm:$0xff]
      %v1097 = vld [vmem:[%s560 + $0xf0] sm:$0xff]
      %v1098 = vld [vmem:[%s560 + $0xf8] sm:$0xff]
      %v1099 = vld [vmem:[%s560 + $0x108] sm:$0xff]
      %v1100 = vld [vmem:[%s560 + $0x110] sm:$0xff]
      %v1101 = vld [vmem:[%s560 + $0x120] sm:$0xff]
      %v1102 = vld [vmem:[%s560 + $0x128] sm:$0xff]
      %v1103 = vld [vmem:[%s560 + $0x138] sm:$0xff]
      %v1104 = vld [vmem:[%s560 + $0x140] sm:$0xff]
      %v1105 = vld [vmem:[%s560 + $0x150] sm:$0xff]
      %v1106 = vld [vmem:[%s560 + $0x158] sm:$0xff]
      %v1107 = vld [vmem:[%s560 + $0x168] sm:$0xff]
      %v1108 = vld [vmem:[%s560 + $0x170] sm:$0xff]
      %1141 = vrot.lane.b32.xlu0 %v1077, 12
      %v1142 = vpop.permute.xlu0 %1141
      %1143 = vrot.lane.b32.xlu0 %v1078, 12
      %v1144 = vpop.permute.xlu0 %1143
      %1145 = vrot.lane.b32.xlu0 %v1079, 12
      %v1146 = vpop.permute.xlu0 %1145
      %1147 = vrot.lane.b32.xlu0 %v1080, 12
      %v1148 = vpop.permute.xlu0 %1147
      %1149 = vrot.lane.b32.xlu0 %v1081, 12
      %v1150 = vpop.permute.xlu0 %1149
      %1151 = vrot.lane.b32.xlu0 %v1082, 12
      %v1152 = vpop.permute.xlu0 %1151
      %1153 = vrot.lane.b32.xlu0 %v1083, 12
      %v1154 = vpop.permute.xlu0 %1153
      %1155 = vrot.lane.b32.xlu0 %v1084, 12
      %v1156 = vpop.permute.xlu0 %1155
      %1157 = vrot.lane.b32.xlu0 %v1085, 12
      %v1158 = vpop.permute.xlu0 %1157
      %1159 = vrot.lane.b32.xlu0 %v1086, 12
      %v1160 = vpop.permute.xlu0 %1159
      %1161 = vrot.lane.b32.xlu0 %v1087, 12
      %v1162 = vpop.permute.xlu0 %1161
      %1163 = vrot.lane.b32.xlu0 %v1088, 12
      %v1164 = vpop.permute.xlu0 %1163
      %1165 = vrot.lane.b32.xlu0 %v1089, 12
      %v1166 = vpop.permute.xlu0 %1165
      %1167 = vrot.lane.b32.xlu0 %v1090, 12
      %v1168 = vpop.permute.xlu0 %1167
      %1169 = vrot.lane.b32.xlu0 %v1091, 12
      %v1170 = vpop.permute.xlu0 %1169
      %1171 = vrot.lane.b32.xlu0 %v1092, 12
      %v1172 = vpop.permute.xlu0 %1171
      %1173 = vrot.lane.b32.xlu0 %v1093, 12
      %v1174 = vpop.permute.xlu0 %1173
      %1175 = vrot.lane.b32.xlu0 %v1094, 12
      %v1176 = vpop.permute.xlu0 %1175
      %1177 = vrot.lane.b32.xlu0 %v1095, 12
      %v1178 = vpop.permute.xlu0 %1177
      %1179 = vrot.lane.b32.xlu0 %v1096, 12
      %v1180 = vpop.permute.xlu0 %1179
      %1181 = vrot.lane.b32.xlu0 %v1097, 12
      %v1182 = vpop.permute.xlu0 %1181
      %1183 = vrot.lane.b32.xlu0 %v1098, 12
      %v1184 = vpop.permute.xlu0 %1183
      %1185 = vrot.lane.b32.xlu0 %v1099, 12
      %v1186 = vpop.permute.xlu0 %1185
      %1187 = vrot.lane.b32.xlu0 %v1100, 12
      %v1188 = vpop.permute.xlu0 %1187
      %1189 = vrot.lane.b32.xlu0 %v1101, 12
      %v1190 = vpop.permute.xlu0 %1189
      %1191 = vrot.lane.b32.xlu0 %v1102, 12
      %v1192 = vpop.permute.xlu0 %1191
      %1193 = vrot.lane.b32.xlu0 %v1103, 12
      %v1194 = vpop.permute.xlu0 %1193
      %1195 = vrot.lane.b32.xlu0 %v1104, 12
      %v1196 = vpop.permute.xlu0 %1195
      %1197 = vrot.lane.b32.xlu0 %v1105, 12
      %v1198 = vpop.permute.xlu0 %1197
      %1199 = vrot.lane.b32.xlu0 %v1106, 12
      %v1200 = vpop.permute.xlu0 %1199
      %1201 = vrot.lane.b32.xlu0 %v1107, 12
      %v1202 = vpop.permute.xlu0 %1201
      %1203 = vrot.lane.b32.xlu0 %v1108, 12
      %v1204 = vpop.permute.xlu0 %1203
      %vm1237 = vcmask 130144
      %1238 = vst.msk [vmem:[#allocation3] sm:$0xff] %vm1237, %v1142
      %1239 = vst.msk [vmem:[#allocation3 + $0x8] sm:$0xff] %vm1237, %v1144
      %1240 = vst.msk [vmem:[#allocation3 + $0x10] sm:$0xff] %vm1237, %v1146
      %1241 = vst.msk [vmem:[#allocation3 + $0x18] sm:$0xff] %vm1237, %v1148
      %1242 = vst.msk [vmem:[#allocation3 + $0x20] sm:$0xff] %vm1237, %v1150
      %1243 = vst.msk [vmem:[#allocation3 + $0x28] sm:$0xff] %vm1237, %v1152
      %1244 = vst.msk [vmem:[#allocation3 + $0x30] sm:$0xff] %vm1237, %v1154
      %1245 = vst.msk [vmem:[#allocation3 + $0x38] sm:$0xff] %vm1237, %v1156
      %1246 = vst.msk [vmem:[#allocation3 + $0x40] sm:$0xff] %vm1237, %v1158
      %1247 = vst.msk [vmem:[#allocation3 + $0x48] sm:$0xff] %vm1237, %v1160
      %1248 = vst.msk [vmem:[#allocation3 + $0x50] sm:$0xff] %vm1237, %v1162
      %1249 = vst.msk [vmem:[#allocation3 + $0x58] sm:$0xff] %vm1237, %v1164
      %1250 = vst.msk [vmem:[#allocation3 + $0x60] sm:$0xff] %vm1237, %v1166
      %1251 = vst.msk [vmem:[#allocation3 + $0x68] sm:$0xff] %vm1237, %v1168
      %1252 = vst.msk [vmem:[#allocation3 + $0x70] sm:$0xff] %vm1237, %v1170
      %1253 = vst.msk [vmem:[#allocation3 + $0x78] sm:$0xff] %vm1237, %v1172
      %1254 = vst.msk [vmem:[#allocation3 + $0x80] sm:$0xff] %vm1237, %v1174
      %1255 = vst.msk [vmem:[#allocation3 + $0x88] sm:$0xff] %vm1237, %v1176
      %1256 = vst.msk [vmem:[#allocation3 + $0x90] sm:$0xff] %vm1237, %v1178
      %1257 = vst.msk [vmem:[#allocation3 + $0x98] sm:$0xff] %vm1237, %v1180
      %1258 = vst.msk [vmem:[#allocation3 + $0xa0] sm:$0xff] %vm1237, %v1182
      %1259 = vst.msk [vmem:[#allocation3 + $0xa8] sm:$0xff] %vm1237, %v1184
      %1260 = vst.msk [vmem:[#allocation3 + $0xb0] sm:$0xff] %vm1237, %v1186
      %1261 = vst.msk [vmem:[#allocation3 + $0xb8] sm:$0xff] %vm1237, %v1188
      %1262 = vst.msk [vmem:[#allocation3 + $0xc0] sm:$0xff] %vm1237, %v1190
      %1263 = vst.msk [vmem:[#allocation3 + $0xc8] sm:$0xff] %vm1237, %v1192
      %1264 = vst.msk [vmem:[#allocation3 + $0xd0] sm:$0xff] %vm1237, %v1194
      %1265 = vst.msk [vmem:[#allocation3 + $0xd8] sm:$0xff] %vm1237, %v1196
      %1266 = vst.msk [vmem:[#allocation3 + $0xe0] sm:$0xff] %vm1237, %v1198
      %1267 = vst.msk [vmem:[#allocation3 + $0xe8] sm:$0xff] %vm1237, %v1200
      %1268 = vst.msk [vmem:[#allocation3 + $0xf0] sm:$0xff] %vm1237, %v1202
      %1269 = vst.msk [vmem:[#allocation3 + $0xf8] sm:$0xff] %vm1237, %v1204
      %v1270 = vld [vmem:[%s560 + $0x1] sm:$0xff]
      %v1271 = vld [vmem:[%s560 + $0x9] sm:$0xff]
      %v1272 = vld [vmem:[%s560 + $0x19] sm:$0xff]
      %v1273 = vld [vmem:[%s560 + $0x21] sm:$0xff]
      %v1274 = vld [vmem:[%s560 + $0x31] sm:$0xff]
      %v1275 = vld [vmem:[%s560 + $0x39] sm:$0xff]
      %v1276 = vld [vmem:[%s560 + $0x49] sm:$0xff]
      %v1277 = vld [vmem:[%s560 + $0x51] sm:$0xff]
      %v1278 = vld [vmem:[%s560 + $0x61] sm:$0xff]
      %v1279 = vld [vmem:[%s560 + $0x69] sm:$0xff]
      %v1280 = vld [vmem:[%s560 + $0x79] sm:$0xff]
      %v1281 = vld [vmem:[%s560 + $0x81] sm:$0xff]
      %v1282 = vld [vmem:[%s560 + $0x91] sm:$0xff]
      %v1283 = vld [vmem:[%s560 + $0x99] sm:$0xff]
      %v1284 = vld [vmem:[%s560 + $0xa9] sm:$0xff]
      %v1285 = vld [vmem:[%s560 + $0xb1] sm:$0xff]
      %v1286 = vld [vmem:[%s560 + $0xc1] sm:$0xff]
      %v1287 = vld [vmem:[%s560 + $0xc9] sm:$0xff]
      %v1288 = vld [vmem:[%s560 + $0xd9] sm:$0xff]
      %v1289 = vld [vmem:[%s560 + $0xe1] sm:$0xff]
      %v1290 = vld [vmem:[%s560 + $0xf1] sm:$0xff]
      %v1291 = vld [vmem:[%s560 + $0xf9] sm:$0xff]
      %v1292 = vld [vmem:[%s560 + $0x109] sm:$0xff]
      %v1293 = vld [vmem:[%s560 + $0x111] sm:$0xff]
      %v1294 = vld [vmem:[%s560 + $0x121] sm:$0xff]
      %v1295 = vld [vmem:[%s560 + $0x129] sm:$0xff]
      %v1296 = vld [vmem:[%s560 + $0x139] sm:$0xff]
      %v1297 = vld [vmem:[%s560 + $0x141] sm:$0xff]
      %v1298 = vld [vmem:[%s560 + $0x151] sm:$0xff]
      %v1299 = vld [vmem:[%s560 + $0x159] sm:$0xff]
      %v1300 = vld [vmem:[%s560 + $0x169] sm:$0xff]
      %v1301 = vld [vmem:[%s560 + $0x171] sm:$0xff]
      %1334 = vrot.lane.b32.xlu0 %v1270, 16
      %v1335 = vpop.permute.xlu0 %1334
      %1336 = vrot.lane.b32.xlu0 %v1271, 16
      %v1337 = vpop.permute.xlu0 %1336
      %1338 = vrot.lane.b32.xlu0 %v1272, 16
      %v1339 = vpop.permute.xlu0 %1338
      %1340 = vrot.lane.b32.xlu0 %v1273, 16
      %v1341 = vpop.permute.xlu0 %1340
      %1342 = vrot.lane.b32.xlu0 %v1274, 16
      %v1343 = vpop.permute.xlu0 %1342
      %1344 = vrot.lane.b32.xlu0 %v1275, 16
      %v1345 = vpop.permute.xlu0 %1344
      %1346 = vrot.lane.b32.xlu0 %v1276, 16
      %v1347 = vpop.permute.xlu0 %1346
      %1348 = vrot.lane.b32.xlu0 %v1277, 16
      %v1349 = vpop.permute.xlu0 %1348
      %1350 = vrot.lane.b32.xlu0 %v1278, 16
      %v1351 = vpop.permute.xlu0 %1350
      %1352 = vrot.lane.b32.xlu0 %v1279, 16
      %v1353 = vpop.permute.xlu0 %1352
      %1354 = vrot.lane.b32.xlu0 %v1280, 16
      %v1355 = vpop.permute.xlu0 %1354
      %1356 = vrot.lane.b32.xlu0 %v1281, 16
      %v1357 = vpop.permute.xlu0 %1356
      %1358 = vrot.lane.b32.xlu0 %v1282, 16
      %v1359 = vpop.permute.xlu0 %1358
      %1360 = vrot.lane.b32.xlu0 %v1283, 16
      %v1361 = vpop.permute.xlu0 %1360
      %1362 = vrot.lane.b32.xlu0 %v1284, 16
      %v1363 = vpop.permute.xlu0 %1362
      %1364 = vrot.lane.b32.xlu0 %v1285, 16
      %v1365 = vpop.permute.xlu0 %1364
      %1366 = vrot.lane.b32.xlu0 %v1286, 16
      %v1367 = vpop.permute.xlu0 %1366
      %1368 = vrot.lane.b32.xlu0 %v1287, 16
      %v1369 = vpop.permute.xlu0 %1368
      %1370 = vrot.lane.b32.xlu0 %v1288, 16
      %v1371 = vpop.permute.xlu0 %1370
      %1372 = vrot.lane.b32.xlu0 %v1289, 16
      %v1373 = vpop.permute.xlu0 %1372
      %1374 = vrot.lane.b32.xlu0 %v1290, 16
      %v1375 = vpop.permute.xlu0 %1374
      %1376 = vrot.lane.b32.xlu0 %v1291, 16
      %v1377 = vpop.permute.xlu0 %1376
      %1378 = vrot.lane.b32.xlu0 %v1292, 16
      %v1379 = vpop.permute.xlu0 %1378
      %1380 = vrot.lane.b32.xlu0 %v1293, 16
      %v1381 = vpop.permute.xlu0 %1380
      %1382 = vrot.lane.b32.xlu0 %v1294, 16
      %v1383 = vpop.permute.xlu0 %1382
      %1384 = vrot.lane.b32.xlu0 %v1295, 16
      %v1385 = vpop.permute.xlu0 %1384
      %1386 = vrot.lane.b32.xlu0 %v1296, 16
      %v1387 = vpop.permute.xlu0 %1386
      %1388 = vrot.lane.b32.xlu0 %v1297, 16
      %v1389 = vpop.permute.xlu0 %1388
      %1390 = vrot.lane.b32.xlu0 %v1298, 16
      %v1391 = vpop.permute.xlu0 %1390
      %1392 = vrot.lane.b32.xlu0 %v1299, 16
      %v1393 = vpop.permute.xlu0 %1392
      %1394 = vrot.lane.b32.xlu0 %v1300, 16
      %v1395 = vpop.permute.xlu0 %1394
      %1396 = vrot.lane.b32.xlu0 %v1301, 16
      %v1397 = vpop.permute.xlu0 %1396
      %vm1430 = vcmask 162944
      %1431 = vst.msk [vmem:[#allocation3] sm:$0xff] %vm1430, %v1335
      %1432 = vst.msk [vmem:[#allocation3 + $0x8] sm:$0xff] %vm1430, %v1337
      %1433 = vst.msk [vmem:[#allocation3 + $0x10] sm:$0xff] %vm1430, %v1339
      %1434 = vst.msk [vmem:[#allocation3 + $0x18] sm:$0xff] %vm1430, %v1341
      %1435 = vst.msk [vmem:[#allocation3 + $0x20] sm:$0xff] %vm1430, %v1343
      %1436 = vst.msk [vmem:[#allocation3 + $0x28] sm:$0xff] %vm1430, %v1345
      %1437 = vst.msk [vmem:[#allocation3 + $0x30] sm:$0xff] %vm1430, %v1347
      %1438 = vst.msk [vmem:[#allocation3 + $0x38] sm:$0xff] %vm1430, %v1349
      %1439 = vst.msk [vmem:[#allocation3 + $0x40] sm:$0xff] %vm1430, %v1351
      %1440 = vst.msk [vmem:[#allocation3 + $0x48] sm:$0xff] %vm1430, %v1353
      %1441 = vst.msk [vmem:[#allocation3 + $0x50] sm:$0xff] %vm1430, %v1355
      %1442 = vst.msk [vmem:[#allocation3 + $0x58] sm:$0xff] %vm1430, %v1357
      %1443 = vst.msk [vmem:[#allocation3 + $0x60] sm:$0xff] %vm1430, %v1359
      %1444 = vst.msk [vmem:[#allocation3 + $0x68] sm:$0xff] %vm1430, %v1361
      %1445 = vst.msk [vmem:[#allocation3 + $0x70] sm:$0xff] %vm1430, %v1363
      %1446 = vst.msk [vmem:[#allocation3 + $0x78] sm:$0xff] %vm1430, %v1365
      %1447 = vst.msk [vmem:[#allocation3 + $0x80] sm:$0xff] %vm1430, %v1367
      %1448 = vst.msk [vmem:[#allocation3 + $0x88] sm:$0xff] %vm1430, %v1369
      %1449 = vst.msk [vmem:[#allocation3 + $0x90] sm:$0xff] %vm1430, %v1371
      %1450 = vst.msk [vmem:[#allocation3 + $0x98] sm:$0xff] %vm1430, %v1373
      %1451 = vst.msk [vmem:[#allocation3 + $0xa0] sm:$0xff] %vm1430, %v1375
      %1452 = vst.msk [vmem:[#allocation3 + $0xa8] sm:$0xff] %vm1430, %v1377
      %1453 = vst.msk [vmem:[#allocation3 + $0xb0] sm:$0xff] %vm1430, %v1379
      %1454 = vst.msk [vmem:[#allocation3 + $0xb8] sm:$0xff] %vm1430, %v1381
      %1455 = vst.msk [vmem:[#allocation3 + $0xc0] sm:$0xff] %vm1430, %v1383
      %1456 = vst.msk [vmem:[#allocation3 + $0xc8] sm:$0xff] %vm1430, %v1385
      %1457 = vst.msk [vmem:[#allocation3 + $0xd0] sm:$0xff] %vm1430, %v1387
      %1458 = vst.msk [vmem:[#allocation3 + $0xd8] sm:$0xff] %vm1430, %v1389
      %1459 = vst.msk [vmem:[#allocation3 + $0xe0] sm:$0xff] %vm1430, %v1391
      %1460 = vst.msk [vmem:[#allocation3 + $0xe8] sm:$0xff] %vm1430, %v1393
      %1461 = vst.msk [vmem:[#allocation3 + $0xf0] sm:$0xff] %vm1430, %v1395
      %1462 = vst.msk [vmem:[#allocation3 + $0xf8] sm:$0xff] %vm1430, %v1397
      %v1463 = vld [vmem:[%s560 + $0x2] sm:$0xff]
      %v1464 = vld [vmem:[%s560 + $0xa] sm:$0xff]
      %v1465 = vld [vmem:[%s560 + $0x1a] sm:$0xff]
      %v1466 = vld [vmem:[%s560 + $0x22] sm:$0xff]
      %v1467 = vld [vmem:[%s560 + $0x32] sm:$0xff]
      %v1468 = vld [vmem:[%s560 + $0x3a] sm:$0xff]
      %v1469 = vld [vmem:[%s560 + $0x4a] sm:$0xff]
      %v1470 = vld [vmem:[%s560 + $0x52] sm:$0xff]
      %v1471 = vld [vmem:[%s560 + $0x62] sm:$0xff]
      %v1472 = vld [vmem:[%s560 + $0x6a] sm:$0xff]
      %v1473 = vld [vmem:[%s560 + $0x7a] sm:$0xff]
      %v1474 = vld [vmem:[%s560 + $0x82] sm:$0xff]
      %v1475 = vld [vmem:[%s560 + $0x92] sm:$0xff]
      %v1476 = vld [vmem:[%s560 + $0x9a] sm:$0xff]
      %v1477 = vld [vmem:[%s560 + $0xaa] sm:$0xff]
      %v1478 = vld [vmem:[%s560 + $0xb2] sm:$0xff]
      %v1479 = vld [vmem:[%s560 + $0xc2] sm:$0xff]
      %v1480 = vld [vmem:[%s560 + $0xca] sm:$0xff]
      %v1481 = vld [vmem:[%s560 + $0xda] sm:$0xff]
      %v1482 = vld [vmem:[%s560 + $0xe2] sm:$0xff]
      %v1483 = vld [vmem:[%s560 + $0xf2] sm:$0xff]
      %v1484 = vld [vmem:[%s560 + $0xfa] sm:$0xff]
      %v1485 = vld [vmem:[%s560 + $0x10a] sm:$0xff]
      %v1486 = vld [vmem:[%s560 + $0x112] sm:$0xff]
      %v1487 = vld [vmem:[%s560 + $0x122] sm:$0xff]
      %v1488 = vld [vmem:[%s560 + $0x12a] sm:$0xff]
      %v1489 = vld [vmem:[%s560 + $0x13a] sm:$0xff]
      %v1490 = vld [vmem:[%s560 + $0x142] sm:$0xff]
      %v1491 = vld [vmem:[%s560 + $0x152] sm:$0xff]
      %v1492 = vld [vmem:[%s560 + $0x15a] sm:$0xff]
      %v1493 = vld [vmem:[%s560 + $0x16a] sm:$0xff]
      %v1494 = vld [vmem:[%s560 + $0x172] sm:$0xff]
      %1527 = vrot.lane.b32.xlu0 %v1463, 20
      %v1528 = vpop.permute.xlu0 %1527
      %1529 = vrot.lane.b32.xlu0 %v1464, 20
      %v1530 = vpop.permute.xlu0 %1529
      %1531 = vrot.lane.b32.xlu0 %v1465, 20
      %v1532 = vpop.permute.xlu0 %1531
      %1533 = vrot.lane.b32.xlu0 %v1466, 20
      %v1534 = vpop.permute.xlu0 %1533
      %1535 = vrot.lane.b32.xlu0 %v1467, 20
      %v1536 = vpop.permute.xlu0 %1535
      %1537 = vrot.lane.b32.xlu0 %v1468, 20
      %v1538 = vpop.permute.xlu0 %1537
      %1539 = vrot.lane.b32.xlu0 %v1469, 20
      %v1540 = vpop.permute.xlu0 %1539
      %1541 = vrot.lane.b32.xlu0 %v1470, 20
      %v1542 = vpop.permute.xlu0 %1541
      %1543 = vrot.lane.b32.xlu0 %v1471, 20
      %v1544 = vpop.permute.xlu0 %1543
      %1545 = vrot.lane.b32.xlu0 %v1472, 20
      %v1546 = vpop.permute.xlu0 %1545
      %1547 = vrot.lane.b32.xlu0 %v1473, 20
      %v1548 = vpop.permute.xlu0 %1547
      %1549 = vrot.lane.b32.xlu0 %v1474, 20
      %v1550 = vpop.permute.xlu0 %1549
      %1551 = vrot.lane.b32.xlu0 %v1475, 20
      %v1552 = vpop.permute.xlu0 %1551
      %1553 = vrot.lane.b32.xlu0 %v1476, 20
      %v1554 = vpop.permute.xlu0 %1553
      %1555 = vrot.lane.b32.xlu0 %v1477, 20
      %v1556 = vpop.permute.xlu0 %1555
      %1557 = vrot.lane.b32.xlu0 %v1478, 20
      %v1558 = vpop.permute.xlu0 %1557
      %1559 = vrot.lane.b32.xlu0 %v1479, 20
      %v1560 = vpop.permute.xlu0 %1559
      %1561 = vrot.lane.b32.xlu0 %v1480, 20
      %v1562 = vpop.permute.xlu0 %1561
      %1563 = vrot.lane.b32.xlu0 %v1481, 20
      %v1564 = vpop.permute.xlu0 %1563
      %1565 = vrot.lane.b32.xlu0 %v1482, 20
      %v1566 = vpop.permute.xlu0 %1565
      %1567 = vrot.lane.b32.xlu0 %v1483, 20
      %v1568 = vpop.permute.xlu0 %1567
      %1569 = vrot.lane.b32.xlu0 %v1484, 20
      %v1570 = vpop.permute.xlu0 %1569
      %1571 = vrot.lane.b32.xlu0 %v1485, 20
      %v1572 = vpop.permute.xlu0 %1571
      %1573 = vrot.lane.b32.xlu0 %v1486, 20
      %v1574 = vpop.permute.xlu0 %1573
      %1575 = vrot.lane.b32.xlu0 %v1487, 20
      %v1576 = vpop.permute.xlu0 %1575
      %1577 = vrot.lane.b32.xlu0 %v1488, 20
      %v1578 = vpop.permute.xlu0 %1577
      %1579 = vrot.lane.b32.xlu0 %v1489, 20
      %v1580 = vpop.permute.xlu0 %1579
      %1581 = vrot.lane.b32.xlu0 %v1490, 20
      %v1582 = vpop.permute.xlu0 %1581
      %1583 = vrot.lane.b32.xlu0 %v1491, 20
      %v1584 = vpop.permute.xlu0 %1583
      %1585 = vrot.lane.b32.xlu0 %v1492, 20
      %v1586 = vpop.permute.xlu0 %1585
      %1587 = vrot.lane.b32.xlu0 %v1493, 20
      %v1588 = vpop.permute.xlu0 %1587
      %1589 = vrot.lane.b32.xlu0 %v1494, 20
      %v1590 = vpop.permute.xlu0 %1589
      %vm1623 = vcmask 195744
      %1624 = vst.msk [vmem:[#allocation3] sm:$0xff] %vm1623, %v1528
      %1625 = vst.msk [vmem:[#allocation3 + $0x8] sm:$0xff] %vm1623, %v1530
      %1626 = vst.msk [vmem:[#allocation3 + $0x10] sm:$0xff] %vm1623, %v1532
      %1627 = vst.msk [vmem:[#allocation3 + $0x18] sm:$0xff] %vm1623, %v1534
      %1628 = vst.msk [vmem:[#allocation3 + $0x20] sm:$0xff] %vm1623, %v1536
      %1629 = vst.msk [vmem:[#allocation3 + $0x28] sm:$0xff] %vm1623, %v1538
      %1630 = vst.msk [vmem:[#allocation3 + $0x30] sm:$0xff] %vm1623, %v1540
      %1631 = vst.msk [vmem:[#allocation3 + $0x38] sm:$0xff] %vm1623, %v1542
      %1632 = vst.msk [vmem:[#allocation3 + $0x40] sm:$0xff] %vm1623, %v1544
      %1633 = vst.msk [vmem:[#allocation3 + $0x48] sm:$0xff] %vm1623, %v1546
      %1634 = vst.msk [vmem:[#allocation3 + $0x50] sm:$0xff] %vm1623, %v1548
      %1635 = vst.msk [vmem:[#allocation3 + $0x58] sm:$0xff] %vm1623, %v1550
      %1636 = vst.msk [vmem:[#allocation3 + $0x60] sm:$0xff] %vm1623, %v1552
      %1637 = vst.msk [vmem:[#allocation3 + $0x68] sm:$0xff] %vm1623, %v1554
      %1638 = vst.msk [vmem:[#allocation3 + $0x70] sm:$0xff] %vm1623, %v1556
      %1639 = vst.msk [vmem:[#allocation3 + $0x78] sm:$0xff] %vm1623, %v1558
      %1640 = vst.msk [vmem:[#allocation3 + $0x80] sm:$0xff] %vm1623, %v1560
      %1641 = vst.msk [vmem:[#allocation3 + $0x88] sm:$0xff] %vm1623, %v1562
      %1642 = vst.msk [vmem:[#allocation3 + $0x90] sm:$0xff] %vm1623, %v1564
      %1643 = vst.msk [vmem:[#allocation3 + $0x98] sm:$0xff] %vm1623, %v1566
      %1644 = vst.msk [vmem:[#allocation3 + $0xa0] sm:$0xff] %vm1623, %v1568
      %1645 = vst.msk [vmem:[#allocation3 + $0xa8] sm:$0xff] %vm1623, %v1570
      %1646 = vst.msk [vmem:[#allocation3 + $0xb0] sm:$0xff] %vm1623, %v1572
      %1647 = vst.msk [vmem:[#allocation3 + $0xb8] sm:$0xff] %vm1623, %v1574
      %1648 = vst.msk [vmem:[#allocation3 + $0xc0] sm:$0xff] %vm1623, %v1576
      %1649 = vst.msk [vmem:[#allocation3 + $0xc8] sm:$0xff] %vm1623, %v1578
      %1650 = vst.msk [vmem:[#allocation3 + $0xd0] sm:$0xff] %vm1623, %v1580
      %1651 = vst.msk [vmem:[#allocation3 + $0xd8] sm:$0xff] %vm1623, %v1582
      %1652 = vst.msk [vmem:[#allocation3 + $0xe0] sm:$0xff] %vm1623, %v1584
      %1653 = vst.msk [vmem:[#allocation3 + $0xe8] sm:$0xff] %vm1623, %v1586
      %1654 = vst.msk [vmem:[#allocation3 + $0xf0] sm:$0xff] %vm1623, %v1588
      %1655 = vst.msk [vmem:[#allocation3 + $0xf8] sm:$0xff] %vm1623, %v1590
      %s1656 = scalar_lea.vmem [#allocation2], 48
      %v1657 = vld [vmem:[%s1656] sm:$0xff]
      %v1658 = vld [vmem:[%s1656 + $0x8] sm:$0xff]
      %v1659 = vld [vmem:[%s1656 + $0x18] sm:$0xff]
      %v1660 = vld [vmem:[%s1656 + $0x20] sm:$0xff]
      %v1661 = vld [vmem:[%s1656 + $0x30] sm:$0xff]
      %v1662 = vld [vmem:[%s1656 + $0x38] sm:$0xff]
      %v1663 = vld [vmem:[%s1656 + $0x48] sm:$0xff]
      %v1664 = vld [vmem:[%s1656 + $0x50] sm:$0xff]
      %v1665 = vld [vmem:[%s1656 + $0x60] sm:$0xff]
      %v1666 = vld [vmem:[%s1656 + $0x68] sm:$0xff]
      %v1667 = vld [vmem:[%s1656 + $0x78] sm:$0xff]
      %v1668 = vld [vmem:[%s1656 + $0x80] sm:$0xff]
      %v1669 = vld [vmem:[%s1656 + $0x90] sm:$0xff]
      %v1670 = vld [vmem:[%s1656 + $0x98] sm:$0xff]
      %v1671 = vld [vmem:[%s1656 + $0xa8] sm:$0xff]
      %v1672 = vld [vmem:[%s1656 + $0xb0] sm:$0xff]
      %v1673 = vld [vmem:[%s1656 + $0xc0] sm:$0xff]
      %v1674 = vld [vmem:[%s1656 + $0xc8] sm:$0xff]
      %v1675 = vld [vmem:[%s1656 + $0xd8] sm:$0xff]
      %v1676 = vld [vmem:[%s1656 + $0xe0] sm:$0xff]
      %v1677 = vld [vmem:[%s1656 + $0xf0] sm:$0xff]
      %v1678 = vld [vmem:[%s1656 + $0xf8] sm:$0xff]
      %v1679 = vld [vmem:[%s1656 + $0x108] sm:$0xff]
      %v1680 = vld [vmem:[%s1656 + $0x110] sm:$0xff]
      %v1681 = vld [vmem:[%s1656 + $0x120] sm:$0xff]
      %v1682 = vld [vmem:[%s1656 + $0x128] sm:$0xff]
      %v1683 = vld [vmem:[%s1656 + $0x138] sm:$0xff]
      %v1684 = vld [vmem:[%s1656 + $0x140] sm:$0xff]
      %v1685 = vld [vmem:[%s1656 + $0x150] sm:$0xff]
      %v1686 = vld [vmem:[%s1656 + $0x158] sm:$0xff]
      %v1687 = vld [vmem:[%s1656 + $0x168] sm:$0xff]
      %v1688 = vld [vmem:[%s1656 + $0x170] sm:$0xff]
      %1721 = vrot.lane.b32.xlu0 %v1657, 24
      %v1722 = vpop.permute.xlu0 %1721
      %1723 = vrot.lane.b32.xlu0 %v1658, 24
      %v1724 = vpop.permute.xlu0 %1723
      %1725 = vrot.lane.b32.xlu0 %v1659, 24
      %v1726 = vpop.permute.xlu0 %1725
      %1727 = vrot.lane.b32.xlu0 %v1660, 24
      %v1728 = vpop.permute.xlu0 %1727
      %1729 = vrot.lane.b32.xlu0 %v1661, 24
      %v1730 = vpop.permute.xlu0 %1729
      %1731 = vrot.lane.b32.xlu0 %v1662, 24
      %v1732 = vpop.permute.xlu0 %1731
      %1733 = vrot.lane.b32.xlu0 %v1663, 24
      %v1734 = vpop.permute.xlu0 %1733
      %1735 = vrot.lane.b32.xlu0 %v1664, 24
      %v1736 = vpop.permute.xlu0 %1735
      %1737 = vrot.lane.b32.xlu0 %v1665, 24
      %v1738 = vpop.permute.xlu0 %1737
      %1739 = vrot.lane.b32.xlu0 %v1666, 24
      %v1740 = vpop.permute.xlu0 %1739
      %1741 = vrot.lane.b32.xlu0 %v1667, 24
      %v1742 = vpop.permute.xlu0 %1741
      %1743 = vrot.lane.b32.xlu0 %v1668, 24
      %v1744 = vpop.permute.xlu0 %1743
      %1745 = vrot.lane.b32.xlu0 %v1669, 24
      %v1746 = vpop.permute.xlu0 %1745
      %1747 = vrot.lane.b32.xlu0 %v1670, 24
      %v1748 = vpop.permute.xlu0 %1747
      %1749 = vrot.lane.b32.xlu0 %v1671, 24
      %v1750 = vpop.permute.xlu0 %1749
      %1751 = vrot.lane.b32.xlu0 %v1672, 24
      %v1752 = vpop.permute.xlu0 %1751
      %1753 = vrot.lane.b32.xlu0 %v1673, 24
      %v1754 = vpop.permute.xlu0 %1753
      %1755 = vrot.lane.b32.xlu0 %v1674, 24
      %v1756 = vpop.permute.xlu0 %1755
      %1757 = vrot.lane.b32.xlu0 %v1675, 24
      %v1758 = vpop.permute.xlu0 %1757
      %1759 = vrot.lane.b32.xlu0 %v1676, 24
      %v1760 = vpop.permute.xlu0 %1759
      %1761 = vrot.lane.b32.xlu0 %v1677, 24
      %v1762 = vpop.permute.xlu0 %1761
      %1763 = vrot.lane.b32.xlu0 %v1678, 24
      %v1764 = vpop.permute.xlu0 %1763
      %1765 = vrot.lane.b32.xlu0 %v1679, 24
      %v1766 = vpop.permute.xlu0 %1765
      %1767 = vrot.lane.b32.xlu0 %v1680, 24
      %v1768 = vpop.permute.xlu0 %1767
      %1769 = vrot.lane.b32.xlu0 %v1681, 24
      %v1770 = vpop.permute.xlu0 %1769
      %1771 = vrot.lane.b32.xlu0 %v1682, 24
      %v1772 = vpop.permute.xlu0 %1771
      %1773 = vrot.lane.b32.xlu0 %v1683, 24
      %v1774 = vpop.permute.xlu0 %1773
      %1775 = vrot.lane.b32.xlu0 %v1684, 24
      %v1776 = vpop.permute.xlu0 %1775
      %1777 = vrot.lane.b32.xlu0 %v1685, 24
      %v1778 = vpop.permute.xlu0 %1777
      %1779 = vrot.lane.b32.xlu0 %v1686, 24
      %v1780 = vpop.permute.xlu0 %1779
      %1781 = vrot.lane.b32.xlu0 %v1687, 24
      %v1782 = vpop.permute.xlu0 %1781
      %1783 = vrot.lane.b32.xlu0 %v1688, 24
      %v1784 = vpop.permute.xlu0 %1783
      %vm1817 = vcmask 228544
      %1818 = vst.msk [vmem:[#allocation3] sm:$0xff] %vm1817, %v1722
      %1819 = vst.msk [vmem:[#allocation3 + $0x8] sm:$0xff] %vm1817, %v1724
      %1820 = vst.msk [vmem:[#allocation3 + $0x10] sm:$0xff] %vm1817, %v1726
      %1821 = vst.msk [vmem:[#allocation3 + $0x18] sm:$0xff] %vm1817, %v1728
      %1822 = vst.msk [vmem:[#allocation3 + $0x20] sm:$0xff] %vm1817, %v1730
      %1823 = vst.msk [vmem:[#allocation3 + $0x28] sm:$0xff] %vm1817, %v1732
      %1824 = vst.msk [vmem:[#allocation3 + $0x30] sm:$0xff] %vm1817, %v1734
      %1825 = vst.msk [vmem:[#allocation3 + $0x38] sm:$0xff] %vm1817, %v1736
      %1826 = vst.msk [vmem:[#allocation3 + $0x40] sm:$0xff] %vm1817, %v1738
      %1827 = vst.msk [vmem:[#allocation3 + $0x48] sm:$0xff] %vm1817, %v1740
      %1828 = vst.msk [vmem:[#allocation3 + $0x50] sm:$0xff] %vm1817, %v1742
      %1829 = vst.msk [vmem:[#allocation3 + $0x58] sm:$0xff] %vm1817, %v1744
      %1830 = vst.msk [vmem:[#allocation3 + $0x60] sm:$0xff] %vm1817, %v1746
      %1831 = vst.msk [vmem:[#allocation3 + $0x68] sm:$0xff] %vm1817, %v1748
      %1832 = vst.msk [vmem:[#allocation3 + $0x70] sm:$0xff] %vm1817, %v1750
      %1833 = vst.msk [vmem:[#allocation3 + $0x78] sm:$0xff] %vm1817, %v1752
      %1834 = vst.msk [vmem:[#allocation3 + $0x80] sm:$0xff] %vm1817, %v1754
      %1835 = vst.msk [vmem:[#allocation3 + $0x88] sm:$0xff] %vm1817, %v1756
      %1836 = vst.msk [vmem:[#allocation3 + $0x90] sm:$0xff] %vm1817, %v1758
      %1837 = vst.msk [vmem:[#allocation3 + $0x98] sm:$0xff] %vm1817, %v1760
      %1838 = vst.msk [vmem:[#allocation3 + $0xa0] sm:$0xff] %vm1817, %v1762
      %1839 = vst.msk [vmem:[#allocation3 + $0xa8] sm:$0xff] %vm1817, %v1764
      %1840 = vst.msk [vmem:[#allocation3 + $0xb0] sm:$0xff] %vm1817, %v1766
      %1841 = vst.msk [vmem:[#allocation3 + $0xb8] sm:$0xff] %vm1817, %v1768
      %1842 = vst.msk [vmem:[#allocation3 + $0xc0] sm:$0xff] %vm1817, %v1770
      %1843 = vst.msk [vmem:[#allocation3 + $0xc8] sm:$0xff] %vm1817, %v1772
      %1844 = vst.msk [vmem:[#allocation3 + $0xd0] sm:$0xff] %vm1817, %v1774
      %1845 = vst.msk [vmem:[#allocation3 + $0xd8] sm:$0xff] %vm1817, %v1776
      %1846 = vst.msk [vmem:[#allocation3 + $0xe0] sm:$0xff] %vm1817, %v1778
      %1847 = vst.msk [vmem:[#allocation3 + $0xe8] sm:$0xff] %vm1817, %v1780
      %1848 = vst.msk [vmem:[#allocation3 + $0xf0] sm:$0xff] %vm1817, %v1782
      %1849 = vst.msk [vmem:[#allocation3 + $0xf8] sm:$0xff] %vm1817, %v1784
      %v1850 = vld [vmem:[%s1656 + $0x1] sm:$0xff]
      %v1851 = vld [vmem:[%s1656 + $0x9] sm:$0xff]
      %v1852 = vld [vmem:[%s1656 + $0x19] sm:$0xff]
      %v1853 = vld [vmem:[%s1656 + $0x21] sm:$0xff]
      %v1854 = vld [vmem:[%s1656 + $0x31] sm:$0xff]
      %v1855 = vld [vmem:[%s1656 + $0x39] sm:$0xff]
      %v1856 = vld [vmem:[%s1656 + $0x49] sm:$0xff]
      %v1857 = vld [vmem:[%s1656 + $0x51] sm:$0xff]
      %v1858 = vld [vmem:[%s1656 + $0x61] sm:$0xff]
      %v1859 = vld [vmem:[%s1656 + $0x69] sm:$0xff]
      %v1860 = vld [vmem:[%s1656 + $0x79] sm:$0xff]
      %v1861 = vld [vmem:[%s1656 + $0x81] sm:$0xff]
      %v1862 = vld [vmem:[%s1656 + $0x91] sm:$0xff]
      %v1863 = vld [vmem:[%s1656 + $0x99] sm:$0xff]
      %v1864 = vld [vmem:[%s1656 + $0xa9] sm:$0xff]
      %v1865 = vld [vmem:[%s1656 + $0xb1] sm:$0xff]
      %v1866 = vld [vmem:[%s1656 + $0xc1] sm:$0xff]
      %v1867 = vld [vmem:[%s1656 + $0xc9] sm:$0xff]
      %v1868 = vld [vmem:[%s1656 + $0xd9] sm:$0xff]
      %v1869 = vld [vmem:[%s1656 + $0xe1] sm:$0xff]
      %v1870 = vld [vmem:[%s1656 + $0xf1] sm:$0xff]
      %v1871 = vld [vmem:[%s1656 + $0xf9] sm:$0xff]
      %v1872 = vld [vmem:[%s1656 + $0x109] sm:$0xff]
      %v1873 = vld [vmem:[%s1656 + $0x111] sm:$0xff]
      %v1874 = vld [vmem:[%s1656 + $0x121] sm:$0xff]
      %v1875 = vld [vmem:[%s1656 + $0x129] sm:$0xff]
      %v1876 = vld [vmem:[%s1656 + $0x139] sm:$0xff]
      %v1877 = vld [vmem:[%s1656 + $0x141] sm:$0xff]
      %v1878 = vld [vmem:[%s1656 + $0x151] sm:$0xff]
      %v1879 = vld [vmem:[%s1656 + $0x159] sm:$0xff]
      %v1880 = vld [vmem:[%s1656 + $0x169] sm:$0xff]
      %v1881 = vld [vmem:[%s1656 + $0x171] sm:$0xff]
      %1914 = vrot.lane.b32.xlu0 %v1850, 28
      %v1915 = vpop.permute.xlu0 %1914
      %1916 = vrot.lane.b32.xlu0 %v1851, 28
      %v1917 = vpop.permute.xlu0 %1916
      %1918 = vrot.lane.b32.xlu0 %v1852, 28
      %v1919 = vpop.permute.xlu0 %1918
      %1920 = vrot.lane.b32.xlu0 %v1853, 28
      %v1921 = vpop.permute.xlu0 %1920
      %1922 = vrot.lane.b32.xlu0 %v1854, 28
      %v1923 = vpop.permute.xlu0 %1922
      %1924 = vrot.lane.b32.xlu0 %v1855, 28
      %v1925 = vpop.permute.xlu0 %1924
      %1926 = vrot.lane.b32.xlu0 %v1856, 28
      %v1927 = vpop.permute.xlu0 %1926
      %1928 = vrot.lane.b32.xlu0 %v1857, 28
      %v1929 = vpop.permute.xlu0 %1928
      %1930 = vrot.lane.b32.xlu0 %v1858, 28
      %v1931 = vpop.permute.xlu0 %1930
      %1932 = vrot.lane.b32.xlu0 %v1859, 28
      %v1933 = vpop.permute.xlu0 %1932
      %1934 = vrot.lane.b32.xlu0 %v1860, 28
      %v1935 = vpop.permute.xlu0 %1934
      %1936 = vrot.lane.b32.xlu0 %v1861, 28
      %v1937 = vpop.permute.xlu0 %1936
      %1938 = vrot.lane.b32.xlu0 %v1862, 28
      %v1939 = vpop.permute.xlu0 %1938
      %1940 = vrot.lane.b32.xlu0 %v1863, 28
      %v1941 = vpop.permute.xlu0 %1940
      %1942 = vrot.lane.b32.xlu0 %v1864, 28
      %v1943 = vpop.permute.xlu0 %1942
      %1944 = vrot.lane.b32.xlu0 %v1865, 28
      %v1945 = vpop.permute.xlu0 %1944
      %1946 = vrot.lane.b32.xlu0 %v1866, 28
      %v1947 = vpop.permute.xlu0 %1946
      %1948 = vrot.lane.b32.xlu0 %v1867, 28
      %v1949 = vpop.permute.xlu0 %1948
      %1950 = vrot.lane.b32.xlu0 %v1868, 28
      %v1951 = vpop.permute.xlu0 %1950
      %1952 = vrot.lane.b32.xlu0 %v1869, 28
      %v1953 = vpop.permute.xlu0 %1952
      %1954 = vrot.lane.b32.xlu0 %v1870, 28
      %v1955 = vpop.permute.xlu0 %1954
      %1956 = vrot.lane.b32.xlu0 %v1871, 28
      %v1957 = vpop.permute.xlu0 %1956
      %1958 = vrot.lane.b32.xlu0 %v1872, 28
      %v1959 = vpop.permute.xlu0 %1958
      %1960 = vrot.lane.b32.xlu0 %v1873, 28
      %v1961 = vpop.permute.xlu0 %1960
      %1962 = vrot.lane.b32.xlu0 %v1874, 28
      %v1963 = vpop.permute.xlu0 %1962
      %1964 = vrot.lane.b32.xlu0 %v1875, 28
      %v1965 = vpop.permute.xlu0 %1964
      %1966 = vrot.lane.b32.xlu0 %v1876, 28
      %v1967 = vpop.permute.xlu0 %1966
      %1968 = vrot.lane.b32.xlu0 %v1877, 28
      %v1969 = vpop.permute.xlu0 %1968
      %1970 = vrot.lane.b32.xlu0 %v1878, 28
      %v1971 = vpop.permute.xlu0 %1970
      %1972 = vrot.lane.b32.xlu0 %v1879, 28
      %v1973 = vpop.permute.xlu0 %1972
      %1974 = vrot.lane.b32.xlu0 %v1880, 28
      %v1975 = vpop.permute.xlu0 %1974
      %1976 = vrot.lane.b32.xlu0 %v1881, 28
      %v1977 = vpop.permute.xlu0 %1976
      %vm2010 = vcmask 261344
      %2011 = vst.msk [vmem:[#allocation3] sm:$0xff] %vm2010, %v1915
      %2012 = vst.msk [vmem:[#allocation3 + $0x8] sm:$0xff] %vm2010, %v1917
      %2013 = vst.msk [vmem:[#allocation3 + $0x10] sm:$0xff] %vm2010, %v1919
      %2014 = vst.msk [vmem:[#allocation3 + $0x18] sm:$0xff] %vm2010, %v1921
      %2015 = vst.msk [vmem:[#allocation3 + $0x20] sm:$0xff] %vm2010, %v1923
      %2016 = vst.msk [vmem:[#allocation3 + $0x28] sm:$0xff] %vm2010, %v1925
      %2017 = vst.msk [vmem:[#allocation3 + $0x30] sm:$0xff] %vm2010, %v1927
      %2018 = vst.msk [vmem:[#allocation3 + $0x38] sm:$0xff] %vm2010, %v1929
      %2019 = vst.msk [vmem:[#allocation3 + $0x40] sm:$0xff] %vm2010, %v1931
      %2020 = vst.msk [vmem:[#allocation3 + $0x48] sm:$0xff] %vm2010, %v1933
      %2021 = vst.msk [vmem:[#allocation3 + $0x50] sm:$0xff] %vm2010, %v1935
      %2022 = vst.msk [vmem:[#allocation3 + $0x58] sm:$0xff] %vm2010, %v1937
      %2023 = vst.msk [vmem:[#allocation3 + $0x60] sm:$0xff] %vm2010, %v1939
      %2024 = vst.msk [vmem:[#allocation3 + $0x68] sm:$0xff] %vm2010, %v1941
      %2025 = vst.msk [vmem:[#allocation3 + $0x70] sm:$0xff] %vm2010, %v1943
      %2026 = vst.msk [vmem:[#allocation3 + $0x78] sm:$0xff] %vm2010, %v1945
      %2027 = vst.msk [vmem:[#allocation3 + $0x80] sm:$0xff] %vm2010, %v1947
      %2028 = vst.msk [vmem:[#allocation3 + $0x88] sm:$0xff] %vm2010, %v1949
      %2029 = vst.msk [vmem:[#allocation3 + $0x90] sm:$0xff] %vm2010, %v1951
      %2030 = vst.msk [vmem:[#allocation3 + $0x98] sm:$0xff] %vm2010, %v1953
      %2031 = vst.msk [vmem:[#allocation3 + $0xa0] sm:$0xff] %vm2010, %v1955
      %2032 = vst.msk [vmem:[#allocation3 + $0xa8] sm:$0xff] %vm2010, %v1957
      %2033 = vst.msk [vmem:[#allocation3 + $0xb0] sm:$0xff] %vm2010, %v1959
      %2034 = vst.msk [vmem:[#allocation3 + $0xb8] sm:$0xff] %vm2010, %v1961
      %2035 = vst.msk [vmem:[#allocation3 + $0xc0] sm:$0xff] %vm2010, %v1963
      %2036 = vst.msk [vmem:[#allocation3 + $0xc8] sm:$0xff] %vm2010, %v1965
      %2037 = vst.msk [vmem:[#allocation3 + $0xd0] sm:$0xff] %vm2010, %v1967
      %2038 = vst.msk [vmem:[#allocation3 + $0xd8] sm:$0xff] %vm2010, %v1969
      %2039 = vst.msk [vmem:[#allocation3 + $0xe0] sm:$0xff] %vm2010, %v1971
      %2040 = vst.msk [vmem:[#allocation3 + $0xe8] sm:$0xff] %vm2010, %v1973
      %2041 = vst.msk [vmem:[#allocation3 + $0xf0] sm:$0xff] %vm2010, %v1975
      %2042 = vst.msk [vmem:[#allocation3 + $0xf8] sm:$0xff] %vm2010, %v1977
      %v2043 = vld [vmem:[%s1656 + $0x2] sm:$0xff]
      %v2044 = vld [vmem:[%s1656 + $0xa] sm:$0xff]
      %v2045 = vld [vmem:[%s1656 + $0x1a] sm:$0xff]
      %v2046 = vld [vmem:[%s1656 + $0x22] sm:$0xff]
      %v2047 = vld [vmem:[%s1656 + $0x32] sm:$0xff]
      %v2048 = vld [vmem:[%s1656 + $0x3a] sm:$0xff]
      %v2049 = vld [vmem:[%s1656 + $0x4a] sm:$0xff]
      %v2050 = vld [vmem:[%s1656 + $0x52] sm:$0xff]
      %v2051 = vld [vmem:[%s1656 + $0x62] sm:$0xff]
      %v2052 = vld [vmem:[%s1656 + $0x6a] sm:$0xff]
      %v2053 = vld [vmem:[%s1656 + $0x7a] sm:$0xff]
      %v2054 = vld [vmem:[%s1656 + $0x82] sm:$0xff]
      %v2055 = vld [vmem:[%s1656 + $0x92] sm:$0xff]
      %v2056 = vld [vmem:[%s1656 + $0x9a] sm:$0xff]
      %v2057 = vld [vmem:[%s1656 + $0xaa] sm:$0xff]
      %v2058 = vld [vmem:[%s1656 + $0xb2] sm:$0xff]
      %v2059 = vld [vmem:[%s1656 + $0xc2] sm:$0xff]
      %v2060 = vld [vmem:[%s1656 + $0xca] sm:$0xff]
      %v2061 = vld [vmem:[%s1656 + $0xda] sm:$0xff]
      %v2062 = vld [vmem:[%s1656 + $0xe2] sm:$0xff]
      %v2063 = vld [vmem:[%s1656 + $0xf2] sm:$0xff]
      %v2064 = vld [vmem:[%s1656 + $0xfa] sm:$0xff]
      %v2065 = vld [vmem:[%s1656 + $0x10a] sm:$0xff]
      %v2066 = vld [vmem:[%s1656 + $0x112] sm:$0xff]
      %v2067 = vld [vmem:[%s1656 + $0x122] sm:$0xff]
      %v2068 = vld [vmem:[%s1656 + $0x12a] sm:$0xff]
      %v2069 = vld [vmem:[%s1656 + $0x13a] sm:$0xff]
      %v2070 = vld [vmem:[%s1656 + $0x142] sm:$0xff]
      %v2071 = vld [vmem:[%s1656 + $0x152] sm:$0xff]
      %v2072 = vld [vmem:[%s1656 + $0x15a] sm:$0xff]
      %v2073 = vld [vmem:[%s1656 + $0x16a] sm:$0xff]
      %v2074 = vld [vmem:[%s1656 + $0x172] sm:$0xff]
      %2107 = vrot.lane.b32.xlu0 %v2043, 32
      %v2108 = vpop.permute.xlu0 %2107
      %2109 = vrot.lane.b32.xlu0 %v2044, 32
      %v2110 = vpop.permute.xlu0 %2109
      %2111 = vrot.lane.b32.xlu0 %v2045, 32
      %v2112 = vpop.permute.xlu0 %2111
      %2113 = vrot.lane.b32.xlu0 %v2046, 32
      %v2114 = vpop.permute.xlu0 %2113
      %2115 = vrot.lane.b32.xlu0 %v2047, 32
      %v2116 = vpop.permute.xlu0 %2115
      %2117 = vrot.lane.b32.xlu0 %v2048, 32
      %v2118 = vpop.permute.xlu0 %2117
      %2119 = vrot.lane.b32.xlu0 %v2049, 32
      %v2120 = vpop.permute.xlu0 %2119
      %2121 = vrot.lane.b32.xlu0 %v2050, 32
      %v2122 = vpop.permute.xlu0 %2121
      %2123 = vrot.lane.b32.xlu0 %v2051, 32
      %v2124 = vpop.permute.xlu0 %2123
      %2125 = vrot.lane.b32.xlu0 %v2052, 32
      %v2126 = vpop.permute.xlu0 %2125
      %2127 = vrot.lane.b32.xlu0 %v2053, 32
      %v2128 = vpop.permute.xlu0 %2127
      %2129 = vrot.lane.b32.xlu0 %v2054, 32
      %v2130 = vpop.permute.xlu0 %2129
      %2131 = vrot.lane.b32.xlu0 %v2055, 32
      %v2132 = vpop.permute.xlu0 %2131
      %2133 = vrot.lane.b32.xlu0 %v2056, 32
      %v2134 = vpop.permute.xlu0 %2133
      %2135 = vrot.lane.b32.xlu0 %v2057, 32
      %v2136 = vpop.permute.xlu0 %2135
      %2137 = vrot.lane.b32.xlu0 %v2058, 32
      %v2138 = vpop.permute.xlu0 %2137
      %2139 = vrot.lane.b32.xlu0 %v2059, 32
      %v2140 = vpop.permute.xlu0 %2139
      %2141 = vrot.lane.b32.xlu0 %v2060, 32
      %v2142 = vpop.permute.xlu0 %2141
      %2143 = vrot.lane.b32.xlu0 %v2061, 32
      %v2144 = vpop.permute.xlu0 %2143
      %2145 = vrot.lane.b32.xlu0 %v2062, 32
      %v2146 = vpop.permute.xlu0 %2145
      %2147 = vrot.lane.b32.xlu0 %v2063, 32
      %v2148 = vpop.permute.xlu0 %2147
      %2149 = vrot.lane.b32.xlu0 %v2064, 32
      %v2150 = vpop.permute.xlu0 %2149
      %2151 = vrot.lane.b32.xlu0 %v2065, 32
      %v2152 = vpop.permute.xlu0 %2151
      %2153 = vrot.lane.b32.xlu0 %v2066, 32
      %v2154 = vpop.permute.xlu0 %2153
      %2155 = vrot.lane.b32.xlu0 %v2067, 32
      %v2156 = vpop.permute.xlu0 %2155
      %2157 = vrot.lane.b32.xlu0 %v2068, 32
      %v2158 = vpop.permute.xlu0 %2157
      %2159 = vrot.lane.b32.xlu0 %v2069, 32
      %v2160 = vpop.permute.xlu0 %2159
      %2161 = vrot.lane.b32.xlu0 %v2070, 32
      %v2162 = vpop.permute.xlu0 %2161
      %2163 = vrot.lane.b32.xlu0 %v2071, 32
      %v2164 = vpop.permute.xlu0 %2163
      %2165 = vrot.lane.b32.xlu0 %v2072, 32
      %v2166 = vpop.permute.xlu0 %2165
      %2167 = vrot.lane.b32.xlu0 %v2073, 32
      %v2168 = vpop.permute.xlu0 %2167
      %2169 = vrot.lane.b32.xlu0 %v2074, 32
      %v2170 = vpop.permute.xlu0 %2169
      %vm2203 = vcmask 294144
      %2204 = vst.msk [vmem:[#allocation3] sm:$0xff] %vm2203, %v2108
      %2205 = vst.msk [vmem:[#allocation3 + $0x8] sm:$0xff] %vm2203, %v2110
      %2206 = vst.msk [vmem:[#allocation3 + $0x10] sm:$0xff] %vm2203, %v2112
      %2207 = vst.msk [vmem:[#allocation3 + $0x18] sm:$0xff] %vm2203, %v2114
      %2208 = vst.msk [vmem:[#allocation3 + $0x20] sm:$0xff] %vm2203, %v2116
      %2209 = vst.msk [vmem:[#allocation3 + $0x28] sm:$0xff] %vm2203, %v2118
      %2210 = vst.msk [vmem:[#allocation3 + $0x30] sm:$0xff] %vm2203, %v2120
      %2211 = vst.msk [vmem:[#allocation3 + $0x38] sm:$0xff] %vm2203, %v2122
      %2212 = vst.msk [vmem:[#allocation3 + $0x40] sm:$0xff] %vm2203, %v2124
      %2213 = vst.msk [vmem:[#allocation3 + $0x48] sm:$0xff] %vm2203, %v2126
      %2214 = vst.msk [vmem:[#allocation3 + $0x50] sm:$0xff] %vm2203, %v2128
      %2215 = vst.msk [vmem:[#allocation3 + $0x58] sm:$0xff] %vm2203, %v2130
      %2216 = vst.msk [vmem:[#allocation3 + $0x60] sm:$0xff] %vm2203, %v2132
      %2217 = vst.msk [vmem:[#allocation3 + $0x68] sm:$0xff] %vm2203, %v2134
      %2218 = vst.msk [vmem:[#allocation3 + $0x70] sm:$0xff] %vm2203, %v2136
      %2219 = vst.msk [vmem:[#allocation3 + $0x78] sm:$0xff] %vm2203, %v2138
      %2220 = vst.msk [vmem:[#allocation3 + $0x80] sm:$0xff] %vm2203, %v2140
      %2221 = vst.msk [vmem:[#allocation3 + $0x88] sm:$0xff] %vm2203, %v2142
      %2222 = vst.msk [vmem:[#allocation3 + $0x90] sm:$0xff] %vm2203, %v2144
      %2223 = vst.msk [vmem:[#allocation3 + $0x98] sm:$0xff] %vm2203, %v2146
      %2224 = vst.msk [vmem:[#allocation3 + $0xa0] sm:$0xff] %vm2203, %v2148
      %2225 = vst.msk [vmem:[#allocation3 + $0xa8] sm:$0xff] %vm2203, %v2150
      %2226 = vst.msk [vmem:[#allocation3 + $0xb0] sm:$0xff] %vm2203, %v2152
      %2227 = vst.msk [vmem:[#allocation3 + $0xb8] sm:$0xff] %vm2203, %v2154
      %2228 = vst.msk [vmem:[#allocation3 + $0xc0] sm:$0xff] %vm2203, %v2156
      %2229 = vst.msk [vmem:[#allocation3 + $0xc8] sm:$0xff] %vm2203, %v2158
      %2230 = vst.msk [vmem:[#allocation3 + $0xd0] sm:$0xff] %vm2203, %v2160
      %2231 = vst.msk [vmem:[#allocation3 + $0xd8] sm:$0xff] %vm2203, %v2162
      %2232 = vst.msk [vmem:[#allocation3 + $0xe0] sm:$0xff] %vm2203, %v2164
      %2233 = vst.msk [vmem:[#allocation3 + $0xe8] sm:$0xff] %vm2203, %v2166
      %2234 = vst.msk [vmem:[#allocation3 + $0xf0] sm:$0xff] %vm2203, %v2168
      %2235 = vst.msk [vmem:[#allocation3 + $0xf8] sm:$0xff] %vm2203, %v2170
      %v2236 = vld [vmem:[#allocation3] sm:$0xff]
      %v2237 = vld [vmem:[#allocation3 + $0x8] sm:$0xff]
      %v2238 = vld [vmem:[#allocation3 + $0x10] sm:$0xff]
      %v2239 = vld [vmem:[#allocation3 + $0x18] sm:$0xff]
      %v2240 = vld [vmem:[#allocation3 + $0x20] sm:$0xff]
      %v2241 = vld [vmem:[#allocation3 + $0x28] sm:$0xff]
      %v2242 = vld [vmem:[#allocation3 + $0x30] sm:$0xff]
      %v2243 = vld [vmem:[#allocation3 + $0x38] sm:$0xff]
      %v2244 = vld [vmem:[#allocation3 + $0x40] sm:$0xff]
      %v2245 = vld [vmem:[#allocation3 + $0x48] sm:$0xff]
      %v2246 = vld [vmem:[#allocation3 + $0x50] sm:$0xff]
      %v2247 = vld [vmem:[#allocation3 + $0x58] sm:$0xff]
      %v2248 = vld [vmem:[#allocation3 + $0x60] sm:$0xff]
      %v2249 = vld [vmem:[#allocation3 + $0x68] sm:$0xff]
      %v2250 = vld [vmem:[#allocation3 + $0x70] sm:$0xff]
      %v2251 = vld [vmem:[#allocation3 + $0x78] sm:$0xff]
      %v2252 = vld [vmem:[#allocation3 + $0x80] sm:$0xff]
      %v2253 = vld [vmem:[#allocation3 + $0x88] sm:$0xff]
      %v2254 = vld [vmem:[#allocation3 + $0x90] sm:$0xff]
      %v2255 = vld [vmem:[#allocation3 + $0x98] sm:$0xff]
      %v2256 = vld [vmem:[#allocation3 + $0xa0] sm:$0xff]
      %v2257 = vld [vmem:[#allocation3 + $0xa8] sm:$0xff]
      %v2258 = vld [vmem:[#allocation3 + $0xb0] sm:$0xff]
      %v2259 = vld [vmem:[#allocation3 + $0xb8] sm:$0xff]
      %v2260 = vld [vmem:[#allocation3 + $0xc0] sm:$0xff]
      %v2261 = vld [vmem:[#allocation3 + $0xc8] sm:$0xff]
      %v2262 = vld [vmem:[#allocation3 + $0xd0] sm:$0xff]
      %v2263 = vld [vmem:[#allocation3 + $0xd8] sm:$0xff]
      %v2264 = vld [vmem:[#allocation3 + $0xe0] sm:$0xff]
      %v2265 = vld [vmem:[#allocation3 + $0xe8] sm:$0xff]
      %v2266 = vld [vmem:[#allocation3 + $0xf0] sm:$0xff]
      %v2267 = vld [vmem:[#allocation3 + $0xf8] sm:$0xff]
      %v2268 = vld [vmem:[%s4] sm:$0xff]
      %v2269 = vld [vmem:[%s4 + $0x8] sm:$0xff]
      %v2270 = vld [vmem:[%s4 + $0x10] sm:$0xff]
      %v2271 = vld [vmem:[%s4 + $0x18] sm:$0xff]
      %v2272 = vld [vmem:[%s4 + $0x20] sm:$0xf]
      %v2273 = vld [vmem:[%s5] sm:$0x1]
      %v2275 = vlaneseq
      %v2276 = vshrl.u32 %v2275, 7
      %v2277 = vsub.s32 0, %v2276
      %v2278 = vrot.slane %v2273, %v2277
      %vm2280 = vcmask 293888
      %v2282 = vsel %vm2280, %v2236, 0
      %v2285 = vsel %vm2280, %v2237, 0
      %v2288 = vsel %vm2280, %v2238, 0
      %v2291 = vsel %vm2280, %v2239, 0
      %v2294 = vsel %vm2280, %v2240, 0
      %v2297 = vsel %vm2280, %v2241, 0
      %v2300 = vsel %vm2280, %v2242, 0
      %v2303 = vsel %vm2280, %v2243, 0
      %v2306 = vsel %vm2280, %v2244, 0
      %v2309 = vsel %vm2280, %v2245, 0
      %v2312 = vsel %vm2280, %v2246, 0
      %v2315 = vsel %vm2280, %v2247, 0
      %v2318 = vsel %vm2280, %v2248, 0
      %v2321 = vsel %vm2280, %v2249, 0
      %v2324 = vsel %vm2280, %v2250, 0
      %v2327 = vsel %vm2280, %v2251, 0
      %v2330 = vsel %vm2280, %v2252, 0
      %v2333 = vsel %vm2280, %v2253, 0
      %v2336 = vsel %vm2280, %v2254, 0
      %v2339 = vsel %vm2280, %v2255, 0
      %v2342 = vsel %vm2280, %v2256, 0
      %v2345 = vsel %vm2280, %v2257, 0
      %v2348 = vsel %vm2280, %v2258, 0
      %v2351 = vsel %vm2280, %v2259, 0
      %v2354 = vsel %vm2280, %v2260, 0
      %v2357 = vsel %vm2280, %v2261, 0
      %v2360 = vsel %vm2280, %v2262, 0
      %v2363 = vsel %vm2280, %v2263, 0
      %v2366 = vsel %vm2280, %v2264, 0
      %v2369 = vsel %vm2280, %v2265, 0
      %v2372 = vsel %vm2280, %v2266, 0
      %v2375 = vsel %vm2280, %v2267, 0
      %vm2377 = vcmask 1043456
      %v2379 = vsel %vm2377, %v2272, 0
      %2381 = vmatprep.subr.mxu0 0.0
      %2382 = vmatpush1.msra.mxu0 0.0
      %2383 = vmatprep.subr.mxu0 0.0
      %2384 = vmatpush1.msra.mxu0 0.0
      %2385 = vmatprep.subr.mxu0 0.0
      %2386 = vmatpush1.msra.mxu0 0.0
      %2387 = vmatprep.subr.mxu0 0.0
      %2388 = vmatpush1.msra.mxu0 0.0
      %2389 = vmatprep.subr.mxu0 0.0
      %2390 = vmatpush1.msra.mxu0 0.0
      %2391 = vmatprep.subr.mxu0 0.0
      %2392 = vmatpush1.msra.mxu0 0.0
      %2393 = vmatprep.subr.mxu0 0.0
      %2394 = vmatpush1.msra.mxu0 0.0
      %2395 = vmatprep.subr.mxu0 0.0
      %2396 = vmatpush1.msra.mxu0 0.0
      %2397 = vmatprep.subr.mxu0 0.0
      %2398 = vmatpush1.msra.mxu0 0.0
      %2399 = vmatprep.subr.mxu0 0.0
      %2400 = vmatpush1.msra.mxu0 0.0
      %2401 = vmatprep.subr.mxu0 0.0
      %2402 = vmatpush1.msra.mxu0 0.0
      %2403 = vmatprep.subr.mxu0 0.0
      %2404 = vmatpush1.msra.mxu0 %v2379
      %2405 = vmatprep.subr.mxu0 0.0
      %2406 = vmatpush1.msra.mxu0 %v2271
      %2407 = vmatprep.subr.mxu0 0.0
      %2408 = vmatpush1.msra.mxu0 %v2270
      %2409 = vmatprep.subr.mxu0 0.0
      %2410 = vmatpush1.msra.mxu0 %v2269
      %2411 = vmatprep.subr.mxu0 0.0
      %2412 = vmatpush1.msra.mxu0 %v2268
      %2413 = vmatprep.subr.mxu0 0.0
      %2414 = vmatpush2.msra.mxu0 0.0
      %2415 = vmatprep.subr.mxu0 0.0
      %2416 = vmatpush2.msra.mxu0 0.0
      %2417 = vmatprep.subr.mxu0 0.0
      %2418 = vmatpush2.msra.mxu0 0.0
      %2419 = vmatprep.subr.mxu0 0.0
      %2420 = vmatpush2.msra.mxu0 0.0
      %2421 = vmatprep.subr.mxu0 0.0
      %2422 = vmatpush2.msra.mxu0 0.0
      %2423 = vmatprep.subr.mxu0 0.0
      %2424 = vmatpush2.msra.mxu0 0.0
      %2425 = vmatprep.subr.mxu0 0.0
      %2426 = vmatpush2.msra.mxu0 0.0
      %2427 = vmatprep.subr.mxu0 0.0
      %2428 = vmatpush2.msra.mxu0 0.0
      %2429 = vmatprep.subr.mxu0 0.0
      %2430 = vmatpush2.msra.mxu0 0.0
      %2431 = vmatprep.subr.mxu0 0.0
      %2432 = vmatpush2.msra.mxu0 0.0
      %2433 = vmatprep.subr.mxu0 0.0
      %2434 = vmatpush2.msra.mxu0 0.0
      %2435 = vmatprep.subr.mxu0 0.0
      %2436 = vmatpush2.msra.mxu0 0.0
      %2437 = vmatprep.subr.mxu0 0.0
      %2438 = vmatpush2.msra.mxu0 0.0
      %2439 = vmatprep.subr.mxu0 0.0
      %2440 = vmatpush2.msra.mxu0 0.0
      %2441 = vmatprep.subr.mxu0 0.0
      %2442 = vmatpush2.msra.mxu0 0.0
      %2443 = vmatprep.subr.mxu0 0.0
      %2444 = vmatpush2.msra.mxu0 0.0
      %2445 = vmatprep.mubr.f32.mxu0 0.0
      %2446 = vmatmul.mubr.f32.gmra.mxu0 %v2282
      %v2447 = vpop.f32.mrf.mxu0
      %v2448 = vadd.f32 %v2278, %v2447
      %v2449 = vpop.f32.mrf.mxu0
      %2450 = vmatprep.mubr.f32.mxu0 0.0
      %2451 = vmatmul.mubr.f32.gmra.mxu0 %v2285
      %v2452 = vpop.f32.mrf.mxu0
      %v2453 = vadd.f32 %v2278, %v2452
      %v2454 = vpop.f32.mrf.mxu0
      %2455 = vmatprep.mubr.f32.mxu0 0.0
      %2456 = vmatmul.mubr.f32.gmra.mxu0 %v2288
      %v2457 = vpop.f32.mrf.mxu0
      %v2458 = vadd.f32 %v2278, %v2457
      %v2459 = vpop.f32.mrf.mxu0
      %2460 = vmatprep.mubr.f32.mxu0 0.0
      %2461 = vmatmul.mubr.f32.gmra.mxu0 %v2291
      %v2462 = vpop.f32.mrf.mxu0
      %v2463 = vadd.f32 %v2278, %v2462
      %v2464 = vpop.f32.mrf.mxu0
      %2465 = vmatprep.mubr.f32.mxu0 0.0
      %2466 = vmatmul.mubr.f32.gmra.mxu0 %v2294
      %v2467 = vpop.f32.mrf.mxu0
      %v2468 = vadd.f32 %v2278, %v2467
      %v2469 = vpop.f32.mrf.mxu0
      %2470 = vmatprep.mubr.f32.mxu0 0.0
      %2471 = vmatmul.mubr.f32.gmra.mxu0 %v2297
      %v2472 = vpop.f32.mrf.mxu0
      %v2473 = vadd.f32 %v2278, %v2472
      %v2474 = vpop.f32.mrf.mxu0
      %2475 = vmatprep.mubr.f32.mxu0 0.0
      %2476 = vmatmul.mubr.f32.gmra.mxu0 %v2300
      %v2477 = vpop.f32.mrf.mxu0
      %v2478 = vadd.f32 %v2278, %v2477
      %v2479 = vpop.f32.mrf.mxu0
      %2480 = vmatprep.mubr.f32.mxu0 0.0
      %2481 = vmatmul.mubr.f32.gmra.mxu0 %v2303
      %v2482 = vpop.f32.mrf.mxu0
      %v2483 = vadd.f32 %v2278, %v2482
      %v2484 = vpop.f32.mrf.mxu0
      %2485 = vmatprep.mubr.f32.mxu0 0.0
      %2486 = vmatmul.mubr.f32.gmra.mxu0 %v2306
      %v2487 = vpop.f32.mrf.mxu0
      %v2488 = vadd.f32 %v2278, %v2487
      %v2489 = vpop.f32.mrf.mxu0
      %2490 = vmatprep.mubr.f32.mxu0 0.0
      %2491 = vmatmul.mubr.f32.gmra.mxu0 %v2309
      %v2492 = vpop.f32.mrf.mxu0
      %v2493 = vadd.f32 %v2278, %v2492
      %v2494 = vpop.f32.mrf.mxu0
      %2495 = vmatprep.mubr.f32.mxu0 0.0
      %2496 = vmatmul.mubr.f32.gmra.mxu0 %v2312
      %v2497 = vpop.f32.mrf.mxu0
      %v2498 = vadd.f32 %v2278, %v2497
      %v2499 = vpop.f32.mrf.mxu0
      %2500 = vmatprep.mubr.f32.mxu0 0.0
      %2501 = vmatmul.mubr.f32.gmra.mxu0 %v2315
      %v2502 = vpop.f32.mrf.mxu0
      %v2503 = vadd.f32 %v2278, %v2502
      %v2504 = vpop.f32.mrf.mxu0
      %2505 = vmatprep.mubr.f32.mxu0 0.0
      %2506 = vmatmul.mubr.f32.gmra.mxu0 %v2318
      %v2507 = vpop.f32.mrf.mxu0
      %v2508 = vadd.f32 %v2278, %v2507
      %v2509 = vpop.f32.mrf.mxu0
      %2510 = vmatprep.mubr.f32.mxu0 0.0
      %2511 = vmatmul.mubr.f32.gmra.mxu0 %v2321
      %v2512 = vpop.f32.mrf.mxu0
      %v2513 = vadd.f32 %v2278, %v2512
      %v2514 = vpop.f32.mrf.mxu0
      %2515 = vmatprep.mubr.f32.mxu0 0.0
      %2516 = vmatmul.mubr.f32.gmra.mxu0 %v2324
      %v2517 = vpop.f32.mrf.mxu0
      %v2518 = vadd.f32 %v2278, %v2517
      %v2519 = vpop.f32.mrf.mxu0
      %2520 = vmatprep.mubr.f32.mxu0 0.0
      %2521 = vmatmul.mubr.f32.gmra.mxu0 %v2327
      %v2522 = vpop.f32.mrf.mxu0
      %v2523 = vadd.f32 %v2278, %v2522
      %v2524 = vpop.f32.mrf.mxu0
      %2525 = vmatprep.mubr.f32.mxu0 0.0
      %2526 = vmatmul.mubr.f32.gmra.mxu0 %v2330
      %v2527 = vpop.f32.mrf.mxu0
      %v2528 = vadd.f32 %v2278, %v2527
      %v2529 = vpop.f32.mrf.mxu0
      %2530 = vmatprep.mubr.f32.mxu0 0.0
      %2531 = vmatmul.mubr.f32.gmra.mxu0 %v2333
      %v2532 = vpop.f32.mrf.mxu0
      %v2533 = vadd.f32 %v2278, %v2532
      %v2534 = vpop.f32.mrf.mxu0
      %2535 = vmatprep.mubr.f32.mxu0 0.0
      %2536 = vmatmul.mubr.f32.gmra.mxu0 %v2336
      %v2537 = vpop.f32.mrf.mxu0
      %v2538 = vadd.f32 %v2278, %v2537
      %v2539 = vpop.f32.mrf.mxu0
      %2540 = vmatprep.mubr.f32.mxu0 0.0
      %2541 = vmatmul.mubr.f32.gmra.mxu0 %v2339
      %v2542 = vpop.f32.mrf.mxu0
      %v2543 = vadd.f32 %v2278, %v2542
      %v2544 = vpop.f32.mrf.mxu0
      %2545 = vmatprep.mubr.f32.mxu0 0.0
      %2546 = vmatmul.mubr.f32.gmra.mxu0 %v2342
      %v2547 = vpop.f32.mrf.mxu0
      %v2548 = vadd.f32 %v2278, %v2547
      %v2549 = vpop.f32.mrf.mxu0
      %2550 = vmatprep.mubr.f32.mxu0 0.0
      %2551 = vmatmul.mubr.f32.gmra.mxu0 %v2345
      %v2552 = vpop.f32.mrf.mxu0
      %v2553 = vadd.f32 %v2278, %v2552
      %v2554 = vpop.f32.mrf.mxu0
      %2555 = vmatprep.mubr.f32.mxu0 0.0
      %2556 = vmatmul.mubr.f32.gmra.mxu0 %v2348
      %v2557 = vpop.f32.mrf.mxu0
      %v2558 = vadd.f32 %v2278, %v2557
      %v2559 = vpop.f32.mrf.mxu0
      %2560 = vmatprep.mubr.f32.mxu0 0.0
      %2561 = vmatmul.mubr.f32.gmra.mxu0 %v2351
      %v2562 = vpop.f32.mrf.mxu0
      %v2563 = vadd.f32 %v2278, %v2562
      %v2564 = vpop.f32.mrf.mxu0
      %2565 = vmatprep.mubr.f32.mxu0 0.0
      %2566 = vmatmul.mubr.f32.gmra.mxu0 %v2354
      %v2567 = vpop.f32.mrf.mxu0
      %v2568 = vadd.f32 %v2278, %v2567
      %v2569 = vpop.f32.mrf.mxu0
      %2570 = vmatprep.mubr.f32.mxu0 0.0
      %2571 = vmatmul.mubr.f32.gmra.mxu0 %v2357
      %v2572 = vpop.f32.mrf.mxu0
      %v2573 = vadd.f32 %v2278, %v2572
      %v2574 = vpop.f32.mrf.mxu0
      %2575 = vmatprep.mubr.f32.mxu0 0.0
      %2576 = vmatmul.mubr.f32.gmra.mxu0 %v2360
      %v2577 = vpop.f32.mrf.mxu0
      %v2578 = vadd.f32 %v2278, %v2577
      %v2579 = vpop.f32.mrf.mxu0
      %2580 = vmatprep.mubr.f32.mxu0 0.0
      %2581 = vmatmul.mubr.f32.gmra.mxu0 %v2363
      %v2582 = vpop.f32.mrf.mxu0
      %v2583 = vadd.f32 %v2278, %v2582
      %v2584 = vpop.f32.mrf.mxu0
      %2585 = vmatprep.mubr.f32.mxu0 0.0
      %2586 = vmatmul.mubr.f32.gmra.mxu0 %v2366
      %v2587 = vpop.f32.mrf.mxu0
      %v2588 = vadd.f32 %v2278, %v2587
      %v2589 = vpop.f32.mrf.mxu0
      %2590 = vmatprep.mubr.f32.mxu0 0.0
      %2591 = vmatmul.mubr.f32.gmra.mxu0 %v2369
      %v2592 = vpop.f32.mrf.mxu0
      %v2593 = vadd.f32 %v2278, %v2592
      %v2594 = vpop.f32.mrf.mxu0
      %2595 = vmatprep.mubr.f32.mxu0 0.0
      %2596 = vmatmul.mubr.f32.gmra.mxu0 %v2372
      %v2597 = vpop.f32.mrf.mxu0
      %v2598 = vadd.f32 %v2278, %v2597
      %v2599 = vpop.f32.mrf.mxu0
      %2600 = vmatprep.mubr.f32.mxu0 0.0
      %2601 = vmatmul.mubr.f32.gmra.mxu0 %v2375
      %v2602 = vpop.f32.mrf.mxu0
      %v2603 = vadd.f32 %v2278, %v2602
      %v2604 = vpop.f32.mrf.mxu0
      %2605 = vdwg.mxu0
      %vm2606 = vcmask 64512
      %v2607 = vsel %vm2606, %v2448, 0.0
      %v2608 = vsel %vm2606, %v2453, 0.0
      %v2609 = vadd.f32 %v2607, %v2608
      %v2610 = vsel %vm2606, %v2458, 0.0
      %v2611 = vadd.f32 %v2609, %v2610
      %v2612 = vsel %vm2606, %v2463, 0.0
      %v2613 = vadd.f32 %v2611, %v2612
      %v2614 = vsel %vm2606, %v2468, 0.0
      %v2615 = vadd.f32 %v2613, %v2614
      %v2616 = vsel %vm2606, %v2473, 0.0
      %v2617 = vadd.f32 %v2615, %v2616
      %v2618 = vsel %vm2606, %v2478, 0.0
      %v2619 = vadd.f32 %v2617, %v2618
      %v2620 = vsel %vm2606, %v2483, 0.0
      %v2621 = vadd.f32 %v2619, %v2620
      %v2622 = vsel %vm2606, %v2488, 0.0
      %v2623 = vadd.f32 %v2621, %v2622
      %v2624 = vsel %vm2606, %v2493, 0.0
      %v2625 = vadd.f32 %v2623, %v2624
      %v2626 = vsel %vm2606, %v2498, 0.0
      %v2627 = vadd.f32 %v2625, %v2626
      %v2628 = vsel %vm2606, %v2503, 0.0
      %v2629 = vadd.f32 %v2627, %v2628
      %v2630 = vsel %vm2606, %v2508, 0.0
      %v2631 = vadd.f32 %v2629, %v2630
      %v2632 = vsel %vm2606, %v2513, 0.0
      %v2633 = vadd.f32 %v2631, %v2632
      %v2634 = vsel %vm2606, %v2518, 0.0
      %v2635 = vadd.f32 %v2633, %v2634
      %v2636 = vsel %vm2606, %v2523, 0.0
      %v2637 = vadd.f32 %v2635, %v2636
      %v2638 = vsel %vm2606, %v2528, 0.0
      %v2639 = vadd.f32 %v2637, %v2638
      %v2640 = vsel %vm2606, %v2533, 0.0
      %v2641 = vadd.f32 %v2639, %v2640
      %v2642 = vsel %vm2606, %v2538, 0.0
      %v2643 = vadd.f32 %v2641, %v2642
      %v2644 = vsel %vm2606, %v2543, 0.0
      %v2645 = vadd.f32 %v2643, %v2644
      %v2646 = vsel %vm2606, %v2548, 0.0
      %v2647 = vadd.f32 %v2645, %v2646
      %v2648 = vsel %vm2606, %v2553, 0.0
      %v2649 = vadd.f32 %v2647, %v2648
      %v2650 = vsel %vm2606, %v2558, 0.0
      %v2651 = vadd.f32 %v2649, %v2650
      %v2652 = vsel %vm2606, %v2563, 0.0
      %v2653 = vadd.f32 %v2651, %v2652
      %v2654 = vsel %vm2606, %v2568, 0.0
      %v2655 = vadd.f32 %v2653, %v2654
      %v2656 = vsel %vm2606, %v2573, 0.0
      %v2657 = vadd.f32 %v2655, %v2656
      %v2658 = vsel %vm2606, %v2578, 0.0
      %v2659 = vadd.f32 %v2657, %v2658
      %v2660 = vsel %vm2606, %v2583, 0.0
      %v2661 = vadd.f32 %v2659, %v2660
      %v2662 = vsel %vm2606, %v2588, 0.0
      %v2663 = vadd.f32 %v2661, %v2662
      %v2664 = vsel %vm2606, %v2593, 0.0
      %v2665 = vadd.f32 %v2663, %v2664
      %v2666 = vsel %vm2606, %v2598, 0.0
      %v2667 = vadd.f32 %v2665, %v2666
      %v2668 = vsel %vm2606, %v2603, 0.0
      %v2669 = vadd.f32 %v2667, %v2668
      %v2670 = vrot.slane %v2669, 4
      %v2671 = vadd.f32 %v2669, %v2670
      %v2672 = vrot.slane %v2671, 2
      %v2673 = vadd.f32 %v2671, %v2672
      %v2674 = vrot.slane %v2673, 1
      %v2675 = vadd.f32 %v2673, %v2674
      %v2676 = vmul.f32 %v2448, %v2448
      %v2677 = vmul.f32 %v2453, %v2453
      %v2678 = vmul.f32 %v2458, %v2458
      %v2679 = vmul.f32 %v2463, %v2463
      %v2680 = vmul.f32 %v2468, %v2468
      %v2681 = vmul.f32 %v2473, %v2473
      %v2682 = vmul.f32 %v2478, %v2478
      %v2683 = vmul.f32 %v2483, %v2483
      %v2684 = vmul.f32 %v2488, %v2488
      %v2685 = vmul.f32 %v2493, %v2493
      %v2686 = vmul.f32 %v2498, %v2498
      %v2687 = vmul.f32 %v2503, %v2503
      %v2688 = vmul.f32 %v2508, %v2508
      %v2689 = vmul.f32 %v2513, %v2513
      %v2690 = vmul.f32 %v2518, %v2518
      %v2691 = vmul.f32 %v2523, %v2523
      %v2692 = vmul.f32 %v2528, %v2528
      %v2693 = vmul.f32 %v2533, %v2533
      %v2694 = vmul.f32 %v2538, %v2538
      %v2695 = vmul.f32 %v2543, %v2543
      %v2696 = vmul.f32 %v2548, %v2548
      %v2697 = vmul.f32 %v2553, %v2553
      %v2698 = vmul.f32 %v2558, %v2558
      %v2699 = vmul.f32 %v2563, %v2563
      %v2700 = vmul.f32 %v2568, %v2568
      %v2701 = vmul.f32 %v2573, %v2573
      %v2702 = vmul.f32 %v2578, %v2578
      %v2703 = vmul.f32 %v2583, %v2583
      %v2704 = vmul.f32 %v2588, %v2588
      %v2705 = vmul.f32 %v2593, %v2593
      %v2706 = vmul.f32 %v2598, %v2598
      %v2707 = vmul.f32 %v2603, %v2603
      %v2708 = vsel %vm2606, %v2676, 0.0
      %v2709 = vsel %vm2606, %v2677, 0.0
      %v2710 = vadd.f32 %v2708, %v2709
      %v2711 = vsel %vm2606, %v2678, 0.0
      %v2712 = vadd.f32 %v2710, %v2711
      %v2713 = vsel %vm2606, %v2679, 0.0
      %v2714 = vadd.f32 %v2712, %v2713
      %v2715 = vsel %vm2606, %v2680, 0.0
      %v2716 = vadd.f32 %v2714, %v2715
      %v2717 = vsel %vm2606, %v2681, 0.0
      %v2718 = vadd.f32 %v2716, %v2717
      %v2719 = vsel %vm2606, %v2682, 0.0
      %v2720 = vadd.f32 %v2718, %v2719
      %v2721 = vsel %vm2606, %v2683, 0.0
      %v2722 = vadd.f32 %v2720, %v2721
      %v2723 = vsel %vm2606, %v2684, 0.0
      %v2724 = vadd.f32 %v2722, %v2723
      %v2725 = vsel %vm2606, %v2685, 0.0
      %v2726 = vadd.f32 %v2724, %v2725
      %v2727 = vsel %vm2606, %v2686, 0.0
      %v2728 = vadd.f32 %v2726, %v2727
      %v2729 = vsel %vm2606, %v2687, 0.0
      %v2730 = vadd.f32 %v2728, %v2729
      %v2731 = vsel %vm2606, %v2688, 0.0
      %v2732 = vadd.f32 %v2730, %v2731
      %v2733 = vsel %vm2606, %v2689, 0.0
      %v2734 = vadd.f32 %v2732, %v2733
      %v2735 = vsel %vm2606, %v2690, 0.0
      %v2736 = vadd.f32 %v2734, %v2735
      %v2737 = vsel %vm2606, %v2691, 0.0
      %v2738 = vadd.f32 %v2736, %v2737
      %v2739 = vsel %vm2606, %v2692, 0.0
      %v2740 = vadd.f32 %v2738, %v2739
      %v2741 = vsel %vm2606, %v2693, 0.0
      %v2742 = vadd.f32 %v2740, %v2741
      %v2743 = vsel %vm2606, %v2694, 0.0
      %v2744 = vadd.f32 %v2742, %v2743
      %v2745 = vsel %vm2606, %v2695, 0.0
      %v2746 = vadd.f32 %v2744, %v2745
      %v2747 = vsel %vm2606, %v2696, 0.0
      %v2748 = vadd.f32 %v2746, %v2747
      %v2749 = vsel %vm2606, %v2697, 0.0
      %v2750 = vadd.f32 %v2748, %v2749
      %v2751 = vsel %vm2606, %v2698, 0.0
      %v2752 = vadd.f32 %v2750, %v2751
      %v2753 = vsel %vm2606, %v2699, 0.0
      %v2754 = vadd.f32 %v2752, %v2753
      %v2755 = vsel %vm2606, %v2700, 0.0
      %v2756 = vadd.f32 %v2754, %v2755
      %v2757 = vsel %vm2606, %v2701, 0.0
      %v2758 = vadd.f32 %v2756, %v2757
      %v2759 = vsel %vm2606, %v2702, 0.0
      %v2760 = vadd.f32 %v2758, %v2759
      %v2761 = vsel %vm2606, %v2703, 0.0
      %v2762 = vadd.f32 %v2760, %v2761
      %v2763 = vsel %vm2606, %v2704, 0.0
      %v2764 = vadd.f32 %v2762, %v2763
      %v2765 = vsel %vm2606, %v2705, 0.0
      %v2766 = vadd.f32 %v2764, %v2765
      %v2767 = vsel %vm2606, %v2706, 0.0
      %v2768 = vadd.f32 %v2766, %v2767
      %v2769 = vsel %vm2606, %v2707, 0.0
      %v2770 = vadd.f32 %v2768, %v2769
      %v2771 = vrot.slane %v2770, 4
      %v2772 = vadd.f32 %v2770, %v2771
      %v2773 = vrot.slane %v2772, 2
      %v2774 = vadd.f32 %v2772, %v2773
      %v2775 = vrot.slane %v2774, 1
      %v2776 = vadd.f32 %v2774, %v2775
      %vm2777 = vcmask 57344
      %2778 = vst.msk [vmem:[%s380] sm:$0x1] %vm2777, %v2675
      %2779 = vst.msk [vmem:[%s380 + $0x1] sm:$0x1] %vm2777, %v2776
      %2780 = vst.msk [vmem:[%s372] sm:$0xff] %vm2606, %v2448
      %2781 = vst.msk [vmem:[%s372 + $0x8] sm:$0xff] %vm2606, %v2453
      %2782 = vst.msk [vmem:[%s372 + $0x10] sm:$0xff] %vm2606, %v2458
      %2783 = vst.msk [vmem:[%s372 + $0x18] sm:$0xff] %vm2606, %v2463
      %2784 = vst.msk [vmem:[%s372 + $0x20] sm:$0xff] %vm2606, %v2468
      %2785 = vst.msk [vmem:[%s372 + $0x28] sm:$0xff] %vm2606, %v2473
      %2786 = vst.msk [vmem:[%s372 + $0x30] sm:$0xff] %vm2606, %v2478
      %2787 = vst.msk [vmem:[%s372 + $0x38] sm:$0xff] %vm2606, %v2483
      %2788 = vst.msk [vmem:[%s372 + $0x40] sm:$0xff] %vm2606, %v2488
      %2789 = vst.msk [vmem:[%s372 + $0x48] sm:$0xff] %vm2606, %v2493
      %2790 = vst.msk [vmem:[%s372 + $0x50] sm:$0xff] %vm2606, %v2498
      %2791 = vst.msk [vmem:[%s372 + $0x58] sm:$0xff] %vm2606, %v2503
      %2792 = vst.msk [vmem:[%s372 + $0x60] sm:$0xff] %vm2606, %v2508
      %2793 = vst.msk [vmem:[%s372 + $0x68] sm:$0xff] %vm2606, %v2513
      %2794 = vst.msk [vmem:[%s372 + $0x70] sm:$0xff] %vm2606, %v2518
      %2795 = vst.msk [vmem:[%s372 + $0x78] sm:$0xff] %vm2606, %v2523
      %2796 = vst.msk [vmem:[%s372 + $0x80] sm:$0xff] %vm2606, %v2528
      %2797 = vst.msk [vmem:[%s372 + $0x88] sm:$0xff] %vm2606, %v2533
      %2798 = vst.msk [vmem:[%s372 + $0x90] sm:$0xff] %vm2606, %v2538
      %2799 = vst.msk [vmem:[%s372 + $0x98] sm:$0xff] %vm2606, %v2543
      %2800 = vst.msk [vmem:[%s372 + $0xa0] sm:$0xff] %vm2606, %v2548
      %2801 = vst.msk [vmem:[%s372 + $0xa8] sm:$0xff] %vm2606, %v2553
      %2802 = vst.msk [vmem:[%s372 + $0xb0] sm:$0xff] %vm2606, %v2558
      %2803 = vst.msk [vmem:[%s372 + $0xb8] sm:$0xff] %vm2606, %v2563
      %2804 = vst.msk [vmem:[%s372 + $0xc0] sm:$0xff] %vm2606, %v2568
      %2805 = vst.msk [vmem:[%s372 + $0xc8] sm:$0xff] %vm2606, %v2573
      %2806 = vst.msk [vmem:[%s372 + $0xd0] sm:$0xff] %vm2606, %v2578
      %2807 = vst.msk [vmem:[%s372 + $0xd8] sm:$0xff] %vm2606, %v2583
      %2808 = vst.msk [vmem:[%s372 + $0xe0] sm:$0xff] %vm2606, %v2588
      %2809 = vst.msk [vmem:[%s372 + $0xe8] sm:$0xff] %vm2606, %v2593
      %2810 = vst.msk [vmem:[%s372 + $0xf0] sm:$0xff] %vm2606, %v2598
      %2811 = vst.msk [vmem:[%s372 + $0xf8] sm:$0xff] %vm2606, %v2603
      %s2812 = smul.u32 16, %s24
      %p2813 = scmp.lt.s32.totalorder %s23, 1
      %s2814 = scalar_select %p2813, %s23, 1
      %p2815 = scmp.lt.s32.totalorder %s2812, 15
      %s2816 = scalar_select %p2815, %s2812, 15
      %s2817 = smul.addr %s2816, 2
      %s2818 = smul.addr %s2814, 32
      %s2819 = sadd.s32 %s2817, %s2818
      %s2820 = smul.addr %s2819, 8
      %s2821 = scalar_lea.vmem %s6, %s2820
      %p2822 = scmp.lt.s32.totalorder %s23, 1
      %s2823 = scalar_select %p2822, %s23, 1
      %p2824 = scmp.lt.s32.totalorder %s24, 0
      %s2825 = scalar_select %p2824, %s24, 0
      %s2826 = sadd.s32 %s2825, %s2823
      %s2827 = smul.addr %s2826, 2
      %s2828 = scalar_lea.vmem %s7, %s2827
      // Predicated region
      $region45: #{double_conv_forward.4} parent=43 // pred_check
        %p2829 = pneg %p191
      $region46: #{double_conv_forward.4} parent=43 // pred_check_branch
        %2831 = sbr.rel (%p2829) target = $region48
      $region47: #{double_conv_forward.4} parent=43 // pred_region
        %s2832 = smul.u32 16, %s24
      $region48: #{double_conv_forward.4} parent=43 // pred_fallthru
        _
      // Predicated region
      $region49: #{double_conv_forward.4} parent=43 // pred_check
        %p2833 = pneg %p219
      $region50: #{double_conv_forward.4} parent=43 // pred_check_branch
        %2835 = sbr.rel (%p2833) target = $region52
      $region51: #{double_conv_forward.4} parent=43 // pred_region
        _
      $region52: #{double_conv_forward.4} parent=43 // pred_fallthru
        _
    $region44: #{double_conv_forward.4} parent=5 // pred_fallthru
      _
    %p2836 = scmp.le.s32.totalorder 2, %s14
    // Predicated region
    $region53: #{double_conv_forward.4} parent=5 // pred_check
      %p2837 = pneg %p2836
    $region54: #{double_conv_forward.4} parent=5 // pred_check_branch
      %2839 = sbr.rel (%p2837) target = $region56
    $region55: #{double_conv_forward.4} parent=5 // pred_region
      %s2840 = ssub.s32 %s14, 2
      // Predicated region
      $region57: #{double_conv_forward.4} parent=55 // pred_check
        %p2841 = pneg %p197
      $region58: #{double_conv_forward.4} parent=55 // pred_check_branch
        %2843 = sbr.rel (%p2841) target = $region60
      $region59: #{double_conv_forward.4} parent=55 // pred_region
        %s2844 = smul.u32 16, %s26
        %p2845 = scmp.lt.s32.totalorder %s25, 1
        %s2846 = scalar_select %p2845, %s25, 1
        %p2847 = scmp.lt.s32.totalorder %s2844, 15
        %s2848 = scalar_select %p2847, %s2844, 15
        %s2849 = smul.addr %s2848, 2
        %s2850 = smul.addr %s2846, 32
        %s2851 = sadd.s32 %s2849, %s2850
        %s2852 = smul.addr %s2851, 8
        %s2853 = scalar_lea.vmem %s6, %s2852
      $region60: #{double_conv_forward.4} parent=55 // pred_fallthru
        _
      // Predicated region
      $region61: #{double_conv_forward.4} parent=55 // pred_check
        %p2854 = pneg %p225
      $region62: #{double_conv_forward.4} parent=55 // pred_check_branch
        %2856 = sbr.rel (%p2854) target = $region64
      $region63: #{double_conv_forward.4} parent=55 // pred_region
        %p2857 = scmp.lt.s32.totalorder %s25, 1
        %s2858 = scalar_select %p2857, %s25, 1
        %p2859 = scmp.lt.s32.totalorder %s26, 0
        %s2860 = scalar_select %p2859, %s26, 0
        %s2861 = sadd.s32 %s2860, %s2858
        %s2862 = smul.addr %s2861, 2
        %s2863 = scalar_lea.vmem %s7, %s2862
      $region64: #{double_conv_forward.4} parent=55 // pred_fallthru
        _
    $region56: #{double_conv_forward.4} parent=5 // pred_fallthru
      _
  $region6: #{double_conv_forward.4} parent=0 // loop_footer
    %s18 = sadd.s32 1, %s14
  $region7: #{double_conv_forward.4} parent=0 // loop_footer_branch
    %13 = sbr.rel target = $region3
  $region8: #{double_conv_forward.4} parent=0 // loop_exit
    _

</llo_original>
